<compile_context>
chip_gen: v6e
topology: v6e:2x2x1
jax: 0.10.0
libtpu: 0.0.40
codegen_flags: <defaults>
</compile_context>

<pallas_src>
import math
from functools import partial

import jax
import jax.numpy as jnp
from jax import lax
from jax.experimental import pallas as pl
from jax.experimental.pallas import tpu as pltpu

# ---------------- configuration (small, consistent with the module) ----------------
IN_CH = 4          # in_channels
IMG = 16           # img_size (2D, spatial_dims=2 -> "unetr_2d")
PATCH = 4          # patch_size
HIDDEN = 32        # hidden_size
MLP_DIM = 64       # mlp_dim
NUM_LAYERS = 2     # num_layers
NUM_HEADS = 4      # num_heads
HEAD_DIM = HIDDEN // NUM_HEADS
N_PATCHES = (IMG // PATCH) ** 2
PATCH_DIM = IN_CH * PATCH * PATCH
EPS = 1e-5         # nn.LayerNorm default eps
NEG_INF = -1e30    # additive key mask for padded tokens
# dropout_rate = 0.0 -> dropout layers are identity and are omitted.


# ---------------- small helpers used inside the kernel ----------------
def _layernorm(x, w2d, b2d):
    # x: (T, H) float32, w2d/b2d: (1, H)
    mu = jnp.mean(x, axis=-1, keepdims=True)
    var = jnp.mean((x - mu) * (x - mu), axis=-1, keepdims=True)
    return (x - mu) * lax.rsqrt(var + EPS) * w2d + b2d


def _gelu_exact(x):
    # nn.GELU() default = exact erf formulation
    return 0.5 * x * (1.0 + lax.erf(x * (1.0 / math.sqrt(2.0))))


_LAYER_PARAM_ORDER = ("n1w", "n1b", "wqkv", "wo", "bo", "n2w", "n2b",
                      "w1", "b1", "w2", "b2")


# ---------------- fused kernel: patch-embed -> L transformer blocks -> final LN ----------------
def _make_fused_kernel(num_layers, num_heads, head_dim, hidden, bpg, n_pad):
    def kernel(patches_ref, base_ref, mask_ref, pw_ref,
               n1w_ref, n1b_ref, wqkv_ref, wo_ref, bo_ref,
               n2w_ref, n2b_ref, w1_ref, b1_ref, w2_ref, b2_ref,
               fnw_ref, fnb_ref,
               hid_ref, out_ref):
        H, hd, nh = hidden, head_dim, num_heads
        key_mask = mask_ref[...]                                  # (1, n_pad): 0 valid, -1e30 pad

        # patch embedding + pos + conv bias + modality tokens (all folded into `base`)
        x = jnp.dot(patches_ref[0], pw_ref[...],
                    preferred_element_type=jnp.float32) + base_ref[...]        # (T, H)

        for l in range(num_layers):                   # unrolled layer loop, weights resident
            # ----- self-attention branch: x + Wo(softmax(q k^T / sqrt(hd)) v) + bo -----
            xn = _layernorm(x, n1w_ref[l], n1b_ref[l])
            # one fused qkv matmul (q pre-scaled by 1/sqrt(hd) host-side)
            qkv = jnp.dot(xn, wqkv_ref[l], preferred_element_type=jnp.float32)   # (T, 3H)
            ctx_rows = []
            for b in range(bpg):                      # static loop over batch elems in this step
                r0 = b * n_pad
                heads = []
                for h in range(nh):                   # static loop; static lane slices
                    c0 = h * hd
                    q = qkv[r0:r0 + n_pad, c0:c0 + hd]
                    k = qkv[r0:r0 + n_pad, H + c0:H + c0 + hd]
                    v = qkv[r0:r0 + n_pad, 2 * H + c0:2 * H + c0 + hd]
                    s = jnp.einsum('qd,kd->qk', q, k,
                                   preferred_element_type=jnp.float32)           # (n_pad, n_pad)
                    s = s + key_mask                  # mask padded key columns
                    s = s - jnp.max(s, axis=-1, keepdims=True)
                    e = jnp.exp(s)
                    p = e * pl.reciprocal(jnp.sum(e, axis=-1, keepdims=True), approx=True)
                    heads.append(jnp.dot(p, v, preferred_element_type=jnp.float32))  # (n_pad, hd)
                ctx_rows.append(jnp.concatenate(heads, axis=-1))                 # (n_pad, H)
            ctx = ctx_rows[0] if bpg == 1 else jnp.concatenate(ctx_rows, axis=0)  # (T, H)
            # single merged output projection
            attn = jnp.dot(ctx, wo_ref[l], preferred_element_type=jnp.float32) + bo_ref[l]
            x = x + attn

            # ----- MLP branch: x + MLP(LN2(x)) -----
            xn2 = _layernorm(x, n2w_ref[l], n2b_ref[l])
            h1 = _gelu_exact(jnp.dot(xn2, w1_ref[l],
                                     preferred_element_type=jnp.float32) + b1_ref[l])
            x = x + jnp.dot(h1, w2_ref[l], preferred_element_type=jnp.float32) + b2_ref[l]

            hid_ref[l, 0] = x.astype(hid_ref.dtype)   # sublane-aligned (T, H) store

        out_ref[0] = _layernorm(x, fnw_ref[...], fnb_ref[...]).astype(out_ref.dtype)

    return kernel


def fused_vit_call(patches_g, base_t, key_mask, patch_w, layer_params, norm_w, norm_b,
                   bpg, n_pad):
    G, T, PD = patches_g.shape
    H = patch_w.shape[1]
    L = layer_params["wqkv"].shape[0]

    def _resident_spec(a):
        nd = a.ndim
        return pl.BlockSpec(a.shape, lambda g, _nd=nd: (0,) * _nd)

    in_specs = [
        pl.BlockSpec((1, T, PD), lambda g: (g, 0, 0)),    # one batch-group per grid step
        _resident_spec(base_t),
        _resident_spec(key_mask),
        _resident_spec(patch_w),
    ]
    arrays = [patches_g, base_t, key_mask, patch_w]
    for name in _LAYER_PARAM_ORDER:
        a = layer_params[name]
        in_specs.append(_resident_spec(a))
        arrays.append(a)
    in_specs += [_resident_spec(norm_w), _resident_spec(norm_b)]
    arrays += [norm_w, norm_b]

    out_shape = (
        jax.ShapeDtypeStruct((L, G, T, H), jnp.float32),  # per-layer hidden states
        jax.ShapeDtypeStruct((G, T, H), jnp.float32),     # final normed tokens
    )
    out_specs = (
        pl.BlockSpec((L, 1, T, H), lambda g: (0, g, 0, 0)),
        pl.BlockSpec((1, T, H), lambda g: (g, 0, 0)),
    )

    hid, out = pl.pallas_call(
        _make_fused_kernel(L, NUM_HEADS, HEAD_DIM, H, bpg, n_pad),
        out_shape=out_shape,
        grid=(G,),
        in_specs=in_specs,
        out_specs=out_specs,
        compiler_params=pltpu.CompilerParams(dimension_semantics=("parallel",)),
    )(*arrays)
    return hid, out


# ---------------- chip-aware batch-grouping (fold batch on single-TC chips) ----------------
def _batch_groups(B):
    """Grid size G: fold the whole batch into one grid step on single-TensorCore chips
    (v5e/v6e); keep a 2-way parallel batch grid on multi-TC chips (v7x / megacore)."""
    try:
        kind = jax.devices()[0].device_kind.lower()
    except Exception:
        kind = ""
    multi_tc = any(t in kind for t in ("v7", "7x", "v4", "v5p"))
    if multi_tc and B % 2 == 0:
        return 2
    return 1


# ---------------- glue: patch extraction (Conv2d(kernel=stride=patch) + flatten(2).T fold) ----
def extract_patches(x):
    # x: (B, C, H, W) NCHW -> (B, n_patches, C*p*p), patch flattened in (c, i, j) order
    B, C, Himg, Wimg = x.shape
    hp, wp = Himg // PATCH, Wimg // PATCH
    x = x.reshape(B, C, hp, PATCH, wp, PATCH)
    x = x.transpose(0, 2, 4, 1, 3, 5)          # (B, hp, wp, C, p, p)
    return x.reshape(B, hp * wp, C * PATCH * PATCH)


# ---------------- host-side weight stacking (free, under jit) ----------------
def _stack_layer_params(blocks):
    st = lambda name: jnp.stack([blk[name] for blk in blocks], axis=0)
    out = {name: st(name) for name in _LAYER_PARAM_ORDER}
    # fold the 1/sqrt(head_dim) attention scale into the q projection columns (cols 0:H)
    scale = 1.0 / math.sqrt(HEAD_DIM)
    out["wqkv"] = out["wqkv"].at[:, :, :HIDDEN].multiply(scale)
    return out


def _build_base(params, modality, info_mode):
    # Additive "base": patch rows get pos + conv bias, appended rows get raw modality tokens.
    pos_bias = params["pos"] + params["patch_b"]          # (N_PATCHES, H)
    if info_mode == "concat":
        tok = params["CT_token"] if modality == "CT" else params["MRI_token"]
        return jnp.concatenate([pos_bias, tok.reshape(1, HIDDEN)], axis=0), 1
    if info_mode == "concat2":
        if modality == "CT":
            ct, mri = params["CT_token"], params["no_MRI_token"]
        else:
            ct, mri = params["no_CT_token"], params["MRI_token"]
        return jnp.concatenate(
            [pos_bias, ct.reshape(1, HIDDEN), mri.reshape(1, HIDDEN)], axis=0), 2
    if info_mode == "add":
        tok = params["CT_token"] if modality == "CT" else params["MRI_token"]
        return pos_bias + tok.reshape(1, HIDDEN), 0
    raise ValueError(f"unknown info_mode {info_mode}")


# ---------------- parameter initialization (deterministic, synthetic) ----------------
def init_params(key):
    def nrm(k, shape, scale=0.02):
        return (scale * jax.random.normal(k, shape)).astype(jnp.float32)

    keys = jax.random.split(key, 2 + NUM_LAYERS)
    params = {}
    k0, k1 = jax.random.split(keys[0])
    params["patch_w"] = nrm(k0, (PATCH_DIM, HIDDEN))
    params["patch_b"] = jnp.zeros((1, HIDDEN), jnp.float32)
    params["pos"] = nrm(k1, (N_PATCHES, HIDDEN))

    blocks = []
    for i in range(NUM_LAYERS):
        kk = jax.random.split(keys[1 + i], 4)
        blocks.append(dict(
            n1w=jnp.ones((1, HIDDEN), jnp.float32), n1b=jnp.zeros((1, HIDDEN), jnp.float32),
            # qkv_bias=False.  Column layout [q(h0..h3) | k(h0..h3) | v(h0..h3)]
            wqkv=nrm(kk[0], (HIDDEN, 3 * HIDDEN)),
            wo=nrm(kk[1], (HIDDEN, HIDDEN)), bo=jnp.zeros((1, HIDDEN), jnp.float32),
            n2w=jnp.ones((1, HIDDEN), jnp.float32), n2b=jnp.zeros((1, HIDDEN), jnp.float32),
            w1=nrm(kk[2], (HIDDEN, MLP_DIM)), b1=jnp.zeros((1, MLP_DIM), jnp.float32),
            w2=nrm(kk[3], (MLP_DIM, HIDDEN)), b2=jnp.zeros((1, HIDDEN), jnp.float32),
        ))
    params["blocks"] = blocks
    params["norm_w"] = jnp.ones((1, HIDDEN), jnp.float32)
    params["norm_b"] = jnp.zeros((1, HIDDEN), jnp.float32)
    # modality tokens are zero-initialized nn.Parameters in the PyTorch module
    params["CT_token"] = jnp.zeros((1, 1, HIDDEN), jnp.float32)
    params["MRI_token"] = jnp.zeros((1, 1, HIDDEN), jnp.float32)
    params["no_CT_token"] = jnp.zeros((1, 1, HIDDEN), jnp.float32)
    params["no_MRI_token"] = jnp.zeros((1, 1, HIDDEN), jnp.float32)
    return params


# ---------------- full forward (mirrors ViT_modality.forward) ----------------
@partial(jax.jit, static_argnums=(2, 3))
def vit_modality_forward(params, x, modality, info_mode):
    B = x.shape[0]
    patches = extract_patches(x)                                   # (B, N_PATCHES, PATCH_DIM)
    base, n_extra = _build_base(params, modality, info_mode)       # (n_tok, H)
    n_tok = N_PATCHES + n_extra
    n_pad = -(-n_tok // 8) * 8                                     # sublane-align token count

    # zero-pad patch rows for appended modality tokens + alignment; pad base rows with zeros
    patches = jnp.pad(patches, ((0, 0), (0, n_pad - N_PATCHES), (0, 0)))
    base = jnp.pad(base, ((0, n_pad - n_tok), (0, 0)))
    key_mask = jnp.where(jnp.arange(n_pad) < n_tok, 0.0, NEG_INF).astype(jnp.float32)[None, :]

    G = _batch_groups(B)                                           # grid size (static)
    bpg = B // G                                                   # batch elems folded per step
    patches_g = patches.reshape(G, bpg * n_pad, PATCH_DIM)
    base_t = jnp.tile(base, (bpg, 1))                              # (bpg*n_pad, H)

    layer_params = _stack_layer_params(params["blocks"])
    hid, out = fused_vit_call(patches_g, base_t, key_mask, params["patch_w"],
                              layer_params, params["norm_w"], params["norm_b"],
                              bpg, n_pad)

    hid = hid.reshape(NUM_LAYERS, B, n_pad, HIDDEN)
    out = out.reshape(B, n_pad, HIDDEN)

    hidden_states_out = [hid[l, :, :N_PATCHES, :] for l in range(NUM_LAYERS)]
    x_out = out[:, :N_PATCHES, :]
    if info_mode == "concat":
        modality_out = out[:, N_PATCHES, :]
    elif info_mode == "concat2":
        modality_out = out[:, N_PATCHES:N_PATCHES + 2, :]
    else:  # "add"
        modality_out = None
    return x_out, hidden_states_out, modality_out


if __name__ == "__main__":
    key = jax.random.PRNGKey(0)
    pkey, xkey = jax.random.split(key)
    params = init_params(pkey)
    x = jax.random.normal(xkey, (2, IN_CH, IMG, IMG), dtype=jnp.float32)

    x_out, hidden_states, modality_out = vit_modality_forward(params, x, "CT", "concat")

    jax.block_until_ready(x_out)
    jax.block_until_ready(modality_out)
    for h in hidden_states:
        jax.block_until_ready(h)

    assert x_out.shape == (2, N_PATCHES, HIDDEN)
    assert modality_out.shape == (2, HIDDEN)
    assert len(hidden_states) == NUM_LAYERS
    assert all(h.shape == (2, N_PATCHES, HIDDEN) for h in hidden_states)
    assert bool(jnp.all(jnp.isfinite(x_out)))
    print("KERNEL_OK")
</pallas_src>

<mosaic_0001>
module attributes {stable_mosaic.version = 11 : i64} {
  func.func @kernel(%arg0: i32, %arg1: memref<1x48x64xf32, #tpu.memory_space<vmem>>, %arg2: memref<48x32xf32, #tpu.memory_space<vmem>>, %arg3: memref<1x24xf32, #tpu.memory_space<vmem>>, %arg4: memref<64x32xf32, #tpu.memory_space<vmem>>, %arg5: memref<2x1x32xf32, #tpu.memory_space<vmem>>, %arg6: memref<2x1x32xf32, #tpu.memory_space<vmem>>, %arg7: memref<2x32x96xf32, #tpu.memory_space<vmem>>, %arg8: memref<2x32x32xf32, #tpu.memory_space<vmem>>, %arg9: memref<2x1x32xf32, #tpu.memory_space<vmem>>, %arg10: memref<2x1x32xf32, #tpu.memory_space<vmem>>, %arg11: memref<2x1x32xf32, #tpu.memory_space<vmem>>, %arg12: memref<2x32x64xf32, #tpu.memory_space<vmem>>, %arg13: memref<2x1x64xf32, #tpu.memory_space<vmem>>, %arg14: memref<2x64x32xf32, #tpu.memory_space<vmem>>, %arg15: memref<2x1x32xf32, #tpu.memory_space<vmem>>, %arg16: memref<1x32xf32, #tpu.memory_space<vmem>>, %arg17: memref<1x32xf32, #tpu.memory_space<vmem>>, %arg18: memref<2x1x48x32xf32, #tpu.memory_space<vmem>>, %arg19: memref<1x48x32xf32, #tpu.memory_space<vmem>>) attributes {dimension_semantics = [#tpu.dimension_semantics<parallel>], iteration_bounds = array<i64: 1>, scalar_prefetch = 0 : i64, scratch_operands = 0 : i64, tpu.core_type = #tpu.core_type<tc>, window_params = [{transform_indices = @transform_0, window_bounds = array<i64: 1, 48, 64>}, {pipeline_mode = #tpu.pipeline_mode<synchronous>, transform_indices = @transform_1, window_bounds = array<i64: 48, 32>}, {pipeline_mode = #tpu.pipeline_mode<synchronous>, transform_indices = @transform_2, window_bounds = array<i64: 1, 24>}, {pipeline_mode = #tpu.pipeline_mode<synchronous>, transform_indices = @transform_3, window_bounds = array<i64: 64, 32>}, {pipeline_mode = #tpu.pipeline_mode<synchronous>, transform_indices = @transform_4, window_bounds = array<i64: 2, 1, 32>}, {pipeline_mode = #tpu.pipeline_mode<synchronous>, transform_indices = @transform_5, window_bounds = array<i64: 2, 1, 32>}, {pipeline_mode = #tpu.pipeline_mode<synchronous>, transform_indices = @transform_6, window_bounds = array<i64: 2, 32, 96>}, {pipeline_mode = #tpu.pipeline_mode<synchronous>, transform_indices = @transform_7, window_bounds = array<i64: 2, 32, 32>}, {pipeline_mode = #tpu.pipeline_mode<synchronous>, transform_indices = @transform_8, window_bounds = array<i64: 2, 1, 32>}, {pipeline_mode = #tpu.pipeline_mode<synchronous>, transform_indices = @transform_9, window_bounds = array<i64: 2, 1, 32>}, {pipeline_mode = #tpu.pipeline_mode<synchronous>, transform_indices = @transform_10, window_bounds = array<i64: 2, 1, 32>}, {pipeline_mode = #tpu.pipeline_mode<synchronous>, transform_indices = @transform_11, window_bounds = array<i64: 2, 32, 64>}, {pipeline_mode = #tpu.pipeline_mode<synchronous>, transform_indices = @transform_12, window_bounds = array<i64: 2, 1, 64>}, {pipeline_mode = #tpu.pipeline_mode<synchronous>, transform_indices = @transform_13, window_bounds = array<i64: 2, 64, 32>}, {pipeline_mode = #tpu.pipeline_mode<synchronous>, transform_indices = @transform_14, window_bounds = array<i64: 2, 1, 32>}, {pipeline_mode = #tpu.pipeline_mode<synchronous>, transform_indices = @transform_15, window_bounds = array<i64: 1, 32>}, {pipeline_mode = #tpu.pipeline_mode<synchronous>, transform_indices = @transform_16, window_bounds = array<i64: 1, 32>}, {transform_indices = @transform_17, window_bounds = array<i64: 2, 1, 48, 32>}, {transform_indices = @transform_18, window_bounds = array<i64: 1, 48, 32>}]} {
    %c0 = arith.constant 0 : index
    %c0_0 = arith.constant 0 : index
    %0 = vector.load %arg3[%c0, %c0_0] : memref<1x24xf32, #tpu.memory_space<vmem>>, vector<1x24xf32>
    %c0_1 = arith.constant 0 : index
    %c0_2 = arith.constant 0 : index
    %c0_3 = arith.constant 0 : index
    %1 = vector.load %arg1[%c0_1, %c0_2, %c0_3] : memref<1x48x64xf32, #tpu.memory_space<vmem>>, vector<1x48x64xf32>
    %2 = vector.shape_cast %1 : vector<1x48x64xf32> to vector<48x64xf32>
    %c0_4 = arith.constant 0 : index
    %c0_5 = arith.constant 0 : index
    %3 = vector.load %arg4[%c0_4, %c0_5] : memref<64x32xf32, #tpu.memory_space<vmem>>, vector<64x32xf32>
    %cst = arith.constant dense<0.000000e+00> : vector<48x32xf32>
    %4 = tpu.matmul %2, %3, %cst {dimension_numbers = #tpu.dot_dimension_numbers<[1], [0], [0], [1], [0, 0, 1, 1], [], []>} : vector<48x64xf32>, vector<64x32xf32>, vector<48x32xf32> -> vector<48x32xf32>
    %c0_6 = arith.constant 0 : index
    %c0_7 = arith.constant 0 : index
    %5 = vector.load %arg2[%c0_6, %c0_7] : memref<48x32xf32, #tpu.memory_space<vmem>>, vector<48x32xf32>
    %6 = arith.addf %4, %5 : vector<48x32xf32>
    %c0_8 = arith.constant 0 : index
    %c0_9 = arith.constant 0 : index
    %c0_10 = arith.constant 0 : index
    %7 = vector.load %arg5[%c0_8, %c0_9, %c0_10] : memref<2x1x32xf32, #tpu.memory_space<vmem>>, vector<1x1x32xf32>
    %8 = vector.shape_cast %7 : vector<1x1x32xf32> to vector<1x32xf32>
    %c0_11 = arith.constant 0 : index
    %c0_12 = arith.constant 0 : index
    %c0_13 = arith.constant 0 : index
    %9 = vector.load %arg6[%c0_11, %c0_12, %c0_13] : memref<2x1x32xf32, #tpu.memory_space<vmem>>, vector<1x1x32xf32>
    %10 = vector.shape_cast %9 : vector<1x1x32xf32> to vector<1x32xf32>
    %cst_14 = arith.constant dense<0.000000e+00> : vector<48xf32>
    %11 = vector.multi_reduction <add>, %6, %cst_14 [1] : vector<48x32xf32> to vector<48xf32>
    %12 = vector.shape_cast %11 : vector<48xf32> to vector<48x1xf32>
    %cst_15 = arith.constant 3.200000e+01 : f32
    %13 = vector.broadcast %cst_15 : f32 to vector<48x1xf32>
    %14 = arith.divf %12, %13 : vector<48x1xf32>
    %15 = vector.broadcast %14 : vector<48x1xf32> to vector<48x32xf32>
    %16 = arith.subf %6, %15 : vector<48x32xf32>
    %17 = vector.broadcast %14 : vector<48x1xf32> to vector<48x32xf32>
    %18 = arith.subf %6, %17 : vector<48x32xf32>
    %19 = arith.mulf %16, %18 : vector<48x32xf32>
    %cst_16 = arith.constant dense<0.000000e+00> : vector<48xf32>
    %20 = vector.multi_reduction <add>, %19, %cst_16 [1] : vector<48x32xf32> to vector<48xf32>
    %21 = vector.shape_cast %20 : vector<48xf32> to vector<48x1xf32>
    %cst_17 = arith.constant 3.200000e+01 : f32
    %22 = vector.broadcast %cst_17 : f32 to vector<48x1xf32>
    %23 = arith.divf %21, %22 : vector<48x1xf32>
    %24 = vector.broadcast %14 : vector<48x1xf32> to vector<48x32xf32>
    %25 = arith.subf %6, %24 : vector<48x32xf32>
    %cst_18 = arith.constant 9.99999974E-6 : f32
    %26 = vector.broadcast %cst_18 : f32 to vector<48x1xf32>
    %27 = arith.addf %23, %26 : vector<48x1xf32>
    %28 = math.rsqrt %27 : vector<48x1xf32>
    %29 = vector.broadcast %28 : vector<48x1xf32> to vector<48x32xf32>
    %30 = arith.mulf %25, %29 : vector<48x32xf32>
    %31 = vector.broadcast %8 : vector<1x32xf32> to vector<48x32xf32>
    %32 = arith.mulf %30, %31 : vector<48x32xf32>
    %33 = vector.broadcast %10 : vector<1x32xf32> to vector<48x32xf32>
    %34 = arith.addf %32, %33 : vector<48x32xf32>
    %c0_19 = arith.constant 0 : index
    %c0_20 = arith.constant 0 : index
    %c0_21 = arith.constant 0 : index
    %35 = vector.load %arg7[%c0_19, %c0_20, %c0_21] : memref<2x32x96xf32, #tpu.memory_space<vmem>>, vector<1x32x96xf32>
    %36 = vector.shape_cast %35 : vector<1x32x96xf32> to vector<32x96xf32>
    %cst_22 = arith.constant dense<0.000000e+00> : vector<48x96xf32>
    %37 = tpu.matmul %34, %36, %cst_22 {dimension_numbers = #tpu.dot_dimension_numbers<[1], [0], [0], [1], [0, 0, 1, 1], [], []>} : vector<48x32xf32>, vector<32x96xf32>, vector<48x96xf32> -> vector<48x96xf32>
    %38 = vector.extract_strided_slice %37 {offsets = [0, 0], sizes = [24, 8], strides = [1, 1]} : vector<48x96xf32> to vector<24x8xf32>
    %39 = vector.extract_strided_slice %37 {offsets = [0, 32], sizes = [24, 8], strides = [1, 1]} : vector<48x96xf32> to vector<24x8xf32>
    %40 = vector.extract_strided_slice %37 {offsets = [0, 64], sizes = [24, 8], strides = [1, 1]} : vector<48x96xf32> to vector<24x8xf32>
    "tpu.trace_start"() <{level = 10 : i32, message = "qd,kd->qk"}> : () -> ()
    %cst_23 = arith.constant dense<0.000000e+00> : vector<24x24xf32>
    %41 = tpu.matmul %38, %39, %cst_23 {dimension_numbers = #tpu.dot_dimension_numbers<[1], [1], [0], [0], [0, 0, 1, 0], [], []>} : vector<24x8xf32>, vector<24x8xf32>, vector<24x24xf32> -> vector<24x24xf32>
    "tpu.trace_stop"() : () -> ()
    %42 = vector.broadcast %0 : vector<1x24xf32> to vector<24x24xf32>
    %43 = arith.addf %41, %42 : vector<24x24xf32>
    %cst_24 = arith.constant dense<0xFF800000> : vector<24xf32>
    %44 = vector.multi_reduction <maximumf>, %43, %cst_24 [1] : vector<24x24xf32> to vector<24xf32>
    %45 = vector.shape_cast %44 : vector<24xf32> to vector<24x1xf32>
    %46 = vector.broadcast %45 : vector<24x1xf32> to vector<24x24xf32>
    %47 = arith.subf %43, %46 : vector<24x24xf32>
    %48 = math.exp %47 : vector<24x24xf32>
    %cst_25 = arith.constant dense<0.000000e+00> : vector<24xf32>
    %49 = vector.multi_reduction <add>, %48, %cst_25 [1] : vector<24x24xf32> to vector<24xf32>
    %50 = vector.shape_cast %49 : vector<24xf32> to vector<24x1xf32>
    %51 = tpu.reciprocal %50 {approx = true} : vector<24x1xf32> -> vector<24x1xf32>
    %52 = vector.broadcast %51 : vector<24x1xf32> to vector<24x24xf32>
    %53 = arith.mulf %48, %52 : vector<24x24xf32>
    %cst_26 = arith.constant dense<0.000000e+00> : vector<24x8xf32>
    %54 = tpu.matmul %53, %40, %cst_26 {dimension_numbers = #tpu.dot_dimension_numbers<[1], [0], [0], [1], [0, 0, 1, 1], [], []>} : vector<24x24xf32>, vector<24x8xf32>, vector<24x8xf32> -> vector<24x8xf32>
    %55 = vector.extract_strided_slice %37 {offsets = [0, 8], sizes = [24, 8], strides = [1, 1]} : vector<48x96xf32> to vector<24x8xf32>
    %56 = vector.extract_strided_slice %37 {offsets = [0, 40], sizes = [24, 8], strides = [1, 1]} : vector<48x96xf32> to vector<24x8xf32>
    %57 = vector.extract_strided_slice %37 {offsets = [0, 72], sizes = [24, 8], strides = [1, 1]} : vector<48x96xf32> to vector<24x8xf32>
    "tpu.trace_start"() <{level = 10 : i32, message = "qd,kd->qk"}> : () -> ()
    %cst_27 = arith.constant dense<0.000000e+00> : vector<24x24xf32>
    %58 = tpu.matmul %55, %56, %cst_27 {dimension_numbers = #tpu.dot_dimension_numbers<[1], [1], [0], [0], [0, 0, 1, 0], [], []>} : vector<24x8xf32>, vector<24x8xf32>, vector<24x24xf32> -> vector<24x24xf32>
    "tpu.trace_stop"() : () -> ()
    %59 = vector.broadcast %0 : vector<1x24xf32> to vector<24x24xf32>
    %60 = arith.addf %58, %59 : vector<24x24xf32>
    %cst_28 = arith.constant dense<0xFF800000> : vector<24xf32>
    %61 = vector.multi_reduction <maximumf>, %60, %cst_28 [1] : vector<24x24xf32> to vector<24xf32>
    %62 = vector.shape_cast %61 : vector<24xf32> to vector<24x1xf32>
    %63 = vector.broadcast %62 : vector<24x1xf32> to vector<24x24xf32>
    %64 = arith.subf %60, %63 : vector<24x24xf32>
    %65 = math.exp %64 : vector<24x24xf32>
    %cst_29 = arith.constant dense<0.000000e+00> : vector<24xf32>
    %66 = vector.multi_reduction <add>, %65, %cst_29 [1] : vector<24x24xf32> to vector<24xf32>
    %67 = vector.shape_cast %66 : vector<24xf32> to vector<24x1xf32>
    %68 = tpu.reciprocal %67 {approx = true} : vector<24x1xf32> -> vector<24x1xf32>
    %69 = vector.broadcast %68 : vector<24x1xf32> to vector<24x24xf32>
    %70 = arith.mulf %65, %69 : vector<24x24xf32>
    %cst_30 = arith.constant dense<0.000000e+00> : vector<24x8xf32>
    %71 = tpu.matmul %70, %57, %cst_30 {dimension_numbers = #tpu.dot_dimension_numbers<[1], [0], [0], [1], [0, 0, 1, 1], [], []>} : vector<24x24xf32>, vector<24x8xf32>, vector<24x8xf32> -> vector<24x8xf32>
    %72 = vector.extract_strided_slice %37 {offsets = [0, 16], sizes = [24, 8], strides = [1, 1]} : vector<48x96xf32> to vector<24x8xf32>
    %73 = vector.extract_strided_slice %37 {offsets = [0, 48], sizes = [24, 8], strides = [1, 1]} : vector<48x96xf32> to vector<24x8xf32>
    %74 = vector.extract_strided_slice %37 {offsets = [0, 80], sizes = [24, 8], strides = [1, 1]} : vector<48x96xf32> to vector<24x8xf32>
    "tpu.trace_start"() <{level = 10 : i32, message = "qd,kd->qk"}> : () -> ()
    %cst_31 = arith.constant dense<0.000000e+00> : vector<24x24xf32>
    %75 = tpu.matmul %72, %73, %cst_31 {dimension_numbers = #tpu.dot_dimension_numbers<[1], [1], [0], [0], [0, 0, 1, 0], [], []>} : vector<24x8xf32>, vector<24x8xf32>, vector<24x24xf32> -> vector<24x24xf32>
    "tpu.trace_stop"() : () -> ()
    %76 = vector.broadcast %0 : vector<1x24xf32> to vector<24x24xf32>
    %77 = arith.addf %75, %76 : vector<24x24xf32>
    %cst_32 = arith.constant dense<0xFF800000> : vector<24xf32>
    %78 = vector.multi_reduction <maximumf>, %77, %cst_32 [1] : vector<24x24xf32> to vector<24xf32>
    %79 = vector.shape_cast %78 : vector<24xf32> to vector<24x1xf32>
    %80 = vector.broadcast %79 : vector<24x1xf32> to vector<24x24xf32>
    %81 = arith.subf %77, %80 : vector<24x24xf32>
    %82 = math.exp %81 : vector<24x24xf32>
    %cst_33 = arith.constant dense<0.000000e+00> : vector<24xf32>
    %83 = vector.multi_reduction <add>, %82, %cst_33 [1] : vector<24x24xf32> to vector<24xf32>
    %84 = vector.shape_cast %83 : vector<24xf32> to vector<24x1xf32>
    %85 = tpu.reciprocal %84 {approx = true} : vector<24x1xf32> -> vector<24x1xf32>
    %86 = vector.broadcast %85 : vector<24x1xf32> to vector<24x24xf32>
    %87 = arith.mulf %82, %86 : vector<24x24xf32>
    %cst_34 = arith.constant dense<0.000000e+00> : vector<24x8xf32>
    %88 = tpu.matmul %87, %74, %cst_34 {dimension_numbers = #tpu.dot_dimension_numbers<[1], [0], [0], [1], [0, 0, 1, 1], [], []>} : vector<24x24xf32>, vector<24x8xf32>, vector<24x8xf32> -> vector<24x8xf32>
    %89 = vector.extract_strided_slice %37 {offsets = [0, 24], sizes = [24, 8], strides = [1, 1]} : vector<48x96xf32> to vector<24x8xf32>
    %90 = vector.extract_strided_slice %37 {offsets = [0, 56], sizes = [24, 8], strides = [1, 1]} : vector<48x96xf32> to vector<24x8xf32>
    %91 = vector.extract_strided_slice %37 {offsets = [0, 88], sizes = [24, 8], strides = [1, 1]} : vector<48x96xf32> to vector<24x8xf32>
    "tpu.trace_start"() <{level = 10 : i32, message = "qd,kd->qk"}> : () -> ()
    %cst_35 = arith.constant dense<0.000000e+00> : vector<24x24xf32>
    %92 = tpu.matmul %89, %90, %cst_35 {dimension_numbers = #tpu.dot_dimension_numbers<[1], [1], [0], [0], [0, 0, 1, 0], [], []>} : vector<24x8xf32>, vector<24x8xf32>, vector<24x24xf32> -> vector<24x24xf32>
    "tpu.trace_stop"() : () -> ()
    %93 = vector.broadcast %0 : vector<1x24xf32> to vector<24x24xf32>
    %94 = arith.addf %92, %93 : vector<24x24xf32>
    %cst_36 = arith.constant dense<0xFF800000> : vector<24xf32>
    %95 = vector.multi_reduction <maximumf>, %94, %cst_36 [1] : vector<24x24xf32> to vector<24xf32>
    %96 = vector.shape_cast %95 : vector<24xf32> to vector<24x1xf32>
    %97 = vector.broadcast %96 : vector<24x1xf32> to vector<24x24xf32>
    %98 = arith.subf %94, %97 : vector<24x24xf32>
    %99 = math.exp %98 : vector<24x24xf32>
    %cst_37 = arith.constant dense<0.000000e+00> : vector<24xf32>
    %100 = vector.multi_reduction <add>, %99, %cst_37 [1] : vector<24x24xf32> to vector<24xf32>
    %101 = vector.shape_cast %100 : vector<24xf32> to vector<24x1xf32>
    %102 = tpu.reciprocal %101 {approx = true} : vector<24x1xf32> -> vector<24x1xf32>
    %103 = vector.broadcast %102 : vector<24x1xf32> to vector<24x24xf32>
    %104 = arith.mulf %99, %103 : vector<24x24xf32>
    %cst_38 = arith.constant dense<0.000000e+00> : vector<24x8xf32>
    %105 = tpu.matmul %104, %91, %cst_38 {dimension_numbers = #tpu.dot_dimension_numbers<[1], [0], [0], [1], [0, 0, 1, 1], [], []>} : vector<24x24xf32>, vector<24x8xf32>, vector<24x8xf32> -> vector<24x8xf32>
    %106 = tpu.concatenate %54, %71, %88, %105 in 1 : vector<24x8xf32>, vector<24x8xf32>, vector<24x8xf32>, vector<24x8xf32> -> vector<24x32xf32>
    %107 = vector.extract_strided_slice %37 {offsets = [24, 0], sizes = [24, 8], strides = [1, 1]} : vector<48x96xf32> to vector<24x8xf32>
    %108 = vector.extract_strided_slice %37 {offsets = [24, 32], sizes = [24, 8], strides = [1, 1]} : vector<48x96xf32> to vector<24x8xf32>
    %109 = vector.extract_strided_slice %37 {offsets = [24, 64], sizes = [24, 8], strides = [1, 1]} : vector<48x96xf32> to vector<24x8xf32>
    "tpu.trace_start"() <{level = 10 : i32, message = "qd,kd->qk"}> : () -> ()
    %cst_39 = arith.constant dense<0.000000e+00> : vector<24x24xf32>
    %110 = tpu.matmul %107, %108, %cst_39 {dimension_numbers = #tpu.dot_dimension_numbers<[1], [1], [0], [0], [0, 0, 1, 0], [], []>} : vector<24x8xf32>, vector<24x8xf32>, vector<24x24xf32> -> vector<24x24xf32>
    "tpu.trace_stop"() : () -> ()
    %111 = vector.broadcast %0 : vector<1x24xf32> to vector<24x24xf32>
    %112 = arith.addf %110, %111 : vector<24x24xf32>
    %cst_40 = arith.constant dense<0xFF800000> : vector<24xf32>
    %113 = vector.multi_reduction <maximumf>, %112, %cst_40 [1] : vector<24x24xf32> to vector<24xf32>
    %114 = vector.shape_cast %113 : vector<24xf32> to vector<24x1xf32>
    %115 = vector.broadcast %114 : vector<24x1xf32> to vector<24x24xf32>
    %116 = arith.subf %112, %115 : vector<24x24xf32>
    %117 = math.exp %116 : vector<24x24xf32>
    %cst_41 = arith.constant dense<0.000000e+00> : vector<24xf32>
    %118 = vector.multi_reduction <add>, %117, %cst_41 [1] : vector<24x24xf32> to vector<24xf32>
    %119 = vector.shape_cast %118 : vector<24xf32> to vector<24x1xf32>
    %120 = tpu.reciprocal %119 {approx = true} : vector<24x1xf32> -> vector<24x1xf32>
    %121 = vector.broadcast %120 : vector<24x1xf32> to vector<24x24xf32>
    %122 = arith.mulf %117, %121 : vector<24x24xf32>
    %cst_42 = arith.constant dense<0.000000e+00> : vector<24x8xf32>
    %123 = tpu.matmul %122, %109, %cst_42 {dimension_numbers = #tpu.dot_dimension_numbers<[1], [0], [0], [1], [0, 0, 1, 1], [], []>} : vector<24x24xf32>, vector<24x8xf32>, vector<24x8xf32> -> vector<24x8xf32>
    %124 = vector.extract_strided_slice %37 {offsets = [24, 8], sizes = [24, 8], strides = [1, 1]} : vector<48x96xf32> to vector<24x8xf32>
    %125 = vector.extract_strided_slice %37 {offsets = [24, 40], sizes = [24, 8], strides = [1, 1]} : vector<48x96xf32> to vector<24x8xf32>
    %126 = vector.extract_strided_slice %37 {offsets = [24, 72], sizes = [24, 8], strides = [1, 1]} : vector<48x96xf32> to vector<24x8xf32>
    "tpu.trace_start"() <{level = 10 : i32, message = "qd,kd->qk"}> : () -> ()
    %cst_43 = arith.constant dense<0.000000e+00> : vector<24x24xf32>
    %127 = tpu.matmul %124, %125, %cst_43 {dimension_numbers = #tpu.dot_dimension_numbers<[1], [1], [0], [0], [0, 0, 1, 0], [], []>} : vector<24x8xf32>, vector<24x8xf32>, vector<24x24xf32> -> vector<24x24xf32>
    "tpu.trace_stop"() : () -> ()
    %128 = vector.broadcast %0 : vector<1x24xf32> to vector<24x24xf32>
    %129 = arith.addf %127, %128 : vector<24x24xf32>
    %cst_44 = arith.constant dense<0xFF800000> : vector<24xf32>
    %130 = vector.multi_reduction <maximumf>, %129, %cst_44 [1] : vector<24x24xf32> to vector<24xf32>
    %131 = vector.shape_cast %130 : vector<24xf32> to vector<24x1xf32>
    %132 = vector.broadcast %131 : vector<24x1xf32> to vector<24x24xf32>
    %133 = arith.subf %129, %132 : vector<24x24xf32>
    %134 = math.exp %133 : vector<24x24xf32>
    %cst_45 = arith.constant dense<0.000000e+00> : vector<24xf32>
    %135 = vector.multi_reduction <add>, %134, %cst_45 [1] : vector<24x24xf32> to vector<24xf32>
    %136 = vector.shape_cast %135 : vector<24xf32> to vector<24x1xf32>
    %137 = tpu.reciprocal %136 {approx = true} : vector<24x1xf32> -> vector<24x1xf32>
    %138 = vector.broadcast %137 : vector<24x1xf32> to vector<24x24xf32>
    %139 = arith.mulf %134, %138 : vector<24x24xf32>
    %cst_46 = arith.constant dense<0.000000e+00> : vector<24x8xf32>
    %140 = tpu.matmul %139, %126, %cst_46 {dimension_numbers = #tpu.dot_dimension_numbers<[1], [0], [0], [1], [0, 0, 1, 1], [], []>} : vector<24x24xf32>, vector<24x8xf32>, vector<24x8xf32> -> vector<24x8xf32>
    %141 = vector.extract_strided_slice %37 {offsets = [24, 16], sizes = [24, 8], strides = [1, 1]} : vector<48x96xf32> to vector<24x8xf32>
    %142 = vector.extract_strided_slice %37 {offsets = [24, 48], sizes = [24, 8], strides = [1, 1]} : vector<48x96xf32> to vector<24x8xf32>
    %143 = vector.extract_strided_slice %37 {offsets = [24, 80], sizes = [24, 8], strides = [1, 1]} : vector<48x96xf32> to vector<24x8xf32>
    "tpu.trace_start"() <{level = 10 : i32, message = "qd,kd->qk"}> : () -> ()
    %cst_47 = arith.constant dense<0.000000e+00> : vector<24x24xf32>
    %144 = tpu.matmul %141, %142, %cst_47 {dimension_numbers = #tpu.dot_dimension_numbers<[1], [1], [0], [0], [0, 0, 1, 0], [], []>} : vector<24x8xf32>, vector<24x8xf32>, vector<24x24xf32> -> vector<24x24xf32>
    "tpu.trace_stop"() : () -> ()
    %145 = vector.broadcast %0 : vector<1x24xf32> to vector<24x24xf32>
    %146 = arith.addf %144, %145 : vector<24x24xf32>
    %cst_48 = arith.constant dense<0xFF800000> : vector<24xf32>
    %147 = vector.multi_reduction <maximumf>, %146, %cst_48 [1] : vector<24x24xf32> to vector<24xf32>
    %148 = vector.shape_cast %147 : vector<24xf32> to vector<24x1xf32>
    %149 = vector.broadcast %148 : vector<24x1xf32> to vector<24x24xf32>
    %150 = arith.subf %146, %149 : vector<24x24xf32>
    %151 = math.exp %150 : vector<24x24xf32>
    %cst_49 = arith.constant dense<0.000000e+00> : vector<24xf32>
    %152 = vector.multi_reduction <add>, %151, %cst_49 [1] : vector<24x24xf32> to vector<24xf32>
    %153 = vector.shape_cast %152 : vector<24xf32> to vector<24x1xf32>
    %154 = tpu.reciprocal %153 {approx = true} : vector<24x1xf32> -> vector<24x1xf32>
    %155 = vector.broadcast %154 : vector<24x1xf32> to vector<24x24xf32>
    %156 = arith.mulf %151, %155 : vector<24x24xf32>
    %cst_50 = arith.constant dense<0.000000e+00> : vector<24x8xf32>
    %157 = tpu.matmul %156, %143, %cst_50 {dimension_numbers = #tpu.dot_dimension_numbers<[1], [0], [0], [1], [0, 0, 1, 1], [], []>} : vector<24x24xf32>, vector<24x8xf32>, vector<24x8xf32> -> vector<24x8xf32>
    %158 = vector.extract_strided_slice %37 {offsets = [24, 24], sizes = [24, 8], strides = [1, 1]} : vector<48x96xf32> to vector<24x8xf32>
    %159 = vector.extract_strided_slice %37 {offsets = [24, 56], sizes = [24, 8], strides = [1, 1]} : vector<48x96xf32> to vector<24x8xf32>
    %160 = vector.extract_strided_slice %37 {offsets = [24, 88], sizes = [24, 8], strides = [1, 1]} : vector<48x96xf32> to vector<24x8xf32>
    "tpu.trace_start"() <{level = 10 : i32, message = "qd,kd->qk"}> : () -> ()
    %cst_51 = arith.constant dense<0.000000e+00> : vector<24x24xf32>
    %161 = tpu.matmul %158, %159, %cst_51 {dimension_numbers = #tpu.dot_dimension_numbers<[1], [1], [0], [0], [0, 0, 1, 0], [], []>} : vector<24x8xf32>, vector<24x8xf32>, vector<24x24xf32> -> vector<24x24xf32>
    "tpu.trace_stop"() : () -> ()
    %162 = vector.broadcast %0 : vector<1x24xf32> to vector<24x24xf32>
    %163 = arith.addf %161, %162 : vector<24x24xf32>
    %cst_52 = arith.constant dense<0xFF800000> : vector<24xf32>
    %164 = vector.multi_reduction <maximumf>, %163, %cst_52 [1] : vector<24x24xf32> to vector<24xf32>
    %165 = vector.shape_cast %164 : vector<24xf32> to vector<24x1xf32>
    %166 = vector.broadcast %165 : vector<24x1xf32> to vector<24x24xf32>
    %167 = arith.subf %163, %166 : vector<24x24xf32>
    %168 = math.exp %167 : vector<24x24xf32>
    %cst_53 = arith.constant dense<0.000000e+00> : vector<24xf32>
    %169 = vector.multi_reduction <add>, %168, %cst_53 [1] : vector<24x24xf32> to vector<24xf32>
    %170 = vector.shape_cast %169 : vector<24xf32> to vector<24x1xf32>
    %171 = tpu.reciprocal %170 {approx = true} : vector<24x1xf32> -> vector<24x1xf32>
    %172 = vector.broadcast %171 : vector<24x1xf32> to vector<24x24xf32>
    %173 = arith.mulf %168, %172 : vector<24x24xf32>
    %cst_54 = arith.constant dense<0.000000e+00> : vector<24x8xf32>
    %174 = tpu.matmul %173, %160, %cst_54 {dimension_numbers = #tpu.dot_dimension_numbers<[1], [0], [0], [1], [0, 0, 1, 1], [], []>} : vector<24x24xf32>, vector<24x8xf32>, vector<24x8xf32> -> vector<24x8xf32>
    %175 = tpu.concatenate %123, %140, %157, %174 in 1 : vector<24x8xf32>, vector<24x8xf32>, vector<24x8xf32>, vector<24x8xf32> -> vector<24x32xf32>
    %176 = tpu.concatenate %106, %175 in 0 : vector<24x32xf32>, vector<24x32xf32> -> vector<48x32xf32>
    %c0_55 = arith.constant 0 : index
    %c0_56 = arith.constant 0 : index
    %c0_57 = arith.constant 0 : index
    %177 = vector.load %arg8[%c0_55, %c0_56, %c0_57] : memref<2x32x32xf32, #tpu.memory_space<vmem>>, vector<1x32x32xf32>
    %178 = vector.shape_cast %177 : vector<1x32x32xf32> to vector<32x32xf32>
    %cst_58 = arith.constant dense<0.000000e+00> : vector<48x32xf32>
    %179 = tpu.matmul %176, %178, %cst_58 {dimension_numbers = #tpu.dot_dimension_numbers<[1], [0], [0], [1], [0, 0, 1, 1], [], []>} : vector<48x32xf32>, vector<32x32xf32>, vector<48x32xf32> -> vector<48x32xf32>
    %c0_59 = arith.constant 0 : index
    %c0_60 = arith.constant 0 : index
    %c0_61 = arith.constant 0 : index
    %180 = vector.load %arg9[%c0_59, %c0_60, %c0_61] : memref<2x1x32xf32, #tpu.memory_space<vmem>>, vector<1x1x32xf32>
    %181 = vector.shape_cast %180 : vector<1x1x32xf32> to vector<1x32xf32>
    %182 = vector.broadcast %181 : vector<1x32xf32> to vector<48x32xf32>
    %183 = arith.addf %179, %182 : vector<48x32xf32>
    %184 = arith.addf %6, %183 : vector<48x32xf32>
    %c0_62 = arith.constant 0 : index
    %c0_63 = arith.constant 0 : index
    %c0_64 = arith.constant 0 : index
    %185 = vector.load %arg10[%c0_62, %c0_63, %c0_64] : memref<2x1x32xf32, #tpu.memory_space<vmem>>, vector<1x1x32xf32>
    %186 = vector.shape_cast %185 : vector<1x1x32xf32> to vector<1x32xf32>
    %c0_65 = arith.constant 0 : index
    %c0_66 = arith.constant 0 : index
    %c0_67 = arith.constant 0 : index
    %187 = vector.load %arg11[%c0_65, %c0_66, %c0_67] : memref<2x1x32xf32, #tpu.memory_space<vmem>>, vector<1x1x32xf32>
    %188 = vector.shape_cast %187 : vector<1x1x32xf32> to vector<1x32xf32>
    %cst_68 = arith.constant dense<0.000000e+00> : vector<48xf32>
    %189 = vector.multi_reduction <add>, %184, %cst_68 [1] : vector<48x32xf32> to vector<48xf32>
    %190 = vector.shape_cast %189 : vector<48xf32> to vector<48x1xf32>
    %cst_69 = arith.constant 3.200000e+01 : f32
    %191 = vector.broadcast %cst_69 : f32 to vector<48x1xf32>
    %192 = arith.divf %190, %191 : vector<48x1xf32>
    %193 = vector.broadcast %192 : vector<48x1xf32> to vector<48x32xf32>
    %194 = arith.subf %184, %193 : vector<48x32xf32>
    %195 = vector.broadcast %192 : vector<48x1xf32> to vector<48x32xf32>
    %196 = arith.subf %184, %195 : vector<48x32xf32>
    %197 = arith.mulf %194, %196 : vector<48x32xf32>
    %cst_70 = arith.constant dense<0.000000e+00> : vector<48xf32>
    %198 = vector.multi_reduction <add>, %197, %cst_70 [1] : vector<48x32xf32> to vector<48xf32>
    %199 = vector.shape_cast %198 : vector<48xf32> to vector<48x1xf32>
    %cst_71 = arith.constant 3.200000e+01 : f32
    %200 = vector.broadcast %cst_71 : f32 to vector<48x1xf32>
    %201 = arith.divf %199, %200 : vector<48x1xf32>
    %202 = vector.broadcast %192 : vector<48x1xf32> to vector<48x32xf32>
    %203 = arith.subf %184, %202 : vector<48x32xf32>
    %cst_72 = arith.constant 9.99999974E-6 : f32
    %204 = vector.broadcast %cst_72 : f32 to vector<48x1xf32>
    %205 = arith.addf %201, %204 : vector<48x1xf32>
    %206 = math.rsqrt %205 : vector<48x1xf32>
    %207 = vector.broadcast %206 : vector<48x1xf32> to vector<48x32xf32>
    %208 = arith.mulf %203, %207 : vector<48x32xf32>
    %209 = vector.broadcast %186 : vector<1x32xf32> to vector<48x32xf32>
    %210 = arith.mulf %208, %209 : vector<48x32xf32>
    %211 = vector.broadcast %188 : vector<1x32xf32> to vector<48x32xf32>
    %212 = arith.addf %210, %211 : vector<48x32xf32>
    %c0_73 = arith.constant 0 : index
    %c0_74 = arith.constant 0 : index
    %c0_75 = arith.constant 0 : index
    %213 = vector.load %arg12[%c0_73, %c0_74, %c0_75] : memref<2x32x64xf32, #tpu.memory_space<vmem>>, vector<1x32x64xf32>
    %214 = vector.shape_cast %213 : vector<1x32x64xf32> to vector<32x64xf32>
    %cst_76 = arith.constant dense<0.000000e+00> : vector<48x64xf32>
    %215 = tpu.matmul %212, %214, %cst_76 {dimension_numbers = #tpu.dot_dimension_numbers<[1], [0], [0], [1], [0, 0, 1, 1], [], []>} : vector<48x32xf32>, vector<32x64xf32>, vector<48x64xf32> -> vector<48x64xf32>
    %c0_77 = arith.constant 0 : index
    %c0_78 = arith.constant 0 : index
    %c0_79 = arith.constant 0 : index
    %216 = vector.load %arg13[%c0_77, %c0_78, %c0_79] : memref<2x1x64xf32, #tpu.memory_space<vmem>>, vector<1x1x64xf32>
    %217 = vector.shape_cast %216 : vector<1x1x64xf32> to vector<1x64xf32>
    %218 = vector.broadcast %217 : vector<1x64xf32> to vector<48x64xf32>
    %219 = arith.addf %215, %218 : vector<48x64xf32>
    %cst_80 = arith.constant 5.000000e-01 : f32
    %220 = vector.broadcast %cst_80 : f32 to vector<48x64xf32>
    %221 = arith.mulf %220, %219 : vector<48x64xf32>
    %cst_81 = arith.constant 0.707106769 : f32
    %222 = vector.broadcast %cst_81 : f32 to vector<48x64xf32>
    %223 = arith.mulf %219, %222 : vector<48x64xf32>
    %224 = math.erf %223 : vector<48x64xf32>
    %cst_82 = arith.constant 1.000000e+00 : f32
    %225 = vector.broadcast %cst_82 : f32 to vector<48x64xf32>
    %226 = arith.addf %225, %224 : vector<48x64xf32>
    %227 = arith.mulf %221, %226 : vector<48x64xf32>
    %c0_83 = arith.constant 0 : index
    %c0_84 = arith.constant 0 : index
    %c0_85 = arith.constant 0 : index
    %228 = vector.load %arg14[%c0_83, %c0_84, %c0_85] : memref<2x64x32xf32, #tpu.memory_space<vmem>>, vector<1x64x32xf32>
    %229 = vector.shape_cast %228 : vector<1x64x32xf32> to vector<64x32xf32>
    %cst_86 = arith.constant dense<0.000000e+00> : vector<48x32xf32>
    %230 = tpu.matmul %227, %229, %cst_86 {dimension_numbers = #tpu.dot_dimension_numbers<[1], [0], [0], [1], [0, 0, 1, 1], [], []>} : vector<48x64xf32>, vector<64x32xf32>, vector<48x32xf32> -> vector<48x32xf32>
    %231 = arith.addf %184, %230 : vector<48x32xf32>
    %c0_87 = arith.constant 0 : index
    %c0_88 = arith.constant 0 : index
    %c0_89 = arith.constant 0 : index
    %232 = vector.load %arg15[%c0_87, %c0_88, %c0_89] : memref<2x1x32xf32, #tpu.memory_space<vmem>>, vector<1x1x32xf32>
    %233 = vector.shape_cast %232 : vector<1x1x32xf32> to vector<1x32xf32>
    %234 = vector.broadcast %233 : vector<1x32xf32> to vector<48x32xf32>
    %235 = arith.addf %231, %234 : vector<48x32xf32>
    %c0_90 = arith.constant 0 : index
    %c0_91 = arith.constant 0 : index
    %c0_92 = arith.constant 0 : index
    %c0_93 = arith.constant 0 : index
    %236 = vector.load %arg18[%c0_90, %c0_91, %c0_92, %c0_93] : memref<2x1x48x32xf32, #tpu.memory_space<vmem>>, vector<1x1x48x32xf32>
    %237 = vector.shape_cast %236 : vector<1x1x48x32xf32> to vector<48x32xf32>
    %238 = vector.shape_cast %235 : vector<48x32xf32> to vector<1x1x48x32xf32>
    tpu.vector_store %arg18[%c0_90, %c0_91, %c0_92, %c0_93], %238 {strides = array<i32>} : memref<2x1x48x32xf32, #tpu.memory_space<vmem>>, vector<1x1x48x32xf32>,
    %c1 = arith.constant 1 : index
    %c0_94 = arith.constant 0 : index
    %c0_95 = arith.constant 0 : index
    %239 = vector.load %arg5[%c1, %c0_94, %c0_95] : memref<2x1x32xf32, #tpu.memory_space<vmem>>, vector<1x1x32xf32>
    %240 = vector.shape_cast %239 : vector<1x1x32xf32> to vector<1x32xf32>
    %c1_96 = arith.constant 1 : index
    %c0_97 = arith.constant 0 : index
    %c0_98 = arith.constant 0 : index
    %241 = vector.load %arg6[%c1_96, %c0_97, %c0_98] : memref<2x1x32xf32, #tpu.memory_space<vmem>>, vector<1x1x32xf32>
    %242 = vector.shape_cast %241 : vector<1x1x32xf32> to vector<1x32xf32>
    %cst_99 = arith.constant dense<0.000000e+00> : vector<48xf32>
    %243 = vector.multi_reduction <add>, %235, %cst_99 [1] : vector<48x32xf32> to vector<48xf32>
    %244 = vector.shape_cast %243 : vector<48xf32> to vector<48x1xf32>
    %cst_100 = arith.constant 3.200000e+01 : f32
    %245 = vector.broadcast %cst_100 : f32 to vector<48x1xf32>
    %246 = arith.divf %244, %245 : vector<48x1xf32>
    %247 = vector.broadcast %246 : vector<48x1xf32> to vector<48x32xf32>
    %248 = arith.subf %235, %247 : vector<48x32xf32>
    %249 = vector.broadcast %246 : vector<48x1xf32> to vector<48x32xf32>
    %250 = arith.subf %235, %249 : vector<48x32xf32>
    %251 = arith.mulf %248, %250 : vector<48x32xf32>
    %cst_101 = arith.constant dense<0.000000e+00> : vector<48xf32>
    %252 = vector.multi_reduction <add>, %251, %cst_101 [1] : vector<48x32xf32> to vector<48xf32>
    %253 = vector.shape_cast %252 : vector<48xf32> to vector<48x1xf32>
    %cst_102 = arith.constant 3.200000e+01 : f32
    %254 = vector.broadcast %cst_102 : f32 to vector<48x1xf32>
    %255 = arith.divf %253, %254 : vector<48x1xf32>
    %256 = vector.broadcast %246 : vector<48x1xf32> to vector<48x32xf32>
    %257 = arith.subf %235, %256 : vector<48x32xf32>
    %cst_103 = arith.constant 9.99999974E-6 : f32
    %258 = vector.broadcast %cst_103 : f32 to vector<48x1xf32>
    %259 = arith.addf %255, %258 : vector<48x1xf32>
    %260 = math.rsqrt %259 : vector<48x1xf32>
    %261 = vector.broadcast %260 : vector<48x1xf32> to vector<48x32xf32>
    %262 = arith.mulf %257, %261 : vector<48x32xf32>
    %263 = vector.broadcast %240 : vector<1x32xf32> to vector<48x32xf32>
    %264 = arith.mulf %262, %263 : vector<48x32xf32>
    %265 = vector.broadcast %242 : vector<1x32xf32> to vector<48x32xf32>
    %266 = arith.addf %264, %265 : vector<48x32xf32>
    %c1_104 = arith.constant 1 : index
    %c0_105 = arith.constant 0 : index
    %c0_106 = arith.constant 0 : index
    %267 = vector.load %arg7[%c1_104, %c0_105, %c0_106] : memref<2x32x96xf32, #tpu.memory_space<vmem>>, vector<1x32x96xf32>
    %268 = vector.shape_cast %267 : vector<1x32x96xf32> to vector<32x96xf32>
    %cst_107 = arith.constant dense<0.000000e+00> : vector<48x96xf32>
    %269 = tpu.matmul %266, %268, %cst_107 {dimension_numbers = #tpu.dot_dimension_numbers<[1], [0], [0], [1], [0, 0, 1, 1], [], []>} : vector<48x32xf32>, vector<32x96xf32>, vector<48x96xf32> -> vector<48x96xf32>
    %270 = vector.extract_strided_slice %269 {offsets = [0, 0], sizes = [24, 8], strides = [1, 1]} : vector<48x96xf32> to vector<24x8xf32>
    %271 = vector.extract_strided_slice %269 {offsets = [0, 32], sizes = [24, 8], strides = [1, 1]} : vector<48x96xf32> to vector<24x8xf32>
    %272 = vector.extract_strided_slice %269 {offsets = [0, 64], sizes = [24, 8], strides = [1, 1]} : vector<48x96xf32> to vector<24x8xf32>
    "tpu.trace_start"() <{level = 10 : i32, message = "qd,kd->qk"}> : () -> ()
    %cst_108 = arith.constant dense<0.000000e+00> : vector<24x24xf32>
    %273 = tpu.matmul %270, %271, %cst_108 {dimension_numbers = #tpu.dot_dimension_numbers<[1], [1], [0], [0], [0, 0, 1, 0], [], []>} : vector<24x8xf32>, vector<24x8xf32>, vector<24x24xf32> -> vector<24x24xf32>
    "tpu.trace_stop"() : () -> ()
    %274 = vector.broadcast %0 : vector<1x24xf32> to vector<24x24xf32>
    %275 = arith.addf %273, %274 : vector<24x24xf32>
    %cst_109 = arith.constant dense<0xFF800000> : vector<24xf32>
    %276 = vector.multi_reduction <maximumf>, %275, %cst_109 [1] : vector<24x24xf32> to vector<24xf32>
    %277 = vector.shape_cast %276 : vector<24xf32> to vector<24x1xf32>
    %278 = vector.broadcast %277 : vector<24x1xf32> to vector<24x24xf32>
    %279 = arith.subf %275, %278 : vector<24x24xf32>
    %280 = math.exp %279 : vector<24x24xf32>
    %cst_110 = arith.constant dense<0.000000e+00> : vector<24xf32>
    %281 = vector.multi_reduction <add>, %280, %cst_110 [1] : vector<24x24xf32> to vector<24xf32>
    %282 = vector.shape_cast %281 : vector<24xf32> to vector<24x1xf32>
    %283 = tpu.reciprocal %282 {approx = true} : vector<24x1xf32> -> vector<24x1xf32>
    %284 = vector.broadcast %283 : vector<24x1xf32> to vector<24x24xf32>
    %285 = arith.mulf %280, %284 : vector<24x24xf32>
    %cst_111 = arith.constant dense<0.000000e+00> : vector<24x8xf32>
    %286 = tpu.matmul %285, %272, %cst_111 {dimension_numbers = #tpu.dot_dimension_numbers<[1], [0], [0], [1], [0, 0, 1, 1], [], []>} : vector<24x24xf32>, vector<24x8xf32>, vector<24x8xf32> -> vector<24x8xf32>
    %287 = vector.extract_strided_slice %269 {offsets = [0, 8], sizes = [24, 8], strides = [1, 1]} : vector<48x96xf32> to vector<24x8xf32>
    %288 = vector.extract_strided_slice %269 {offsets = [0, 40], sizes = [24, 8], strides = [1, 1]} : vector<48x96xf32> to vector<24x8xf32>
    %289 = vector.extract_strided_slice %269 {offsets = [0, 72], sizes = [24, 8], strides = [1, 1]} : vector<48x96xf32> to vector<24x8xf32>
    "tpu.trace_start"() <{level = 10 : i32, message = "qd,kd->qk"}> : () -> ()
    %cst_112 = arith.constant dense<0.000000e+00> : vector<24x24xf32>
    %290 = tpu.matmul %287, %288, %cst_112 {dimension_numbers = #tpu.dot_dimension_numbers<[1], [1], [0], [0], [0, 0, 1, 0], [], []>} : vector<24x8xf32>, vector<24x8xf32>, vector<24x24xf32> -> vector<24x24xf32>
    "tpu.trace_stop"() : () -> ()
    %291 = vector.broadcast %0 : vector<1x24xf32> to vector<24x24xf32>
    %292 = arith.addf %290, %291 : vector<24x24xf32>
    %cst_113 = arith.constant dense<0xFF800000> : vector<24xf32>
    %293 = vector.multi_reduction <maximumf>, %292, %cst_113 [1] : vector<24x24xf32> to vector<24xf32>
    %294 = vector.shape_cast %293 : vector<24xf32> to vector<24x1xf32>
    %295 = vector.broadcast %294 : vector<24x1xf32> to vector<24x24xf32>
    %296 = arith.subf %292, %295 : vector<24x24xf32>
    %297 = math.exp %296 : vector<24x24xf32>
    %cst_114 = arith.constant dense<0.000000e+00> : vector<24xf32>
    %298 = vector.multi_reduction <add>, %297, %cst_114 [1] : vector<24x24xf32> to vector<24xf32>
    %299 = vector.shape_cast %298 : vector<24xf32> to vector<24x1xf32>
    %300 = tpu.reciprocal %299 {approx = true} : vector<24x1xf32> -> vector<24x1xf32>
    %301 = vector.broadcast %300 : vector<24x1xf32> to vector<24x24xf32>
    %302 = arith.mulf %297, %301 : vector<24x24xf32>
    %cst_115 = arith.constant dense<0.000000e+00> : vector<24x8xf32>
    %303 = tpu.matmul %302, %289, %cst_115 {dimension_numbers = #tpu.dot_dimension_numbers<[1], [0], [0], [1], [0, 0, 1, 1], [], []>} : vector<24x24xf32>, vector<24x8xf32>, vector<24x8xf32> -> vector<24x8xf32>
    %304 = vector.extract_strided_slice %269 {offsets = [0, 16], sizes = [24, 8], strides = [1, 1]} : vector<48x96xf32> to vector<24x8xf32>
    %305 = vector.extract_strided_slice %269 {offsets = [0, 48], sizes = [24, 8], strides = [1, 1]} : vector<48x96xf32> to vector<24x8xf32>
    %306 = vector.extract_strided_slice %269 {offsets = [0, 80], sizes = [24, 8], strides = [1, 1]} : vector<48x96xf32> to vector<24x8xf32>
    "tpu.trace_start"() <{level = 10 : i32, message = "qd,kd->qk"}> : () -> ()
    %cst_116 = arith.constant dense<0.000000e+00> : vector<24x24xf32>
    %307 = tpu.matmul %304, %305, %cst_116 {dimension_numbers = #tpu.dot_dimension_numbers<[1], [1], [0], [0], [0, 0, 1, 0], [], []>} : vector<24x8xf32>, vector<24x8xf32>, vector<24x24xf32> -> vector<24x24xf32>
    "tpu.trace_stop"() : () -> ()
    %308 = vector.broadcast %0 : vector<1x24xf32> to vector<24x24xf32>
    %309 = arith.addf %307, %308 : vector<24x24xf32>
    %cst_117 = arith.constant dense<0xFF800000> : vector<24xf32>
    %310 = vector.multi_reduction <maximumf>, %309, %cst_117 [1] : vector<24x24xf32> to vector<24xf32>
    %311 = vector.shape_cast %310 : vector<24xf32> to vector<24x1xf32>
    %312 = vector.broadcast %311 : vector<24x1xf32> to vector<24x24xf32>
    %313 = arith.subf %309, %312 : vector<24x24xf32>
    %314 = math.exp %313 : vector<24x24xf32>
    %cst_118 = arith.constant dense<0.000000e+00> : vector<24xf32>
    %315 = vector.multi_reduction <add>, %314, %cst_118 [1] : vector<24x24xf32> to vector<24xf32>
    %316 = vector.shape_cast %315 : vector<24xf32> to vector<24x1xf32>
    %317 = tpu.reciprocal %316 {approx = true} : vector<24x1xf32> -> vector<24x1xf32>
    %318 = vector.broadcast %317 : vector<24x1xf32> to vector<24x24xf32>
    %319 = arith.mulf %314, %318 : vector<24x24xf32>
    %cst_119 = arith.constant dense<0.000000e+00> : vector<24x8xf32>
    %320 = tpu.matmul %319, %306, %cst_119 {dimension_numbers = #tpu.dot_dimension_numbers<[1], [0], [0], [1], [0, 0, 1, 1], [], []>} : vector<24x24xf32>, vector<24x8xf32>, vector<24x8xf32> -> vector<24x8xf32>
    %321 = vector.extract_strided_slice %269 {offsets = [0, 24], sizes = [24, 8], strides = [1, 1]} : vector<48x96xf32> to vector<24x8xf32>
    %322 = vector.extract_strided_slice %269 {offsets = [0, 56], sizes = [24, 8], strides = [1, 1]} : vector<48x96xf32> to vector<24x8xf32>
    %323 = vector.extract_strided_slice %269 {offsets = [0, 88], sizes = [24, 8], strides = [1, 1]} : vector<48x96xf32> to vector<24x8xf32>
    "tpu.trace_start"() <{level = 10 : i32, message = "qd,kd->qk"}> : () -> ()
    %cst_120 = arith.constant dense<0.000000e+00> : vector<24x24xf32>
    %324 = tpu.matmul %321, %322, %cst_120 {dimension_numbers = #tpu.dot_dimension_numbers<[1], [1], [0], [0], [0, 0, 1, 0], [], []>} : vector<24x8xf32>, vector<24x8xf32>, vector<24x24xf32> -> vector<24x24xf32>
    "tpu.trace_stop"() : () -> ()
    %325 = vector.broadcast %0 : vector<1x24xf32> to vector<24x24xf32>
    %326 = arith.addf %324, %325 : vector<24x24xf32>
    %cst_121 = arith.constant dense<0xFF800000> : vector<24xf32>
    %327 = vector.multi_reduction <maximumf>, %326, %cst_121 [1] : vector<24x24xf32> to vector<24xf32>
    %328 = vector.shape_cast %327 : vector<24xf32> to vector<24x1xf32>
    %329 = vector.broadcast %328 : vector<24x1xf32> to vector<24x24xf32>
    %330 = arith.subf %326, %329 : vector<24x24xf32>
    %331 = math.exp %330 : vector<24x24xf32>
    %cst_122 = arith.constant dense<0.000000e+00> : vector<24xf32>
    %332 = vector.multi_reduction <add>, %331, %cst_122 [1] : vector<24x24xf32> to vector<24xf32>
    %333 = vector.shape_cast %332 : vector<24xf32> to vector<24x1xf32>
    %334 = tpu.reciprocal %333 {approx = true} : vector<24x1xf32> -> vector<24x1xf32>
    %335 = vector.broadcast %334 : vector<24x1xf32> to vector<24x24xf32>
    %336 = arith.mulf %331, %335 : vector<24x24xf32>
    %cst_123 = arith.constant dense<0.000000e+00> : vector<24x8xf32>
    %337 = tpu.matmul %336, %323, %cst_123 {dimension_numbers = #tpu.dot_dimension_numbers<[1], [0], [0], [1], [0, 0, 1, 1], [], []>} : vector<24x24xf32>, vector<24x8xf32>, vector<24x8xf32> -> vector<24x8xf32>
    %338 = tpu.concatenate %286, %303, %320, %337 in 1 : vector<24x8xf32>, vector<24x8xf32>, vector<24x8xf32>, vector<24x8xf32> -> vector<24x32xf32>
    %339 = vector.extract_strided_slice %269 {offsets = [24, 0], sizes = [24, 8], strides = [1, 1]} : vector<48x96xf32> to vector<24x8xf32>
    %340 = vector.extract_strided_slice %269 {offsets = [24, 32], sizes = [24, 8], strides = [1, 1]} : vector<48x96xf32> to vector<24x8xf32>
    %341 = vector.extract_strided_slice %269 {offsets = [24, 64], sizes = [24, 8], strides = [1, 1]} : vector<48x96xf32> to vector<24x8xf32>
    "tpu.trace_start"() <{level = 10 : i32, message = "qd,kd->qk"}> : () -> ()
    %cst_124 = arith.constant dense<0.000000e+00> : vector<24x24xf32>
    %342 = tpu.matmul %339, %340, %cst_124 {dimension_numbers = #tpu.dot_dimension_numbers<[1], [1], [0], [0], [0, 0, 1, 0], [], []>} : vector<24x8xf32>, vector<24x8xf32>, vector<24x24xf32> -> vector<24x24xf32>
    "tpu.trace_stop"() : () -> ()
    %343 = vector.broadcast %0 : vector<1x24xf32> to vector<24x24xf32>
    %344 = arith.addf %342, %343 : vector<24x24xf32>
    %cst_125 = arith.constant dense<0xFF800000> : vector<24xf32>
    %345 = vector.multi_reduction <maximumf>, %344, %cst_125 [1] : vector<24x24xf32> to vector<24xf32>
    %346 = vector.shape_cast %345 : vector<24xf32> to vector<24x1xf32>
    %347 = vector.broadcast %346 : vector<24x1xf32> to vector<24x24xf32>
    %348 = arith.subf %344, %347 : vector<24x24xf32>
    %349 = math.exp %348 : vector<24x24xf32>
    %cst_126 = arith.constant dense<0.000000e+00> : vector<24xf32>
    %350 = vector.multi_reduction <add>, %349, %cst_126 [1] : vector<24x24xf32> to vector<24xf32>
    %351 = vector.shape_cast %350 : vector<24xf32> to vector<24x1xf32>
    %352 = tpu.reciprocal %351 {approx = true} : vector<24x1xf32> -> vector<24x1xf32>
    %353 = vector.broadcast %352 : vector<24x1xf32> to vector<24x24xf32>
    %354 = arith.mulf %349, %353 : vector<24x24xf32>
    %cst_127 = arith.constant dense<0.000000e+00> : vector<24x8xf32>
    %355 = tpu.matmul %354, %341, %cst_127 {dimension_numbers = #tpu.dot_dimension_numbers<[1], [0], [0], [1], [0, 0, 1, 1], [], []>} : vector<24x24xf32>, vector<24x8xf32>, vector<24x8xf32> -> vector<24x8xf32>
    %356 = vector.extract_strided_slice %269 {offsets = [24, 8], sizes = [24, 8], strides = [1, 1]} : vector<48x96xf32> to vector<24x8xf32>
    %357 = vector.extract_strided_slice %269 {offsets = [24, 40], sizes = [24, 8], strides = [1, 1]} : vector<48x96xf32> to vector<24x8xf32>
    %358 = vector.extract_strided_slice %269 {offsets = [24, 72], sizes = [24, 8], strides = [1, 1]} : vector<48x96xf32> to vector<24x8xf32>
    "tpu.trace_start"() <{level = 10 : i32, message = "qd,kd->qk"}> : () -> ()
    %cst_128 = arith.constant dense<0.000000e+00> : vector<24x24xf32>
    %359 = tpu.matmul %356, %357, %cst_128 {dimension_numbers = #tpu.dot_dimension_numbers<[1], [1], [0], [0], [0, 0, 1, 0], [], []>} : vector<24x8xf32>, vector<24x8xf32>, vector<24x24xf32> -> vector<24x24xf32>
    "tpu.trace_stop"() : () -> ()
    %360 = vector.broadcast %0 : vector<1x24xf32> to vector<24x24xf32>
    %361 = arith.addf %359, %360 : vector<24x24xf32>
    %cst_129 = arith.constant dense<0xFF800000> : vector<24xf32>
    %362 = vector.multi_reduction <maximumf>, %361, %cst_129 [1] : vector<24x24xf32> to vector<24xf32>
    %363 = vector.shape_cast %362 : vector<24xf32> to vector<24x1xf32>
    %364 = vector.broadcast %363 : vector<24x1xf32> to vector<24x24xf32>
    %365 = arith.subf %361, %364 : vector<24x24xf32>
    %366 = math.exp %365 : vector<24x24xf32>
    %cst_130 = arith.constant dense<0.000000e+00> : vector<24xf32>
    %367 = vector.multi_reduction <add>, %366, %cst_130 [1] : vector<24x24xf32> to vector<24xf32>
    %368 = vector.shape_cast %367 : vector<24xf32> to vector<24x1xf32>
    %369 = tpu.reciprocal %368 {approx = true} : vector<24x1xf32> -> vector<24x1xf32>
    %370 = vector.broadcast %369 : vector<24x1xf32> to vector<24x24xf32>
    %371 = arith.mulf %366, %370 : vector<24x24xf32>
    %cst_131 = arith.constant dense<0.000000e+00> : vector<24x8xf32>
    %372 = tpu.matmul %371, %358, %cst_131 {dimension_numbers = #tpu.dot_dimension_numbers<[1], [0], [0], [1], [0, 0, 1, 1], [], []>} : vector<24x24xf32>, vector<24x8xf32>, vector<24x8xf32> -> vector<24x8xf32>
    %373 = vector.extract_strided_slice %269 {offsets = [24, 16], sizes = [24, 8], strides = [1, 1]} : vector<48x96xf32> to vector<24x8xf32>
    %374 = vector.extract_strided_slice %269 {offsets = [24, 48], sizes = [24, 8], strides = [1, 1]} : vector<48x96xf32> to vector<24x8xf32>
    %375 = vector.extract_strided_slice %269 {offsets = [24, 80], sizes = [24, 8], strides = [1, 1]} : vector<48x96xf32> to vector<24x8xf32>
    "tpu.trace_start"() <{level = 10 : i32, message = "qd,kd->qk"}> : () -> ()
    %cst_132 = arith.constant dense<0.000000e+00> : vector<24x24xf32>
    %376 = tpu.matmul %373, %374, %cst_132 {dimension_numbers = #tpu.dot_dimension_numbers<[1], [1], [0], [0], [0, 0, 1, 0], [], []>} : vector<24x8xf32>, vector<24x8xf32>, vector<24x24xf32> -> vector<24x24xf32>
    "tpu.trace_stop"() : () -> ()
    %377 = vector.broadcast %0 : vector<1x24xf32> to vector<24x24xf32>
    %378 = arith.addf %376, %377 : vector<24x24xf32>
    %cst_133 = arith.constant dense<0xFF800000> : vector<24xf32>
    %379 = vector.multi_reduction <maximumf>, %378, %cst_133 [1] : vector<24x24xf32> to vector<24xf32>
    %380 = vector.shape_cast %379 : vector<24xf32> to vector<24x1xf32>
    %381 = vector.broadcast %380 : vector<24x1xf32> to vector<24x24xf32>
    %382 = arith.subf %378, %381 : vector<24x24xf32>
    %383 = math.exp %382 : vector<24x24xf32>
    %cst_134 = arith.constant dense<0.000000e+00> : vector<24xf32>
    %384 = vector.multi_reduction <add>, %383, %cst_134 [1] : vector<24x24xf32> to vector<24xf32>
    %385 = vector.shape_cast %384 : vector<24xf32> to vector<24x1xf32>
    %386 = tpu.reciprocal %385 {approx = true} : vector<24x1xf32> -> vector<24x1xf32>
    %387 = vector.broadcast %386 : vector<24x1xf32> to vector<24x24xf32>
    %388 = arith.mulf %383, %387 : vector<24x24xf32>
    %cst_135 = arith.constant dense<0.000000e+00> : vector<24x8xf32>
    %389 = tpu.matmul %388, %375, %cst_135 {dimension_numbers = #tpu.dot_dimension_numbers<[1], [0], [0], [1], [0, 0, 1, 1], [], []>} : vector<24x24xf32>, vector<24x8xf32>, vector<24x8xf32> -> vector<24x8xf32>
    %390 = vector.extract_strided_slice %269 {offsets = [24, 24], sizes = [24, 8], strides = [1, 1]} : vector<48x96xf32> to vector<24x8xf32>
    %391 = vector.extract_strided_slice %269 {offsets = [24, 56], sizes = [24, 8], strides = [1, 1]} : vector<48x96xf32> to vector<24x8xf32>
    %392 = vector.extract_strided_slice %269 {offsets = [24, 88], sizes = [24, 8], strides = [1, 1]} : vector<48x96xf32> to vector<24x8xf32>
    "tpu.trace_start"() <{level = 10 : i32, message = "qd,kd->qk"}> : () -> ()
    %cst_136 = arith.constant dense<0.000000e+00> : vector<24x24xf32>
    %393 = tpu.matmul %390, %391, %cst_136 {dimension_numbers = #tpu.dot_dimension_numbers<[1], [1], [0], [0], [0, 0, 1, 0], [], []>} : vector<24x8xf32>, vector<24x8xf32>, vector<24x24xf32> -> vector<24x24xf32>
    "tpu.trace_stop"() : () -> ()
    %394 = vector.broadcast %0 : vector<1x24xf32> to vector<24x24xf32>
    %395 = arith.addf %393, %394 : vector<24x24xf32>
    %cst_137 = arith.constant dense<0xFF800000> : vector<24xf32>
    %396 = vector.multi_reduction <maximumf>, %395, %cst_137 [1] : vector<24x24xf32> to vector<24xf32>
    %397 = vector.shape_cast %396 : vector<24xf32> to vector<24x1xf32>
    %398 = vector.broadcast %397 : vector<24x1xf32> to vector<24x24xf32>
    %399 = arith.subf %395, %398 : vector<24x24xf32>
    %400 = math.exp %399 : vector<24x24xf32>
    %cst_138 = arith.constant dense<0.000000e+00> : vector<24xf32>
    %401 = vector.multi_reduction <add>, %400, %cst_138 [1] : vector<24x24xf32> to vector<24xf32>
    %402 = vector.shape_cast %401 : vector<24xf32> to vector<24x1xf32>
    %403 = tpu.reciprocal %402 {approx = true} : vector<24x1xf32> -> vector<24x1xf32>
    %404 = vector.broadcast %403 : vector<24x1xf32> to vector<24x24xf32>
    %405 = arith.mulf %400, %404 : vector<24x24xf32>
    %cst_139 = arith.constant dense<0.000000e+00> : vector<24x8xf32>
    %406 = tpu.matmul %405, %392, %cst_139 {dimension_numbers = #tpu.dot_dimension_numbers<[1], [0], [0], [1], [0, 0, 1, 1], [], []>} : vector<24x24xf32>, vector<24x8xf32>, vector<24x8xf32> -> vector<24x8xf32>
    %407 = tpu.concatenate %355, %372, %389, %406 in 1 : vector<24x8xf32>, vector<24x8xf32>, vector<24x8xf32>, vector<24x8xf32> -> vector<24x32xf32>
    %408 = tpu.concatenate %338, %407 in 0 : vector<24x32xf32>, vector<24x32xf32> -> vector<48x32xf32>
    %c1_140 = arith.constant 1 : index
    %c0_141 = arith.constant 0 : index
    %c0_142 = arith.constant 0 : index
    %409 = vector.load %arg8[%c1_140, %c0_141, %c0_142] : memref<2x32x32xf32, #tpu.memory_space<vmem>>, vector<1x32x32xf32>
    %410 = vector.shape_cast %409 : vector<1x32x32xf32> to vector<32x32xf32>
    %cst_143 = arith.constant dense<0.000000e+00> : vector<48x32xf32>
    %411 = tpu.matmul %408, %410, %cst_143 {dimension_numbers = #tpu.dot_dimension_numbers<[1], [0], [0], [1], [0, 0, 1, 1], [], []>} : vector<48x32xf32>, vector<32x32xf32>, vector<48x32xf32> -> vector<48x32xf32>
    %c1_144 = arith.constant 1 : index
    %c0_145 = arith.constant 0 : index
    %c0_146 = arith.constant 0 : index
    %412 = vector.load %arg9[%c1_144, %c0_145, %c0_146] : memref<2x1x32xf32, #tpu.memory_space<vmem>>, vector<1x1x32xf32>
    %413 = vector.shape_cast %412 : vector<1x1x32xf32> to vector<1x32xf32>
    %414 = vector.broadcast %413 : vector<1x32xf32> to vector<48x32xf32>
    %415 = arith.addf %411, %414 : vector<48x32xf32>
    %416 = arith.addf %235, %415 : vector<48x32xf32>
    %c1_147 = arith.constant 1 : index
    %c0_148 = arith.constant 0 : index
    %c0_149 = arith.constant 0 : index
    %417 = vector.load %arg10[%c1_147, %c0_148, %c0_149] : memref<2x1x32xf32, #tpu.memory_space<vmem>>, vector<1x1x32xf32>
    %418 = vector.shape_cast %417 : vector<1x1x32xf32> to vector<1x32xf32>
    %c1_150 = arith.constant 1 : index
    %c0_151 = arith.constant 0 : index
    %c0_152 = arith.constant 0 : index
    %419 = vector.load %arg11[%c1_150, %c0_151, %c0_152] : memref<2x1x32xf32, #tpu.memory_space<vmem>>, vector<1x1x32xf32>
    %420 = vector.shape_cast %419 : vector<1x1x32xf32> to vector<1x32xf32>
    %cst_153 = arith.constant dense<0.000000e+00> : vector<48xf32>
    %421 = vector.multi_reduction <add>, %416, %cst_153 [1] : vector<48x32xf32> to vector<48xf32>
    %422 = vector.shape_cast %421 : vector<48xf32> to vector<48x1xf32>
    %cst_154 = arith.constant 3.200000e+01 : f32
    %423 = vector.broadcast %cst_154 : f32 to vector<48x1xf32>
    %424 = arith.divf %422, %423 : vector<48x1xf32>
    %425 = vector.broadcast %424 : vector<48x1xf32> to vector<48x32xf32>
    %426 = arith.subf %416, %425 : vector<48x32xf32>
    %427 = vector.broadcast %424 : vector<48x1xf32> to vector<48x32xf32>
    %428 = arith.subf %416, %427 : vector<48x32xf32>
    %429 = arith.mulf %426, %428 : vector<48x32xf32>
    %cst_155 = arith.constant dense<0.000000e+00> : vector<48xf32>
    %430 = vector.multi_reduction <add>, %429, %cst_155 [1] : vector<48x32xf32> to vector<48xf32>
    %431 = vector.shape_cast %430 : vector<48xf32> to vector<48x1xf32>
    %cst_156 = arith.constant 3.200000e+01 : f32
    %432 = vector.broadcast %cst_156 : f32 to vector<48x1xf32>
    %433 = arith.divf %431, %432 : vector<48x1xf32>
    %434 = vector.broadcast %424 : vector<48x1xf32> to vector<48x32xf32>
    %435 = arith.subf %416, %434 : vector<48x32xf32>
    %cst_157 = arith.constant 9.99999974E-6 : f32
    %436 = vector.broadcast %cst_157 : f32 to vector<48x1xf32>
    %437 = arith.addf %433, %436 : vector<48x1xf32>
    %438 = math.rsqrt %437 : vector<48x1xf32>
    %439 = vector.broadcast %438 : vector<48x1xf32> to vector<48x32xf32>
    %440 = arith.mulf %435, %439 : vector<48x32xf32>
    %441 = vector.broadcast %418 : vector<1x32xf32> to vector<48x32xf32>
    %442 = arith.mulf %440, %441 : vector<48x32xf32>
    %443 = vector.broadcast %420 : vector<1x32xf32> to vector<48x32xf32>
    %444 = arith.addf %442, %443 : vector<48x32xf32>
    %c1_158 = arith.constant 1 : index
    %c0_159 = arith.constant 0 : index
    %c0_160 = arith.constant 0 : index
    %445 = vector.load %arg12[%c1_158, %c0_159, %c0_160] : memref<2x32x64xf32, #tpu.memory_space<vmem>>, vector<1x32x64xf32>
    %446 = vector.shape_cast %445 : vector<1x32x64xf32> to vector<32x64xf32>
    %cst_161 = arith.constant dense<0.000000e+00> : vector<48x64xf32>
    %447 = tpu.matmul %444, %446, %cst_161 {dimension_numbers = #tpu.dot_dimension_numbers<[1], [0], [0], [1], [0, 0, 1, 1], [], []>} : vector<48x32xf32>, vector<32x64xf32>, vector<48x64xf32> -> vector<48x64xf32>
    %c1_162 = arith.constant 1 : index
    %c0_163 = arith.constant 0 : index
    %c0_164 = arith.constant 0 : index
    %448 = vector.load %arg13[%c1_162, %c0_163, %c0_164] : memref<2x1x64xf32, #tpu.memory_space<vmem>>, vector<1x1x64xf32>
    %449 = vector.shape_cast %448 : vector<1x1x64xf32> to vector<1x64xf32>
    %450 = vector.broadcast %449 : vector<1x64xf32> to vector<48x64xf32>
    %451 = arith.addf %447, %450 : vector<48x64xf32>
    %cst_165 = arith.constant 5.000000e-01 : f32
    %452 = vector.broadcast %cst_165 : f32 to vector<48x64xf32>
    %453 = arith.mulf %452, %451 : vector<48x64xf32>
    %cst_166 = arith.constant 0.707106769 : f32
    %454 = vector.broadcast %cst_166 : f32 to vector<48x64xf32>
    %455 = arith.mulf %451, %454 : vector<48x64xf32>
    %456 = math.erf %455 : vector<48x64xf32>
    %cst_167 = arith.constant 1.000000e+00 : f32
    %457 = vector.broadcast %cst_167 : f32 to vector<48x64xf32>
    %458 = arith.addf %457, %456 : vector<48x64xf32>
    %459 = arith.mulf %453, %458 : vector<48x64xf32>
    %c1_168 = arith.constant 1 : index
    %c0_169 = arith.constant 0 : index
    %c0_170 = arith.constant 0 : index
    %460 = vector.load %arg14[%c1_168, %c0_169, %c0_170] : memref<2x64x32xf32, #tpu.memory_space<vmem>>, vector<1x64x32xf32>
    %461 = vector.shape_cast %460 : vector<1x64x32xf32> to vector<64x32xf32>
    %cst_171 = arith.constant dense<0.000000e+00> : vector<48x32xf32>
    %462 = tpu.matmul %459, %461, %cst_171 {dimension_numbers = #tpu.dot_dimension_numbers<[1], [0], [0], [1], [0, 0, 1, 1], [], []>} : vector<48x64xf32>, vector<64x32xf32>, vector<48x32xf32> -> vector<48x32xf32>
    %463 = arith.addf %416, %462 : vector<48x32xf32>
    %c1_172 = arith.constant 1 : index
    %c0_173 = arith.constant 0 : index
    %c0_174 = arith.constant 0 : index
    %464 = vector.load %arg15[%c1_172, %c0_173, %c0_174] : memref<2x1x32xf32, #tpu.memory_space<vmem>>, vector<1x1x32xf32>
    %465 = vector.shape_cast %464 : vector<1x1x32xf32> to vector<1x32xf32>
    %466 = vector.broadcast %465 : vector<1x32xf32> to vector<48x32xf32>
    %467 = arith.addf %463, %466 : vector<48x32xf32>
    %c1_175 = arith.constant 1 : index
    %c0_176 = arith.constant 0 : index
    %c0_177 = arith.constant 0 : index
    %c0_178 = arith.constant 0 : index
    %468 = vector.load %arg18[%c1_175, %c0_176, %c0_177, %c0_178] : memref<2x1x48x32xf32, #tpu.memory_space<vmem>>, vector<1x1x48x32xf32>
    %469 = vector.shape_cast %468 : vector<1x1x48x32xf32> to vector<48x32xf32>
    %470 = vector.shape_cast %467 : vector<48x32xf32> to vector<1x1x48x32xf32>
    tpu.vector_store %arg18[%c1_175, %c0_176, %c0_177, %c0_178], %470 {strides = array<i32>} : memref<2x1x48x32xf32, #tpu.memory_space<vmem>>, vector<1x1x48x32xf32>,
    %c0_179 = arith.constant 0 : index
    %c0_180 = arith.constant 0 : index
    %471 = vector.load %arg16[%c0_179, %c0_180] : memref<1x32xf32, #tpu.memory_space<vmem>>, vector<1x32xf32>
    %c0_181 = arith.constant 0 : index
    %c0_182 = arith.constant 0 : index
    %472 = vector.load %arg17[%c0_181, %c0_182] : memref<1x32xf32, #tpu.memory_space<vmem>>, vector<1x32xf32>
    %cst_183 = arith.constant dense<0.000000e+00> : vector<48xf32>
    %473 = vector.multi_reduction <add>, %467, %cst_183 [1] : vector<48x32xf32> to vector<48xf32>
    %474 = vector.shape_cast %473 : vector<48xf32> to vector<48x1xf32>
    %cst_184 = arith.constant 3.200000e+01 : f32
    %475 = vector.broadcast %cst_184 : f32 to vector<48x1xf32>
    %476 = arith.divf %474, %475 : vector<48x1xf32>
    %477 = vector.broadcast %476 : vector<48x1xf32> to vector<48x32xf32>
    %478 = arith.subf %467, %477 : vector<48x32xf32>
    %479 = vector.broadcast %476 : vector<48x1xf32> to vector<48x32xf32>
    %480 = arith.subf %467, %479 : vector<48x32xf32>
    %481 = arith.mulf %478, %480 : vector<48x32xf32>
    %cst_185 = arith.constant dense<0.000000e+00> : vector<48xf32>
    %482 = vector.multi_reduction <add>, %481, %cst_185 [1] : vector<48x32xf32> to vector<48xf32>
    %483 = vector.shape_cast %482 : vector<48xf32> to vector<48x1xf32>
    %cst_186 = arith.constant 3.200000e+01 : f32
    %484 = vector.broadcast %cst_186 : f32 to vector<48x1xf32>
    %485 = arith.divf %483, %484 : vector<48x1xf32>
    %486 = vector.broadcast %476 : vector<48x1xf32> to vector<48x32xf32>
    %487 = arith.subf %467, %486 : vector<48x32xf32>
    %cst_187 = arith.constant 9.99999974E-6 : f32
    %488 = vector.broadcast %cst_187 : f32 to vector<48x1xf32>
    %489 = arith.addf %485, %488 : vector<48x1xf32>
    %490 = math.rsqrt %489 : vector<48x1xf32>
    %491 = vector.broadcast %490 : vector<48x1xf32> to vector<48x32xf32>
    %492 = arith.mulf %487, %491 : vector<48x32xf32>
    %493 = vector.broadcast %471 : vector<1x32xf32> to vector<48x32xf32>
    %494 = arith.mulf %492, %493 : vector<48x32xf32>
    %495 = vector.broadcast %472 : vector<1x32xf32> to vector<48x32xf32>
    %496 = arith.addf %494, %495 : vector<48x32xf32>
    %c0_188 = arith.constant 0 : index
    %c0_189 = arith.constant 0 : index
    %c0_190 = arith.constant 0 : index
    %497 = vector.load %arg19[%c0_188, %c0_189, %c0_190] : memref<1x48x32xf32, #tpu.memory_space<vmem>>, vector<1x48x32xf32>
    %498 = vector.shape_cast %497 : vector<1x48x32xf32> to vector<48x32xf32>
    %499 = vector.shape_cast %496 : vector<48x32xf32> to vector<1x48x32xf32>
    tpu.vector_store %arg19[%c0_188, %c0_189, %c0_190], %499 {strides = array<i32>} : memref<1x48x32xf32, #tpu.memory_space<vmem>>, vector<1x48x32xf32>,
    return
  }
  func.func @transform_0(%arg0: i32) -> (i32, i32, i32) {
    %c0_i32 = arith.constant 0 : i32
    %c0_i32_0 = arith.constant 0 : i32
    %c0_i32_1 = arith.constant 0 : i32
    return %arg0, %c0_i32, %c0_i32_0 : i32, i32, i32
  }
  func.func @transform_1(%arg0: i32) -> (i32, i32) {
    %c0_i32 = arith.constant 0 : i32
    %c0_i32_0 = arith.constant 0 : i32
    %c0_i32_1 = arith.constant 0 : i32
    return %c0_i32, %c0_i32_0 : i32, i32
  }
  func.func @transform_2(%arg0: i32) -> (i32, i32) {
    %c0_i32 = arith.constant 0 : i32
    %c0_i32_0 = arith.constant 0 : i32
    %c0_i32_1 = arith.constant 0 : i32
    return %c0_i32, %c0_i32_0 : i32, i32
  }
  func.func @transform_3(%arg0: i32) -> (i32, i32) {
    %c0_i32 = arith.constant 0 : i32
    %c0_i32_0 = arith.constant 0 : i32
    %c0_i32_1 = arith.constant 0 : i32
    return %c0_i32, %c0_i32_0 : i32, i32
  }
  func.func @transform_4(%arg0: i32) -> (i32, i32, i32) {
    %c0_i32 = arith.constant 0 : i32
    %c0_i32_0 = arith.constant 0 : i32
    %c0_i32_1 = arith.constant 0 : i32
    %c0_i32_2 = arith.constant 0 : i32
    return %c0_i32, %c0_i32_0, %c0_i32_1 : i32, i32, i32
  }
  func.func @transform_5(%arg0: i32) -> (i32, i32, i32) {
    %c0_i32 = arith.constant 0 : i32
    %c0_i32_0 = arith.constant 0 : i32
    %c0_i32_1 = arith.constant 0 : i32
    %c0_i32_2 = arith.constant 0 : i32
    return %c0_i32, %c0_i32_0, %c0_i32_1 : i32, i32, i32
  }
  func.func @transform_6(%arg0: i32) -> (i32, i32, i32) {
    %c0_i32 = arith.constant 0 : i32
    %c0_i32_0 = arith.constant 0 : i32
    %c0_i32_1 = arith.constant 0 : i32
    %c0_i32_2 = arith.constant 0 : i32
    return %c0_i32, %c0_i32_0, %c0_i32_1 : i32, i32, i32
  }
  func.func @transform_7(%arg0: i32) -> (i32, i32, i32) {
    %c0_i32 = arith.constant 0 : i32
    %c0_i32_0 = arith.constant 0 : i32
    %c0_i32_1 = arith.constant 0 : i32
    %c0_i32_2 = arith.constant 0 : i32
    return %c0_i32, %c0_i32_0, %c0_i32_1 : i32, i32, i32
  }
  func.func @transform_8(%arg0: i32) -> (i32, i32, i32) {
    %c0_i32 = arith.constant 0 : i32
    %c0_i32_0 = arith.constant 0 : i32
    %c0_i32_1 = arith.constant 0 : i32
    %c0_i32_2 = arith.constant 0 : i32
    return %c0_i32, %c0_i32_0, %c0_i32_1 : i32, i32, i32
  }
  func.func @transform_9(%arg0: i32) -> (i32, i32, i32) {
    %c0_i32 = arith.constant 0 : i32
    %c0_i32_0 = arith.constant 0 : i32
    %c0_i32_1 = arith.constant 0 : i32
    %c0_i32_2 = arith.constant 0 : i32
    return %c0_i32, %c0_i32_0, %c0_i32_1 : i32, i32, i32
  }
  func.func @transform_10(%arg0: i32) -> (i32, i32, i32) {
    %c0_i32 = arith.constant 0 : i32
    %c0_i32_0 = arith.constant 0 : i32
    %c0_i32_1 = arith.constant 0 : i32
    %c0_i32_2 = arith.constant 0 : i32
    return %c0_i32, %c0_i32_0, %c0_i32_1 : i32, i32, i32
  }
  func.func @transform_11(%arg0: i32) -> (i32, i32, i32) {
    %c0_i32 = arith.constant 0 : i32
    %c0_i32_0 = arith.constant 0 : i32
    %c0_i32_1 = arith.constant 0 : i32
    %c0_i32_2 = arith.constant 0 : i32
    return %c0_i32, %c0_i32_0, %c0_i32_1 : i32, i32, i32
  }
  func.func @transform_12(%arg0: i32) -> (i32, i32, i32) {
    %c0_i32 = arith.constant 0 : i32
    %c0_i32_0 = arith.constant 0 : i32
    %c0_i32_1 = arith.constant 0 : i32
    %c0_i32_2 = arith.constant 0 : i32
    return %c0_i32, %c0_i32_0, %c0_i32_1 : i32, i32, i32
  }
  func.func @transform_13(%arg0: i32) -> (i32, i32, i32) {
    %c0_i32 = arith.constant 0 : i32
    %c0_i32_0 = arith.constant 0 : i32
    %c0_i32_1 = arith.constant 0 : i32
    %c0_i32_2 = arith.constant 0 : i32
    return %c0_i32, %c0_i32_0, %c0_i32_1 : i32, i32, i32
  }
  func.func @transform_14(%arg0: i32) -> (i32, i32, i32) {
    %c0_i32 = arith.constant 0 : i32
    %c0_i32_0 = arith.constant 0 : i32
    %c0_i32_1 = arith.constant 0 : i32
    %c0_i32_2 = arith.constant 0 : i32
    return %c0_i32, %c0_i32_0, %c0_i32_1 : i32, i32, i32
  }
  func.func @transform_15(%arg0: i32) -> (i32, i32) {
    %c0_i32 = arith.constant 0 : i32
    %c0_i32_0 = arith.constant 0 : i32
    %c0_i32_1 = arith.constant 0 : i32
    return %c0_i32, %c0_i32_0 : i32, i32
  }
  func.func @transform_16(%arg0: i32) -> (i32, i32) {
    %c0_i32 = arith.constant 0 : i32
    %c0_i32_0 = arith.constant 0 : i32
    %c0_i32_1 = arith.constant 0 : i32
    return %c0_i32, %c0_i32_0 : i32, i32
  }
  func.func @transform_17(%arg0: i32) -> (i32, i32, i32, i32) {
    %c0_i32 = arith.constant 0 : i32
    %c0_i32_0 = arith.constant 0 : i32
    %c0_i32_1 = arith.constant 0 : i32
    %c0_i32_2 = arith.constant 0 : i32
    return %c0_i32, %arg0, %c0_i32_0, %c0_i32_1 : i32, i32, i32, i32
  }
  func.func @transform_18(%arg0: i32) -> (i32, i32, i32) {
    %c0_i32 = arith.constant 0 : i32
    %c0_i32_0 = arith.constant 0 : i32
    %c0_i32_1 = arith.constant 0 : i32
    return %arg0, %c0_i32, %c0_i32_0 : i32, i32, i32
  }
}

</mosaic_0001>

<llo_original>
// kernel: vit_modality_forward.1
$region0: #{vit_modality_forward.1}
  #allocation0 [shape = 'u32[]', space=smem, size = 0x4, offset = 0x4, fixed_abs, tag = 'smem constant byte address 0x4 - core index']
  #allocation1 [shape = 'u32[144,128]{1,0:T(1,128)}', space=vmem, size = 0x12000, scoped, tag = 'internal scratch']
  %s0 = inlined_call_operand.vmem [shape: f32[1,48,64], index: 0, kind: input, shape index: {}]
  %s1 = inlined_call_operand.vmem [shape: f32[48,32], index: 1, kind: input, shape index: {}]
  %s2 = inlined_call_operand.vmem [shape: f32[1,24], index: 2, kind: input, shape index: {}]
  %s3 = inlined_call_operand.vmem [shape: f32[64,32], index: 3, kind: input, shape index: {}]
  %s4 = inlined_call_operand.vmem [shape: f32[2,1,32], index: 4, kind: input, shape index: {}]
  %s5 = inlined_call_operand.vmem [shape: f32[2,1,32], index: 5, kind: input, shape index: {}]
  %s6 = inlined_call_operand.vmem [shape: f32[2,32,96], index: 6, kind: input, shape index: {}]
  %s7 = inlined_call_operand.vmem [shape: f32[2,32,32], index: 7, kind: input, shape index: {}]
  %s8 = inlined_call_operand.vmem [shape: f32[2,1,32], index: 8, kind: input, shape index: {}]
  %s9 = inlined_call_operand.vmem [shape: f32[2,1,32], index: 9, kind: input, shape index: {}]
  %s10 = inlined_call_operand.vmem [shape: f32[2,1,32], index: 10, kind: input, shape index: {}]
  %s11 = inlined_call_operand.vmem [shape: f32[2,32,64], index: 11, kind: input, shape index: {}]
  %s12 = inlined_call_operand.vmem [shape: f32[2,1,64], index: 12, kind: input, shape index: {}]
  %s13 = inlined_call_operand.vmem [shape: f32[2,64,32], index: 13, kind: input, shape index: {}]
  %s14 = inlined_call_operand.vmem [shape: f32[2,1,32], index: 14, kind: input, shape index: {}]
  %s15 = inlined_call_operand.vmem [shape: f32[1,32], index: 15, kind: input, shape index: {}]
  %s16 = inlined_call_operand.vmem [shape: f32[1,32], index: 16, kind: input, shape index: {}]
  %s17 = inlined_call_operand.vmem [shape: f32[2,1,48,32], index: 17, kind: output, shape index: {0}]
  %s18 = inlined_call_operand.vmem [shape: f32[1,48,32], index: 18, kind: output, shape index: {1}]
  %19 = xla_tuple %s17, %s18
  %s20 = sld [smem:[#allocation0]]
  $region86: #{vit_modality_forward.1} parent=0
    _
  %s22 = ssub.s32 1, %s20
  %s23 = scalar_select 0, %s22, %s20
  // Predicated region
  $region2: #{vit_modality_forward.1} parent=0 // pred_check
    _
  $region3: #{vit_modality_forward.1} parent=0 // pred_check_branch
    %25 = sbr.rel (0) target = $region5
  $region4: #{vit_modality_forward.1} parent=0 // pred_region
    _
  $region5: #{vit_modality_forward.1} parent=0 // pred_fallthru
    _
  // Predicated region
  $region6: #{vit_modality_forward.1} parent=0 // pred_check
    _
  $region7: #{vit_modality_forward.1} parent=0 // pred_check_branch
    %27 = sbr.rel (0) target = $region9
  $region8: #{vit_modality_forward.1} parent=0 // pred_region
    _
  $region9: #{vit_modality_forward.1} parent=0 // pred_fallthru
    _
  // Predicated region
  $region10: #{vit_modality_forward.1} parent=0 // pred_check
    _
  $region11: #{vit_modality_forward.1} parent=0 // pred_check_branch
    %29 = sbr.rel (0) target = $region13
  $region12: #{vit_modality_forward.1} parent=0 // pred_region
    _
  $region13: #{vit_modality_forward.1} parent=0 // pred_fallthru
    _
  // Predicated region
  $region14: #{vit_modality_forward.1} parent=0 // pred_check
    _
  $region15: #{vit_modality_forward.1} parent=0 // pred_check_branch
    %31 = sbr.rel (0) target = $region17
  $region16: #{vit_modality_forward.1} parent=0 // pred_region
    _
  $region17: #{vit_modality_forward.1} parent=0 // pred_fallthru
    _
  // Predicated region
  $region18: #{vit_modality_forward.1} parent=0 // pred_check
    _
  $region19: #{vit_modality_forward.1} parent=0 // pred_check_branch
    %33 = sbr.rel (0) target = $region21
  $region20: #{vit_modality_forward.1} parent=0 // pred_region
    _
  $region21: #{vit_modality_forward.1} parent=0 // pred_fallthru
    _
  // Predicated region
  $region22: #{vit_modality_forward.1} parent=0 // pred_check
    _
  $region23: #{vit_modality_forward.1} parent=0 // pred_check_branch
    %35 = sbr.rel (0) target = $region25
  $region24: #{vit_modality_forward.1} parent=0 // pred_region
    _
  $region25: #{vit_modality_forward.1} parent=0 // pred_fallthru
    _
  // Predicated region
  $region26: #{vit_modality_forward.1} parent=0 // pred_check
    _
  $region27: #{vit_modality_forward.1} parent=0 // pred_check_branch
    %37 = sbr.rel (0) target = $region29
  $region28: #{vit_modality_forward.1} parent=0 // pred_region
    _
  $region29: #{vit_modality_forward.1} parent=0 // pred_fallthru
    _
  // Predicated region
  $region30: #{vit_modality_forward.1} parent=0 // pred_check
    _
  $region31: #{vit_modality_forward.1} parent=0 // pred_check_branch
    %39 = sbr.rel (0) target = $region33
  $region32: #{vit_modality_forward.1} parent=0 // pred_region
    _
  $region33: #{vit_modality_forward.1} parent=0 // pred_fallthru
    _
  // Predicated region
  $region34: #{vit_modality_forward.1} parent=0 // pred_check
    _
  $region35: #{vit_modality_forward.1} parent=0 // pred_check_branch
    %41 = sbr.rel (0) target = $region37
  $region36: #{vit_modality_forward.1} parent=0 // pred_region
    _
  $region37: #{vit_modality_forward.1} parent=0 // pred_fallthru
    _
  // Predicated region
  $region38: #{vit_modality_forward.1} parent=0 // pred_check
    _
  $region39: #{vit_modality_forward.1} parent=0 // pred_check_branch
    %43 = sbr.rel (0) target = $region41
  $region40: #{vit_modality_forward.1} parent=0 // pred_region
    _
  $region41: #{vit_modality_forward.1} parent=0 // pred_fallthru
    _
  // Predicated region
  $region42: #{vit_modality_forward.1} parent=0 // pred_check
    _
  $region43: #{vit_modality_forward.1} parent=0 // pred_check_branch
    %45 = sbr.rel (0) target = $region45
  $region44: #{vit_modality_forward.1} parent=0 // pred_region
    _
  $region45: #{vit_modality_forward.1} parent=0 // pred_fallthru
    _
  // Predicated region
  $region46: #{vit_modality_forward.1} parent=0 // pred_check
    _
  $region47: #{vit_modality_forward.1} parent=0 // pred_check_branch
    %47 = sbr.rel (0) target = $region49
  $region48: #{vit_modality_forward.1} parent=0 // pred_region
    _
  $region49: #{vit_modality_forward.1} parent=0 // pred_fallthru
    _
  // Predicated region
  $region50: #{vit_modality_forward.1} parent=0 // pred_check
    _
  $region51: #{vit_modality_forward.1} parent=0 // pred_check_branch
    %49 = sbr.rel (0) target = $region53
  $region52: #{vit_modality_forward.1} parent=0 // pred_region
    _
  $region53: #{vit_modality_forward.1} parent=0 // pred_fallthru
    _
  // Predicated region
  $region54: #{vit_modality_forward.1} parent=0 // pred_check
    _
  $region55: #{vit_modality_forward.1} parent=0 // pred_check_branch
    %51 = sbr.rel (0) target = $region57
  $region56: #{vit_modality_forward.1} parent=0 // pred_region
    _
  $region57: #{vit_modality_forward.1} parent=0 // pred_fallthru
    _
  // Predicated region
  $region58: #{vit_modality_forward.1} parent=0 // pred_check
    _
  $region59: #{vit_modality_forward.1} parent=0 // pred_check_branch
    %53 = sbr.rel (0) target = $region61
  $region60: #{vit_modality_forward.1} parent=0 // pred_region
    _
  $region61: #{vit_modality_forward.1} parent=0 // pred_fallthru
    _
  // Predicated region
  $region62: #{vit_modality_forward.1} parent=0 // pred_check
    _
  $region63: #{vit_modality_forward.1} parent=0 // pred_check_branch
    %55 = sbr.rel (0) target = $region65
  $region64: #{vit_modality_forward.1} parent=0 // pred_region
    _
  $region65: #{vit_modality_forward.1} parent=0 // pred_fallthru
    _
  // Predicated region
  $region66: #{vit_modality_forward.1} parent=0 // pred_check
    _
  $region67: #{vit_modality_forward.1} parent=0 // pred_check_branch
    %57 = sbr.rel (0) target = $region69
  $region68: #{vit_modality_forward.1} parent=0 // pred_region
    _
  $region69: #{vit_modality_forward.1} parent=0 // pred_fallthru
    _
  %v58 = vld [vmem:[%s2] sm:$0x1]
  %v59 = vld [vmem:[%s0] sm:$0xff]
  %v60 = vld [vmem:[%s0 + $0x8] sm:$0xff]
  %v61 = vld [vmem:[%s0 + $0x10] sm:$0xff]
  %v62 = vld [vmem:[%s0 + $0x18] sm:$0xff]
  %v63 = vld [vmem:[%s0 + $0x20] sm:$0xff]
  %v64 = vld [vmem:[%s0 + $0x28] sm:$0xff]
  %v65 = vld [vmem:[%s3] sm:$0xff]
  %v66 = vld [vmem:[%s3 + $0x8] sm:$0xff]
  %v67 = vld [vmem:[%s3 + $0x10] sm:$0xff]
  %v68 = vld [vmem:[%s3 + $0x18] sm:$0xff]
  %v69 = vld [vmem:[%s3 + $0x20] sm:$0xff]
  %v70 = vld [vmem:[%s3 + $0x28] sm:$0xff]
  %v71 = vld [vmem:[%s3 + $0x30] sm:$0xff]
  %v72 = vld [vmem:[%s3 + $0x38] sm:$0xff]
  %v73 = vld [vmem:[%s1] sm:$0xff]
  %v74 = vld [vmem:[%s1 + $0x8] sm:$0xff]
  %v75 = vld [vmem:[%s1 + $0x10] sm:$0xff]
  %v76 = vld [vmem:[%s1 + $0x18] sm:$0xff]
  %v77 = vld [vmem:[%s1 + $0x20] sm:$0xff]
  %v78 = vld [vmem:[%s1 + $0x28] sm:$0xff]
  %vm79 = vcmask 523264
  %v81 = vsel %vm79, %v59, 0
  %v84 = vsel %vm79, %v60, 0
  %v87 = vsel %vm79, %v61, 0
  %v90 = vsel %vm79, %v62, 0
  %v93 = vsel %vm79, %v63, 0
  %v96 = vsel %vm79, %v64, 0
  %98 = vmatprep.subr.mxu0 0.0
  %99 = vmatpush1.msra.mxu0 0.0
  %100 = vmatprep.subr.mxu0 0.0
  %101 = vmatpush1.msra.mxu0 0.0
  %102 = vmatprep.subr.mxu0 0.0
  %103 = vmatpush1.msra.mxu0 0.0
  %104 = vmatprep.subr.mxu0 0.0
  %105 = vmatpush1.msra.mxu0 0.0
  %106 = vmatprep.subr.mxu0 0.0
  %107 = vmatpush1.msra.mxu0 0.0
  %108 = vmatprep.subr.mxu0 0.0
  %109 = vmatpush1.msra.mxu0 0.0
  %110 = vmatprep.subr.mxu0 0.0
  %111 = vmatpush1.msra.mxu0 0.0
  %112 = vmatprep.subr.mxu0 0.0
  %113 = vmatpush1.msra.mxu0 0.0
  %114 = vmatprep.subr.mxu0 0.0
  %115 = vmatpush1.msra.mxu0 %v72
  %116 = vmatprep.subr.mxu0 0.0
  %117 = vmatpush1.msra.mxu0 %v71
  %118 = vmatprep.subr.mxu0 0.0
  %119 = vmatpush1.msra.mxu0 %v70
  %120 = vmatprep.subr.mxu0 0.0
  %121 = vmatpush1.msra.mxu0 %v69
  %122 = vmatprep.subr.mxu0 0.0
  %123 = vmatpush1.msra.mxu0 %v68
  %124 = vmatprep.subr.mxu0 0.0
  %125 = vmatpush1.msra.mxu0 %v67
  %126 = vmatprep.subr.mxu0 0.0
  %127 = vmatpush1.msra.mxu0 %v66
  %128 = vmatprep.subr.mxu0 0.0
  %129 = vmatpush1.msra.mxu0 %v65
  %130 = vmatprep.subr.mxu0 0.0
  %131 = vmatpush2.msra.mxu0 0.0
  %132 = vmatprep.subr.mxu0 0.0
  %133 = vmatpush2.msra.mxu0 0.0
  %134 = vmatprep.subr.mxu0 0.0
  %135 = vmatpush2.msra.mxu0 0.0
  %136 = vmatprep.subr.mxu0 0.0
  %137 = vmatpush2.msra.mxu0 0.0
  %138 = vmatprep.subr.mxu0 0.0
  %139 = vmatpush2.msra.mxu0 0.0
  %140 = vmatprep.subr.mxu0 0.0
  %141 = vmatpush2.msra.mxu0 0.0
  %142 = vmatprep.subr.mxu0 0.0
  %143 = vmatpush2.msra.mxu0 0.0
  %144 = vmatprep.subr.mxu0 0.0
  %145 = vmatpush2.msra.mxu0 0.0
  %146 = vmatprep.subr.mxu0 0.0
  %147 = vmatpush2.msra.mxu0 0.0
  %148 = vmatprep.subr.mxu0 0.0
  %149 = vmatpush2.msra.mxu0 0.0
  %150 = vmatprep.subr.mxu0 0.0
  %151 = vmatpush2.msra.mxu0 0.0
  %152 = vmatprep.subr.mxu0 0.0
  %153 = vmatpush2.msra.mxu0 0.0
  %154 = vmatprep.subr.mxu0 0.0
  %155 = vmatpush2.msra.mxu0 0.0
  %156 = vmatprep.subr.mxu0 0.0
  %157 = vmatpush2.msra.mxu0 0.0
  %158 = vmatprep.subr.mxu0 0.0
  %159 = vmatpush2.msra.mxu0 0.0
  %160 = vmatprep.subr.mxu0 0.0
  %161 = vmatpush2.msra.mxu0 0.0
  %162 = vmatprep.mubr.f32.mxu0 0.0
  %163 = vmatmul.mubr.f32.gmra.mxu0 %v81
  %v164 = vpop.f32.mrf.mxu0
  %v165 = vadd.f32 %v73, %v164
  %v166 = vpop.f32.mrf.mxu0
  %167 = vmatprep.mubr.f32.mxu0 0.0
  %168 = vmatmul.mubr.f32.gmra.mxu0 %v84
  %v169 = vpop.f32.mrf.mxu0
  %v170 = vadd.f32 %v74, %v169
  %v171 = vpop.f32.mrf.mxu0
  %172 = vmatprep.mubr.f32.mxu0 0.0
  %173 = vmatmul.mubr.f32.gmra.mxu0 %v87
  %v174 = vpop.f32.mrf.mxu0
  %v175 = vadd.f32 %v75, %v174
  %v176 = vpop.f32.mrf.mxu0
  %177 = vmatprep.mubr.f32.mxu0 0.0
  %178 = vmatmul.mubr.f32.gmra.mxu0 %v90
  %v179 = vpop.f32.mrf.mxu0
  %v180 = vadd.f32 %v76, %v179
  %v181 = vpop.f32.mrf.mxu0
  %182 = vmatprep.mubr.f32.mxu0 0.0
  %183 = vmatmul.mubr.f32.gmra.mxu0 %v93
  %v184 = vpop.f32.mrf.mxu0
  %v185 = vadd.f32 %v77, %v184
  %v186 = vpop.f32.mrf.mxu0
  %187 = vmatprep.mubr.f32.mxu0 0.0
  %188 = vmatmul.mubr.f32.gmra.mxu0 %v96
  %v189 = vpop.f32.mrf.mxu0
  %v190 = vadd.f32 %v78, %v189
  %v191 = vpop.f32.mrf.mxu0
  %192 = vdwg.mxu0
  %v193 = vld [vmem:[%s4] sm:$0x1]
  %v194 = vld [vmem:[%s5] sm:$0x1]
  %vm195 = vcmask 261120
  %v196 = vsel %vm195, %v165, 0.0
  %197 = vadd.xlane.f32.xlu0 %v196
  %v198 = vpop.xlane.xlu0 %197
  %v199 = vsel %vm195, %v170, 0.0
  %200 = vadd.xlane.f32.xlu0 %v199
  %v201 = vpop.xlane.xlu0 %200
  %v202 = vsel %vm195, %v175, 0.0
  %203 = vadd.xlane.f32.xlu0 %v202
  %v204 = vpop.xlane.xlu0 %203
  %v205 = vsel %vm195, %v180, 0.0
  %206 = vadd.xlane.f32.xlu0 %v205
  %v207 = vpop.xlane.xlu0 %206
  %v208 = vsel %vm195, %v185, 0.0
  %209 = vadd.xlane.f32.xlu0 %v208
  %v210 = vpop.xlane.xlu0 %209
  %v211 = vsel %vm195, %v190, 0.0
  %212 = vadd.xlane.f32.xlu0 %v211
  %v213 = vpop.xlane.xlu0 %212
  %v214 = vrcp.pop 32.0
  %v215 = vmul.f32 %v198, %v214
  %v216 = vmul.f32 %v201, %v214
  %v217 = vmul.f32 %v204, %v214
  %v218 = vmul.f32 %v207, %v214
  %v219 = vmul.f32 %v210, %v214
  %v220 = vmul.f32 %v213, %v214
  %v221 = vsub.f32 %v165, %v215
  %v222 = vsub.f32 %v170, %v216
  %v223 = vsub.f32 %v175, %v217
  %v224 = vsub.f32 %v180, %v218
  %v225 = vsub.f32 %v185, %v219
  %v226 = vsub.f32 %v190, %v220
  %v227 = vmul.f32 %v221, %v221
  %v228 = vmul.f32 %v222, %v222
  %v229 = vmul.f32 %v223, %v223
  %v230 = vmul.f32 %v224, %v224
  %v231 = vmul.f32 %v225, %v225
  %v232 = vmul.f32 %v226, %v226
  %v233 = vsel %vm195, %v227, 0.0
  %234 = vadd.xlane.f32.xlu0 %v233
  %v235 = vpop.xlane.xlu0 %234
  %v236 = vsel %vm195, %v228, 0.0
  %237 = vadd.xlane.f32.xlu0 %v236
  %v238 = vpop.xlane.xlu0 %237
  %v239 = vsel %vm195, %v229, 0.0
  %240 = vadd.xlane.f32.xlu0 %v239
  %v241 = vpop.xlane.xlu0 %240
  %v242 = vsel %vm195, %v230, 0.0
  %243 = vadd.xlane.f32.xlu0 %v242
  %v244 = vpop.xlane.xlu0 %243
  %v245 = vsel %vm195, %v231, 0.0
  %246 = vadd.xlane.f32.xlu0 %v245
  %v247 = vpop.xlane.xlu0 %246
  %v248 = vsel %vm195, %v232, 0.0
  %249 = vadd.xlane.f32.xlu0 %v248
  %v250 = vpop.xlane.xlu0 %249
  %v251 = vmul.f32 %v235, %v214
  %v252 = vmul.f32 %v238, %v214
  %v253 = vmul.f32 %v241, %v214
  %v254 = vmul.f32 %v244, %v214
  %v255 = vmul.f32 %v247, %v214
  %v256 = vmul.f32 %v250, %v214
  %v257 = vadd.f32 %v251, 1e-05
  %v258 = vadd.f32 %v252, 1e-05
  %v259 = vadd.f32 %v253, 1e-05
  %v260 = vadd.f32 %v254, 1e-05
  %v261 = vadd.f32 %v255, 1e-05
  %v262 = vadd.f32 %v256, 1e-05
  %v263 = vrsqrt.pop %v257
  %v264 = vrsqrt.pop %v258
  %v265 = vrsqrt.pop %v259
  %v266 = vrsqrt.pop %v260
  %v267 = vrsqrt.pop %v261
  %v268 = vrsqrt.pop %v262
  %v269 = vmul.f32 %v221, %v263
  %v270 = vmul.f32 %v222, %v264
  %v271 = vmul.f32 %v223, %v265
  %v272 = vmul.f32 %v224, %v266
  %v273 = vmul.f32 %v225, %v267
  %v274 = vmul.f32 %v226, %v268
  %v276 = vlaneseq
  %v277 = vshrl.u32 %v276, 7
  %v278 = vsub.s32 0, %v277
  %v279 = vrot.slane %v193, %v278
  %v281 = vmul.f32 %v269, %v279
  %v282 = vmul.f32 %v270, %v279
  %v283 = vmul.f32 %v271, %v279
  %v284 = vmul.f32 %v272, %v279
  %v285 = vmul.f32 %v273, %v279
  %v286 = vmul.f32 %v274, %v279
  %v288 = vlaneseq
  %v289 = vshrl.u32 %v288, 7
  %v290 = vsub.s32 0, %v289
  %v291 = vrot.slane %v194, %v290
  %v293 = vadd.f32 %v281, %v291
  %v294 = vadd.f32 %v282, %v291
  %v295 = vadd.f32 %v283, %v291
  %v296 = vadd.f32 %v284, %v291
  %v297 = vadd.f32 %v285, %v291
  %v298 = vadd.f32 %v286, %v291
  %v299 = vld [vmem:[%s6] sm:$0xff]
  %v300 = vld [vmem:[%s6 + $0x8] sm:$0xff]
  %v301 = vld [vmem:[%s6 + $0x10] sm:$0xff]
  %v302 = vld [vmem:[%s6 + $0x18] sm:$0xff]
  %v304 = vsel %vm195, %v293, 0
  %v307 = vsel %vm195, %v294, 0
  %v310 = vsel %vm195, %v295, 0
  %v313 = vsel %vm195, %v296, 0
  %v316 = vsel %vm195, %v297, 0
  %v319 = vsel %vm195, %v298, 0
  %321 = vmatprep.subr.mxu0 0.0
  %322 = vmatpush1.msra.mxu0 0.0
  %323 = vmatprep.subr.mxu0 0.0
  %324 = vmatpush1.msra.mxu0 0.0
  %325 = vmatprep.subr.mxu0 0.0
  %326 = vmatpush1.msra.mxu0 0.0
  %327 = vmatprep.subr.mxu0 0.0
  %328 = vmatpush1.msra.mxu0 0.0
  %329 = vmatprep.subr.mxu0 0.0
  %330 = vmatpush1.msra.mxu0 0.0
  %331 = vmatprep.subr.mxu0 0.0
  %332 = vmatpush1.msra.mxu0 0.0
  %333 = vmatprep.subr.mxu0 0.0
  %334 = vmatpush1.msra.mxu0 0.0
  %335 = vmatprep.subr.mxu0 0.0
  %336 = vmatpush1.msra.mxu0 0.0
  %337 = vmatprep.subr.mxu0 0.0
  %338 = vmatpush1.msra.mxu0 0.0
  %339 = vmatprep.subr.mxu0 0.0
  %340 = vmatpush1.msra.mxu0 0.0
  %341 = vmatprep.subr.mxu0 0.0
  %342 = vmatpush1.msra.mxu0 0.0
  %343 = vmatprep.subr.mxu0 0.0
  %344 = vmatpush1.msra.mxu0 0.0
  %345 = vmatprep.subr.mxu0 0.0
  %346 = vmatpush1.msra.mxu0 %v302
  %347 = vmatprep.subr.mxu0 0.0
  %348 = vmatpush1.msra.mxu0 %v301
  %349 = vmatprep.subr.mxu0 0.0
  %350 = vmatpush1.msra.mxu0 %v300
  %351 = vmatprep.subr.mxu0 0.0
  %352 = vmatpush1.msra.mxu0 %v299
  %353 = vmatprep.subr.mxu0 0.0
  %354 = vmatpush2.msra.mxu0 0.0
  %355 = vmatprep.subr.mxu0 0.0
  %356 = vmatpush2.msra.mxu0 0.0
  %357 = vmatprep.subr.mxu0 0.0
  %358 = vmatpush2.msra.mxu0 0.0
  %359 = vmatprep.subr.mxu0 0.0
  %360 = vmatpush2.msra.mxu0 0.0
  %361 = vmatprep.subr.mxu0 0.0
  %362 = vmatpush2.msra.mxu0 0.0
  %363 = vmatprep.subr.mxu0 0.0
  %364 = vmatpush2.msra.mxu0 0.0
  %365 = vmatprep.subr.mxu0 0.0
  %366 = vmatpush2.msra.mxu0 0.0
  %367 = vmatprep.subr.mxu0 0.0
  %368 = vmatpush2.msra.mxu0 0.0
  %369 = vmatprep.subr.mxu0 0.0
  %370 = vmatpush2.msra.mxu0 0.0
  %371 = vmatprep.subr.mxu0 0.0
  %372 = vmatpush2.msra.mxu0 0.0
  %373 = vmatprep.subr.mxu0 0.0
  %374 = vmatpush2.msra.mxu0 0.0
  %375 = vmatprep.subr.mxu0 0.0
  %376 = vmatpush2.msra.mxu0 0.0
  %377 = vmatprep.subr.mxu0 0.0
  %378 = vmatpush2.msra.mxu0 0.0
  %379 = vmatprep.subr.mxu0 0.0
  %380 = vmatpush2.msra.mxu0 0.0
  %381 = vmatprep.subr.mxu0 0.0
  %382 = vmatpush2.msra.mxu0 0.0
  %383 = vmatprep.subr.mxu0 0.0
  %384 = vmatpush2.msra.mxu0 0.0
  %385 = vmatprep.mubr.f32.mxu0 0.0
  %386 = vmatmul.mubr.f32.gmra.mxu0 %v304
  %v387 = vpop.f32.mrf.mxu0
  %v388 = vadd.f32 0.0, %v387
  %v389 = vpop.f32.mrf.mxu0
  %390 = vmatprep.mubr.f32.mxu0 0.0
  %391 = vmatmul.mubr.f32.gmra.mxu0 %v307
  %v392 = vpop.f32.mrf.mxu0
  %v393 = vadd.f32 0.0, %v392
  %v394 = vpop.f32.mrf.mxu0
  %395 = vmatprep.mubr.f32.mxu0 0.0
  %396 = vmatmul.mubr.f32.gmra.mxu0 %v310
  %v397 = vpop.f32.mrf.mxu0
  %v398 = vadd.f32 0.0, %v397
  %v399 = vpop.f32.mrf.mxu0
  %400 = vmatprep.mubr.f32.mxu0 0.0
  %401 = vmatmul.mubr.f32.gmra.mxu0 %v313
  %v402 = vpop.f32.mrf.mxu0
  %v403 = vadd.f32 0.0, %v402
  %v404 = vpop.f32.mrf.mxu0
  %405 = vmatprep.mubr.f32.mxu0 0.0
  %406 = vmatmul.mubr.f32.gmra.mxu0 %v316
  %v407 = vpop.f32.mrf.mxu0
  %v408 = vadd.f32 0.0, %v407
  %v409 = vpop.f32.mrf.mxu0
  %410 = vmatprep.mubr.f32.mxu0 0.0
  %411 = vmatmul.mubr.f32.gmra.mxu0 %v319
  %v412 = vpop.f32.mrf.mxu0
  %v413 = vadd.f32 0.0, %v412
  %v414 = vpop.f32.mrf.mxu0
  %415 = vdwg.mxu0
  %v417 = vlaneseq
  %v418 = vshrl.u32 %v417, 7
  %v419 = vsub.s32 0, %v418
  %v420 = vrot.slane %v58, %v419
  %425 = vrot.lane.b32.xlu0 %v388, 96
  %v426 = vpop.permute.xlu0 %425
  %427 = vrot.lane.b32.xlu0 %v393, 96
  %v428 = vpop.permute.xlu0 %427
  %429 = vrot.lane.b32.xlu0 %v398, 96
  %v430 = vpop.permute.xlu0 %429
  %vm431 = vcmask 64512
  %v432 = vsel %vm431, %v388, 0
  %v434 = vsel %vm431, %v393, 0
  %v436 = vsel %vm431, %v398, 0
  %v438 = vsel %vm431, %v426, 0
  %v440 = vsel %vm431, %v428, 0
  %v442 = vsel %vm431, %v430, 0
  %444 = vmatprep.subr.mxu0 0.0
  %445 = vmatpush1.xpose.msra.mxu0 0.0
  %446 = vmatprep.subr.mxu0 0.0
  %447 = vmatpush1.xpose.msra.mxu0 0.0
  %448 = vmatprep.subr.mxu0 0.0
  %449 = vmatpush1.xpose.msra.mxu0 0.0
  %450 = vmatprep.subr.mxu0 0.0
  %451 = vmatpush1.xpose.msra.mxu0 0.0
  %452 = vmatprep.subr.mxu0 0.0
  %453 = vmatpush1.xpose.msra.mxu0 0.0
  %454 = vmatprep.subr.mxu0 0.0
  %455 = vmatpush1.xpose.msra.mxu0 0.0
  %456 = vmatprep.subr.mxu0 0.0
  %457 = vmatpush1.xpose.msra.mxu0 0.0
  %458 = vmatprep.subr.mxu0 0.0
  %459 = vmatpush1.xpose.msra.mxu0 0.0
  %460 = vmatprep.subr.mxu0 0.0
  %461 = vmatpush1.xpose.msra.mxu0 0.0
  %462 = vmatprep.subr.mxu0 0.0
  %463 = vmatpush1.xpose.msra.mxu0 0.0
  %464 = vmatprep.subr.mxu0 0.0
  %465 = vmatpush1.xpose.msra.mxu0 0.0
  %466 = vmatprep.subr.mxu0 0.0
  %467 = vmatpush1.xpose.msra.mxu0 0.0
  %468 = vmatprep.subr.mxu0 0.0
  %469 = vmatpush1.xpose.msra.mxu0 0.0
  %470 = vmatprep.subr.mxu0 0.0
  %471 = vmatpush1.xpose.msra.mxu0 %v442
  %472 = vmatprep.subr.mxu0 0.0
  %473 = vmatpush1.xpose.msra.mxu0 %v440
  %474 = vmatprep.subr.mxu0 0.0
  %475 = vmatpush1.xpose.msra.mxu0 %v438
  %476 = vmatprep.subr.mxu0 0.0
  %477 = vmatpush2.xpose.msra.mxu0 0.0
  %478 = vmatprep.subr.mxu0 0.0
  %479 = vmatpush2.xpose.msra.mxu0 0.0
  %480 = vmatprep.subr.mxu0 0.0
  %481 = vmatpush2.xpose.msra.mxu0 0.0
  %482 = vmatprep.subr.mxu0 0.0
  %483 = vmatpush2.xpose.msra.mxu0 0.0
  %484 = vmatprep.subr.mxu0 0.0
  %485 = vmatpush2.xpose.msra.mxu0 0.0
  %486 = vmatprep.subr.mxu0 0.0
  %487 = vmatpush2.xpose.msra.mxu0 0.0
  %488 = vmatprep.subr.mxu0 0.0
  %489 = vmatpush2.xpose.msra.mxu0 0.0
  %490 = vmatprep.subr.mxu0 0.0
  %491 = vmatpush2.xpose.msra.mxu0 0.0
  %492 = vmatprep.subr.mxu0 0.0
  %493 = vmatpush2.xpose.msra.mxu0 0.0
  %494 = vmatprep.subr.mxu0 0.0
  %495 = vmatpush2.xpose.msra.mxu0 0.0
  %496 = vmatprep.subr.mxu0 0.0
  %497 = vmatpush2.xpose.msra.mxu0 0.0
  %498 = vmatprep.subr.mxu0 0.0
  %499 = vmatpush2.xpose.msra.mxu0 0.0
  %500 = vmatprep.subr.mxu0 0.0
  %501 = vmatpush2.xpose.msra.mxu0 0.0
  %502 = vmatprep.subr.mxu0 0.0
  %503 = vmatpush2.xpose.msra.mxu0 0.0
  %504 = vmatprep.subr.mxu0 0.0
  %505 = vmatpush2.xpose.msra.mxu0 0.0
  %506 = vmatprep.subr.mxu0 0.0
  %507 = vmatpush2.xpose.msra.mxu0 0.0
  %508 = vmatprep.mubr.f32.mxu0 0.0
  %509 = vmatmul.mubr.f32.gmra.mxu0 %v432
  %v510 = vpop.f32.mrf.mxu0
  %v511 = vadd.f32 %v420, %v510
  %v512 = vpop.f32.mrf.mxu0
  %513 = vmatprep.mubr.f32.mxu0 0.0
  %514 = vmatmul.mubr.f32.gmra.mxu0 %v434
  %v515 = vpop.f32.mrf.mxu0
  %v516 = vadd.f32 %v420, %v515
  %v517 = vpop.f32.mrf.mxu0
  %518 = vmatprep.mubr.f32.mxu0 0.0
  %519 = vmatmul.mubr.f32.gmra.mxu0 %v436
  %v520 = vpop.f32.mrf.mxu0
  %v521 = vadd.f32 %v420, %v520
  %v522 = vpop.f32.mrf.mxu0
  %523 = vdwg.mxu0
  %vm524 = vcmask 195584
  %v525 = vsel %vm524, %v511, -inf
  %526 = vmax.xlane.f32.xlu0 %v525
  %v527 = vpop.xlane.xlu0 %526
  %v528 = vsel %vm524, %v516, -inf
  %529 = vmax.xlane.f32.xlu0 %v528
  %v530 = vpop.xlane.xlu0 %529
  %v531 = vsel %vm524, %v521, -inf
  %532 = vmax.xlane.f32.xlu0 %v531
  %v533 = vpop.xlane.xlu0 %532
  %v534 = vsub.f32 %v511, %v527
  %v535 = vsub.f32 %v516, %v530
  %v536 = vsub.f32 %v521, %v533
  %v537 = vmul.f32 %v534, 1.442695
  %v538 = vpow.pop %v537
  %v539 = vmul.f32 %v535, 1.442695
  %v540 = vpow.pop %v539
  %v541 = vmul.f32 %v536, 1.442695
  %v542 = vpow.pop %v541
  %v543 = vsel %vm524, %v538, 0.0
  %544 = vadd.xlane.f32.xlu0 %v543
  %v545 = vpop.xlane.xlu0 %544
  %v546 = vsel %vm524, %v540, 0.0
  %547 = vadd.xlane.f32.xlu0 %v546
  %v548 = vpop.xlane.xlu0 %547
  %v549 = vsel %vm524, %v542, 0.0
  %550 = vadd.xlane.f32.xlu0 %v549
  %v551 = vpop.xlane.xlu0 %550
  %v552 = vrcp.pop %v545
  %v553 = vrcp.pop %v548
  %v554 = vrcp.pop %v551
  %v555 = vmul.f32 %v538, %v552
  %v556 = vmul.f32 %v540, %v553
  %v557 = vmul.f32 %v542, %v554
  %558 = vrot.lane.b32.xlu0 %v388, 64
  %v559 = vpop.permute.xlu0 %558
  %560 = vrot.lane.b32.xlu0 %v393, 64
  %v561 = vpop.permute.xlu0 %560
  %562 = vrot.lane.b32.xlu0 %v398, 64
  %v563 = vpop.permute.xlu0 %562
  %v568 = vsel %vm524, %v555, 0
  %v571 = vsel %vm524, %v556, 0
  %v574 = vsel %vm524, %v557, 0
  %576 = vmatprep.subr.mxu0 0.0
  %577 = vmatpush1.msra.mxu0 0.0
  %578 = vmatprep.subr.mxu0 0.0
  %579 = vmatpush1.msra.mxu0 0.0
  %580 = vmatprep.subr.mxu0 0.0
  %581 = vmatpush1.msra.mxu0 0.0
  %582 = vmatprep.subr.mxu0 0.0
  %583 = vmatpush1.msra.mxu0 0.0
  %584 = vmatprep.subr.mxu0 0.0
  %585 = vmatpush1.msra.mxu0 0.0
  %586 = vmatprep.subr.mxu0 0.0
  %587 = vmatpush1.msra.mxu0 0.0
  %588 = vmatprep.subr.mxu0 0.0
  %589 = vmatpush1.msra.mxu0 0.0
  %590 = vmatprep.subr.mxu0 0.0
  %591 = vmatpush1.msra.mxu0 0.0
  %592 = vmatprep.subr.mxu0 0.0
  %593 = vmatpush1.msra.mxu0 0.0
  %594 = vmatprep.subr.mxu0 0.0
  %595 = vmatpush1.msra.mxu0 0.0
  %596 = vmatprep.subr.mxu0 0.0
  %597 = vmatpush1.msra.mxu0 0.0
  %598 = vmatprep.subr.mxu0 0.0
  %599 = vmatpush1.msra.mxu0 0.0
  %600 = vmatprep.subr.mxu0 0.0
  %601 = vmatpush1.msra.mxu0 0.0
  %602 = vmatprep.subr.mxu0 0.0
  %603 = vmatpush1.msra.mxu0 %v563
  %604 = vmatprep.subr.mxu0 0.0
  %605 = vmatpush1.msra.mxu0 %v561
  %606 = vmatprep.subr.mxu0 0.0
  %607 = vmatpush1.msra.mxu0 %v559
  %608 = vmatprep.subr.mxu0 0.0
  %609 = vmatpush2.msra.mxu0 0.0
  %610 = vmatprep.subr.mxu0 0.0
  %611 = vmatpush2.msra.mxu0 0.0
  %612 = vmatprep.subr.mxu0 0.0
  %613 = vmatpush2.msra.mxu0 0.0
  %614 = vmatprep.subr.mxu0 0.0
  %615 = vmatpush2.msra.mxu0 0.0
  %616 = vmatprep.subr.mxu0 0.0
  %617 = vmatpush2.msra.mxu0 0.0
  %618 = vmatprep.subr.mxu0 0.0
  %619 = vmatpush2.msra.mxu0 0.0
  %620 = vmatprep.subr.mxu0 0.0
  %621 = vmatpush2.msra.mxu0 0.0
  %622 = vmatprep.subr.mxu0 0.0
  %623 = vmatpush2.msra.mxu0 0.0
  %624 = vmatprep.subr.mxu0 0.0
  %625 = vmatpush2.msra.mxu0 0.0
  %626 = vmatprep.subr.mxu0 0.0
  %627 = vmatpush2.msra.mxu0 0.0
  %628 = vmatprep.subr.mxu0 0.0
  %629 = vmatpush2.msra.mxu0 0.0
  %630 = vmatprep.subr.mxu0 0.0
  %631 = vmatpush2.msra.mxu0 0.0
  %632 = vmatprep.subr.mxu0 0.0
  %633 = vmatpush2.msra.mxu0 0.0
  %634 = vmatprep.subr.mxu0 0.0
  %635 = vmatpush2.msra.mxu0 0.0
  %636 = vmatprep.subr.mxu0 0.0
  %637 = vmatpush2.msra.mxu0 0.0
  %638 = vmatprep.subr.mxu0 0.0
  %639 = vmatpush2.msra.mxu0 0.0
  %640 = vmatprep.mubr.f32.mxu0 0.0
  %641 = vmatmul.mubr.f32.gmra.mxu0 %v568
  %v642 = vpop.f32.mrf.mxu0
  %v643 = vadd.f32 0.0, %v642
  %v644 = vpop.f32.mrf.mxu0
  %645 = vmatprep.mubr.f32.mxu0 0.0
  %646 = vmatmul.mubr.f32.gmra.mxu0 %v571
  %v647 = vpop.f32.mrf.mxu0
  %v648 = vadd.f32 0.0, %v647
  %v649 = vpop.f32.mrf.mxu0
  %650 = vmatprep.mubr.f32.mxu0 0.0
  %651 = vmatmul.mubr.f32.gmra.mxu0 %v574
  %v652 = vpop.f32.mrf.mxu0
  %v653 = vadd.f32 0.0, %v652
  %v654 = vpop.f32.mrf.mxu0
  %655 = vdwg.mxu0
  %656 = vrot.lane.b32.xlu0 %v388, 120
  %v657 = vpop.permute.xlu0 %656
  %658 = vrot.lane.b32.xlu0 %v393, 120
  %v659 = vpop.permute.xlu0 %658
  %660 = vrot.lane.b32.xlu0 %v398, 120
  %v661 = vpop.permute.xlu0 %660
  %662 = vrot.lane.b32.xlu0 %v388, 88
  %v663 = vpop.permute.xlu0 %662
  %664 = vrot.lane.b32.xlu0 %v393, 88
  %v665 = vpop.permute.xlu0 %664
  %666 = vrot.lane.b32.xlu0 %v398, 88
  %v667 = vpop.permute.xlu0 %666
  %v668 = vsel %vm431, %v657, 0
  %v670 = vsel %vm431, %v659, 0
  %v672 = vsel %vm431, %v661, 0
  %v674 = vsel %vm431, %v663, 0
  %v676 = vsel %vm431, %v665, 0
  %v678 = vsel %vm431, %v667, 0
  %680 = vmatprep.subr.mxu0 0.0
  %681 = vmatpush1.xpose.msra.mxu0 0.0
  %682 = vmatprep.subr.mxu0 0.0
  %683 = vmatpush1.xpose.msra.mxu0 0.0
  %684 = vmatprep.subr.mxu0 0.0
  %685 = vmatpush1.xpose.msra.mxu0 0.0
  %686 = vmatprep.subr.mxu0 0.0
  %687 = vmatpush1.xpose.msra.mxu0 0.0
  %688 = vmatprep.subr.mxu0 0.0
  %689 = vmatpush1.xpose.msra.mxu0 0.0
  %690 = vmatprep.subr.mxu0 0.0
  %691 = vmatpush1.xpose.msra.mxu0 0.0
  %692 = vmatprep.subr.mxu0 0.0
  %693 = vmatpush1.xpose.msra.mxu0 0.0
  %694 = vmatprep.subr.mxu0 0.0
  %695 = vmatpush1.xpose.msra.mxu0 0.0
  %696 = vmatprep.subr.mxu0 0.0
  %697 = vmatpush1.xpose.msra.mxu0 0.0
  %698 = vmatprep.subr.mxu0 0.0
  %699 = vmatpush1.xpose.msra.mxu0 0.0
  %700 = vmatprep.subr.mxu0 0.0
  %701 = vmatpush1.xpose.msra.mxu0 0.0
  %702 = vmatprep.subr.mxu0 0.0
  %703 = vmatpush1.xpose.msra.mxu0 0.0
  %704 = vmatprep.subr.mxu0 0.0
  %705 = vmatpush1.xpose.msra.mxu0 0.0
  %706 = vmatprep.subr.mxu0 0.0
  %707 = vmatpush1.xpose.msra.mxu0 %v678
  %708 = vmatprep.subr.mxu0 0.0
  %709 = vmatpush1.xpose.msra.mxu0 %v676
  %710 = vmatprep.subr.mxu0 0.0
  %711 = vmatpush1.xpose.msra.mxu0 %v674
  %712 = vmatprep.subr.mxu0 0.0
  %713 = vmatpush2.xpose.msra.mxu0 0.0
  %714 = vmatprep.subr.mxu0 0.0
  %715 = vmatpush2.xpose.msra.mxu0 0.0
  %716 = vmatprep.subr.mxu0 0.0
  %717 = vmatpush2.xpose.msra.mxu0 0.0
  %718 = vmatprep.subr.mxu0 0.0
  %719 = vmatpush2.xpose.msra.mxu0 0.0
  %720 = vmatprep.subr.mxu0 0.0
  %721 = vmatpush2.xpose.msra.mxu0 0.0
  %722 = vmatprep.subr.mxu0 0.0
  %723 = vmatpush2.xpose.msra.mxu0 0.0
  %724 = vmatprep.subr.mxu0 0.0
  %725 = vmatpush2.xpose.msra.mxu0 0.0
  %726 = vmatprep.subr.mxu0 0.0
  %727 = vmatpush2.xpose.msra.mxu0 0.0
  %728 = vmatprep.subr.mxu0 0.0
  %729 = vmatpush2.xpose.msra.mxu0 0.0
  %730 = vmatprep.subr.mxu0 0.0
  %731 = vmatpush2.xpose.msra.mxu0 0.0
  %732 = vmatprep.subr.mxu0 0.0
  %733 = vmatpush2.xpose.msra.mxu0 0.0
  %734 = vmatprep.subr.mxu0 0.0
  %735 = vmatpush2.xpose.msra.mxu0 0.0
  %736 = vmatprep.subr.mxu0 0.0
  %737 = vmatpush2.xpose.msra.mxu0 0.0
  %738 = vmatprep.subr.mxu0 0.0
  %739 = vmatpush2.xpose.msra.mxu0 0.0
  %740 = vmatprep.subr.mxu0 0.0
  %741 = vmatpush2.xpose.msra.mxu0 0.0
  %742 = vmatprep.subr.mxu0 0.0
  %743 = vmatpush2.xpose.msra.mxu0 0.0
  %744 = vmatprep.mubr.f32.mxu0 0.0
  %745 = vmatmul.mubr.f32.gmra.mxu0 %v668
  %v746 = vpop.f32.mrf.mxu0
  %v747 = vadd.f32 %v420, %v746
  %v748 = vpop.f32.mrf.mxu0
  %749 = vmatprep.mubr.f32.mxu0 0.0
  %750 = vmatmul.mubr.f32.gmra.mxu0 %v670
  %v751 = vpop.f32.mrf.mxu0
  %v752 = vadd.f32 %v420, %v751
  %v753 = vpop.f32.mrf.mxu0
  %754 = vmatprep.mubr.f32.mxu0 0.0
  %755 = vmatmul.mubr.f32.gmra.mxu0 %v672
  %v756 = vpop.f32.mrf.mxu0
  %v757 = vadd.f32 %v420, %v756
  %v758 = vpop.f32.mrf.mxu0
  %759 = vdwg.mxu0
  %v760 = vsel %vm524, %v747, -inf
  %761 = vmax.xlane.f32.xlu0 %v760
  %v762 = vpop.xlane.xlu0 %761
  %v763 = vsel %vm524, %v752, -inf
  %764 = vmax.xlane.f32.xlu0 %v763
  %v765 = vpop.xlane.xlu0 %764
  %v766 = vsel %vm524, %v757, -inf
  %767 = vmax.xlane.f32.xlu0 %v766
  %v768 = vpop.xlane.xlu0 %767
  %v769 = vsub.f32 %v747, %v762
  %v770 = vsub.f32 %v752, %v765
  %v771 = vsub.f32 %v757, %v768
  %v772 = vmul.f32 %v769, 1.442695
  %v773 = vpow.pop %v772
  %v774 = vmul.f32 %v770, 1.442695
  %v775 = vpow.pop %v774
  %v776 = vmul.f32 %v771, 1.442695
  %v777 = vpow.pop %v776
  %v778 = vsel %vm524, %v773, 0.0
  %779 = vadd.xlane.f32.xlu0 %v778
  %v780 = vpop.xlane.xlu0 %779
  %v781 = vsel %vm524, %v775, 0.0
  %782 = vadd.xlane.f32.xlu0 %v781
  %v783 = vpop.xlane.xlu0 %782
  %v784 = vsel %vm524, %v777, 0.0
  %785 = vadd.xlane.f32.xlu0 %v784
  %v786 = vpop.xlane.xlu0 %785
  %v787 = vrcp.pop %v780
  %v788 = vrcp.pop %v783
  %v789 = vrcp.pop %v786
  %v790 = vmul.f32 %v773, %v787
  %v791 = vmul.f32 %v775, %v788
  %v792 = vmul.f32 %v777, %v789
  %793 = vrot.lane.b32.xlu0 %v388, 56
  %v794 = vpop.permute.xlu0 %793
  %795 = vrot.lane.b32.xlu0 %v393, 56
  %v796 = vpop.permute.xlu0 %795
  %797 = vrot.lane.b32.xlu0 %v398, 56
  %v798 = vpop.permute.xlu0 %797
  %v803 = vsel %vm524, %v790, 0
  %v806 = vsel %vm524, %v791, 0
  %v809 = vsel %vm524, %v792, 0
  %811 = vmatprep.subr.mxu0 0.0
  %812 = vmatpush1.msra.mxu0 0.0
  %813 = vmatprep.subr.mxu0 0.0
  %814 = vmatpush1.msra.mxu0 0.0
  %815 = vmatprep.subr.mxu0 0.0
  %816 = vmatpush1.msra.mxu0 0.0
  %817 = vmatprep.subr.mxu0 0.0
  %818 = vmatpush1.msra.mxu0 0.0
  %819 = vmatprep.subr.mxu0 0.0
  %820 = vmatpush1.msra.mxu0 0.0
  %821 = vmatprep.subr.mxu0 0.0
  %822 = vmatpush1.msra.mxu0 0.0
  %823 = vmatprep.subr.mxu0 0.0
  %824 = vmatpush1.msra.mxu0 0.0
  %825 = vmatprep.subr.mxu0 0.0
  %826 = vmatpush1.msra.mxu0 0.0
  %827 = vmatprep.subr.mxu0 0.0
  %828 = vmatpush1.msra.mxu0 0.0
  %829 = vmatprep.subr.mxu0 0.0
  %830 = vmatpush1.msra.mxu0 0.0
  %831 = vmatprep.subr.mxu0 0.0
  %832 = vmatpush1.msra.mxu0 0.0
  %833 = vmatprep.subr.mxu0 0.0
  %834 = vmatpush1.msra.mxu0 0.0
  %835 = vmatprep.subr.mxu0 0.0
  %836 = vmatpush1.msra.mxu0 0.0
  %837 = vmatprep.subr.mxu0 0.0
  %838 = vmatpush1.msra.mxu0 %v798
  %839 = vmatprep.subr.mxu0 0.0
  %840 = vmatpush1.msra.mxu0 %v796
  %841 = vmatprep.subr.mxu0 0.0
  %842 = vmatpush1.msra.mxu0 %v794
  %843 = vmatprep.subr.mxu0 0.0
  %844 = vmatpush2.msra.mxu0 0.0
  %845 = vmatprep.subr.mxu0 0.0
  %846 = vmatpush2.msra.mxu0 0.0
  %847 = vmatprep.subr.mxu0 0.0
  %848 = vmatpush2.msra.mxu0 0.0
  %849 = vmatprep.subr.mxu0 0.0
  %850 = vmatpush2.msra.mxu0 0.0
  %851 = vmatprep.subr.mxu0 0.0
  %852 = vmatpush2.msra.mxu0 0.0
  %853 = vmatprep.subr.mxu0 0.0
  %854 = vmatpush2.msra.mxu0 0.0
  %855 = vmatprep.subr.mxu0 0.0
  %856 = vmatpush2.msra.mxu0 0.0
  %857 = vmatprep.subr.mxu0 0.0
  %858 = vmatpush2.msra.mxu0 0.0
  %859 = vmatprep.subr.mxu0 0.0
  %860 = vmatpush2.msra.mxu0 0.0
  %861 = vmatprep.subr.mxu0 0.0
  %862 = vmatpush2.msra.mxu0 0.0
  %863 = vmatprep.subr.mxu0 0.0
  %864 = vmatpush2.msra.mxu0 0.0
  %865 = vmatprep.subr.mxu0 0.0
  %866 = vmatpush2.msra.mxu0 0.0
  %867 = vmatprep.subr.mxu0 0.0
  %868 = vmatpush2.msra.mxu0 0.0
  %869 = vmatprep.subr.mxu0 0.0
  %870 = vmatpush2.msra.mxu0 0.0
  %871 = vmatprep.subr.mxu0 0.0
  %872 = vmatpush2.msra.mxu0 0.0
  %873 = vmatprep.subr.mxu0 0.0
  %874 = vmatpush2.msra.mxu0 0.0
  %875 = vmatprep.mubr.f32.mxu0 0.0
  %876 = vmatmul.mubr.f32.gmra.mxu0 %v803
  %v877 = vpop.f32.mrf.mxu0
  %v878 = vadd.f32 0.0, %v877
  %v879 = vpop.f32.mrf.mxu0
  %880 = vmatprep.mubr.f32.mxu0 0.0
  %881 = vmatmul.mubr.f32.gmra.mxu0 %v806
  %v882 = vpop.f32.mrf.mxu0
  %v883 = vadd.f32 0.0, %v882
  %v884 = vpop.f32.mrf.mxu0
  %885 = vmatprep.mubr.f32.mxu0 0.0
  %886 = vmatmul.mubr.f32.gmra.mxu0 %v809
  %v887 = vpop.f32.mrf.mxu0
  %v888 = vadd.f32 0.0, %v887
  %v889 = vpop.f32.mrf.mxu0
  %890 = vdwg.mxu0
  %891 = vrot.lane.b32.xlu0 %v388, 112
  %v892 = vpop.permute.xlu0 %891
  %893 = vrot.lane.b32.xlu0 %v393, 112
  %v894 = vpop.permute.xlu0 %893
  %895 = vrot.lane.b32.xlu0 %v398, 112
  %v896 = vpop.permute.xlu0 %895
  %897 = vrot.lane.b32.xlu0 %v388, 80
  %v898 = vpop.permute.xlu0 %897
  %899 = vrot.lane.b32.xlu0 %v393, 80
  %v900 = vpop.permute.xlu0 %899
  %901 = vrot.lane.b32.xlu0 %v398, 80
  %v902 = vpop.permute.xlu0 %901
  %v903 = vsel %vm431, %v892, 0
  %v905 = vsel %vm431, %v894, 0
  %v907 = vsel %vm431, %v896, 0
  %v909 = vsel %vm431, %v898, 0
  %v911 = vsel %vm431, %v900, 0
  %v913 = vsel %vm431, %v902, 0
  %915 = vmatprep.subr.mxu0 0.0
  %916 = vmatpush1.xpose.msra.mxu0 0.0
  %917 = vmatprep.subr.mxu0 0.0
  %918 = vmatpush1.xpose.msra.mxu0 0.0
  %919 = vmatprep.subr.mxu0 0.0
  %920 = vmatpush1.xpose.msra.mxu0 0.0
  %921 = vmatprep.subr.mxu0 0.0
  %922 = vmatpush1.xpose.msra.mxu0 0.0
  %923 = vmatprep.subr.mxu0 0.0
  %924 = vmatpush1.xpose.msra.mxu0 0.0
  %925 = vmatprep.subr.mxu0 0.0
  %926 = vmatpush1.xpose.msra.mxu0 0.0
  %927 = vmatprep.subr.mxu0 0.0
  %928 = vmatpush1.xpose.msra.mxu0 0.0
  %929 = vmatprep.subr.mxu0 0.0
  %930 = vmatpush1.xpose.msra.mxu0 0.0
  %931 = vmatprep.subr.mxu0 0.0
  %932 = vmatpush1.xpose.msra.mxu0 0.0
  %933 = vmatprep.subr.mxu0 0.0
  %934 = vmatpush1.xpose.msra.mxu0 0.0
  %935 = vmatprep.subr.mxu0 0.0
  %936 = vmatpush1.xpose.msra.mxu0 0.0
  %937 = vmatprep.subr.mxu0 0.0
  %938 = vmatpush1.xpose.msra.mxu0 0.0
  %939 = vmatprep.subr.mxu0 0.0
  %940 = vmatpush1.xpose.msra.mxu0 0.0
  %941 = vmatprep.subr.mxu0 0.0
  %942 = vmatpush1.xpose.msra.mxu0 %v913
  %943 = vmatprep.subr.mxu0 0.0
  %944 = vmatpush1.xpose.msra.mxu0 %v911
  %945 = vmatprep.subr.mxu0 0.0
  %946 = vmatpush1.xpose.msra.mxu0 %v909
  %947 = vmatprep.subr.mxu0 0.0
  %948 = vmatpush2.xpose.msra.mxu0 0.0
  %949 = vmatprep.subr.mxu0 0.0
  %950 = vmatpush2.xpose.msra.mxu0 0.0
  %951 = vmatprep.subr.mxu0 0.0
  %952 = vmatpush2.xpose.msra.mxu0 0.0
  %953 = vmatprep.subr.mxu0 0.0
  %954 = vmatpush2.xpose.msra.mxu0 0.0
  %955 = vmatprep.subr.mxu0 0.0
  %956 = vmatpush2.xpose.msra.mxu0 0.0
  %957 = vmatprep.subr.mxu0 0.0
  %958 = vmatpush2.xpose.msra.mxu0 0.0
  %959 = vmatprep.subr.mxu0 0.0
  %960 = vmatpush2.xpose.msra.mxu0 0.0
  %961 = vmatprep.subr.mxu0 0.0
  %962 = vmatpush2.xpose.msra.mxu0 0.0
  %963 = vmatprep.subr.mxu0 0.0
  %964 = vmatpush2.xpose.msra.mxu0 0.0
  %965 = vmatprep.subr.mxu0 0.0
  %966 = vmatpush2.xpose.msra.mxu0 0.0
  %967 = vmatprep.subr.mxu0 0.0
  %968 = vmatpush2.xpose.msra.mxu0 0.0
  %969 = vmatprep.subr.mxu0 0.0
  %970 = vmatpush2.xpose.msra.mxu0 0.0
  %971 = vmatprep.subr.mxu0 0.0
  %972 = vmatpush2.xpose.msra.mxu0 0.0
  %973 = vmatprep.subr.mxu0 0.0
  %974 = vmatpush2.xpose.msra.mxu0 0.0
  %975 = vmatprep.subr.mxu0 0.0
  %976 = vmatpush2.xpose.msra.mxu0 0.0
  %977 = vmatprep.subr.mxu0 0.0
  %978 = vmatpush2.xpose.msra.mxu0 0.0
  %979 = vmatprep.mubr.f32.mxu0 0.0
  %980 = vmatmul.mubr.f32.gmra.mxu0 %v903
  %v981 = vpop.f32.mrf.mxu0
  %v982 = vadd.f32 %v420, %v981
  %v983 = vpop.f32.mrf.mxu0
  %984 = vmatprep.mubr.f32.mxu0 0.0
  %985 = vmatmul.mubr.f32.gmra.mxu0 %v905
  %v986 = vpop.f32.mrf.mxu0
  %v987 = vadd.f32 %v420, %v986
  %v988 = vpop.f32.mrf.mxu0
  %989 = vmatprep.mubr.f32.mxu0 0.0
  %990 = vmatmul.mubr.f32.gmra.mxu0 %v907
  %v991 = vpop.f32.mrf.mxu0
  %v992 = vadd.f32 %v420, %v991
  %v993 = vpop.f32.mrf.mxu0
  %994 = vdwg.mxu0
  %v995 = vsel %vm524, %v982, -inf
  %996 = vmax.xlane.f32.xlu0 %v995
  %v997 = vpop.xlane.xlu0 %996
  %v998 = vsel %vm524, %v987, -inf
  %999 = vmax.xlane.f32.xlu0 %v998
  %v1000 = vpop.xlane.xlu0 %999
  %v1001 = vsel %vm524, %v992, -inf
  %1002 = vmax.xlane.f32.xlu0 %v1001
  %v1003 = vpop.xlane.xlu0 %1002
  %v1004 = vsub.f32 %v982, %v997
  %v1005 = vsub.f32 %v987, %v1000
  %v1006 = vsub.f32 %v992, %v1003
  %v1007 = vmul.f32 %v1004, 1.442695
  %v1008 = vpow.pop %v1007
  %v1009 = vmul.f32 %v1005, 1.442695
  %v1010 = vpow.pop %v1009
  %v1011 = vmul.f32 %v1006, 1.442695
  %v1012 = vpow.pop %v1011
  %v1013 = vsel %vm524, %v1008, 0.0
  %1014 = vadd.xlane.f32.xlu0 %v1013
  %v1015 = vpop.xlane.xlu0 %1014
  %v1016 = vsel %vm524, %v1010, 0.0
  %1017 = vadd.xlane.f32.xlu0 %v1016
  %v1018 = vpop.xlane.xlu0 %1017
  %v1019 = vsel %vm524, %v1012, 0.0
  %1020 = vadd.xlane.f32.xlu0 %v1019
  %v1021 = vpop.xlane.xlu0 %1020
  %v1022 = vrcp.pop %v1015
  %v1023 = vrcp.pop %v1018
  %v1024 = vrcp.pop %v1021
  %v1025 = vmul.f32 %v1008, %v1022
  %v1026 = vmul.f32 %v1010, %v1023
  %v1027 = vmul.f32 %v1012, %v1024
  %1028 = vrot.lane.b32.xlu0 %v388, 48
  %v1029 = vpop.permute.xlu0 %1028
  %1030 = vrot.lane.b32.xlu0 %v393, 48
  %v1031 = vpop.permute.xlu0 %1030
  %1032 = vrot.lane.b32.xlu0 %v398, 48
  %v1033 = vpop.permute.xlu0 %1032
  %v1038 = vsel %vm524, %v1025, 0
  %v1041 = vsel %vm524, %v1026, 0
  %v1044 = vsel %vm524, %v1027, 0
  %1046 = vmatprep.subr.mxu0 0.0
  %1047 = vmatpush1.msra.mxu0 0.0
  %1048 = vmatprep.subr.mxu0 0.0
  %1049 = vmatpush1.msra.mxu0 0.0
  %1050 = vmatprep.subr.mxu0 0.0
  %1051 = vmatpush1.msra.mxu0 0.0
  %1052 = vmatprep.subr.mxu0 0.0
  %1053 = vmatpush1.msra.mxu0 0.0
  %1054 = vmatprep.subr.mxu0 0.0
  %1055 = vmatpush1.msra.mxu0 0.0
  %1056 = vmatprep.subr.mxu0 0.0
  %1057 = vmatpush1.msra.mxu0 0.0
  %1058 = vmatprep.subr.mxu0 0.0
  %1059 = vmatpush1.msra.mxu0 0.0
  %1060 = vmatprep.subr.mxu0 0.0
  %1061 = vmatpush1.msra.mxu0 0.0
  %1062 = vmatprep.subr.mxu0 0.0
  %1063 = vmatpush1.msra.mxu0 0.0
  %1064 = vmatprep.subr.mxu0 0.0
  %1065 = vmatpush1.msra.mxu0 0.0
  %1066 = vmatprep.subr.mxu0 0.0
  %1067 = vmatpush1.msra.mxu0 0.0
  %1068 = vmatprep.subr.mxu0 0.0
  %1069 = vmatpush1.msra.mxu0 0.0
  %1070 = vmatprep.subr.mxu0 0.0
  %1071 = vmatpush1.msra.mxu0 0.0
  %1072 = vmatprep.subr.mxu0 0.0
  %1073 = vmatpush1.msra.mxu0 %v1033
  %1074 = vmatprep.subr.mxu0 0.0
  %1075 = vmatpush1.msra.mxu0 %v1031
  %1076 = vmatprep.subr.mxu0 0.0
  %1077 = vmatpush1.msra.mxu0 %v1029
  %1078 = vmatprep.subr.mxu0 0.0
  %1079 = vmatpush2.msra.mxu0 0.0
  %1080 = vmatprep.subr.mxu0 0.0
  %1081 = vmatpush2.msra.mxu0 0.0
  %1082 = vmatprep.subr.mxu0 0.0
  %1083 = vmatpush2.msra.mxu0 0.0
  %1084 = vmatprep.subr.mxu0 0.0
  %1085 = vmatpush2.msra.mxu0 0.0
  %1086 = vmatprep.subr.mxu0 0.0
  %1087 = vmatpush2.msra.mxu0 0.0
  %1088 = vmatprep.subr.mxu0 0.0
  %1089 = vmatpush2.msra.mxu0 0.0
  %1090 = vmatprep.subr.mxu0 0.0
  %1091 = vmatpush2.msra.mxu0 0.0
  %1092 = vmatprep.subr.mxu0 0.0
  %1093 = vmatpush2.msra.mxu0 0.0
  %1094 = vmatprep.subr.mxu0 0.0
  %1095 = vmatpush2.msra.mxu0 0.0
  %1096 = vmatprep.subr.mxu0 0.0
  %1097 = vmatpush2.msra.mxu0 0.0
  %1098 = vmatprep.subr.mxu0 0.0
  %1099 = vmatpush2.msra.mxu0 0.0
  %1100 = vmatprep.subr.mxu0 0.0
  %1101 = vmatpush2.msra.mxu0 0.0
  %1102 = vmatprep.subr.mxu0 0.0
  %1103 = vmatpush2.msra.mxu0 0.0
  %1104 = vmatprep.subr.mxu0 0.0
  %1105 = vmatpush2.msra.mxu0 0.0
  %1106 = vmatprep.subr.mxu0 0.0
  %1107 = vmatpush2.msra.mxu0 0.0
  %1108 = vmatprep.subr.mxu0 0.0
  %1109 = vmatpush2.msra.mxu0 0.0
  %1110 = vmatprep.mubr.f32.mxu0 0.0
  %1111 = vmatmul.mubr.f32.gmra.mxu0 %v1038
  %v1112 = vpop.f32.mrf.mxu0
  %v1113 = vadd.f32 0.0, %v1112
  %v1114 = vpop.f32.mrf.mxu0
  %1115 = vmatprep.mubr.f32.mxu0 0.0
  %1116 = vmatmul.mubr.f32.gmra.mxu0 %v1041
  %v1117 = vpop.f32.mrf.mxu0
  %v1118 = vadd.f32 0.0, %v1117
  %v1119 = vpop.f32.mrf.mxu0
  %1120 = vmatprep.mubr.f32.mxu0 0.0
  %1121 = vmatmul.mubr.f32.gmra.mxu0 %v1044
  %v1122 = vpop.f32.mrf.mxu0
  %v1123 = vadd.f32 0.0, %v1122
  %v1124 = vpop.f32.mrf.mxu0
  %1125 = vdwg.mxu0
  %1126 = vrot.lane.b32.xlu0 %v388, 104
  %v1127 = vpop.permute.xlu0 %1126
  %1128 = vrot.lane.b32.xlu0 %v393, 104
  %v1129 = vpop.permute.xlu0 %1128
  %1130 = vrot.lane.b32.xlu0 %v398, 104
  %v1131 = vpop.permute.xlu0 %1130
  %1132 = vrot.lane.b32.xlu0 %v388, 72
  %v1133 = vpop.permute.xlu0 %1132
  %1134 = vrot.lane.b32.xlu0 %v393, 72
  %v1135 = vpop.permute.xlu0 %1134
  %1136 = vrot.lane.b32.xlu0 %v398, 72
  %v1137 = vpop.permute.xlu0 %1136
  %v1138 = vsel %vm431, %v1127, 0
  %v1140 = vsel %vm431, %v1129, 0
  %v1142 = vsel %vm431, %v1131, 0
  %v1144 = vsel %vm431, %v1133, 0
  %v1146 = vsel %vm431, %v1135, 0
  %v1148 = vsel %vm431, %v1137, 0
  %1150 = vmatprep.subr.mxu0 0.0
  %1151 = vmatpush1.xpose.msra.mxu0 0.0
  %1152 = vmatprep.subr.mxu0 0.0
  %1153 = vmatpush1.xpose.msra.mxu0 0.0
  %1154 = vmatprep.subr.mxu0 0.0
  %1155 = vmatpush1.xpose.msra.mxu0 0.0
  %1156 = vmatprep.subr.mxu0 0.0
  %1157 = vmatpush1.xpose.msra.mxu0 0.0
  %1158 = vmatprep.subr.mxu0 0.0
  %1159 = vmatpush1.xpose.msra.mxu0 0.0
  %1160 = vmatprep.subr.mxu0 0.0
  %1161 = vmatpush1.xpose.msra.mxu0 0.0
  %1162 = vmatprep.subr.mxu0 0.0
  %1163 = vmatpush1.xpose.msra.mxu0 0.0
  %1164 = vmatprep.subr.mxu0 0.0
  %1165 = vmatpush1.xpose.msra.mxu0 0.0
  %1166 = vmatprep.subr.mxu0 0.0
  %1167 = vmatpush1.xpose.msra.mxu0 0.0
  %1168 = vmatprep.subr.mxu0 0.0
  %1169 = vmatpush1.xpose.msra.mxu0 0.0
  %1170 = vmatprep.subr.mxu0 0.0
  %1171 = vmatpush1.xpose.msra.mxu0 0.0
  %1172 = vmatprep.subr.mxu0 0.0
  %1173 = vmatpush1.xpose.msra.mxu0 0.0
  %1174 = vmatprep.subr.mxu0 0.0
  %1175 = vmatpush1.xpose.msra.mxu0 0.0
  %1176 = vmatprep.subr.mxu0 0.0
  %1177 = vmatpush1.xpose.msra.mxu0 %v1148
  %1178 = vmatprep.subr.mxu0 0.0
  %1179 = vmatpush1.xpose.msra.mxu0 %v1146
  %1180 = vmatprep.subr.mxu0 0.0
  %1181 = vmatpush1.xpose.msra.mxu0 %v1144
  %1182 = vmatprep.subr.mxu0 0.0
  %1183 = vmatpush2.xpose.msra.mxu0 0.0
  %1184 = vmatprep.subr.mxu0 0.0
  %1185 = vmatpush2.xpose.msra.mxu0 0.0
  %1186 = vmatprep.subr.mxu0 0.0
  %1187 = vmatpush2.xpose.msra.mxu0 0.0
  %1188 = vmatprep.subr.mxu0 0.0
  %1189 = vmatpush2.xpose.msra.mxu0 0.0
  %1190 = vmatprep.subr.mxu0 0.0
  %1191 = vmatpush2.xpose.msra.mxu0 0.0
  %1192 = vmatprep.subr.mxu0 0.0
  %1193 = vmatpush2.xpose.msra.mxu0 0.0
  %1194 = vmatprep.subr.mxu0 0.0
  %1195 = vmatpush2.xpose.msra.mxu0 0.0
  %1196 = vmatprep.subr.mxu0 0.0
  %1197 = vmatpush2.xpose.msra.mxu0 0.0
  %1198 = vmatprep.subr.mxu0 0.0
  %1199 = vmatpush2.xpose.msra.mxu0 0.0
  %1200 = vmatprep.subr.mxu0 0.0
  %1201 = vmatpush2.xpose.msra.mxu0 0.0
  %1202 = vmatprep.subr.mxu0 0.0
  %1203 = vmatpush2.xpose.msra.mxu0 0.0
  %1204 = vmatprep.subr.mxu0 0.0
  %1205 = vmatpush2.xpose.msra.mxu0 0.0
  %1206 = vmatprep.subr.mxu0 0.0
  %1207 = vmatpush2.xpose.msra.mxu0 0.0
  %1208 = vmatprep.subr.mxu0 0.0
  %1209 = vmatpush2.xpose.msra.mxu0 0.0
  %1210 = vmatprep.subr.mxu0 0.0
  %1211 = vmatpush2.xpose.msra.mxu0 0.0
  %1212 = vmatprep.subr.mxu0 0.0
  %1213 = vmatpush2.xpose.msra.mxu0 0.0
  %1214 = vmatprep.mubr.f32.mxu0 0.0
  %1215 = vmatmul.mubr.f32.gmra.mxu0 %v1138
  %v1216 = vpop.f32.mrf.mxu0
  %v1217 = vadd.f32 %v420, %v1216
  %v1218 = vpop.f32.mrf.mxu0
  %1219 = vmatprep.mubr.f32.mxu0 0.0
  %1220 = vmatmul.mubr.f32.gmra.mxu0 %v1140
  %v1221 = vpop.f32.mrf.mxu0
  %v1222 = vadd.f32 %v420, %v1221
  %v1223 = vpop.f32.mrf.mxu0
  %1224 = vmatprep.mubr.f32.mxu0 0.0
  %1225 = vmatmul.mubr.f32.gmra.mxu0 %v1142
  %v1226 = vpop.f32.mrf.mxu0
  %v1227 = vadd.f32 %v420, %v1226
  %v1228 = vpop.f32.mrf.mxu0
  %1229 = vdwg.mxu0
  %v1230 = vsel %vm524, %v1217, -inf
  %1231 = vmax.xlane.f32.xlu0 %v1230
  %v1232 = vpop.xlane.xlu0 %1231
  %v1233 = vsel %vm524, %v1222, -inf
  %1234 = vmax.xlane.f32.xlu0 %v1233
  %v1235 = vpop.xlane.xlu0 %1234
  %v1236 = vsel %vm524, %v1227, -inf
  %1237 = vmax.xlane.f32.xlu0 %v1236
  %v1238 = vpop.xlane.xlu0 %1237
  %v1239 = vsub.f32 %v1217, %v1232
  %v1240 = vsub.f32 %v1222, %v1235
  %v1241 = vsub.f32 %v1227, %v1238
  %v1242 = vmul.f32 %v1239, 1.442695
  %v1243 = vpow.pop %v1242
  %v1244 = vmul.f32 %v1240, 1.442695
  %v1245 = vpow.pop %v1244
  %v1246 = vmul.f32 %v1241, 1.442695
  %v1247 = vpow.pop %v1246
  %v1248 = vsel %vm524, %v1243, 0.0
  %1249 = vadd.xlane.f32.xlu0 %v1248
  %v1250 = vpop.xlane.xlu0 %1249
  %v1251 = vsel %vm524, %v1245, 0.0
  %1252 = vadd.xlane.f32.xlu0 %v1251
  %v1253 = vpop.xlane.xlu0 %1252
  %v1254 = vsel %vm524, %v1247, 0.0
  %1255 = vadd.xlane.f32.xlu0 %v1254
  %v1256 = vpop.xlane.xlu0 %1255
  %v1257 = vrcp.pop %v1250
  %v1258 = vrcp.pop %v1253
  %v1259 = vrcp.pop %v1256
  %v1260 = vmul.f32 %v1243, %v1257
  %v1261 = vmul.f32 %v1245, %v1258
  %v1262 = vmul.f32 %v1247, %v1259
  %1263 = vrot.lane.b32.xlu0 %v388, 40
  %v1264 = vpop.permute.xlu0 %1263
  %1265 = vrot.lane.b32.xlu0 %v393, 40
  %v1266 = vpop.permute.xlu0 %1265
  %1267 = vrot.lane.b32.xlu0 %v398, 40
  %v1268 = vpop.permute.xlu0 %1267
  %v1273 = vsel %vm524, %v1260, 0
  %v1276 = vsel %vm524, %v1261, 0
  %v1279 = vsel %vm524, %v1262, 0
  %1281 = vmatprep.subr.mxu0 0.0
  %1282 = vmatpush1.msra.mxu0 0.0
  %1283 = vmatprep.subr.mxu0 0.0
  %1284 = vmatpush1.msra.mxu0 0.0
  %1285 = vmatprep.subr.mxu0 0.0
  %1286 = vmatpush1.msra.mxu0 0.0
  %1287 = vmatprep.subr.mxu0 0.0
  %1288 = vmatpush1.msra.mxu0 0.0
  %1289 = vmatprep.subr.mxu0 0.0
  %1290 = vmatpush1.msra.mxu0 0.0
  %1291 = vmatprep.subr.mxu0 0.0
  %1292 = vmatpush1.msra.mxu0 0.0
  %1293 = vmatprep.subr.mxu0 0.0
  %1294 = vmatpush1.msra.mxu0 0.0
  %1295 = vmatprep.subr.mxu0 0.0
  %1296 = vmatpush1.msra.mxu0 0.0
  %1297 = vmatprep.subr.mxu0 0.0
  %1298 = vmatpush1.msra.mxu0 0.0
  %1299 = vmatprep.subr.mxu0 0.0
  %1300 = vmatpush1.msra.mxu0 0.0
  %1301 = vmatprep.subr.mxu0 0.0
  %1302 = vmatpush1.msra.mxu0 0.0
  %1303 = vmatprep.subr.mxu0 0.0
  %1304 = vmatpush1.msra.mxu0 0.0
  %1305 = vmatprep.subr.mxu0 0.0
  %1306 = vmatpush1.msra.mxu0 0.0
  %1307 = vmatprep.subr.mxu0 0.0
  %1308 = vmatpush1.msra.mxu0 %v1268
  %1309 = vmatprep.subr.mxu0 0.0
  %1310 = vmatpush1.msra.mxu0 %v1266
  %1311 = vmatprep.subr.mxu0 0.0
  %1312 = vmatpush1.msra.mxu0 %v1264
  %1313 = vmatprep.subr.mxu0 0.0
  %1314 = vmatpush2.msra.mxu0 0.0
  %1315 = vmatprep.subr.mxu0 0.0
  %1316 = vmatpush2.msra.mxu0 0.0
  %1317 = vmatprep.subr.mxu0 0.0
  %1318 = vmatpush2.msra.mxu0 0.0
  %1319 = vmatprep.subr.mxu0 0.0
  %1320 = vmatpush2.msra.mxu0 0.0
  %1321 = vmatprep.subr.mxu0 0.0
  %1322 = vmatpush2.msra.mxu0 0.0
  %1323 = vmatprep.subr.mxu0 0.0
  %1324 = vmatpush2.msra.mxu0 0.0
  %1325 = vmatprep.subr.mxu0 0.0
  %1326 = vmatpush2.msra.mxu0 0.0
  %1327 = vmatprep.subr.mxu0 0.0
  %1328 = vmatpush2.msra.mxu0 0.0
  %1329 = vmatprep.subr.mxu0 0.0
  %1330 = vmatpush2.msra.mxu0 0.0
  %1331 = vmatprep.subr.mxu0 0.0
  %1332 = vmatpush2.msra.mxu0 0.0
  %1333 = vmatprep.subr.mxu0 0.0
  %1334 = vmatpush2.msra.mxu0 0.0
  %1335 = vmatprep.subr.mxu0 0.0
  %1336 = vmatpush2.msra.mxu0 0.0
  %1337 = vmatprep.subr.mxu0 0.0
  %1338 = vmatpush2.msra.mxu0 0.0
  %1339 = vmatprep.subr.mxu0 0.0
  %1340 = vmatpush2.msra.mxu0 0.0
  %1341 = vmatprep.subr.mxu0 0.0
  %1342 = vmatpush2.msra.mxu0 0.0
  %1343 = vmatprep.subr.mxu0 0.0
  %1344 = vmatpush2.msra.mxu0 0.0
  %1345 = vmatprep.mubr.f32.mxu0 0.0
  %1346 = vmatmul.mubr.f32.gmra.mxu0 %v1273
  %v1347 = vpop.f32.mrf.mxu0
  %v1348 = vadd.f32 0.0, %v1347
  %v1349 = vpop.f32.mrf.mxu0
  %1350 = vmatprep.mubr.f32.mxu0 0.0
  %1351 = vmatmul.mubr.f32.gmra.mxu0 %v1276
  %v1352 = vpop.f32.mrf.mxu0
  %v1353 = vadd.f32 0.0, %v1352
  %v1354 = vpop.f32.mrf.mxu0
  %1355 = vmatprep.mubr.f32.mxu0 0.0
  %1356 = vmatmul.mubr.f32.gmra.mxu0 %v1279
  %v1357 = vpop.f32.mrf.mxu0
  %v1358 = vadd.f32 0.0, %v1357
  %v1359 = vpop.f32.mrf.mxu0
  %1360 = vdwg.mxu0
  %1364 = vrot.lane.b32.xlu0 %v878, 8
  %v1365 = vpop.permute.xlu0 %1364
  %1366 = vrot.lane.b32.xlu0 %v883, 8
  %v1367 = vpop.permute.xlu0 %1366
  %1368 = vrot.lane.b32.xlu0 %v888, 8
  %v1369 = vpop.permute.xlu0 %1368
  %1376 = vrot.lane.b32.xlu0 %v1113, 16
  %v1377 = vpop.permute.xlu0 %1376
  %1378 = vrot.lane.b32.xlu0 %v1118, 16
  %v1379 = vpop.permute.xlu0 %1378
  %1380 = vrot.lane.b32.xlu0 %v1123, 16
  %v1381 = vpop.permute.xlu0 %1380
  %1388 = vrot.lane.b32.xlu0 %v1348, 24
  %v1389 = vpop.permute.xlu0 %1388
  %1390 = vrot.lane.b32.xlu0 %v1353, 24
  %v1391 = vpop.permute.xlu0 %1390
  %1392 = vrot.lane.b32.xlu0 %v1358, 24
  %v1393 = vpop.permute.xlu0 %1392
  %v1397 = vsel %vm431, %v643, %v1365
  %v1398 = vsel %vm431, %v648, %v1367
  %v1399 = vsel %vm431, %v653, %v1369
  %vm1400 = vcmask 130048
  %v1401 = vsel %vm1400, %v1397, %v1377
  %v1402 = vsel %vm1400, %v1398, %v1379
  %v1403 = vsel %vm1400, %v1399, %v1381
  %v1404 = vsel %vm524, %v1401, %v1389
  %v1405 = vsel %vm524, %v1402, %v1391
  %v1406 = vsel %vm524, %v1403, %v1393
  %1410 = vrot.lane.b32.xlu0 %v403, 96
  %v1411 = vpop.permute.xlu0 %1410
  %1412 = vrot.lane.b32.xlu0 %v408, 96
  %v1413 = vpop.permute.xlu0 %1412
  %1414 = vrot.lane.b32.xlu0 %v413, 96
  %v1415 = vpop.permute.xlu0 %1414
  %v1416 = vsel %vm431, %v403, 0
  %v1418 = vsel %vm431, %v408, 0
  %v1420 = vsel %vm431, %v413, 0
  %v1422 = vsel %vm431, %v1411, 0
  %v1424 = vsel %vm431, %v1413, 0
  %v1426 = vsel %vm431, %v1415, 0
  %1428 = vmatprep.subr.mxu0 0.0
  %1429 = vmatpush1.xpose.msra.mxu0 0.0
  %1430 = vmatprep.subr.mxu0 0.0
  %1431 = vmatpush1.xpose.msra.mxu0 0.0
  %1432 = vmatprep.subr.mxu0 0.0
  %1433 = vmatpush1.xpose.msra.mxu0 0.0
  %1434 = vmatprep.subr.mxu0 0.0
  %1435 = vmatpush1.xpose.msra.mxu0 0.0
  %1436 = vmatprep.subr.mxu0 0.0
  %1437 = vmatpush1.xpose.msra.mxu0 0.0
  %1438 = vmatprep.subr.mxu0 0.0
  %1439 = vmatpush1.xpose.msra.mxu0 0.0
  %1440 = vmatprep.subr.mxu0 0.0
  %1441 = vmatpush1.xpose.msra.mxu0 0.0
  %1442 = vmatprep.subr.mxu0 0.0
  %1443 = vmatpush1.xpose.msra.mxu0 0.0
  %1444 = vmatprep.subr.mxu0 0.0
  %1445 = vmatpush1.xpose.msra.mxu0 0.0
  %1446 = vmatprep.subr.mxu0 0.0
  %1447 = vmatpush1.xpose.msra.mxu0 0.0
  %1448 = vmatprep.subr.mxu0 0.0
  %1449 = vmatpush1.xpose.msra.mxu0 0.0
  %1450 = vmatprep.subr.mxu0 0.0
  %1451 = vmatpush1.xpose.msra.mxu0 0.0
  %1452 = vmatprep.subr.mxu0 0.0
  %1453 = vmatpush1.xpose.msra.mxu0 0.0
  %1454 = vmatprep.subr.mxu0 0.0
  %1455 = vmatpush1.xpose.msra.mxu0 %v1426
  %1456 = vmatprep.subr.mxu0 0.0
  %1457 = vmatpush1.xpose.msra.mxu0 %v1424
  %1458 = vmatprep.subr.mxu0 0.0
  %1459 = vmatpush1.xpose.msra.mxu0 %v1422
  %1460 = vmatprep.subr.mxu0 0.0
  %1461 = vmatpush2.xpose.msra.mxu0 0.0
  %1462 = vmatprep.subr.mxu0 0.0
  %1463 = vmatpush2.xpose.msra.mxu0 0.0
  %1464 = vmatprep.subr.mxu0 0.0
  %1465 = vmatpush2.xpose.msra.mxu0 0.0
  %1466 = vmatprep.subr.mxu0 0.0
  %1467 = vmatpush2.xpose.msra.mxu0 0.0
  %1468 = vmatprep.subr.mxu0 0.0
  %1469 = vmatpush2.xpose.msra.mxu0 0.0
  %1470 = vmatprep.subr.mxu0 0.0
  %1471 = vmatpush2.xpose.msra.mxu0 0.0
  %1472 = vmatprep.subr.mxu0 0.0
  %1473 = vmatpush2.xpose.msra.mxu0 0.0
  %1474 = vmatprep.subr.mxu0 0.0
  %1475 = vmatpush2.xpose.msra.mxu0 0.0
  %1476 = vmatprep.subr.mxu0 0.0
  %1477 = vmatpush2.xpose.msra.mxu0 0.0
  %1478 = vmatprep.subr.mxu0 0.0
  %1479 = vmatpush2.xpose.msra.mxu0 0.0
  %1480 = vmatprep.subr.mxu0 0.0
  %1481 = vmatpush2.xpose.msra.mxu0 0.0
  %1482 = vmatprep.subr.mxu0 0.0
  %1483 = vmatpush2.xpose.msra.mxu0 0.0
  %1484 = vmatprep.subr.mxu0 0.0
  %1485 = vmatpush2.xpose.msra.mxu0 0.0
  %1486 = vmatprep.subr.mxu0 0.0
  %1487 = vmatpush2.xpose.msra.mxu0 0.0
  %1488 = vmatprep.subr.mxu0 0.0
  %1489 = vmatpush2.xpose.msra.mxu0 0.0
  %1490 = vmatprep.subr.mxu0 0.0
  %1491 = vmatpush2.xpose.msra.mxu0 0.0
  %1492 = vmatprep.mubr.f32.mxu0 0.0
  %1493 = vmatmul.mubr.f32.gmra.mxu0 %v1416
  %v1494 = vpop.f32.mrf.mxu0
  %v1495 = vadd.f32 %v420, %v1494
  %v1496 = vpop.f32.mrf.mxu0
  %1497 = vmatprep.mubr.f32.mxu0 0.0
  %1498 = vmatmul.mubr.f32.gmra.mxu0 %v1418
  %v1499 = vpop.f32.mrf.mxu0
  %v1500 = vadd.f32 %v420, %v1499
  %v1501 = vpop.f32.mrf.mxu0
  %1502 = vmatprep.mubr.f32.mxu0 0.0
  %1503 = vmatmul.mubr.f32.gmra.mxu0 %v1420
  %v1504 = vpop.f32.mrf.mxu0
  %v1505 = vadd.f32 %v420, %v1504
  %v1506 = vpop.f32.mrf.mxu0
  %1507 = vdwg.mxu0
  %v1508 = vsel %vm524, %v1495, -inf
  %1509 = vmax.xlane.f32.xlu0 %v1508
  %v1510 = vpop.xlane.xlu0 %1509
  %v1511 = vsel %vm524, %v1500, -inf
  %1512 = vmax.xlane.f32.xlu0 %v1511
  %v1513 = vpop.xlane.xlu0 %1512
  %v1514 = vsel %vm524, %v1505, -inf
  %1515 = vmax.xlane.f32.xlu0 %v1514
  %v1516 = vpop.xlane.xlu0 %1515
  %v1517 = vsub.f32 %v1495, %v1510
  %v1518 = vsub.f32 %v1500, %v1513
  %v1519 = vsub.f32 %v1505, %v1516
  %v1520 = vmul.f32 %v1517, 1.442695
  %v1521 = vpow.pop %v1520
  %v1522 = vmul.f32 %v1518, 1.442695
  %v1523 = vpow.pop %v1522
  %v1524 = vmul.f32 %v1519, 1.442695
  %v1525 = vpow.pop %v1524
  %v1526 = vsel %vm524, %v1521, 0.0
  %1527 = vadd.xlane.f32.xlu0 %v1526
  %v1528 = vpop.xlane.xlu0 %1527
  %v1529 = vsel %vm524, %v1523, 0.0
  %1530 = vadd.xlane.f32.xlu0 %v1529
  %v1531 = vpop.xlane.xlu0 %1530
  %v1532 = vsel %vm524, %v1525, 0.0
  %1533 = vadd.xlane.f32.xlu0 %v1532
  %v1534 = vpop.xlane.xlu0 %1533
  %v1535 = vrcp.pop %v1528
  %v1536 = vrcp.pop %v1531
  %v1537 = vrcp.pop %v1534
  %v1538 = vmul.f32 %v1521, %v1535
  %v1539 = vmul.f32 %v1523, %v1536
  %v1540 = vmul.f32 %v1525, %v1537
  %1541 = vrot.lane.b32.xlu0 %v403, 64
  %v1542 = vpop.permute.xlu0 %1541
  %1543 = vrot.lane.b32.xlu0 %v408, 64
  %v1544 = vpop.permute.xlu0 %1543
  %1545 = vrot.lane.b32.xlu0 %v413, 64
  %v1546 = vpop.permute.xlu0 %1545
  %v1551 = vsel %vm524, %v1538, 0
  %v1554 = vsel %vm524, %v1539, 0
  %v1557 = vsel %vm524, %v1540, 0
  %1559 = vmatprep.subr.mxu0 0.0
  %1560 = vmatpush1.msra.mxu0 0.0
  %1561 = vmatprep.subr.mxu0 0.0
  %1562 = vmatpush1.msra.mxu0 0.0
  %1563 = vmatprep.subr.mxu0 0.0
  %1564 = vmatpush1.msra.mxu0 0.0
  %1565 = vmatprep.subr.mxu0 0.0
  %1566 = vmatpush1.msra.mxu0 0.0
  %1567 = vmatprep.subr.mxu0 0.0
  %1568 = vmatpush1.msra.mxu0 0.0
  %1569 = vmatprep.subr.mxu0 0.0
  %1570 = vmatpush1.msra.mxu0 0.0
  %1571 = vmatprep.subr.mxu0 0.0
  %1572 = vmatpush1.msra.mxu0 0.0
  %1573 = vmatprep.subr.mxu0 0.0
  %1574 = vmatpush1.msra.mxu0 0.0
  %1575 = vmatprep.subr.mxu0 0.0
  %1576 = vmatpush1.msra.mxu0 0.0
  %1577 = vmatprep.subr.mxu0 0.0
  %1578 = vmatpush1.msra.mxu0 0.0
  %1579 = vmatprep.subr.mxu0 0.0
  %1580 = vmatpush1.msra.mxu0 0.0
  %1581 = vmatprep.subr.mxu0 0.0
  %1582 = vmatpush1.msra.mxu0 0.0
  %1583 = vmatprep.subr.mxu0 0.0
  %1584 = vmatpush1.msra.mxu0 0.0
  %1585 = vmatprep.subr.mxu0 0.0
  %1586 = vmatpush1.msra.mxu0 %v1546
  %1587 = vmatprep.subr.mxu0 0.0
  %1588 = vmatpush1.msra.mxu0 %v1544
  %1589 = vmatprep.subr.mxu0 0.0
  %1590 = vmatpush1.msra.mxu0 %v1542
  %1591 = vmatprep.subr.mxu0 0.0
  %1592 = vmatpush2.msra.mxu0 0.0
  %1593 = vmatprep.subr.mxu0 0.0
  %1594 = vmatpush2.msra.mxu0 0.0
  %1595 = vmatprep.subr.mxu0 0.0
  %1596 = vmatpush2.msra.mxu0 0.0
  %1597 = vmatprep.subr.mxu0 0.0
  %1598 = vmatpush2.msra.mxu0 0.0
  %1599 = vmatprep.subr.mxu0 0.0
  %1600 = vmatpush2.msra.mxu0 0.0
  %1601 = vmatprep.subr.mxu0 0.0
  %1602 = vmatpush2.msra.mxu0 0.0
  %1603 = vmatprep.subr.mxu0 0.0
  %1604 = vmatpush2.msra.mxu0 0.0
  %1605 = vmatprep.subr.mxu0 0.0
  %1606 = vmatpush2.msra.mxu0 0.0
  %1607 = vmatprep.subr.mxu0 0.0
  %1608 = vmatpush2.msra.mxu0 0.0
  %1609 = vmatprep.subr.mxu0 0.0
  %1610 = vmatpush2.msra.mxu0 0.0
  %1611 = vmatprep.subr.mxu0 0.0
  %1612 = vmatpush2.msra.mxu0 0.0
  %1613 = vmatprep.subr.mxu0 0.0
  %1614 = vmatpush2.msra.mxu0 0.0
  %1615 = vmatprep.subr.mxu0 0.0
  %1616 = vmatpush2.msra.mxu0 0.0
  %1617 = vmatprep.subr.mxu0 0.0
  %1618 = vmatpush2.msra.mxu0 0.0
  %1619 = vmatprep.subr.mxu0 0.0
  %1620 = vmatpush2.msra.mxu0 0.0
  %1621 = vmatprep.subr.mxu0 0.0
  %1622 = vmatpush2.msra.mxu0 0.0
  %1623 = vmatprep.mubr.f32.mxu0 0.0
  %1624 = vmatmul.mubr.f32.gmra.mxu0 %v1551
  %v1625 = vpop.f32.mrf.mxu0
  %v1626 = vadd.f32 0.0, %v1625
  %v1627 = vpop.f32.mrf.mxu0
  %1628 = vmatprep.mubr.f32.mxu0 0.0
  %1629 = vmatmul.mubr.f32.gmra.mxu0 %v1554
  %v1630 = vpop.f32.mrf.mxu0
  %v1631 = vadd.f32 0.0, %v1630
  %v1632 = vpop.f32.mrf.mxu0
  %1633 = vmatprep.mubr.f32.mxu0 0.0
  %1634 = vmatmul.mubr.f32.gmra.mxu0 %v1557
  %v1635 = vpop.f32.mrf.mxu0
  %v1636 = vadd.f32 0.0, %v1635
  %v1637 = vpop.f32.mrf.mxu0
  %1638 = vdwg.mxu0
  %1639 = vrot.lane.b32.xlu0 %v403, 120
  %v1640 = vpop.permute.xlu0 %1639
  %1641 = vrot.lane.b32.xlu0 %v408, 120
  %v1642 = vpop.permute.xlu0 %1641
  %1643 = vrot.lane.b32.xlu0 %v413, 120
  %v1644 = vpop.permute.xlu0 %1643
  %1645 = vrot.lane.b32.xlu0 %v403, 88
  %v1646 = vpop.permute.xlu0 %1645
  %1647 = vrot.lane.b32.xlu0 %v408, 88
  %v1648 = vpop.permute.xlu0 %1647
  %1649 = vrot.lane.b32.xlu0 %v413, 88
  %v1650 = vpop.permute.xlu0 %1649
  %v1651 = vsel %vm431, %v1640, 0
  %v1653 = vsel %vm431, %v1642, 0
  %v1655 = vsel %vm431, %v1644, 0
  %v1657 = vsel %vm431, %v1646, 0
  %v1659 = vsel %vm431, %v1648, 0
  %v1661 = vsel %vm431, %v1650, 0
  %1663 = vmatprep.subr.mxu0 0.0
  %1664 = vmatpush1.xpose.msra.mxu0 0.0
  %1665 = vmatprep.subr.mxu0 0.0
  %1666 = vmatpush1.xpose.msra.mxu0 0.0
  %1667 = vmatprep.subr.mxu0 0.0
  %1668 = vmatpush1.xpose.msra.mxu0 0.0
  %1669 = vmatprep.subr.mxu0 0.0
  %1670 = vmatpush1.xpose.msra.mxu0 0.0
  %1671 = vmatprep.subr.mxu0 0.0
  %1672 = vmatpush1.xpose.msra.mxu0 0.0
  %1673 = vmatprep.subr.mxu0 0.0
  %1674 = vmatpush1.xpose.msra.mxu0 0.0
  %1675 = vmatprep.subr.mxu0 0.0
  %1676 = vmatpush1.xpose.msra.mxu0 0.0
  %1677 = vmatprep.subr.mxu0 0.0
  %1678 = vmatpush1.xpose.msra.mxu0 0.0
  %1679 = vmatprep.subr.mxu0 0.0
  %1680 = vmatpush1.xpose.msra.mxu0 0.0
  %1681 = vmatprep.subr.mxu0 0.0
  %1682 = vmatpush1.xpose.msra.mxu0 0.0
  %1683 = vmatprep.subr.mxu0 0.0
  %1684 = vmatpush1.xpose.msra.mxu0 0.0
  %1685 = vmatprep.subr.mxu0 0.0
  %1686 = vmatpush1.xpose.msra.mxu0 0.0
  %1687 = vmatprep.subr.mxu0 0.0
  %1688 = vmatpush1.xpose.msra.mxu0 0.0
  %1689 = vmatprep.subr.mxu0 0.0
  %1690 = vmatpush1.xpose.msra.mxu0 %v1661
  %1691 = vmatprep.subr.mxu0 0.0
  %1692 = vmatpush1.xpose.msra.mxu0 %v1659
  %1693 = vmatprep.subr.mxu0 0.0
  %1694 = vmatpush1.xpose.msra.mxu0 %v1657
  %1695 = vmatprep.subr.mxu0 0.0
  %1696 = vmatpush2.xpose.msra.mxu0 0.0
  %1697 = vmatprep.subr.mxu0 0.0
  %1698 = vmatpush2.xpose.msra.mxu0 0.0
  %1699 = vmatprep.subr.mxu0 0.0
  %1700 = vmatpush2.xpose.msra.mxu0 0.0
  %1701 = vmatprep.subr.mxu0 0.0
  %1702 = vmatpush2.xpose.msra.mxu0 0.0
  %1703 = vmatprep.subr.mxu0 0.0
  %1704 = vmatpush2.xpose.msra.mxu0 0.0
  %1705 = vmatprep.subr.mxu0 0.0
  %1706 = vmatpush2.xpose.msra.mxu0 0.0
  %1707 = vmatprep.subr.mxu0 0.0
  %1708 = vmatpush2.xpose.msra.mxu0 0.0
  %1709 = vmatprep.subr.mxu0 0.0
  %1710 = vmatpush2.xpose.msra.mxu0 0.0
  %1711 = vmatprep.subr.mxu0 0.0
  %1712 = vmatpush2.xpose.msra.mxu0 0.0
  %1713 = vmatprep.subr.mxu0 0.0
  %1714 = vmatpush2.xpose.msra.mxu0 0.0
  %1715 = vmatprep.subr.mxu0 0.0
  %1716 = vmatpush2.xpose.msra.mxu0 0.0
  %1717 = vmatprep.subr.mxu0 0.0
  %1718 = vmatpush2.xpose.msra.mxu0 0.0
  %1719 = vmatprep.subr.mxu0 0.0
  %1720 = vmatpush2.xpose.msra.mxu0 0.0
  %1721 = vmatprep.subr.mxu0 0.0
  %1722 = vmatpush2.xpose.msra.mxu0 0.0
  %1723 = vmatprep.subr.mxu0 0.0
  %1724 = vmatpush2.xpose.msra.mxu0 0.0
  %1725 = vmatprep.subr.mxu0 0.0
  %1726 = vmatpush2.xpose.msra.mxu0 0.0
  %1727 = vmatprep.mubr.f32.mxu0 0.0
  %1728 = vmatmul.mubr.f32.gmra.mxu0 %v1651
  %v1729 = vpop.f32.mrf.mxu0
  %v1730 = vadd.f32 %v420, %v1729
  %v1731 = vpop.f32.mrf.mxu0
  %1732 = vmatprep.mubr.f32.mxu0 0.0
  %1733 = vmatmul.mubr.f32.gmra.mxu0 %v1653
  %v1734 = vpop.f32.mrf.mxu0
  %v1735 = vadd.f32 %v420, %v1734
  %v1736 = vpop.f32.mrf.mxu0
  %1737 = vmatprep.mubr.f32.mxu0 0.0
  %1738 = vmatmul.mubr.f32.gmra.mxu0 %v1655
  %v1739 = vpop.f32.mrf.mxu0
  %v1740 = vadd.f32 %v420, %v1739
  %v1741 = vpop.f32.mrf.mxu0
  %1742 = vdwg.mxu0
  %v1743 = vsel %vm524, %v1730, -inf
  %1744 = vmax.xlane.f32.xlu0 %v1743
  %v1745 = vpop.xlane.xlu0 %1744
  %v1746 = vsel %vm524, %v1735, -inf
  %1747 = vmax.xlane.f32.xlu0 %v1746
  %v1748 = vpop.xlane.xlu0 %1747
  %v1749 = vsel %vm524, %v1740, -inf
  %1750 = vmax.xlane.f32.xlu0 %v1749
  %v1751 = vpop.xlane.xlu0 %1750
  %v1752 = vsub.f32 %v1730, %v1745
  %v1753 = vsub.f32 %v1735, %v1748
  %v1754 = vsub.f32 %v1740, %v1751
  %v1755 = vmul.f32 %v1752, 1.442695
  %v1756 = vpow.pop %v1755
  %v1757 = vmul.f32 %v1753, 1.442695
  %v1758 = vpow.pop %v1757
  %v1759 = vmul.f32 %v1754, 1.442695
  %v1760 = vpow.pop %v1759
  %v1761 = vsel %vm524, %v1756, 0.0
  %1762 = vadd.xlane.f32.xlu0 %v1761
  %v1763 = vpop.xlane.xlu0 %1762
  %v1764 = vsel %vm524, %v1758, 0.0
  %1765 = vadd.xlane.f32.xlu0 %v1764
  %v1766 = vpop.xlane.xlu0 %1765
  %v1767 = vsel %vm524, %v1760, 0.0
  %1768 = vadd.xlane.f32.xlu0 %v1767
  %v1769 = vpop.xlane.xlu0 %1768
  %v1770 = vrcp.pop %v1763
  %v1771 = vrcp.pop %v1766
  %v1772 = vrcp.pop %v1769
  %v1773 = vmul.f32 %v1756, %v1770
  %v1774 = vmul.f32 %v1758, %v1771
  %v1775 = vmul.f32 %v1760, %v1772
  %1776 = vrot.lane.b32.xlu0 %v403, 56
  %v1777 = vpop.permute.xlu0 %1776
  %1778 = vrot.lane.b32.xlu0 %v408, 56
  %v1779 = vpop.permute.xlu0 %1778
  %1780 = vrot.lane.b32.xlu0 %v413, 56
  %v1781 = vpop.permute.xlu0 %1780
  %v1786 = vsel %vm524, %v1773, 0
  %v1789 = vsel %vm524, %v1774, 0
  %v1792 = vsel %vm524, %v1775, 0
  %1794 = vmatprep.subr.mxu0 0.0
  %1795 = vmatpush1.msra.mxu0 0.0
  %1796 = vmatprep.subr.mxu0 0.0
  %1797 = vmatpush1.msra.mxu0 0.0
  %1798 = vmatprep.subr.mxu0 0.0
  %1799 = vmatpush1.msra.mxu0 0.0
  %1800 = vmatprep.subr.mxu0 0.0
  %1801 = vmatpush1.msra.mxu0 0.0
  %1802 = vmatprep.subr.mxu0 0.0
  %1803 = vmatpush1.msra.mxu0 0.0
  %1804 = vmatprep.subr.mxu0 0.0
  %1805 = vmatpush1.msra.mxu0 0.0
  %1806 = vmatprep.subr.mxu0 0.0
  %1807 = vmatpush1.msra.mxu0 0.0
  %1808 = vmatprep.subr.mxu0 0.0
  %1809 = vmatpush1.msra.mxu0 0.0
  %1810 = vmatprep.subr.mxu0 0.0
  %1811 = vmatpush1.msra.mxu0 0.0
  %1812 = vmatprep.subr.mxu0 0.0
  %1813 = vmatpush1.msra.mxu0 0.0
  %1814 = vmatprep.subr.mxu0 0.0
  %1815 = vmatpush1.msra.mxu0 0.0
  %1816 = vmatprep.subr.mxu0 0.0
  %1817 = vmatpush1.msra.mxu0 0.0
  %1818 = vmatprep.subr.mxu0 0.0
  %1819 = vmatpush1.msra.mxu0 0.0
  %1820 = vmatprep.subr.mxu0 0.0
  %1821 = vmatpush1.msra.mxu0 %v1781
  %1822 = vmatprep.subr.mxu0 0.0
  %1823 = vmatpush1.msra.mxu0 %v1779
  %1824 = vmatprep.subr.mxu0 0.0
  %1825 = vmatpush1.msra.mxu0 %v1777
  %1826 = vmatprep.subr.mxu0 0.0
  %1827 = vmatpush2.msra.mxu0 0.0
  %1828 = vmatprep.subr.mxu0 0.0
  %1829 = vmatpush2.msra.mxu0 0.0
  %1830 = vmatprep.subr.mxu0 0.0
  %1831 = vmatpush2.msra.mxu0 0.0
  %1832 = vmatprep.subr.mxu0 0.0
  %1833 = vmatpush2.msra.mxu0 0.0
  %1834 = vmatprep.subr.mxu0 0.0
  %1835 = vmatpush2.msra.mxu0 0.0
  %1836 = vmatprep.subr.mxu0 0.0
  %1837 = vmatpush2.msra.mxu0 0.0
  %1838 = vmatprep.subr.mxu0 0.0
  %1839 = vmatpush2.msra.mxu0 0.0
  %1840 = vmatprep.subr.mxu0 0.0
  %1841 = vmatpush2.msra.mxu0 0.0
  %1842 = vmatprep.subr.mxu0 0.0
  %1843 = vmatpush2.msra.mxu0 0.0
  %1844 = vmatprep.subr.mxu0 0.0
  %1845 = vmatpush2.msra.mxu0 0.0
  %1846 = vmatprep.subr.mxu0 0.0
  %1847 = vmatpush2.msra.mxu0 0.0
  %1848 = vmatprep.subr.mxu0 0.0
  %1849 = vmatpush2.msra.mxu0 0.0
  %1850 = vmatprep.subr.mxu0 0.0
  %1851 = vmatpush2.msra.mxu0 0.0
  %1852 = vmatprep.subr.mxu0 0.0
  %1853 = vmatpush2.msra.mxu0 0.0
  %1854 = vmatprep.subr.mxu0 0.0
  %1855 = vmatpush2.msra.mxu0 0.0
  %1856 = vmatprep.subr.mxu0 0.0
  %1857 = vmatpush2.msra.mxu0 0.0
  %1858 = vmatprep.mubr.f32.mxu0 0.0
  %1859 = vmatmul.mubr.f32.gmra.mxu0 %v1786
  %v1860 = vpop.f32.mrf.mxu0
  %v1861 = vadd.f32 0.0, %v1860
  %v1862 = vpop.f32.mrf.mxu0
  %1863 = vmatprep.mubr.f32.mxu0 0.0
  %1864 = vmatmul.mubr.f32.gmra.mxu0 %v1789
  %v1865 = vpop.f32.mrf.mxu0
  %v1866 = vadd.f32 0.0, %v1865
  %v1867 = vpop.f32.mrf.mxu0
  %1868 = vmatprep.mubr.f32.mxu0 0.0
  %1869 = vmatmul.mubr.f32.gmra.mxu0 %v1792
  %v1870 = vpop.f32.mrf.mxu0
  %v1871 = vadd.f32 0.0, %v1870
  %v1872 = vpop.f32.mrf.mxu0
  %1873 = vdwg.mxu0
  %1874 = vrot.lane.b32.xlu0 %v403, 112
  %v1875 = vpop.permute.xlu0 %1874
  %1876 = vrot.lane.b32.xlu0 %v408, 112
  %v1877 = vpop.permute.xlu0 %1876
  %1878 = vrot.lane.b32.xlu0 %v413, 112
  %v1879 = vpop.permute.xlu0 %1878
  %1880 = vrot.lane.b32.xlu0 %v403, 80
  %v1881 = vpop.permute.xlu0 %1880
  %1882 = vrot.lane.b32.xlu0 %v408, 80
  %v1883 = vpop.permute.xlu0 %1882
  %1884 = vrot.lane.b32.xlu0 %v413, 80
  %v1885 = vpop.permute.xlu0 %1884
  %v1886 = vsel %vm431, %v1875, 0
  %v1888 = vsel %vm431, %v1877, 0
  %v1890 = vsel %vm431, %v1879, 0
  %v1892 = vsel %vm431, %v1881, 0
  %v1894 = vsel %vm431, %v1883, 0
  %v1896 = vsel %vm431, %v1885, 0
  %1898 = vmatprep.subr.mxu0 0.0
  %1899 = vmatpush1.xpose.msra.mxu0 0.0
  %1900 = vmatprep.subr.mxu0 0.0
  %1901 = vmatpush1.xpose.msra.mxu0 0.0
  %1902 = vmatprep.subr.mxu0 0.0
  %1903 = vmatpush1.xpose.msra.mxu0 0.0
  %1904 = vmatprep.subr.mxu0 0.0
  %1905 = vmatpush1.xpose.msra.mxu0 0.0
  %1906 = vmatprep.subr.mxu0 0.0
  %1907 = vmatpush1.xpose.msra.mxu0 0.0
  %1908 = vmatprep.subr.mxu0 0.0
  %1909 = vmatpush1.xpose.msra.mxu0 0.0
  %1910 = vmatprep.subr.mxu0 0.0
  %1911 = vmatpush1.xpose.msra.mxu0 0.0
  %1912 = vmatprep.subr.mxu0 0.0
  %1913 = vmatpush1.xpose.msra.mxu0 0.0
  %1914 = vmatprep.subr.mxu0 0.0
  %1915 = vmatpush1.xpose.msra.mxu0 0.0
  %1916 = vmatprep.subr.mxu0 0.0
  %1917 = vmatpush1.xpose.msra.mxu0 0.0
  %1918 = vmatprep.subr.mxu0 0.0
  %1919 = vmatpush1.xpose.msra.mxu0 0.0
  %1920 = vmatprep.subr.mxu0 0.0
  %1921 = vmatpush1.xpose.msra.mxu0 0.0
  %1922 = vmatprep.subr.mxu0 0.0
  %1923 = vmatpush1.xpose.msra.mxu0 0.0
  %1924 = vmatprep.subr.mxu0 0.0
  %1925 = vmatpush1.xpose.msra.mxu0 %v1896
  %1926 = vmatprep.subr.mxu0 0.0
  %1927 = vmatpush1.xpose.msra.mxu0 %v1894
  %1928 = vmatprep.subr.mxu0 0.0
  %1929 = vmatpush1.xpose.msra.mxu0 %v1892
  %1930 = vmatprep.subr.mxu0 0.0
  %1931 = vmatpush2.xpose.msra.mxu0 0.0
  %1932 = vmatprep.subr.mxu0 0.0
  %1933 = vmatpush2.xpose.msra.mxu0 0.0
  %1934 = vmatprep.subr.mxu0 0.0
  %1935 = vmatpush2.xpose.msra.mxu0 0.0
  %1936 = vmatprep.subr.mxu0 0.0
  %1937 = vmatpush2.xpose.msra.mxu0 0.0
  %1938 = vmatprep.subr.mxu0 0.0
  %1939 = vmatpush2.xpose.msra.mxu0 0.0
  %1940 = vmatprep.subr.mxu0 0.0
  %1941 = vmatpush2.xpose.msra.mxu0 0.0
  %1942 = vmatprep.subr.mxu0 0.0
  %1943 = vmatpush2.xpose.msra.mxu0 0.0
  %1944 = vmatprep.subr.mxu0 0.0
  %1945 = vmatpush2.xpose.msra.mxu0 0.0
  %1946 = vmatprep.subr.mxu0 0.0
  %1947 = vmatpush2.xpose.msra.mxu0 0.0
  %1948 = vmatprep.subr.mxu0 0.0
  %1949 = vmatpush2.xpose.msra.mxu0 0.0
  %1950 = vmatprep.subr.mxu0 0.0
  %1951 = vmatpush2.xpose.msra.mxu0 0.0
  %1952 = vmatprep.subr.mxu0 0.0
  %1953 = vmatpush2.xpose.msra.mxu0 0.0
  %1954 = vmatprep.subr.mxu0 0.0
  %1955 = vmatpush2.xpose.msra.mxu0 0.0
  %1956 = vmatprep.subr.mxu0 0.0
  %1957 = vmatpush2.xpose.msra.mxu0 0.0
  %1958 = vmatprep.subr.mxu0 0.0
  %1959 = vmatpush2.xpose.msra.mxu0 0.0
  %1960 = vmatprep.subr.mxu0 0.0
  %1961 = vmatpush2.xpose.msra.mxu0 0.0
  %1962 = vmatprep.mubr.f32.mxu0 0.0
  %1963 = vmatmul.mubr.f32.gmra.mxu0 %v1886
  %v1964 = vpop.f32.mrf.mxu0
  %v1965 = vadd.f32 %v420, %v1964
  %v1966 = vpop.f32.mrf.mxu0
  %1967 = vmatprep.mubr.f32.mxu0 0.0
  %1968 = vmatmul.mubr.f32.gmra.mxu0 %v1888
  %v1969 = vpop.f32.mrf.mxu0
  %v1970 = vadd.f32 %v420, %v1969
  %v1971 = vpop.f32.mrf.mxu0
  %1972 = vmatprep.mubr.f32.mxu0 0.0
  %1973 = vmatmul.mubr.f32.gmra.mxu0 %v1890
  %v1974 = vpop.f32.mrf.mxu0
  %v1975 = vadd.f32 %v420, %v1974
  %v1976 = vpop.f32.mrf.mxu0
  %1977 = vdwg.mxu0
  %v1978 = vsel %vm524, %v1965, -inf
  %1979 = vmax.xlane.f32.xlu0 %v1978
  %v1980 = vpop.xlane.xlu0 %1979
  %v1981 = vsel %vm524, %v1970, -inf
  %1982 = vmax.xlane.f32.xlu0 %v1981
  %v1983 = vpop.xlane.xlu0 %1982
  %v1984 = vsel %vm524, %v1975, -inf
  %1985 = vmax.xlane.f32.xlu0 %v1984
  %v1986 = vpop.xlane.xlu0 %1985
  %v1987 = vsub.f32 %v1965, %v1980
  %v1988 = vsub.f32 %v1970, %v1983
  %v1989 = vsub.f32 %v1975, %v1986
  %v1990 = vmul.f32 %v1987, 1.442695
  %v1991 = vpow.pop %v1990
  %v1992 = vmul.f32 %v1988, 1.442695
  %v1993 = vpow.pop %v1992
  %v1994 = vmul.f32 %v1989, 1.442695
  %v1995 = vpow.pop %v1994
  %v1996 = vsel %vm524, %v1991, 0.0
  %1997 = vadd.xlane.f32.xlu0 %v1996
  %v1998 = vpop.xlane.xlu0 %1997
  %v1999 = vsel %vm524, %v1993, 0.0
  %2000 = vadd.xlane.f32.xlu0 %v1999
  %v2001 = vpop.xlane.xlu0 %2000
  %v2002 = vsel %vm524, %v1995, 0.0
  %2003 = vadd.xlane.f32.xlu0 %v2002
  %v2004 = vpop.xlane.xlu0 %2003
  %v2005 = vrcp.pop %v1998
  %v2006 = vrcp.pop %v2001
  %v2007 = vrcp.pop %v2004
  %v2008 = vmul.f32 %v1991, %v2005
  %v2009 = vmul.f32 %v1993, %v2006
  %v2010 = vmul.f32 %v1995, %v2007
  %2011 = vrot.lane.b32.xlu0 %v403, 48
  %v2012 = vpop.permute.xlu0 %2011
  %2013 = vrot.lane.b32.xlu0 %v408, 48
  %v2014 = vpop.permute.xlu0 %2013
  %2015 = vrot.lane.b32.xlu0 %v413, 48
  %v2016 = vpop.permute.xlu0 %2015
  %v2021 = vsel %vm524, %v2008, 0
  %v2024 = vsel %vm524, %v2009, 0
  %v2027 = vsel %vm524, %v2010, 0
  %2029 = vmatprep.subr.mxu0 0.0
  %2030 = vmatpush1.msra.mxu0 0.0
  %2031 = vmatprep.subr.mxu0 0.0
  %2032 = vmatpush1.msra.mxu0 0.0
  %2033 = vmatprep.subr.mxu0 0.0
  %2034 = vmatpush1.msra.mxu0 0.0
  %2035 = vmatprep.subr.mxu0 0.0
  %2036 = vmatpush1.msra.mxu0 0.0
  %2037 = vmatprep.subr.mxu0 0.0
  %2038 = vmatpush1.msra.mxu0 0.0
  %2039 = vmatprep.subr.mxu0 0.0
  %2040 = vmatpush1.msra.mxu0 0.0
  %2041 = vmatprep.subr.mxu0 0.0
  %2042 = vmatpush1.msra.mxu0 0.0
  %2043 = vmatprep.subr.mxu0 0.0
  %2044 = vmatpush1.msra.mxu0 0.0
  %2045 = vmatprep.subr.mxu0 0.0
  %2046 = vmatpush1.msra.mxu0 0.0
  %2047 = vmatprep.subr.mxu0 0.0
  %2048 = vmatpush1.msra.mxu0 0.0
  %2049 = vmatprep.subr.mxu0 0.0
  %2050 = vmatpush1.msra.mxu0 0.0
  %2051 = vmatprep.subr.mxu0 0.0
  %2052 = vmatpush1.msra.mxu0 0.0
  %2053 = vmatprep.subr.mxu0 0.0
  %2054 = vmatpush1.msra.mxu0 0.0
  %2055 = vmatprep.subr.mxu0 0.0
  %2056 = vmatpush1.msra.mxu0 %v2016
  %2057 = vmatprep.subr.mxu0 0.0
  %2058 = vmatpush1.msra.mxu0 %v2014
  %2059 = vmatprep.subr.mxu0 0.0
  %2060 = vmatpush1.msra.mxu0 %v2012
  %2061 = vmatprep.subr.mxu0 0.0
  %2062 = vmatpush2.msra.mxu0 0.0
  %2063 = vmatprep.subr.mxu0 0.0
  %2064 = vmatpush2.msra.mxu0 0.0
  %2065 = vmatprep.subr.mxu0 0.0
  %2066 = vmatpush2.msra.mxu0 0.0
  %2067 = vmatprep.subr.mxu0 0.0
  %2068 = vmatpush2.msra.mxu0 0.0
  %2069 = vmatprep.subr.mxu0 0.0
  %2070 = vmatpush2.msra.mxu0 0.0
  %2071 = vmatprep.subr.mxu0 0.0
  %2072 = vmatpush2.msra.mxu0 0.0
  %2073 = vmatprep.subr.mxu0 0.0
  %2074 = vmatpush2.msra.mxu0 0.0
  %2075 = vmatprep.subr.mxu0 0.0
  %2076 = vmatpush2.msra.mxu0 0.0
  %2077 = vmatprep.subr.mxu0 0.0
  %2078 = vmatpush2.msra.mxu0 0.0
  %2079 = vmatprep.subr.mxu0 0.0
  %2080 = vmatpush2.msra.mxu0 0.0
  %2081 = vmatprep.subr.mxu0 0.0
  %2082 = vmatpush2.msra.mxu0 0.0
  %2083 = vmatprep.subr.mxu0 0.0
  %2084 = vmatpush2.msra.mxu0 0.0
  %2085 = vmatprep.subr.mxu0 0.0
  %2086 = vmatpush2.msra.mxu0 0.0
  %2087 = vmatprep.subr.mxu0 0.0
  %2088 = vmatpush2.msra.mxu0 0.0
  %2089 = vmatprep.subr.mxu0 0.0
  %2090 = vmatpush2.msra.mxu0 0.0
  %2091 = vmatprep.subr.mxu0 0.0
  %2092 = vmatpush2.msra.mxu0 0.0
  %2093 = vmatprep.mubr.f32.mxu0 0.0
  %2094 = vmatmul.mubr.f32.gmra.mxu0 %v2021
  %v2095 = vpop.f32.mrf.mxu0
  %v2096 = vadd.f32 0.0, %v2095
  %v2097 = vpop.f32.mrf.mxu0
  %2098 = vmatprep.mubr.f32.mxu0 0.0
  %2099 = vmatmul.mubr.f32.gmra.mxu0 %v2024
  %v2100 = vpop.f32.mrf.mxu0
  %v2101 = vadd.f32 0.0, %v2100
  %v2102 = vpop.f32.mrf.mxu0
  %2103 = vmatprep.mubr.f32.mxu0 0.0
  %2104 = vmatmul.mubr.f32.gmra.mxu0 %v2027
  %v2105 = vpop.f32.mrf.mxu0
  %v2106 = vadd.f32 0.0, %v2105
  %v2107 = vpop.f32.mrf.mxu0
  %2108 = vdwg.mxu0
  %2109 = vrot.lane.b32.xlu0 %v403, 104
  %v2110 = vpop.permute.xlu0 %2109
  %2111 = vrot.lane.b32.xlu0 %v408, 104
  %v2112 = vpop.permute.xlu0 %2111
  %2113 = vrot.lane.b32.xlu0 %v413, 104
  %v2114 = vpop.permute.xlu0 %2113
  %2115 = vrot.lane.b32.xlu0 %v403, 72
  %v2116 = vpop.permute.xlu0 %2115
  %2117 = vrot.lane.b32.xlu0 %v408, 72
  %v2118 = vpop.permute.xlu0 %2117
  %2119 = vrot.lane.b32.xlu0 %v413, 72
  %v2120 = vpop.permute.xlu0 %2119
  %v2121 = vsel %vm431, %v2110, 0
  %v2123 = vsel %vm431, %v2112, 0
  %v2125 = vsel %vm431, %v2114, 0
  %v2127 = vsel %vm431, %v2116, 0
  %v2129 = vsel %vm431, %v2118, 0
  %v2131 = vsel %vm431, %v2120, 0
  %2133 = vmatprep.subr.mxu0 0.0
  %2134 = vmatpush1.xpose.msra.mxu0 0.0
  %2135 = vmatprep.subr.mxu0 0.0
  %2136 = vmatpush1.xpose.msra.mxu0 0.0
  %2137 = vmatprep.subr.mxu0 0.0
  %2138 = vmatpush1.xpose.msra.mxu0 0.0
  %2139 = vmatprep.subr.mxu0 0.0
  %2140 = vmatpush1.xpose.msra.mxu0 0.0
  %2141 = vmatprep.subr.mxu0 0.0
  %2142 = vmatpush1.xpose.msra.mxu0 0.0
  %2143 = vmatprep.subr.mxu0 0.0
  %2144 = vmatpush1.xpose.msra.mxu0 0.0
  %2145 = vmatprep.subr.mxu0 0.0
  %2146 = vmatpush1.xpose.msra.mxu0 0.0
  %2147 = vmatprep.subr.mxu0 0.0
  %2148 = vmatpush1.xpose.msra.mxu0 0.0
  %2149 = vmatprep.subr.mxu0 0.0
  %2150 = vmatpush1.xpose.msra.mxu0 0.0
  %2151 = vmatprep.subr.mxu0 0.0
  %2152 = vmatpush1.xpose.msra.mxu0 0.0
  %2153 = vmatprep.subr.mxu0 0.0
  %2154 = vmatpush1.xpose.msra.mxu0 0.0
  %2155 = vmatprep.subr.mxu0 0.0
  %2156 = vmatpush1.xpose.msra.mxu0 0.0
  %2157 = vmatprep.subr.mxu0 0.0
  %2158 = vmatpush1.xpose.msra.mxu0 0.0
  %2159 = vmatprep.subr.mxu0 0.0
  %2160 = vmatpush1.xpose.msra.mxu0 %v2131
  %2161 = vmatprep.subr.mxu0 0.0
  %2162 = vmatpush1.xpose.msra.mxu0 %v2129
  %2163 = vmatprep.subr.mxu0 0.0
  %2164 = vmatpush1.xpose.msra.mxu0 %v2127
  %2165 = vmatprep.subr.mxu0 0.0
  %2166 = vmatpush2.xpose.msra.mxu0 0.0
  %2167 = vmatprep.subr.mxu0 0.0
  %2168 = vmatpush2.xpose.msra.mxu0 0.0
  %2169 = vmatprep.subr.mxu0 0.0
  %2170 = vmatpush2.xpose.msra.mxu0 0.0
  %2171 = vmatprep.subr.mxu0 0.0
  %2172 = vmatpush2.xpose.msra.mxu0 0.0
  %2173 = vmatprep.subr.mxu0 0.0
  %2174 = vmatpush2.xpose.msra.mxu0 0.0
  %2175 = vmatprep.subr.mxu0 0.0
  %2176 = vmatpush2.xpose.msra.mxu0 0.0
  %2177 = vmatprep.subr.mxu0 0.0
  %2178 = vmatpush2.xpose.msra.mxu0 0.0
  %2179 = vmatprep.subr.mxu0 0.0
  %2180 = vmatpush2.xpose.msra.mxu0 0.0
  %2181 = vmatprep.subr.mxu0 0.0
  %2182 = vmatpush2.xpose.msra.mxu0 0.0
  %2183 = vmatprep.subr.mxu0 0.0
  %2184 = vmatpush2.xpose.msra.mxu0 0.0
  %2185 = vmatprep.subr.mxu0 0.0
  %2186 = vmatpush2.xpose.msra.mxu0 0.0
  %2187 = vmatprep.subr.mxu0 0.0
  %2188 = vmatpush2.xpose.msra.mxu0 0.0
  %2189 = vmatprep.subr.mxu0 0.0
  %2190 = vmatpush2.xpose.msra.mxu0 0.0
  %2191 = vmatprep.subr.mxu0 0.0
  %2192 = vmatpush2.xpose.msra.mxu0 0.0
  %2193 = vmatprep.subr.mxu0 0.0
  %2194 = vmatpush2.xpose.msra.mxu0 0.0
  %2195 = vmatprep.subr.mxu0 0.0
  %2196 = vmatpush2.xpose.msra.mxu0 0.0
  %2197 = vmatprep.mubr.f32.mxu0 0.0
  %2198 = vmatmul.mubr.f32.gmra.mxu0 %v2121
  %v2199 = vpop.f32.mrf.mxu0
  %v2200 = vadd.f32 %v420, %v2199
  %v2201 = vpop.f32.mrf.mxu0
  %2202 = vmatprep.mubr.f32.mxu0 0.0
  %2203 = vmatmul.mubr.f32.gmra.mxu0 %v2123
  %v2204 = vpop.f32.mrf.mxu0
  %v2205 = vadd.f32 %v420, %v2204
  %v2206 = vpop.f32.mrf.mxu0
  %2207 = vmatprep.mubr.f32.mxu0 0.0
  %2208 = vmatmul.mubr.f32.gmra.mxu0 %v2125
  %v2209 = vpop.f32.mrf.mxu0
  %v2210 = vadd.f32 %v420, %v2209
  %v2211 = vpop.f32.mrf.mxu0
  %2212 = vdwg.mxu0
  %v2213 = vsel %vm524, %v2200, -inf
  %2214 = vmax.xlane.f32.xlu0 %v2213
  %v2215 = vpop.xlane.xlu0 %2214
  %v2216 = vsel %vm524, %v2205, -inf
  %2217 = vmax.xlane.f32.xlu0 %v2216
  %v2218 = vpop.xlane.xlu0 %2217
  %v2219 = vsel %vm524, %v2210, -inf
  %2220 = vmax.xlane.f32.xlu0 %v2219
  %v2221 = vpop.xlane.xlu0 %2220
  %v2222 = vsub.f32 %v2200, %v2215
  %v2223 = vsub.f32 %v2205, %v2218
  %v2224 = vsub.f32 %v2210, %v2221
  %v2225 = vmul.f32 %v2222, 1.442695
  %v2226 = vpow.pop %v2225
  %v2227 = vmul.f32 %v2223, 1.442695
  %v2228 = vpow.pop %v2227
  %v2229 = vmul.f32 %v2224, 1.442695
  %v2230 = vpow.pop %v2229
  %v2231 = vsel %vm524, %v2226, 0.0
  %2232 = vadd.xlane.f32.xlu0 %v2231
  %v2233 = vpop.xlane.xlu0 %2232
  %v2234 = vsel %vm524, %v2228, 0.0
  %2235 = vadd.xlane.f32.xlu0 %v2234
  %v2236 = vpop.xlane.xlu0 %2235
  %v2237 = vsel %vm524, %v2230, 0.0
  %2238 = vadd.xlane.f32.xlu0 %v2237
  %v2239 = vpop.xlane.xlu0 %2238
  %v2240 = vrcp.pop %v2233
  %v2241 = vrcp.pop %v2236
  %v2242 = vrcp.pop %v2239
  %v2243 = vmul.f32 %v2226, %v2240
  %v2244 = vmul.f32 %v2228, %v2241
  %v2245 = vmul.f32 %v2230, %v2242
  %2246 = vrot.lane.b32.xlu0 %v403, 40
  %v2247 = vpop.permute.xlu0 %2246
  %2248 = vrot.lane.b32.xlu0 %v408, 40
  %v2249 = vpop.permute.xlu0 %2248
  %2250 = vrot.lane.b32.xlu0 %v413, 40
  %v2251 = vpop.permute.xlu0 %2250
  %v2256 = vsel %vm524, %v2243, 0
  %v2259 = vsel %vm524, %v2244, 0
  %v2262 = vsel %vm524, %v2245, 0
  %2264 = vmatprep.subr.mxu0 0.0
  %2265 = vmatpush1.msra.mxu0 0.0
  %2266 = vmatprep.subr.mxu0 0.0
  %2267 = vmatpush1.msra.mxu0 0.0
  %2268 = vmatprep.subr.mxu0 0.0
  %2269 = vmatpush1.msra.mxu0 0.0
  %2270 = vmatprep.subr.mxu0 0.0
  %2271 = vmatpush1.msra.mxu0 0.0
  %2272 = vmatprep.subr.mxu0 0.0
  %2273 = vmatpush1.msra.mxu0 0.0
  %2274 = vmatprep.subr.mxu0 0.0
  %2275 = vmatpush1.msra.mxu0 0.0
  %2276 = vmatprep.subr.mxu0 0.0
  %2277 = vmatpush1.msra.mxu0 0.0
  %2278 = vmatprep.subr.mxu0 0.0
  %2279 = vmatpush1.msra.mxu0 0.0
  %2280 = vmatprep.subr.mxu0 0.0
  %2281 = vmatpush1.msra.mxu0 0.0
  %2282 = vmatprep.subr.mxu0 0.0
  %2283 = vmatpush1.msra.mxu0 0.0
  %2284 = vmatprep.subr.mxu0 0.0
  %2285 = vmatpush1.msra.mxu0 0.0
  %2286 = vmatprep.subr.mxu0 0.0
  %2287 = vmatpush1.msra.mxu0 0.0
  %2288 = vmatprep.subr.mxu0 0.0
  %2289 = vmatpush1.msra.mxu0 0.0
  %2290 = vmatprep.subr.mxu0 0.0
  %2291 = vmatpush1.msra.mxu0 %v2251
  %2292 = vmatprep.subr.mxu0 0.0
  %2293 = vmatpush1.msra.mxu0 %v2249
  %2294 = vmatprep.subr.mxu0 0.0
  %2295 = vmatpush1.msra.mxu0 %v2247
  %2296 = vmatprep.subr.mxu0 0.0
  %2297 = vmatpush2.msra.mxu0 0.0
  %2298 = vmatprep.subr.mxu0 0.0
  %2299 = vmatpush2.msra.mxu0 0.0
  %2300 = vmatprep.subr.mxu0 0.0
  %2301 = vmatpush2.msra.mxu0 0.0
  %2302 = vmatprep.subr.mxu0 0.0
  %2303 = vmatpush2.msra.mxu0 0.0
  %2304 = vmatprep.subr.mxu0 0.0
  %2305 = vmatpush2.msra.mxu0 0.0
  %2306 = vmatprep.subr.mxu0 0.0
  %2307 = vmatpush2.msra.mxu0 0.0
  %2308 = vmatprep.subr.mxu0 0.0
  %2309 = vmatpush2.msra.mxu0 0.0
  %2310 = vmatprep.subr.mxu0 0.0
  %2311 = vmatpush2.msra.mxu0 0.0
  %2312 = vmatprep.subr.mxu0 0.0
  %2313 = vmatpush2.msra.mxu0 0.0
  %2314 = vmatprep.subr.mxu0 0.0
  %2315 = vmatpush2.msra.mxu0 0.0
  %2316 = vmatprep.subr.mxu0 0.0
  %2317 = vmatpush2.msra.mxu0 0.0
  %2318 = vmatprep.subr.mxu0 0.0
  %2319 = vmatpush2.msra.mxu0 0.0
  %2320 = vmatprep.subr.mxu0 0.0
  %2321 = vmatpush2.msra.mxu0 0.0
  %2322 = vmatprep.subr.mxu0 0.0
  %2323 = vmatpush2.msra.mxu0 0.0
  %2324 = vmatprep.subr.mxu0 0.0
  %2325 = vmatpush2.msra.mxu0 0.0
  %2326 = vmatprep.subr.mxu0 0.0
  %2327 = vmatpush2.msra.mxu0 0.0
  %2328 = vmatprep.mubr.f32.mxu0 0.0
  %2329 = vmatmul.mubr.f32.gmra.mxu0 %v2256
  %v2330 = vpop.f32.mrf.mxu0
  %v2331 = vadd.f32 0.0, %v2330
  %v2332 = vpop.f32.mrf.mxu0
  %2333 = vmatprep.mubr.f32.mxu0 0.0
  %2334 = vmatmul.mubr.f32.gmra.mxu0 %v2259
  %v2335 = vpop.f32.mrf.mxu0
  %v2336 = vadd.f32 0.0, %v2335
  %v2337 = vpop.f32.mrf.mxu0
  %2338 = vmatprep.mubr.f32.mxu0 0.0
  %2339 = vmatmul.mubr.f32.gmra.mxu0 %v2262
  %v2340 = vpop.f32.mrf.mxu0
  %v2341 = vadd.f32 0.0, %v2340
  %v2342 = vpop.f32.mrf.mxu0
  %2343 = vdwg.mxu0
  %2347 = vrot.lane.b32.xlu0 %v1861, 8
  %v2348 = vpop.permute.xlu0 %2347
  %2349 = vrot.lane.b32.xlu0 %v1866, 8
  %v2350 = vpop.permute.xlu0 %2349
  %2351 = vrot.lane.b32.xlu0 %v1871, 8
  %v2352 = vpop.permute.xlu0 %2351
  %2359 = vrot.lane.b32.xlu0 %v2096, 16
  %v2360 = vpop.permute.xlu0 %2359
  %2361 = vrot.lane.b32.xlu0 %v2101, 16
  %v2362 = vpop.permute.xlu0 %2361
  %2363 = vrot.lane.b32.xlu0 %v2106, 16
  %v2364 = vpop.permute.xlu0 %2363
  %2371 = vrot.lane.b32.xlu0 %v2331, 24
  %v2372 = vpop.permute.xlu0 %2371
  %2373 = vrot.lane.b32.xlu0 %v2336, 24
  %v2374 = vpop.permute.xlu0 %2373
  %2375 = vrot.lane.b32.xlu0 %v2341, 24
  %v2376 = vpop.permute.xlu0 %2375
  %v2380 = vsel %vm431, %v1626, %v2348
  %v2381 = vsel %vm431, %v1631, %v2350
  %v2382 = vsel %vm431, %v1636, %v2352
  %v2383 = vsel %vm1400, %v2380, %v2360
  %v2384 = vsel %vm1400, %v2381, %v2362
  %v2385 = vsel %vm1400, %v2382, %v2364
  %v2386 = vsel %vm524, %v2383, %v2372
  %v2387 = vsel %vm524, %v2384, %v2374
  %v2388 = vsel %vm524, %v2385, %v2376
  %v2389 = vld [vmem:[%s7] sm:$0xff]
  %v2390 = vld [vmem:[%s7 + $0x8] sm:$0xff]
  %v2391 = vld [vmem:[%s7 + $0x10] sm:$0xff]
  %v2392 = vld [vmem:[%s7 + $0x18] sm:$0xff]
  %v2393 = vld [vmem:[%s8] sm:$0x1]
  %v2395 = vlaneseq
  %v2396 = vshrl.u32 %v2395, 7
  %v2397 = vsub.s32 0, %v2396
  %v2398 = vrot.slane %v2393, %v2397
  %v2401 = vsel %vm195, %v1404, 0
  %v2404 = vsel %vm195, %v1405, 0
  %v2407 = vsel %vm195, %v1406, 0
  %v2410 = vsel %vm195, %v2386, 0
  %v2413 = vsel %vm195, %v2387, 0
  %v2416 = vsel %vm195, %v2388, 0
  %2418 = vmatprep.subr.mxu0 0.0
  %2419 = vmatpush1.msra.mxu0 0.0
  %2420 = vmatprep.subr.mxu0 0.0
  %2421 = vmatpush1.msra.mxu0 0.0
  %2422 = vmatprep.subr.mxu0 0.0
  %2423 = vmatpush1.msra.mxu0 0.0
  %2424 = vmatprep.subr.mxu0 0.0
  %2425 = vmatpush1.msra.mxu0 0.0
  %2426 = vmatprep.subr.mxu0 0.0
  %2427 = vmatpush1.msra.mxu0 0.0
  %2428 = vmatprep.subr.mxu0 0.0
  %2429 = vmatpush1.msra.mxu0 0.0
  %2430 = vmatprep.subr.mxu0 0.0
  %2431 = vmatpush1.msra.mxu0 0.0
  %2432 = vmatprep.subr.mxu0 0.0
  %2433 = vmatpush1.msra.mxu0 0.0
  %2434 = vmatprep.subr.mxu0 0.0
  %2435 = vmatpush1.msra.mxu0 0.0
  %2436 = vmatprep.subr.mxu0 0.0
  %2437 = vmatpush1.msra.mxu0 0.0
  %2438 = vmatprep.subr.mxu0 0.0
  %2439 = vmatpush1.msra.mxu0 0.0
  %2440 = vmatprep.subr.mxu0 0.0
  %2441 = vmatpush1.msra.mxu0 0.0
  %2442 = vmatprep.subr.mxu0 0.0
  %2443 = vmatpush1.msra.mxu0 %v2392
  %2444 = vmatprep.subr.mxu0 0.0
  %2445 = vmatpush1.msra.mxu0 %v2391
  %2446 = vmatprep.subr.mxu0 0.0
  %2447 = vmatpush1.msra.mxu0 %v2390
  %2448 = vmatprep.subr.mxu0 0.0
  %2449 = vmatpush1.msra.mxu0 %v2389
  %2450 = vmatprep.subr.mxu0 0.0
  %2451 = vmatpush2.msra.mxu0 0.0
  %2452 = vmatprep.subr.mxu0 0.0
  %2453 = vmatpush2.msra.mxu0 0.0
  %2454 = vmatprep.subr.mxu0 0.0
  %2455 = vmatpush2.msra.mxu0 0.0
  %2456 = vmatprep.subr.mxu0 0.0
  %2457 = vmatpush2.msra.mxu0 0.0
  %2458 = vmatprep.subr.mxu0 0.0
  %2459 = vmatpush2.msra.mxu0 0.0
  %2460 = vmatprep.subr.mxu0 0.0
  %2461 = vmatpush2.msra.mxu0 0.0
  %2462 = vmatprep.subr.mxu0 0.0
  %2463 = vmatpush2.msra.mxu0 0.0
  %2464 = vmatprep.subr.mxu0 0.0
  %2465 = vmatpush2.msra.mxu0 0.0
  %2466 = vmatprep.subr.mxu0 0.0
  %2467 = vmatpush2.msra.mxu0 0.0
  %2468 = vmatprep.subr.mxu0 0.0
  %2469 = vmatpush2.msra.mxu0 0.0
  %2470 = vmatprep.subr.mxu0 0.0
  %2471 = vmatpush2.msra.mxu0 0.0
  %2472 = vmatprep.subr.mxu0 0.0
  %2473 = vmatpush2.msra.mxu0 0.0
  %2474 = vmatprep.subr.mxu0 0.0
  %2475 = vmatpush2.msra.mxu0 0.0
  %2476 = vmatprep.subr.mxu0 0.0
  %2477 = vmatpush2.msra.mxu0 0.0
  %2478 = vmatprep.subr.mxu0 0.0
  %2479 = vmatpush2.msra.mxu0 0.0
  %2480 = vmatprep.subr.mxu0 0.0
  %2481 = vmatpush2.msra.mxu0 0.0
  %2482 = vmatprep.mubr.f32.mxu0 0.0
  %2483 = vmatmul.mubr.f32.gmra.mxu0 %v2401
  %v2484 = vpop.f32.mrf.mxu0
  %v2485 = vadd.f32 %v2398, %v2484
  %v2486 = vpop.f32.mrf.mxu0
  %2487 = vmatprep.mubr.f32.mxu0 0.0
  %2488 = vmatmul.mubr.f32.gmra.mxu0 %v2404
  %v2489 = vpop.f32.mrf.mxu0
  %v2490 = vadd.f32 %v2398, %v2489
  %v2491 = vpop.f32.mrf.mxu0
  %2492 = vmatprep.mubr.f32.mxu0 0.0
  %2493 = vmatmul.mubr.f32.gmra.mxu0 %v2407
  %v2494 = vpop.f32.mrf.mxu0
  %v2495 = vadd.f32 %v2398, %v2494
  %v2496 = vpop.f32.mrf.mxu0
  %2497 = vmatprep.mubr.f32.mxu0 0.0
  %2498 = vmatmul.mubr.f32.gmra.mxu0 %v2410
  %v2499 = vpop.f32.mrf.mxu0
  %v2500 = vadd.f32 %v2398, %v2499
  %v2501 = vpop.f32.mrf.mxu0
  %2502 = vmatprep.mubr.f32.mxu0 0.0
  %2503 = vmatmul.mubr.f32.gmra.mxu0 %v2413
  %v2504 = vpop.f32.mrf.mxu0
  %v2505 = vadd.f32 %v2398, %v2504
  %v2506 = vpop.f32.mrf.mxu0
  %2507 = vmatprep.mubr.f32.mxu0 0.0
  %2508 = vmatmul.mubr.f32.gmra.mxu0 %v2416
  %v2509 = vpop.f32.mrf.mxu0
  %v2510 = vadd.f32 %v2398, %v2509
  %v2511 = vpop.f32.mrf.mxu0
  %2512 = vdwg.mxu0
  %v2513 = vadd.f32 %v165, %v2485
  %v2514 = vadd.f32 %v170, %v2490
  %v2515 = vadd.f32 %v175, %v2495
  %v2516 = vadd.f32 %v180, %v2500
  %v2517 = vadd.f32 %v185, %v2505
  %v2518 = vadd.f32 %v190, %v2510
  %v2519 = vld [vmem:[%s9] sm:$0x1]
  %v2520 = vld [vmem:[%s10] sm:$0x1]
  %v2521 = vsel %vm195, %v2513, 0.0
  %2522 = vadd.xlane.f32.xlu0 %v2521
  %v2523 = vpop.xlane.xlu0 %2522
  %v2524 = vsel %vm195, %v2514, 0.0
  %2525 = vadd.xlane.f32.xlu0 %v2524
  %v2526 = vpop.xlane.xlu0 %2525
  %v2527 = vsel %vm195, %v2515, 0.0
  %2528 = vadd.xlane.f32.xlu0 %v2527
  %v2529 = vpop.xlane.xlu0 %2528
  %v2530 = vsel %vm195, %v2516, 0.0
  %2531 = vadd.xlane.f32.xlu0 %v2530
  %v2532 = vpop.xlane.xlu0 %2531
  %v2533 = vsel %vm195, %v2517, 0.0
  %2534 = vadd.xlane.f32.xlu0 %v2533
  %v2535 = vpop.xlane.xlu0 %2534
  %v2536 = vsel %vm195, %v2518, 0.0
  %2537 = vadd.xlane.f32.xlu0 %v2536
  %v2538 = vpop.xlane.xlu0 %2537
  %v2539 = vmul.f32 %v2523, %v214
  %v2540 = vmul.f32 %v2526, %v214
  %v2541 = vmul.f32 %v2529, %v214
  %v2542 = vmul.f32 %v2532, %v214
  %v2543 = vmul.f32 %v2535, %v214
  %v2544 = vmul.f32 %v2538, %v214
  %v2545 = vsub.f32 %v2513, %v2539
  %v2546 = vsub.f32 %v2514, %v2540
  %v2547 = vsub.f32 %v2515, %v2541
  %v2548 = vsub.f32 %v2516, %v2542
  %v2549 = vsub.f32 %v2517, %v2543
  %v2550 = vsub.f32 %v2518, %v2544
  %v2551 = vmul.f32 %v2545, %v2545
  %v2552 = vmul.f32 %v2546, %v2546
  %v2553 = vmul.f32 %v2547, %v2547
  %v2554 = vmul.f32 %v2548, %v2548
  %v2555 = vmul.f32 %v2549, %v2549
  %v2556 = vmul.f32 %v2550, %v2550
  %v2557 = vsel %vm195, %v2551, 0.0
  %2558 = vadd.xlane.f32.xlu0 %v2557
  %v2559 = vpop.xlane.xlu0 %2558
  %v2560 = vsel %vm195, %v2552, 0.0
  %2561 = vadd.xlane.f32.xlu0 %v2560
  %v2562 = vpop.xlane.xlu0 %2561
  %v2563 = vsel %vm195, %v2553, 0.0
  %2564 = vadd.xlane.f32.xlu0 %v2563
  %v2565 = vpop.xlane.xlu0 %2564
  %v2566 = vsel %vm195, %v2554, 0.0
  %2567 = vadd.xlane.f32.xlu0 %v2566
  %v2568 = vpop.xlane.xlu0 %2567
  %v2569 = vsel %vm195, %v2555, 0.0
  %2570 = vadd.xlane.f32.xlu0 %v2569
  %v2571 = vpop.xlane.xlu0 %2570
  %v2572 = vsel %vm195, %v2556, 0.0
  %2573 = vadd.xlane.f32.xlu0 %v2572
  %v2574 = vpop.xlane.xlu0 %2573
  %v2575 = vmul.f32 %v2559, %v214
  %v2576 = vmul.f32 %v2562, %v214
  %v2577 = vmul.f32 %v2565, %v214
  %v2578 = vmul.f32 %v2568, %v214
  %v2579 = vmul.f32 %v2571, %v214
  %v2580 = vmul.f32 %v2574, %v214
  %v2581 = vadd.f32 %v2575, 1e-05
  %v2582 = vadd.f32 %v2576, 1e-05
  %v2583 = vadd.f32 %v2577, 1e-05
  %v2584 = vadd.f32 %v2578, 1e-05
  %v2585 = vadd.f32 %v2579, 1e-05
  %v2586 = vadd.f32 %v2580, 1e-05
  %v2587 = vrsqrt.pop %v2581
  %v2588 = vrsqrt.pop %v2582
  %v2589 = vrsqrt.pop %v2583
  %v2590 = vrsqrt.pop %v2584
  %v2591 = vrsqrt.pop %v2585
  %v2592 = vrsqrt.pop %v2586
  %v2593 = vmul.f32 %v2545, %v2587
  %v2594 = vmul.f32 %v2546, %v2588
  %v2595 = vmul.f32 %v2547, %v2589
  %v2596 = vmul.f32 %v2548, %v2590
  %v2597 = vmul.f32 %v2549, %v2591
  %v2598 = vmul.f32 %v2550, %v2592
  %v2600 = vlaneseq
  %v2601 = vshrl.u32 %v2600, 7
  %v2602 = vsub.s32 0, %v2601
  %v2603 = vrot.slane %v2519, %v2602
  %v2605 = vmul.f32 %v2593, %v2603
  %v2606 = vmul.f32 %v2594, %v2603
  %v2607 = vmul.f32 %v2595, %v2603
  %v2608 = vmul.f32 %v2596, %v2603
  %v2609 = vmul.f32 %v2597, %v2603
  %v2610 = vmul.f32 %v2598, %v2603
  %v2612 = vlaneseq
  %v2613 = vshrl.u32 %v2612, 7
  %v2614 = vsub.s32 0, %v2613
  %v2615 = vrot.slane %v2520, %v2614
  %v2617 = vadd.f32 %v2605, %v2615
  %v2618 = vadd.f32 %v2606, %v2615
  %v2619 = vadd.f32 %v2607, %v2615
  %v2620 = vadd.f32 %v2608, %v2615
  %v2621 = vadd.f32 %v2609, %v2615
  %v2622 = vadd.f32 %v2610, %v2615
  %v2623 = vld [vmem:[%s11] sm:$0xff]
  %v2624 = vld [vmem:[%s11 + $0x8] sm:$0xff]
  %v2625 = vld [vmem:[%s11 + $0x10] sm:$0xff]
  %v2626 = vld [vmem:[%s11 + $0x18] sm:$0xff]
  %v2627 = vld [vmem:[%s12] sm:$0x1]
  %v2629 = vlaneseq
  %v2630 = vshrl.u32 %v2629, 7
  %v2631 = vsub.s32 0, %v2630
  %v2632 = vrot.slane %v2627, %v2631
  %v2635 = vsel %vm195, %v2617, 0
  %v2638 = vsel %vm195, %v2618, 0
  %v2641 = vsel %vm195, %v2619, 0
  %v2644 = vsel %vm195, %v2620, 0
  %v2647 = vsel %vm195, %v2621, 0
  %v2650 = vsel %vm195, %v2622, 0
  %2652 = vmatprep.subr.mxu0 0.0
  %2653 = vmatpush1.msra.mxu0 0.0
  %2654 = vmatprep.subr.mxu0 0.0
  %2655 = vmatpush1.msra.mxu0 0.0
  %2656 = vmatprep.subr.mxu0 0.0
  %2657 = vmatpush1.msra.mxu0 0.0
  %2658 = vmatprep.subr.mxu0 0.0
  %2659 = vmatpush1.msra.mxu0 0.0
  %2660 = vmatprep.subr.mxu0 0.0
  %2661 = vmatpush1.msra.mxu0 0.0
  %2662 = vmatprep.subr.mxu0 0.0
  %2663 = vmatpush1.msra.mxu0 0.0
  %2664 = vmatprep.subr.mxu0 0.0
  %2665 = vmatpush1.msra.mxu0 0.0
  %2666 = vmatprep.subr.mxu0 0.0
  %2667 = vmatpush1.msra.mxu0 0.0
  %2668 = vmatprep.subr.mxu0 0.0
  %2669 = vmatpush1.msra.mxu0 0.0
  %2670 = vmatprep.subr.mxu0 0.0
  %2671 = vmatpush1.msra.mxu0 0.0
  %2672 = vmatprep.subr.mxu0 0.0
  %2673 = vmatpush1.msra.mxu0 0.0
  %2674 = vmatprep.subr.mxu0 0.0
  %2675 = vmatpush1.msra.mxu0 0.0
  %2676 = vmatprep.subr.mxu0 0.0
  %2677 = vmatpush1.msra.mxu0 %v2626
  %2678 = vmatprep.subr.mxu0 0.0
  %2679 = vmatpush1.msra.mxu0 %v2625
  %2680 = vmatprep.subr.mxu0 0.0
  %2681 = vmatpush1.msra.mxu0 %v2624
  %2682 = vmatprep.subr.mxu0 0.0
  %2683 = vmatpush1.msra.mxu0 %v2623
  %2684 = vmatprep.subr.mxu0 0.0
  %2685 = vmatpush2.msra.mxu0 0.0
  %2686 = vmatprep.subr.mxu0 0.0
  %2687 = vmatpush2.msra.mxu0 0.0
  %2688 = vmatprep.subr.mxu0 0.0
  %2689 = vmatpush2.msra.mxu0 0.0
  %2690 = vmatprep.subr.mxu0 0.0
  %2691 = vmatpush2.msra.mxu0 0.0
  %2692 = vmatprep.subr.mxu0 0.0
  %2693 = vmatpush2.msra.mxu0 0.0
  %2694 = vmatprep.subr.mxu0 0.0
  %2695 = vmatpush2.msra.mxu0 0.0
  %2696 = vmatprep.subr.mxu0 0.0
  %2697 = vmatpush2.msra.mxu0 0.0
  %2698 = vmatprep.subr.mxu0 0.0
  %2699 = vmatpush2.msra.mxu0 0.0
  %2700 = vmatprep.subr.mxu0 0.0
  %2701 = vmatpush2.msra.mxu0 0.0
  %2702 = vmatprep.subr.mxu0 0.0
  %2703 = vmatpush2.msra.mxu0 0.0
  %2704 = vmatprep.subr.mxu0 0.0
  %2705 = vmatpush2.msra.mxu0 0.0
  %2706 = vmatprep.subr.mxu0 0.0
  %2707 = vmatpush2.msra.mxu0 0.0
  %2708 = vmatprep.subr.mxu0 0.0
  %2709 = vmatpush2.msra.mxu0 0.0
  %2710 = vmatprep.subr.mxu0 0.0
  %2711 = vmatpush2.msra.mxu0 0.0
  %2712 = vmatprep.subr.mxu0 0.0
  %2713 = vmatpush2.msra.mxu0 0.0
  %2714 = vmatprep.subr.mxu0 0.0
  %2715 = vmatpush2.msra.mxu0 0.0
  %2716 = vmatprep.mubr.f32.mxu0 0.0
  %2717 = vmatmul.mubr.f32.gmra.mxu0 %v2635
  %v2718 = vpop.f32.mrf.mxu0
  %v2719 = vadd.f32 %v2632, %v2718
  %v2720 = vpop.f32.mrf.mxu0
  %2721 = vmatprep.mubr.f32.mxu0 0.0
  %2722 = vmatmul.mubr.f32.gmra.mxu0 %v2638
  %v2723 = vpop.f32.mrf.mxu0
  %v2724 = vadd.f32 %v2632, %v2723
  %v2725 = vpop.f32.mrf.mxu0
  %2726 = vmatprep.mubr.f32.mxu0 0.0
  %2727 = vmatmul.mubr.f32.gmra.mxu0 %v2641
  %v2728 = vpop.f32.mrf.mxu0
  %v2729 = vadd.f32 %v2632, %v2728
  %v2730 = vpop.f32.mrf.mxu0
  %2731 = vmatprep.mubr.f32.mxu0 0.0
  %2732 = vmatmul.mubr.f32.gmra.mxu0 %v2644
  %v2733 = vpop.f32.mrf.mxu0
  %v2734 = vadd.f32 %v2632, %v2733
  %v2735 = vpop.f32.mrf.mxu0
  %2736 = vmatprep.mubr.f32.mxu0 0.0
  %2737 = vmatmul.mubr.f32.gmra.mxu0 %v2647
  %v2738 = vpop.f32.mrf.mxu0
  %v2739 = vadd.f32 %v2632, %v2738
  %v2740 = vpop.f32.mrf.mxu0
  %2741 = vmatprep.mubr.f32.mxu0 0.0
  %2742 = vmatmul.mubr.f32.gmra.mxu0 %v2650
  %v2743 = vpop.f32.mrf.mxu0
  %v2744 = vadd.f32 %v2632, %v2743
  %v2745 = vpop.f32.mrf.mxu0
  %2746 = vdwg.mxu0
  %v2747 = vmul.f32 %v2719, 0.5
  %v2748 = vmul.f32 %v2724, 0.5
  %v2749 = vmul.f32 %v2729, 0.5
  %v2750 = vmul.f32 %v2734, 0.5
  %v2751 = vmul.f32 %v2739, 0.5
  %v2752 = vmul.f32 %v2744, 0.5
  %v2753 = vmul.f32 %v2719, 0.70710677
  %v2754 = vmul.f32 %v2724, 0.70710677
  %v2755 = vmul.f32 %v2729, 0.70710677
  %v2756 = vmul.f32 %v2734, 0.70710677
  %v2757 = vmul.f32 %v2739, 0.70710677
  %v2758 = vmul.f32 %v2744, 0.70710677
  %v2759 = verf.f32.pop %v2753
  %v2760 = verf.f32.pop %v2754
  %v2761 = verf.f32.pop %v2755
  %v2762 = verf.f32.pop %v2756
  %v2763 = verf.f32.pop %v2757
  %v2764 = verf.f32.pop %v2758
  %v2765 = vadd.f32 %v2759, 1.0
  %v2766 = vadd.f32 %v2760, 1.0
  %v2767 = vadd.f32 %v2761, 1.0
  %v2768 = vadd.f32 %v2762, 1.0
  %v2769 = vadd.f32 %v2763, 1.0
  %v2770 = vadd.f32 %v2764, 1.0
  %v2771 = vmul.f32 %v2747, %v2765
  %v2772 = vmul.f32 %v2748, %v2766
  %v2773 = vmul.f32 %v2749, %v2767
  %v2774 = vmul.f32 %v2750, %v2768
  %v2775 = vmul.f32 %v2751, %v2769
  %v2776 = vmul.f32 %v2752, %v2770
  %v2777 = vld [vmem:[%s13] sm:$0xff]
  %v2778 = vld [vmem:[%s13 + $0x8] sm:$0xff]
  %v2779 = vld [vmem:[%s13 + $0x10] sm:$0xff]
  %v2780 = vld [vmem:[%s13 + $0x18] sm:$0xff]
  %v2781 = vld [vmem:[%s13 + $0x20] sm:$0xff]
  %v2782 = vld [vmem:[%s13 + $0x28] sm:$0xff]
  %v2783 = vld [vmem:[%s13 + $0x30] sm:$0xff]
  %v2784 = vld [vmem:[%s13 + $0x38] sm:$0xff]
  %v2786 = vsel %vm79, %v2771, 0
  %v2789 = vsel %vm79, %v2772, 0
  %v2792 = vsel %vm79, %v2773, 0
  %v2795 = vsel %vm79, %v2774, 0
  %v2798 = vsel %vm79, %v2775, 0
  %v2801 = vsel %vm79, %v2776, 0
  %2803 = vmatprep.subr.mxu0 0.0
  %2804 = vmatpush1.msra.mxu0 0.0
  %2805 = vmatprep.subr.mxu0 0.0
  %2806 = vmatpush1.msra.mxu0 0.0
  %2807 = vmatprep.subr.mxu0 0.0
  %2808 = vmatpush1.msra.mxu0 0.0
  %2809 = vmatprep.subr.mxu0 0.0
  %2810 = vmatpush1.msra.mxu0 0.0
  %2811 = vmatprep.subr.mxu0 0.0
  %2812 = vmatpush1.msra.mxu0 0.0
  %2813 = vmatprep.subr.mxu0 0.0
  %2814 = vmatpush1.msra.mxu0 0.0
  %2815 = vmatprep.subr.mxu0 0.0
  %2816 = vmatpush1.msra.mxu0 0.0
  %2817 = vmatprep.subr.mxu0 0.0
  %2818 = vmatpush1.msra.mxu0 0.0
  %2819 = vmatprep.subr.mxu0 0.0
  %2820 = vmatpush1.msra.mxu0 %v2784
  %2821 = vmatprep.subr.mxu0 0.0
  %2822 = vmatpush1.msra.mxu0 %v2783
  %2823 = vmatprep.subr.mxu0 0.0
  %2824 = vmatpush1.msra.mxu0 %v2782
  %2825 = vmatprep.subr.mxu0 0.0
  %2826 = vmatpush1.msra.mxu0 %v2781
  %2827 = vmatprep.subr.mxu0 0.0
  %2828 = vmatpush1.msra.mxu0 %v2780
  %2829 = vmatprep.subr.mxu0 0.0
  %2830 = vmatpush1.msra.mxu0 %v2779
  %2831 = vmatprep.subr.mxu0 0.0
  %2832 = vmatpush1.msra.mxu0 %v2778
  %2833 = vmatprep.subr.mxu0 0.0
  %2834 = vmatpush1.msra.mxu0 %v2777
  %2835 = vmatprep.subr.mxu0 0.0
  %2836 = vmatpush2.msra.mxu0 0.0
  %2837 = vmatprep.subr.mxu0 0.0
  %2838 = vmatpush2.msra.mxu0 0.0
  %2839 = vmatprep.subr.mxu0 0.0
  %2840 = vmatpush2.msra.mxu0 0.0
  %2841 = vmatprep.subr.mxu0 0.0
  %2842 = vmatpush2.msra.mxu0 0.0
  %2843 = vmatprep.subr.mxu0 0.0
  %2844 = vmatpush2.msra.mxu0 0.0
  %2845 = vmatprep.subr.mxu0 0.0
  %2846 = vmatpush2.msra.mxu0 0.0
  %2847 = vmatprep.subr.mxu0 0.0
  %2848 = vmatpush2.msra.mxu0 0.0
  %2849 = vmatprep.subr.mxu0 0.0
  %2850 = vmatpush2.msra.mxu0 0.0
  %2851 = vmatprep.subr.mxu0 0.0
  %2852 = vmatpush2.msra.mxu0 0.0
  %2853 = vmatprep.subr.mxu0 0.0
  %2854 = vmatpush2.msra.mxu0 0.0
  %2855 = vmatprep.subr.mxu0 0.0
  %2856 = vmatpush2.msra.mxu0 0.0
  %2857 = vmatprep.subr.mxu0 0.0
  %2858 = vmatpush2.msra.mxu0 0.0
  %2859 = vmatprep.subr.mxu0 0.0
  %2860 = vmatpush2.msra.mxu0 0.0
  %2861 = vmatprep.subr.mxu0 0.0
  %2862 = vmatpush2.msra.mxu0 0.0
  %2863 = vmatprep.subr.mxu0 0.0
  %2864 = vmatpush2.msra.mxu0 0.0
  %2865 = vmatprep.subr.mxu0 0.0
  %2866 = vmatpush2.msra.mxu0 0.0
  %2867 = vmatprep.mubr.f32.mxu0 0.0
  %2868 = vmatmul.mubr.f32.gmra.mxu0 %v2786
  %v2869 = vpop.f32.mrf.mxu0
  %v2870 = vadd.f32 0.0, %v2869
  %v2871 = vpop.f32.mrf.mxu0
  %2872 = vmatprep.mubr.f32.mxu0 0.0
  %2873 = vmatmul.mubr.f32.gmra.mxu0 %v2789
  %v2874 = vpop.f32.mrf.mxu0
  %v2875 = vadd.f32 0.0, %v2874
  %v2876 = vpop.f32.mrf.mxu0
  %2877 = vmatprep.mubr.f32.mxu0 0.0
  %2878 = vmatmul.mubr.f32.gmra.mxu0 %v2792
  %v2879 = vpop.f32.mrf.mxu0
  %v2880 = vadd.f32 0.0, %v2879
  %v2881 = vpop.f32.mrf.mxu0
  %2882 = vmatprep.mubr.f32.mxu0 0.0
  %2883 = vmatmul.mubr.f32.gmra.mxu0 %v2795
  %v2884 = vpop.f32.mrf.mxu0
  %v2885 = vadd.f32 0.0, %v2884
  %v2886 = vpop.f32.mrf.mxu0
  %2887 = vmatprep.mubr.f32.mxu0 0.0
  %2888 = vmatmul.mubr.f32.gmra.mxu0 %v2798
  %v2889 = vpop.f32.mrf.mxu0
  %v2890 = vadd.f32 0.0, %v2889
  %v2891 = vpop.f32.mrf.mxu0
  %2892 = vmatprep.mubr.f32.mxu0 0.0
  %2893 = vmatmul.mubr.f32.gmra.mxu0 %v2801
  %v2894 = vpop.f32.mrf.mxu0
  %v2895 = vadd.f32 0.0, %v2894
  %v2896 = vpop.f32.mrf.mxu0
  %2897 = vdwg.mxu0
  %v2898 = vadd.f32 %v2513, %v2870
  %v2899 = vadd.f32 %v2514, %v2875
  %v2900 = vadd.f32 %v2515, %v2880
  %v2901 = vadd.f32 %v2516, %v2885
  %v2902 = vadd.f32 %v2517, %v2890
  %v2903 = vadd.f32 %v2518, %v2895
  %v2904 = vld [vmem:[%s14] sm:$0x1]
  %v2906 = vlaneseq
  %v2907 = vshrl.u32 %v2906, 7
  %v2908 = vsub.s32 0, %v2907
  %v2909 = vrot.slane %v2904, %v2908
  %v2911 = vadd.f32 %v2898, %v2909
  %v2912 = vadd.f32 %v2899, %v2909
  %v2913 = vadd.f32 %v2900, %v2909
  %v2914 = vadd.f32 %v2901, %v2909
  %v2915 = vadd.f32 %v2902, %v2909
  %v2916 = vadd.f32 %v2903, %v2909
  %2917 = vst.msk [vmem:[%s17] sm:$0xff] %vm195, %v2911
  %2918 = vst.msk [vmem:[%s17 + $0x8] sm:$0xff] %vm195, %v2912
  %2919 = vst.msk [vmem:[%s17 + $0x10] sm:$0xff] %vm195, %v2913
  %2920 = vst.msk [vmem:[%s17 + $0x18] sm:$0xff] %vm195, %v2914
  %2921 = vst.msk [vmem:[%s17 + $0x20] sm:$0xff] %vm195, %v2915
  %2922 = vst.msk [vmem:[%s17 + $0x28] sm:$0xff] %vm195, %v2916
  %s2923 = scalar_lea.vmem %s4, 1
  %v2924 = vld [vmem:[%s2923] sm:$0x1]
  %s2925 = scalar_lea.vmem %s5, 1
  %v2926 = vld [vmem:[%s2925] sm:$0x1]
  %v2927 = vsel %vm195, %v2911, 0.0
  %2928 = vadd.xlane.f32.xlu0 %v2927
  %v2929 = vpop.xlane.xlu0 %2928
  %v2930 = vsel %vm195, %v2912, 0.0
  %2931 = vadd.xlane.f32.xlu0 %v2930
  %v2932 = vpop.xlane.xlu0 %2931
  %v2933 = vsel %vm195, %v2913, 0.0
  %2934 = vadd.xlane.f32.xlu0 %v2933
  %v2935 = vpop.xlane.xlu0 %2934
  %v2936 = vsel %vm195, %v2914, 0.0
  %2937 = vadd.xlane.f32.xlu0 %v2936
  %v2938 = vpop.xlane.xlu0 %2937
  %v2939 = vsel %vm195, %v2915, 0.0
  %2940 = vadd.xlane.f32.xlu0 %v2939
  %v2941 = vpop.xlane.xlu0 %2940
  %v2942 = vsel %vm195, %v2916, 0.0
  %2943 = vadd.xlane.f32.xlu0 %v2942
  %v2944 = vpop.xlane.xlu0 %2943
  %v2945 = vmul.f32 %v2929, %v214
  %v2946 = vmul.f32 %v2932, %v214
  %v2947 = vmul.f32 %v2935, %v214
  %v2948 = vmul.f32 %v2938, %v214
  %v2949 = vmul.f32 %v2941, %v214
  %v2950 = vmul.f32 %v2944, %v214
  %v2951 = vsub.f32 %v2911, %v2945
  %v2952 = vsub.f32 %v2912, %v2946
  %v2953 = vsub.f32 %v2913, %v2947
  %v2954 = vsub.f32 %v2914, %v2948
  %v2955 = vsub.f32 %v2915, %v2949
  %v2956 = vsub.f32 %v2916, %v2950
  %v2957 = vmul.f32 %v2951, %v2951
  %v2958 = vmul.f32 %v2952, %v2952
  %v2959 = vmul.f32 %v2953, %v2953
  %v2960 = vmul.f32 %v2954, %v2954
  %v2961 = vmul.f32 %v2955, %v2955
  %v2962 = vmul.f32 %v2956, %v2956
  %v2963 = vsel %vm195, %v2957, 0.0
  %2964 = vadd.xlane.f32.xlu0 %v2963
  %v2965 = vpop.xlane.xlu0 %2964
  %v2966 = vsel %vm195, %v2958, 0.0
  %2967 = vadd.xlane.f32.xlu0 %v2966
  %v2968 = vpop.xlane.xlu0 %2967
  %v2969 = vsel %vm195, %v2959, 0.0
  %2970 = vadd.xlane.f32.xlu0 %v2969
  %v2971 = vpop.xlane.xlu0 %2970
  %v2972 = vsel %vm195, %v2960, 0.0
  %2973 = vadd.xlane.f32.xlu0 %v2972
  %v2974 = vpop.xlane.xlu0 %2973
  %v2975 = vsel %vm195, %v2961, 0.0
  %2976 = vadd.xlane.f32.xlu0 %v2975
  %v2977 = vpop.xlane.xlu0 %2976
  %v2978 = vsel %vm195, %v2962, 0.0
  %2979 = vadd.xlane.f32.xlu0 %v2978
  %v2980 = vpop.xlane.xlu0 %2979
  %v2981 = vmul.f32 %v2965, %v214
  %v2982 = vmul.f32 %v2968, %v214
  %v2983 = vmul.f32 %v2971, %v214
  %v2984 = vmul.f32 %v2974, %v214
  %v2985 = vmul.f32 %v2977, %v214
  %v2986 = vmul.f32 %v2980, %v214
  %v2987 = vadd.f32 %v2981, 1e-05
  %v2988 = vadd.f32 %v2982, 1e-05
  %v2989 = vadd.f32 %v2983, 1e-05
  %v2990 = vadd.f32 %v2984, 1e-05
  %v2991 = vadd.f32 %v2985, 1e-05
  %v2992 = vadd.f32 %v2986, 1e-05
  %v2993 = vrsqrt.pop %v2987
  %v2994 = vrsqrt.pop %v2988
  %v2995 = vrsqrt.pop %v2989
  %v2996 = vrsqrt.pop %v2990
  %v2997 = vrsqrt.pop %v2991
  %v2998 = vrsqrt.pop %v2992
  %v2999 = vmul.f32 %v2951, %v2993
  %v3000 = vmul.f32 %v2952, %v2994
  %v3001 = vmul.f32 %v2953, %v2995
  %v3002 = vmul.f32 %v2954, %v2996
  %v3003 = vmul.f32 %v2955, %v2997
  %v3004 = vmul.f32 %v2956, %v2998
  %v3006 = vlaneseq
  %v3007 = vshrl.u32 %v3006, 7
  %v3008 = vsub.s32 0, %v3007
  %v3009 = vrot.slane %v2924, %v3008
  %v3011 = vmul.f32 %v2999, %v3009
  %v3012 = vmul.f32 %v3000, %v3009
  %v3013 = vmul.f32 %v3001, %v3009
  %v3014 = vmul.f32 %v3002, %v3009
  %v3015 = vmul.f32 %v3003, %v3009
  %v3016 = vmul.f32 %v3004, %v3009
  %v3018 = vlaneseq
  %v3019 = vshrl.u32 %v3018, 7
  %v3020 = vsub.s32 0, %v3019
  %v3021 = vrot.slane %v2926, %v3020
  %v3023 = vadd.f32 %v3011, %v3021
  %v3024 = vadd.f32 %v3012, %v3021
  %v3025 = vadd.f32 %v3013, %v3021
  %v3026 = vadd.f32 %v3014, %v3021
  %v3027 = vadd.f32 %v3015, %v3021
  %v3028 = vadd.f32 %v3016, %v3021
  %s3029 = scalar_lea.vmem %s6, 32
  %v3030 = vld [vmem:[%s3029] sm:$0xff]
  %v3031 = vld [vmem:[%s3029 + $0x8] sm:$0xff]
  %v3032 = vld [vmem:[%s3029 + $0x10] sm:$0xff]
  %v3033 = vld [vmem:[%s3029 + $0x18] sm:$0xff]
  %v3035 = vsel %vm195, %v3023, 0
  %v3038 = vsel %vm195, %v3024, 0
  %v3041 = vsel %vm195, %v3025, 0
  %v3044 = vsel %vm195, %v3026, 0
  %v3047 = vsel %vm195, %v3027, 0
  %v3050 = vsel %vm195, %v3028, 0
  %3052 = vmatprep.subr.mxu0 0.0
  %3053 = vmatpush1.msra.mxu0 0.0
  %3054 = vmatprep.subr.mxu0 0.0
  %3055 = vmatpush1.msra.mxu0 0.0
  %3056 = vmatprep.subr.mxu0 0.0
  %3057 = vmatpush1.msra.mxu0 0.0
  %3058 = vmatprep.subr.mxu0 0.0
  %3059 = vmatpush1.msra.mxu0 0.0
  %3060 = vmatprep.subr.mxu0 0.0
  %3061 = vmatpush1.msra.mxu0 0.0
  %3062 = vmatprep.subr.mxu0 0.0
  %3063 = vmatpush1.msra.mxu0 0.0
  %3064 = vmatprep.subr.mxu0 0.0
  %3065 = vmatpush1.msra.mxu0 0.0
  %3066 = vmatprep.subr.mxu0 0.0
  %3067 = vmatpush1.msra.mxu0 0.0
  %3068 = vmatprep.subr.mxu0 0.0
  %3069 = vmatpush1.msra.mxu0 0.0
  %3070 = vmatprep.subr.mxu0 0.0
  %3071 = vmatpush1.msra.mxu0 0.0
  %3072 = vmatprep.subr.mxu0 0.0
  %3073 = vmatpush1.msra.mxu0 0.0
  %3074 = vmatprep.subr.mxu0 0.0
  %3075 = vmatpush1.msra.mxu0 0.0
  %3076 = vmatprep.subr.mxu0 0.0
  %3077 = vmatpush1.msra.mxu0 %v3033
  %3078 = vmatprep.subr.mxu0 0.0
  %3079 = vmatpush1.msra.mxu0 %v3032
  %3080 = vmatprep.subr.mxu0 0.0
  %3081 = vmatpush1.msra.mxu0 %v3031
  %3082 = vmatprep.subr.mxu0 0.0
  %3083 = vmatpush1.msra.mxu0 %v3030
  %3084 = vmatprep.subr.mxu0 0.0
  %3085 = vmatpush2.msra.mxu0 0.0
  %3086 = vmatprep.subr.mxu0 0.0
  %3087 = vmatpush2.msra.mxu0 0.0
  %3088 = vmatprep.subr.mxu0 0.0
  %3089 = vmatpush2.msra.mxu0 0.0
  %3090 = vmatprep.subr.mxu0 0.0
  %3091 = vmatpush2.msra.mxu0 0.0
  %3092 = vmatprep.subr.mxu0 0.0
  %3093 = vmatpush2.msra.mxu0 0.0
  %3094 = vmatprep.subr.mxu0 0.0
  %3095 = vmatpush2.msra.mxu0 0.0
  %3096 = vmatprep.subr.mxu0 0.0
  %3097 = vmatpush2.msra.mxu0 0.0
  %3098 = vmatprep.subr.mxu0 0.0
  %3099 = vmatpush2.msra.mxu0 0.0
  %3100 = vmatprep.subr.mxu0 0.0
  %3101 = vmatpush2.msra.mxu0 0.0
  %3102 = vmatprep.subr.mxu0 0.0
  %3103 = vmatpush2.msra.mxu0 0.0
  %3104 = vmatprep.subr.mxu0 0.0
  %3105 = vmatpush2.msra.mxu0 0.0
  %3106 = vmatprep.subr.mxu0 0.0
  %3107 = vmatpush2.msra.mxu0 0.0
  %3108 = vmatprep.subr.mxu0 0.0
  %3109 = vmatpush2.msra.mxu0 0.0
  %3110 = vmatprep.subr.mxu0 0.0
  %3111 = vmatpush2.msra.mxu0 0.0
  %3112 = vmatprep.subr.mxu0 0.0
  %3113 = vmatpush2.msra.mxu0 0.0
  %3114 = vmatprep.subr.mxu0 0.0
  %3115 = vmatpush2.msra.mxu0 0.0
  %3116 = vmatprep.mubr.f32.mxu0 0.0
  %3117 = vmatmul.mubr.f32.gmra.mxu0 %v3035
  %v3118 = vpop.f32.mrf.mxu0
  %v3119 = vadd.f32 0.0, %v3118
  %v3120 = vpop.f32.mrf.mxu0
  %3121 = vmatprep.mubr.f32.mxu0 0.0
  %3122 = vmatmul.mubr.f32.gmra.mxu0 %v3038
  %v3123 = vpop.f32.mrf.mxu0
  %v3124 = vadd.f32 0.0, %v3123
  %v3125 = vpop.f32.mrf.mxu0
  %3126 = vmatprep.mubr.f32.mxu0 0.0
  %3127 = vmatmul.mubr.f32.gmra.mxu0 %v3041
  %v3128 = vpop.f32.mrf.mxu0
  %v3129 = vadd.f32 0.0, %v3128
  %v3130 = vpop.f32.mrf.mxu0
  %3131 = vmatprep.mubr.f32.mxu0 0.0
  %3132 = vmatmul.mubr.f32.gmra.mxu0 %v3044
  %v3133 = vpop.f32.mrf.mxu0
  %v3134 = vadd.f32 0.0, %v3133
  %v3135 = vpop.f32.mrf.mxu0
  %3136 = vmatprep.mubr.f32.mxu0 0.0
  %3137 = vmatmul.mubr.f32.gmra.mxu0 %v3047
  %v3138 = vpop.f32.mrf.mxu0
  %v3139 = vadd.f32 0.0, %v3138
  %v3140 = vpop.f32.mrf.mxu0
  %3141 = vmatprep.mubr.f32.mxu0 0.0
  %3142 = vmatmul.mubr.f32.gmra.mxu0 %v3050
  %v3143 = vpop.f32.mrf.mxu0
  %v3144 = vadd.f32 0.0, %v3143
  %v3145 = vpop.f32.mrf.mxu0
  %3146 = vdwg.mxu0
  %3150 = vrot.lane.b32.xlu0 %v3119, 96
  %v3151 = vpop.permute.xlu0 %3150
  %3152 = vrot.lane.b32.xlu0 %v3124, 96
  %v3153 = vpop.permute.xlu0 %3152
  %3154 = vrot.lane.b32.xlu0 %v3129, 96
  %v3155 = vpop.permute.xlu0 %3154
  %v3156 = vsel %vm431, %v3119, 0
  %v3158 = vsel %vm431, %v3124, 0
  %v3160 = vsel %vm431, %v3129, 0
  %v3162 = vsel %vm431, %v3151, 0
  %v3164 = vsel %vm431, %v3153, 0
  %v3166 = vsel %vm431, %v3155, 0
  %3168 = vmatprep.subr.mxu0 0.0
  %3169 = vmatpush1.xpose.msra.mxu0 0.0
  %3170 = vmatprep.subr.mxu0 0.0
  %3171 = vmatpush1.xpose.msra.mxu0 0.0
  %3172 = vmatprep.subr.mxu0 0.0
  %3173 = vmatpush1.xpose.msra.mxu0 0.0
  %3174 = vmatprep.subr.mxu0 0.0
  %3175 = vmatpush1.xpose.msra.mxu0 0.0
  %3176 = vmatprep.subr.mxu0 0.0
  %3177 = vmatpush1.xpose.msra.mxu0 0.0
  %3178 = vmatprep.subr.mxu0 0.0
  %3179 = vmatpush1.xpose.msra.mxu0 0.0
  %3180 = vmatprep.subr.mxu0 0.0
  %3181 = vmatpush1.xpose.msra.mxu0 0.0
  %3182 = vmatprep.subr.mxu0 0.0
  %3183 = vmatpush1.xpose.msra.mxu0 0.0
  %3184 = vmatprep.subr.mxu0 0.0
  %3185 = vmatpush1.xpose.msra.mxu0 0.0
  %3186 = vmatprep.subr.mxu0 0.0
  %3187 = vmatpush1.xpose.msra.mxu0 0.0
  %3188 = vmatprep.subr.mxu0 0.0
  %3189 = vmatpush1.xpose.msra.mxu0 0.0
  %3190 = vmatprep.subr.mxu0 0.0
  %3191 = vmatpush1.xpose.msra.mxu0 0.0
  %3192 = vmatprep.subr.mxu0 0.0
  %3193 = vmatpush1.xpose.msra.mxu0 0.0
  %3194 = vmatprep.subr.mxu0 0.0
  %3195 = vmatpush1.xpose.msra.mxu0 %v3166
  %3196 = vmatprep.subr.mxu0 0.0
  %3197 = vmatpush1.xpose.msra.mxu0 %v3164
  %3198 = vmatprep.subr.mxu0 0.0
  %3199 = vmatpush1.xpose.msra.mxu0 %v3162
  %3200 = vmatprep.subr.mxu0 0.0
  %3201 = vmatpush2.xpose.msra.mxu0 0.0
  %3202 = vmatprep.subr.mxu0 0.0
  %3203 = vmatpush2.xpose.msra.mxu0 0.0
  %3204 = vmatprep.subr.mxu0 0.0
  %3205 = vmatpush2.xpose.msra.mxu0 0.0
  %3206 = vmatprep.subr.mxu0 0.0
  %3207 = vmatpush2.xpose.msra.mxu0 0.0
  %3208 = vmatprep.subr.mxu0 0.0
  %3209 = vmatpush2.xpose.msra.mxu0 0.0
  %3210 = vmatprep.subr.mxu0 0.0
  %3211 = vmatpush2.xpose.msra.mxu0 0.0
  %3212 = vmatprep.subr.mxu0 0.0
  %3213 = vmatpush2.xpose.msra.mxu0 0.0
  %3214 = vmatprep.subr.mxu0 0.0
  %3215 = vmatpush2.xpose.msra.mxu0 0.0
  %3216 = vmatprep.subr.mxu0 0.0
  %3217 = vmatpush2.xpose.msra.mxu0 0.0
  %3218 = vmatprep.subr.mxu0 0.0
  %3219 = vmatpush2.xpose.msra.mxu0 0.0
  %3220 = vmatprep.subr.mxu0 0.0
  %3221 = vmatpush2.xpose.msra.mxu0 0.0
  %3222 = vmatprep.subr.mxu0 0.0
  %3223 = vmatpush2.xpose.msra.mxu0 0.0
  %3224 = vmatprep.subr.mxu0 0.0
  %3225 = vmatpush2.xpose.msra.mxu0 0.0
  %3226 = vmatprep.subr.mxu0 0.0
  %3227 = vmatpush2.xpose.msra.mxu0 0.0
  %3228 = vmatprep.subr.mxu0 0.0
  %3229 = vmatpush2.xpose.msra.mxu0 0.0
  %3230 = vmatprep.subr.mxu0 0.0
  %3231 = vmatpush2.xpose.msra.mxu0 0.0
  %3232 = vmatprep.mubr.f32.mxu0 0.0
  %3233 = vmatmul.mubr.f32.gmra.mxu0 %v3156
  %v3234 = vpop.f32.mrf.mxu0
  %v3235 = vadd.f32 %v420, %v3234
  %v3236 = vpop.f32.mrf.mxu0
  %3237 = vmatprep.mubr.f32.mxu0 0.0
  %3238 = vmatmul.mubr.f32.gmra.mxu0 %v3158
  %v3239 = vpop.f32.mrf.mxu0
  %v3240 = vadd.f32 %v420, %v3239
  %v3241 = vpop.f32.mrf.mxu0
  %3242 = vmatprep.mubr.f32.mxu0 0.0
  %3243 = vmatmul.mubr.f32.gmra.mxu0 %v3160
  %v3244 = vpop.f32.mrf.mxu0
  %v3245 = vadd.f32 %v420, %v3244
  %v3246 = vpop.f32.mrf.mxu0
  %3247 = vdwg.mxu0
  %v3248 = vsel %vm524, %v3235, -inf
  %3249 = vmax.xlane.f32.xlu0 %v3248
  %v3250 = vpop.xlane.xlu0 %3249
  %v3251 = vsel %vm524, %v3240, -inf
  %3252 = vmax.xlane.f32.xlu0 %v3251
  %v3253 = vpop.xlane.xlu0 %3252
  %v3254 = vsel %vm524, %v3245, -inf
  %3255 = vmax.xlane.f32.xlu0 %v3254
  %v3256 = vpop.xlane.xlu0 %3255
  %v3257 = vsub.f32 %v3235, %v3250
  %v3258 = vsub.f32 %v3240, %v3253
  %v3259 = vsub.f32 %v3245, %v3256
  %v3260 = vmul.f32 %v3257, 1.442695
  %v3261 = vpow.pop %v3260
  %v3262 = vmul.f32 %v3258, 1.442695
  %v3263 = vpow.pop %v3262
  %v3264 = vmul.f32 %v3259, 1.442695
  %v3265 = vpow.pop %v3264
  %v3266 = vsel %vm524, %v3261, 0.0
  %3267 = vadd.xlane.f32.xlu0 %v3266
  %v3268 = vpop.xlane.xlu0 %3267
  %v3269 = vsel %vm524, %v3263, 0.0
  %3270 = vadd.xlane.f32.xlu0 %v3269
  %v3271 = vpop.xlane.xlu0 %3270
  %v3272 = vsel %vm524, %v3265, 0.0
  %3273 = vadd.xlane.f32.xlu0 %v3272
  %v3274 = vpop.xlane.xlu0 %3273
  %v3275 = vrcp.pop %v3268
  %v3276 = vrcp.pop %v3271
  %v3277 = vrcp.pop %v3274
  %v3278 = vmul.f32 %v3261, %v3275
  %v3279 = vmul.f32 %v3263, %v3276
  %v3280 = vmul.f32 %v3265, %v3277
  %3281 = vrot.lane.b32.xlu0 %v3119, 64
  %v3282 = vpop.permute.xlu0 %3281
  %3283 = vrot.lane.b32.xlu0 %v3124, 64
  %v3284 = vpop.permute.xlu0 %3283
  %3285 = vrot.lane.b32.xlu0 %v3129, 64
  %v3286 = vpop.permute.xlu0 %3285
  %v3291 = vsel %vm524, %v3278, 0
  %v3294 = vsel %vm524, %v3279, 0
  %v3297 = vsel %vm524, %v3280, 0
  %3299 = vmatprep.subr.mxu0 0.0
  %3300 = vmatpush1.msra.mxu0 0.0
  %3301 = vmatprep.subr.mxu0 0.0
  %3302 = vmatpush1.msra.mxu0 0.0
  %3303 = vmatprep.subr.mxu0 0.0
  %3304 = vmatpush1.msra.mxu0 0.0
  %3305 = vmatprep.subr.mxu0 0.0
  %3306 = vmatpush1.msra.mxu0 0.0
  %3307 = vmatprep.subr.mxu0 0.0
  %3308 = vmatpush1.msra.mxu0 0.0
  %3309 = vmatprep.subr.mxu0 0.0
  %3310 = vmatpush1.msra.mxu0 0.0
  %3311 = vmatprep.subr.mxu0 0.0
  %3312 = vmatpush1.msra.mxu0 0.0
  %3313 = vmatprep.subr.mxu0 0.0
  %3314 = vmatpush1.msra.mxu0 0.0
  %3315 = vmatprep.subr.mxu0 0.0
  %3316 = vmatpush1.msra.mxu0 0.0
  %3317 = vmatprep.subr.mxu0 0.0
  %3318 = vmatpush1.msra.mxu0 0.0
  %3319 = vmatprep.subr.mxu0 0.0
  %3320 = vmatpush1.msra.mxu0 0.0
  %3321 = vmatprep.subr.mxu0 0.0
  %3322 = vmatpush1.msra.mxu0 0.0
  %3323 = vmatprep.subr.mxu0 0.0
  %3324 = vmatpush1.msra.mxu0 0.0
  %3325 = vmatprep.subr.mxu0 0.0
  %3326 = vmatpush1.msra.mxu0 %v3286
  %3327 = vmatprep.subr.mxu0 0.0
  %3328 = vmatpush1.msra.mxu0 %v3284
  %3329 = vmatprep.subr.mxu0 0.0
  %3330 = vmatpush1.msra.mxu0 %v3282
  %3331 = vmatprep.subr.mxu0 0.0
  %3332 = vmatpush2.msra.mxu0 0.0
  %3333 = vmatprep.subr.mxu0 0.0
  %3334 = vmatpush2.msra.mxu0 0.0
  %3335 = vmatprep.subr.mxu0 0.0
  %3336 = vmatpush2.msra.mxu0 0.0
  %3337 = vmatprep.subr.mxu0 0.0
  %3338 = vmatpush2.msra.mxu0 0.0
  %3339 = vmatprep.subr.mxu0 0.0
  %3340 = vmatpush2.msra.mxu0 0.0
  %3341 = vmatprep.subr.mxu0 0.0
  %3342 = vmatpush2.msra.mxu0 0.0
  %3343 = vmatprep.subr.mxu0 0.0
  %3344 = vmatpush2.msra.mxu0 0.0
  %3345 = vmatprep.subr.mxu0 0.0
  %3346 = vmatpush2.msra.mxu0 0.0
  %3347 = vmatprep.subr.mxu0 0.0
  %3348 = vmatpush2.msra.mxu0 0.0
  %3349 = vmatprep.subr.mxu0 0.0
  %3350 = vmatpush2.msra.mxu0 0.0
  %3351 = vmatprep.subr.mxu0 0.0
  %3352 = vmatpush2.msra.mxu0 0.0
  %3353 = vmatprep.subr.mxu0 0.0
  %3354 = vmatpush2.msra.mxu0 0.0
  %3355 = vmatprep.subr.mxu0 0.0
  %3356 = vmatpush2.msra.mxu0 0.0
  %3357 = vmatprep.subr.mxu0 0.0
  %3358 = vmatpush2.msra.mxu0 0.0
  %3359 = vmatprep.subr.mxu0 0.0
  %3360 = vmatpush2.msra.mxu0 0.0
  %3361 = vmatprep.subr.mxu0 0.0
  %3362 = vmatpush2.msra.mxu0 0.0
  %3363 = vmatprep.mubr.f32.mxu0 0.0
  %3364 = vmatmul.mubr.f32.gmra.mxu0 %v3291
  %v3365 = vpop.f32.mrf.mxu0
  %v3366 = vadd.f32 0.0, %v3365
  %v3367 = vpop.f32.mrf.mxu0
  %3368 = vmatprep.mubr.f32.mxu0 0.0
  %3369 = vmatmul.mubr.f32.gmra.mxu0 %v3294
  %v3370 = vpop.f32.mrf.mxu0
  %v3371 = vadd.f32 0.0, %v3370
  %v3372 = vpop.f32.mrf.mxu0
  %3373 = vmatprep.mubr.f32.mxu0 0.0
  %3374 = vmatmul.mubr.f32.gmra.mxu0 %v3297
  %v3375 = vpop.f32.mrf.mxu0
  %v3376 = vadd.f32 0.0, %v3375
  %v3377 = vpop.f32.mrf.mxu0
  %3378 = vdwg.mxu0
  %3379 = vrot.lane.b32.xlu0 %v3119, 120
  %v3380 = vpop.permute.xlu0 %3379
  %3381 = vrot.lane.b32.xlu0 %v3124, 120
  %v3382 = vpop.permute.xlu0 %3381
  %3383 = vrot.lane.b32.xlu0 %v3129, 120
  %v3384 = vpop.permute.xlu0 %3383
  %3385 = vrot.lane.b32.xlu0 %v3119, 88
  %v3386 = vpop.permute.xlu0 %3385
  %3387 = vrot.lane.b32.xlu0 %v3124, 88
  %v3388 = vpop.permute.xlu0 %3387
  %3389 = vrot.lane.b32.xlu0 %v3129, 88
  %v3390 = vpop.permute.xlu0 %3389
  %v3391 = vsel %vm431, %v3380, 0
  %v3393 = vsel %vm431, %v3382, 0
  %v3395 = vsel %vm431, %v3384, 0
  %v3397 = vsel %vm431, %v3386, 0
  %v3399 = vsel %vm431, %v3388, 0
  %v3401 = vsel %vm431, %v3390, 0
  %3403 = vmatprep.subr.mxu0 0.0
  %3404 = vmatpush1.xpose.msra.mxu0 0.0
  %3405 = vmatprep.subr.mxu0 0.0
  %3406 = vmatpush1.xpose.msra.mxu0 0.0
  %3407 = vmatprep.subr.mxu0 0.0
  %3408 = vmatpush1.xpose.msra.mxu0 0.0
  %3409 = vmatprep.subr.mxu0 0.0
  %3410 = vmatpush1.xpose.msra.mxu0 0.0
  %3411 = vmatprep.subr.mxu0 0.0
  %3412 = vmatpush1.xpose.msra.mxu0 0.0
  %3413 = vmatprep.subr.mxu0 0.0
  %3414 = vmatpush1.xpose.msra.mxu0 0.0
  %3415 = vmatprep.subr.mxu0 0.0
  %3416 = vmatpush1.xpose.msra.mxu0 0.0
  %3417 = vmatprep.subr.mxu0 0.0
  %3418 = vmatpush1.xpose.msra.mxu0 0.0
  %3419 = vmatprep.subr.mxu0 0.0
  %3420 = vmatpush1.xpose.msra.mxu0 0.0
  %3421 = vmatprep.subr.mxu0 0.0
  %3422 = vmatpush1.xpose.msra.mxu0 0.0
  %3423 = vmatprep.subr.mxu0 0.0
  %3424 = vmatpush1.xpose.msra.mxu0 0.0
  %3425 = vmatprep.subr.mxu0 0.0
  %3426 = vmatpush1.xpose.msra.mxu0 0.0
  %3427 = vmatprep.subr.mxu0 0.0
  %3428 = vmatpush1.xpose.msra.mxu0 0.0
  %3429 = vmatprep.subr.mxu0 0.0
  %3430 = vmatpush1.xpose.msra.mxu0 %v3401
  %3431 = vmatprep.subr.mxu0 0.0
  %3432 = vmatpush1.xpose.msra.mxu0 %v3399
  %3433 = vmatprep.subr.mxu0 0.0
  %3434 = vmatpush1.xpose.msra.mxu0 %v3397
  %3435 = vmatprep.subr.mxu0 0.0
  %3436 = vmatpush2.xpose.msra.mxu0 0.0
  %3437 = vmatprep.subr.mxu0 0.0
  %3438 = vmatpush2.xpose.msra.mxu0 0.0
  %3439 = vmatprep.subr.mxu0 0.0
  %3440 = vmatpush2.xpose.msra.mxu0 0.0
  %3441 = vmatprep.subr.mxu0 0.0
  %3442 = vmatpush2.xpose.msra.mxu0 0.0
  %3443 = vmatprep.subr.mxu0 0.0
  %3444 = vmatpush2.xpose.msra.mxu0 0.0
  %3445 = vmatprep.subr.mxu0 0.0
  %3446 = vmatpush2.xpose.msra.mxu0 0.0
  %3447 = vmatprep.subr.mxu0 0.0
  %3448 = vmatpush2.xpose.msra.mxu0 0.0
  %3449 = vmatprep.subr.mxu0 0.0
  %3450 = vmatpush2.xpose.msra.mxu0 0.0
  %3451 = vmatprep.subr.mxu0 0.0
  %3452 = vmatpush2.xpose.msra.mxu0 0.0
  %3453 = vmatprep.subr.mxu0 0.0
  %3454 = vmatpush2.xpose.msra.mxu0 0.0
  %3455 = vmatprep.subr.mxu0 0.0
  %3456 = vmatpush2.xpose.msra.mxu0 0.0
  %3457 = vmatprep.subr.mxu0 0.0
  %3458 = vmatpush2.xpose.msra.mxu0 0.0
  %3459 = vmatprep.subr.mxu0 0.0
  %3460 = vmatpush2.xpose.msra.mxu0 0.0
  %3461 = vmatprep.subr.mxu0 0.0
  %3462 = vmatpush2.xpose.msra.mxu0 0.0
  %3463 = vmatprep.subr.mxu0 0.0
  %3464 = vmatpush2.xpose.msra.mxu0 0.0
  %3465 = vmatprep.subr.mxu0 0.0
  %3466 = vmatpush2.xpose.msra.mxu0 0.0
  %3467 = vmatprep.mubr.f32.mxu0 0.0
  %3468 = vmatmul.mubr.f32.gmra.mxu0 %v3391
  %v3469 = vpop.f32.mrf.mxu0
  %v3470 = vadd.f32 %v420, %v3469
  %v3471 = vpop.f32.mrf.mxu0
  %3472 = vmatprep.mubr.f32.mxu0 0.0
  %3473 = vmatmul.mubr.f32.gmra.mxu0 %v3393
  %v3474 = vpop.f32.mrf.mxu0
  %v3475 = vadd.f32 %v420, %v3474
  %v3476 = vpop.f32.mrf.mxu0
  %3477 = vmatprep.mubr.f32.mxu0 0.0
  %3478 = vmatmul.mubr.f32.gmra.mxu0 %v3395
  %v3479 = vpop.f32.mrf.mxu0
  %v3480 = vadd.f32 %v420, %v3479
  %v3481 = vpop.f32.mrf.mxu0
  %3482 = vdwg.mxu0
  %v3483 = vsel %vm524, %v3470, -inf
  %3484 = vmax.xlane.f32.xlu0 %v3483
  %v3485 = vpop.xlane.xlu0 %3484
  %v3486 = vsel %vm524, %v3475, -inf
  %3487 = vmax.xlane.f32.xlu0 %v3486
  %v3488 = vpop.xlane.xlu0 %3487
  %v3489 = vsel %vm524, %v3480, -inf
  %3490 = vmax.xlane.f32.xlu0 %v3489
  %v3491 = vpop.xlane.xlu0 %3490
  %v3492 = vsub.f32 %v3470, %v3485
  %v3493 = vsub.f32 %v3475, %v3488
  %v3494 = vsub.f32 %v3480, %v3491
  %v3495 = vmul.f32 %v3492, 1.442695
  %v3496 = vpow.pop %v3495
  %v3497 = vmul.f32 %v3493, 1.442695
  %v3498 = vpow.pop %v3497
  %v3499 = vmul.f32 %v3494, 1.442695
  %v3500 = vpow.pop %v3499
  %v3501 = vsel %vm524, %v3496, 0.0
  %3502 = vadd.xlane.f32.xlu0 %v3501
  %v3503 = vpop.xlane.xlu0 %3502
  %v3504 = vsel %vm524, %v3498, 0.0
  %3505 = vadd.xlane.f32.xlu0 %v3504
  %v3506 = vpop.xlane.xlu0 %3505
  %v3507 = vsel %vm524, %v3500, 0.0
  %3508 = vadd.xlane.f32.xlu0 %v3507
  %v3509 = vpop.xlane.xlu0 %3508
  %v3510 = vrcp.pop %v3503
  %v3511 = vrcp.pop %v3506
  %v3512 = vrcp.pop %v3509
  %v3513 = vmul.f32 %v3496, %v3510
  %v3514 = vmul.f32 %v3498, %v3511
  %v3515 = vmul.f32 %v3500, %v3512
  %3516 = vrot.lane.b32.xlu0 %v3119, 56
  %v3517 = vpop.permute.xlu0 %3516
  %3518 = vrot.lane.b32.xlu0 %v3124, 56
  %v3519 = vpop.permute.xlu0 %3518
  %3520 = vrot.lane.b32.xlu0 %v3129, 56
  %v3521 = vpop.permute.xlu0 %3520
  %v3526 = vsel %vm524, %v3513, 0
  %v3529 = vsel %vm524, %v3514, 0
  %v3532 = vsel %vm524, %v3515, 0
  %3534 = vmatprep.subr.mxu0 0.0
  %3535 = vmatpush1.msra.mxu0 0.0
  %3536 = vmatprep.subr.mxu0 0.0
  %3537 = vmatpush1.msra.mxu0 0.0
  %3538 = vmatprep.subr.mxu0 0.0
  %3539 = vmatpush1.msra.mxu0 0.0
  %3540 = vmatprep.subr.mxu0 0.0
  %3541 = vmatpush1.msra.mxu0 0.0
  %3542 = vmatprep.subr.mxu0 0.0
  %3543 = vmatpush1.msra.mxu0 0.0
  %3544 = vmatprep.subr.mxu0 0.0
  %3545 = vmatpush1.msra.mxu0 0.0
  %3546 = vmatprep.subr.mxu0 0.0
  %3547 = vmatpush1.msra.mxu0 0.0
  %3548 = vmatprep.subr.mxu0 0.0
  %3549 = vmatpush1.msra.mxu0 0.0
  %3550 = vmatprep.subr.mxu0 0.0
  %3551 = vmatpush1.msra.mxu0 0.0
  %3552 = vmatprep.subr.mxu0 0.0
  %3553 = vmatpush1.msra.mxu0 0.0
  %3554 = vmatprep.subr.mxu0 0.0
  %3555 = vmatpush1.msra.mxu0 0.0
  %3556 = vmatprep.subr.mxu0 0.0
  %3557 = vmatpush1.msra.mxu0 0.0
  %3558 = vmatprep.subr.mxu0 0.0
  %3559 = vmatpush1.msra.mxu0 0.0
  %3560 = vmatprep.subr.mxu0 0.0
  %3561 = vmatpush1.msra.mxu0 %v3521
  %3562 = vmatprep.subr.mxu0 0.0
  %3563 = vmatpush1.msra.mxu0 %v3519
  %3564 = vmatprep.subr.mxu0 0.0
  %3565 = vmatpush1.msra.mxu0 %v3517
  %3566 = vmatprep.subr.mxu0 0.0
  %3567 = vmatpush2.msra.mxu0 0.0
  %3568 = vmatprep.subr.mxu0 0.0
  %3569 = vmatpush2.msra.mxu0 0.0
  %3570 = vmatprep.subr.mxu0 0.0
  %3571 = vmatpush2.msra.mxu0 0.0
  %3572 = vmatprep.subr.mxu0 0.0
  %3573 = vmatpush2.msra.mxu0 0.0
  %3574 = vmatprep.subr.mxu0 0.0
  %3575 = vmatpush2.msra.mxu0 0.0
  %3576 = vmatprep.subr.mxu0 0.0
  %3577 = vmatpush2.msra.mxu0 0.0
  %3578 = vmatprep.subr.mxu0 0.0
  %3579 = vmatpush2.msra.mxu0 0.0
  %3580 = vmatprep.subr.mxu0 0.0
  %3581 = vmatpush2.msra.mxu0 0.0
  %3582 = vmatprep.subr.mxu0 0.0
  %3583 = vmatpush2.msra.mxu0 0.0
  %3584 = vmatprep.subr.mxu0 0.0
  %3585 = vmatpush2.msra.mxu0 0.0
  %3586 = vmatprep.subr.mxu0 0.0
  %3587 = vmatpush2.msra.mxu0 0.0
  %3588 = vmatprep.subr.mxu0 0.0
  %3589 = vmatpush2.msra.mxu0 0.0
  %3590 = vmatprep.subr.mxu0 0.0
  %3591 = vmatpush2.msra.mxu0 0.0
  %3592 = vmatprep.subr.mxu0 0.0
  %3593 = vmatpush2.msra.mxu0 0.0
  %3594 = vmatprep.subr.mxu0 0.0
  %3595 = vmatpush2.msra.mxu0 0.0
  %3596 = vmatprep.subr.mxu0 0.0
  %3597 = vmatpush2.msra.mxu0 0.0
  %3598 = vmatprep.mubr.f32.mxu0 0.0
  %3599 = vmatmul.mubr.f32.gmra.mxu0 %v3526
  %v3600 = vpop.f32.mrf.mxu0
  %v3601 = vadd.f32 0.0, %v3600
  %v3602 = vpop.f32.mrf.mxu0
  %3603 = vmatprep.mubr.f32.mxu0 0.0
  %3604 = vmatmul.mubr.f32.gmra.mxu0 %v3529
  %v3605 = vpop.f32.mrf.mxu0
  %v3606 = vadd.f32 0.0, %v3605
  %v3607 = vpop.f32.mrf.mxu0
  %3608 = vmatprep.mubr.f32.mxu0 0.0
  %3609 = vmatmul.mubr.f32.gmra.mxu0 %v3532
  %v3610 = vpop.f32.mrf.mxu0
  %v3611 = vadd.f32 0.0, %v3610
  %v3612 = vpop.f32.mrf.mxu0
  %3613 = vdwg.mxu0
  %3614 = vrot.lane.b32.xlu0 %v3119, 112
  %v3615 = vpop.permute.xlu0 %3614
  %3616 = vrot.lane.b32.xlu0 %v3124, 112
  %v3617 = vpop.permute.xlu0 %3616
  %3618 = vrot.lane.b32.xlu0 %v3129, 112
  %v3619 = vpop.permute.xlu0 %3618
  %3620 = vrot.lane.b32.xlu0 %v3119, 80
  %v3621 = vpop.permute.xlu0 %3620
  %3622 = vrot.lane.b32.xlu0 %v3124, 80
  %v3623 = vpop.permute.xlu0 %3622
  %3624 = vrot.lane.b32.xlu0 %v3129, 80
  %v3625 = vpop.permute.xlu0 %3624
  %v3626 = vsel %vm431, %v3615, 0
  %v3628 = vsel %vm431, %v3617, 0
  %v3630 = vsel %vm431, %v3619, 0
  %v3632 = vsel %vm431, %v3621, 0
  %v3634 = vsel %vm431, %v3623, 0
  %v3636 = vsel %vm431, %v3625, 0
  %3638 = vmatprep.subr.mxu0 0.0
  %3639 = vmatpush1.xpose.msra.mxu0 0.0
  %3640 = vmatprep.subr.mxu0 0.0
  %3641 = vmatpush1.xpose.msra.mxu0 0.0
  %3642 = vmatprep.subr.mxu0 0.0
  %3643 = vmatpush1.xpose.msra.mxu0 0.0
  %3644 = vmatprep.subr.mxu0 0.0
  %3645 = vmatpush1.xpose.msra.mxu0 0.0
  %3646 = vmatprep.subr.mxu0 0.0
  %3647 = vmatpush1.xpose.msra.mxu0 0.0
  %3648 = vmatprep.subr.mxu0 0.0
  %3649 = vmatpush1.xpose.msra.mxu0 0.0
  %3650 = vmatprep.subr.mxu0 0.0
  %3651 = vmatpush1.xpose.msra.mxu0 0.0
  %3652 = vmatprep.subr.mxu0 0.0
  %3653 = vmatpush1.xpose.msra.mxu0 0.0
  %3654 = vmatprep.subr.mxu0 0.0
  %3655 = vmatpush1.xpose.msra.mxu0 0.0
  %3656 = vmatprep.subr.mxu0 0.0
  %3657 = vmatpush1.xpose.msra.mxu0 0.0
  %3658 = vmatprep.subr.mxu0 0.0
  %3659 = vmatpush1.xpose.msra.mxu0 0.0
  %3660 = vmatprep.subr.mxu0 0.0
  %3661 = vmatpush1.xpose.msra.mxu0 0.0
  %3662 = vmatprep.subr.mxu0 0.0
  %3663 = vmatpush1.xpose.msra.mxu0 0.0
  %3664 = vmatprep.subr.mxu0 0.0
  %3665 = vmatpush1.xpose.msra.mxu0 %v3636
  %3666 = vmatprep.subr.mxu0 0.0
  %3667 = vmatpush1.xpose.msra.mxu0 %v3634
  %3668 = vmatprep.subr.mxu0 0.0
  %3669 = vmatpush1.xpose.msra.mxu0 %v3632
  %3670 = vmatprep.subr.mxu0 0.0
  %3671 = vmatpush2.xpose.msra.mxu0 0.0
  %3672 = vmatprep.subr.mxu0 0.0
  %3673 = vmatpush2.xpose.msra.mxu0 0.0
  %3674 = vmatprep.subr.mxu0 0.0
  %3675 = vmatpush2.xpose.msra.mxu0 0.0
  %3676 = vmatprep.subr.mxu0 0.0
  %3677 = vmatpush2.xpose.msra.mxu0 0.0
  %3678 = vmatprep.subr.mxu0 0.0
  %3679 = vmatpush2.xpose.msra.mxu0 0.0
  %3680 = vmatprep.subr.mxu0 0.0
  %3681 = vmatpush2.xpose.msra.mxu0 0.0
  %3682 = vmatprep.subr.mxu0 0.0
  %3683 = vmatpush2.xpose.msra.mxu0 0.0
  %3684 = vmatprep.subr.mxu0 0.0
  %3685 = vmatpush2.xpose.msra.mxu0 0.0
  %3686 = vmatprep.subr.mxu0 0.0
  %3687 = vmatpush2.xpose.msra.mxu0 0.0
  %3688 = vmatprep.subr.mxu0 0.0
  %3689 = vmatpush2.xpose.msra.mxu0 0.0
  %3690 = vmatprep.subr.mxu0 0.0
  %3691 = vmatpush2.xpose.msra.mxu0 0.0
  %3692 = vmatprep.subr.mxu0 0.0
  %3693 = vmatpush2.xpose.msra.mxu0 0.0
  %3694 = vmatprep.subr.mxu0 0.0
  %3695 = vmatpush2.xpose.msra.mxu0 0.0
  %3696 = vmatprep.subr.mxu0 0.0
  %3697 = vmatpush2.xpose.msra.mxu0 0.0
  %3698 = vmatprep.subr.mxu0 0.0
  %3699 = vmatpush2.xpose.msra.mxu0 0.0
  %3700 = vmatprep.subr.mxu0 0.0
  %3701 = vmatpush2.xpose.msra.mxu0 0.0
  %3702 = vmatprep.mubr.f32.mxu0 0.0
  %3703 = vmatmul.mubr.f32.gmra.mxu0 %v3626
  %v3704 = vpop.f32.mrf.mxu0
  %v3705 = vadd.f32 %v420, %v3704
  %v3706 = vpop.f32.mrf.mxu0
  %3707 = vmatprep.mubr.f32.mxu0 0.0
  %3708 = vmatmul.mubr.f32.gmra.mxu0 %v3628
  %v3709 = vpop.f32.mrf.mxu0
  %v3710 = vadd.f32 %v420, %v3709
  %v3711 = vpop.f32.mrf.mxu0
  %3712 = vmatprep.mubr.f32.mxu0 0.0
  %3713 = vmatmul.mubr.f32.gmra.mxu0 %v3630
  %v3714 = vpop.f32.mrf.mxu0
  %v3715 = vadd.f32 %v420, %v3714
  %v3716 = vpop.f32.mrf.mxu0
  %3717 = vdwg.mxu0
  %v3718 = vsel %vm524, %v3705, -inf
  %3719 = vmax.xlane.f32.xlu0 %v3718
  %v3720 = vpop.xlane.xlu0 %3719
  %v3721 = vsel %vm524, %v3710, -inf
  %3722 = vmax.xlane.f32.xlu0 %v3721
  %v3723 = vpop.xlane.xlu0 %3722
  %v3724 = vsel %vm524, %v3715, -inf
  %3725 = vmax.xlane.f32.xlu0 %v3724
  %v3726 = vpop.xlane.xlu0 %3725
  %v3727 = vsub.f32 %v3705, %v3720
  %v3728 = vsub.f32 %v3710, %v3723
  %v3729 = vsub.f32 %v3715, %v3726
  %v3730 = vmul.f32 %v3727, 1.442695
  %v3731 = vpow.pop %v3730
  %v3732 = vmul.f32 %v3728, 1.442695
  %v3733 = vpow.pop %v3732
  %v3734 = vmul.f32 %v3729, 1.442695
  %v3735 = vpow.pop %v3734
  %v3736 = vsel %vm524, %v3731, 0.0
  %3737 = vadd.xlane.f32.xlu0 %v3736
  %v3738 = vpop.xlane.xlu0 %3737
  %v3739 = vsel %vm524, %v3733, 0.0
  %3740 = vadd.xlane.f32.xlu0 %v3739
  %v3741 = vpop.xlane.xlu0 %3740
  %v3742 = vsel %vm524, %v3735, 0.0
  %3743 = vadd.xlane.f32.xlu0 %v3742
  %v3744 = vpop.xlane.xlu0 %3743
  %v3745 = vrcp.pop %v3738
  %v3746 = vrcp.pop %v3741
  %v3747 = vrcp.pop %v3744
  %v3748 = vmul.f32 %v3731, %v3745
  %v3749 = vmul.f32 %v3733, %v3746
  %v3750 = vmul.f32 %v3735, %v3747
  %3751 = vrot.lane.b32.xlu0 %v3119, 48
  %v3752 = vpop.permute.xlu0 %3751
  %3753 = vrot.lane.b32.xlu0 %v3124, 48
  %v3754 = vpop.permute.xlu0 %3753
  %3755 = vrot.lane.b32.xlu0 %v3129, 48
  %v3756 = vpop.permute.xlu0 %3755
  %v3761 = vsel %vm524, %v3748, 0
  %v3764 = vsel %vm524, %v3749, 0
  %v3767 = vsel %vm524, %v3750, 0
  %3769 = vmatprep.subr.mxu0 0.0
  %3770 = vmatpush1.msra.mxu0 0.0
  %3771 = vmatprep.subr.mxu0 0.0
  %3772 = vmatpush1.msra.mxu0 0.0
  %3773 = vmatprep.subr.mxu0 0.0
  %3774 = vmatpush1.msra.mxu0 0.0
  %3775 = vmatprep.subr.mxu0 0.0
  %3776 = vmatpush1.msra.mxu0 0.0
  %3777 = vmatprep.subr.mxu0 0.0
  %3778 = vmatpush1.msra.mxu0 0.0
  %3779 = vmatprep.subr.mxu0 0.0
  %3780 = vmatpush1.msra.mxu0 0.0
  %3781 = vmatprep.subr.mxu0 0.0
  %3782 = vmatpush1.msra.mxu0 0.0
  %3783 = vmatprep.subr.mxu0 0.0
  %3784 = vmatpush1.msra.mxu0 0.0
  %3785 = vmatprep.subr.mxu0 0.0
  %3786 = vmatpush1.msra.mxu0 0.0
  %3787 = vmatprep.subr.mxu0 0.0
  %3788 = vmatpush1.msra.mxu0 0.0
  %3789 = vmatprep.subr.mxu0 0.0
  %3790 = vmatpush1.msra.mxu0 0.0
  %3791 = vmatprep.subr.mxu0 0.0
  %3792 = vmatpush1.msra.mxu0 0.0
  %3793 = vmatprep.subr.mxu0 0.0
  %3794 = vmatpush1.msra.mxu0 0.0
  %3795 = vmatprep.subr.mxu0 0.0
  %3796 = vmatpush1.msra.mxu0 %v3756
  %3797 = vmatprep.subr.mxu0 0.0
  %3798 = vmatpush1.msra.mxu0 %v3754
  %3799 = vmatprep.subr.mxu0 0.0
  %3800 = vmatpush1.msra.mxu0 %v3752
  %3801 = vmatprep.subr.mxu0 0.0
  %3802 = vmatpush2.msra.mxu0 0.0
  %3803 = vmatprep.subr.mxu0 0.0
  %3804 = vmatpush2.msra.mxu0 0.0
  %3805 = vmatprep.subr.mxu0 0.0
  %3806 = vmatpush2.msra.mxu0 0.0
  %3807 = vmatprep.subr.mxu0 0.0
  %3808 = vmatpush2.msra.mxu0 0.0
  %3809 = vmatprep.subr.mxu0 0.0
  %3810 = vmatpush2.msra.mxu0 0.0
  %3811 = vmatprep.subr.mxu0 0.0
  %3812 = vmatpush2.msra.mxu0 0.0
  %3813 = vmatprep.subr.mxu0 0.0
  %3814 = vmatpush2.msra.mxu0 0.0
  %3815 = vmatprep.subr.mxu0 0.0
  %3816 = vmatpush2.msra.mxu0 0.0
  %3817 = vmatprep.subr.mxu0 0.0
  %3818 = vmatpush2.msra.mxu0 0.0
  %3819 = vmatprep.subr.mxu0 0.0
  %3820 = vmatpush2.msra.mxu0 0.0
  %3821 = vmatprep.subr.mxu0 0.0
  %3822 = vmatpush2.msra.mxu0 0.0
  %3823 = vmatprep.subr.mxu0 0.0
  %3824 = vmatpush2.msra.mxu0 0.0
  %3825 = vmatprep.subr.mxu0 0.0
  %3826 = vmatpush2.msra.mxu0 0.0
  %3827 = vmatprep.subr.mxu0 0.0
  %3828 = vmatpush2.msra.mxu0 0.0
  %3829 = vmatprep.subr.mxu0 0.0
  %3830 = vmatpush2.msra.mxu0 0.0
  %3831 = vmatprep.subr.mxu0 0.0
  %3832 = vmatpush2.msra.mxu0 0.0
  %3833 = vmatprep.mubr.f32.mxu0 0.0
  %3834 = vmatmul.mubr.f32.gmra.mxu0 %v3761
  %v3835 = vpop.f32.mrf.mxu0
  %v3836 = vadd.f32 0.0, %v3835
  %v3837 = vpop.f32.mrf.mxu0
  %3838 = vmatprep.mubr.f32.mxu0 0.0
  %3839 = vmatmul.mubr.f32.gmra.mxu0 %v3764
  %v3840 = vpop.f32.mrf.mxu0
  %v3841 = vadd.f32 0.0, %v3840
  %v3842 = vpop.f32.mrf.mxu0
  %3843 = vmatprep.mubr.f32.mxu0 0.0
  %3844 = vmatmul.mubr.f32.gmra.mxu0 %v3767
  %v3845 = vpop.f32.mrf.mxu0
  %v3846 = vadd.f32 0.0, %v3845
  %v3847 = vpop.f32.mrf.mxu0
  %3848 = vdwg.mxu0
  %3849 = vrot.lane.b32.xlu0 %v3119, 104
  %v3850 = vpop.permute.xlu0 %3849
  %3851 = vrot.lane.b32.xlu0 %v3124, 104
  %v3852 = vpop.permute.xlu0 %3851
  %3853 = vrot.lane.b32.xlu0 %v3129, 104
  %v3854 = vpop.permute.xlu0 %3853
  %3855 = vrot.lane.b32.xlu0 %v3119, 72
  %v3856 = vpop.permute.xlu0 %3855
  %3857 = vrot.lane.b32.xlu0 %v3124, 72
  %v3858 = vpop.permute.xlu0 %3857
  %3859 = vrot.lane.b32.xlu0 %v3129, 72
  %v3860 = vpop.permute.xlu0 %3859
  %v3861 = vsel %vm431, %v3850, 0
  %v3863 = vsel %vm431, %v3852, 0
  %v3865 = vsel %vm431, %v3854, 0
  %v3867 = vsel %vm431, %v3856, 0
  %v3869 = vsel %vm431, %v3858, 0
  %v3871 = vsel %vm431, %v3860, 0
  %3873 = vmatprep.subr.mxu0 0.0
  %3874 = vmatpush1.xpose.msra.mxu0 0.0
  %3875 = vmatprep.subr.mxu0 0.0
  %3876 = vmatpush1.xpose.msra.mxu0 0.0
  %3877 = vmatprep.subr.mxu0 0.0
  %3878 = vmatpush1.xpose.msra.mxu0 0.0
  %3879 = vmatprep.subr.mxu0 0.0
  %3880 = vmatpush1.xpose.msra.mxu0 0.0
  %3881 = vmatprep.subr.mxu0 0.0
  %3882 = vmatpush1.xpose.msra.mxu0 0.0
  %3883 = vmatprep.subr.mxu0 0.0
  %3884 = vmatpush1.xpose.msra.mxu0 0.0
  %3885 = vmatprep.subr.mxu0 0.0
  %3886 = vmatpush1.xpose.msra.mxu0 0.0
  %3887 = vmatprep.subr.mxu0 0.0
  %3888 = vmatpush1.xpose.msra.mxu0 0.0
  %3889 = vmatprep.subr.mxu0 0.0
  %3890 = vmatpush1.xpose.msra.mxu0 0.0
  %3891 = vmatprep.subr.mxu0 0.0
  %3892 = vmatpush1.xpose.msra.mxu0 0.0
  %3893 = vmatprep.subr.mxu0 0.0
  %3894 = vmatpush1.xpose.msra.mxu0 0.0
  %3895 = vmatprep.subr.mxu0 0.0
  %3896 = vmatpush1.xpose.msra.mxu0 0.0
  %3897 = vmatprep.subr.mxu0 0.0
  %3898 = vmatpush1.xpose.msra.mxu0 0.0
  %3899 = vmatprep.subr.mxu0 0.0
  %3900 = vmatpush1.xpose.msra.mxu0 %v3871
  %3901 = vmatprep.subr.mxu0 0.0
  %3902 = vmatpush1.xpose.msra.mxu0 %v3869
  %3903 = vmatprep.subr.mxu0 0.0
  %3904 = vmatpush1.xpose.msra.mxu0 %v3867
  %3905 = vmatprep.subr.mxu0 0.0
  %3906 = vmatpush2.xpose.msra.mxu0 0.0
  %3907 = vmatprep.subr.mxu0 0.0
  %3908 = vmatpush2.xpose.msra.mxu0 0.0
  %3909 = vmatprep.subr.mxu0 0.0
  %3910 = vmatpush2.xpose.msra.mxu0 0.0
  %3911 = vmatprep.subr.mxu0 0.0
  %3912 = vmatpush2.xpose.msra.mxu0 0.0
  %3913 = vmatprep.subr.mxu0 0.0
  %3914 = vmatpush2.xpose.msra.mxu0 0.0
  %3915 = vmatprep.subr.mxu0 0.0
  %3916 = vmatpush2.xpose.msra.mxu0 0.0
  %3917 = vmatprep.subr.mxu0 0.0
  %3918 = vmatpush2.xpose.msra.mxu0 0.0
  %3919 = vmatprep.subr.mxu0 0.0
  %3920 = vmatpush2.xpose.msra.mxu0 0.0
  %3921 = vmatprep.subr.mxu0 0.0
  %3922 = vmatpush2.xpose.msra.mxu0 0.0
  %3923 = vmatprep.subr.mxu0 0.0
  %3924 = vmatpush2.xpose.msra.mxu0 0.0
  %3925 = vmatprep.subr.mxu0 0.0
  %3926 = vmatpush2.xpose.msra.mxu0 0.0
  %3927 = vmatprep.subr.mxu0 0.0
  %3928 = vmatpush2.xpose.msra.mxu0 0.0
  %3929 = vmatprep.subr.mxu0 0.0
  %3930 = vmatpush2.xpose.msra.mxu0 0.0
  %3931 = vmatprep.subr.mxu0 0.0
  %3932 = vmatpush2.xpose.msra.mxu0 0.0
  %3933 = vmatprep.subr.mxu0 0.0
  %3934 = vmatpush2.xpose.msra.mxu0 0.0
  %3935 = vmatprep.subr.mxu0 0.0
  %3936 = vmatpush2.xpose.msra.mxu0 0.0
  %3937 = vmatprep.mubr.f32.mxu0 0.0
  %3938 = vmatmul.mubr.f32.gmra.mxu0 %v3861
  %v3939 = vpop.f32.mrf.mxu0
  %v3940 = vadd.f32 %v420, %v3939
  %v3941 = vpop.f32.mrf.mxu0
  %3942 = vmatprep.mubr.f32.mxu0 0.0
  %3943 = vmatmul.mubr.f32.gmra.mxu0 %v3863
  %v3944 = vpop.f32.mrf.mxu0
  %v3945 = vadd.f32 %v420, %v3944
  %v3946 = vpop.f32.mrf.mxu0
  %3947 = vmatprep.mubr.f32.mxu0 0.0
  %3948 = vmatmul.mubr.f32.gmra.mxu0 %v3865
  %v3949 = vpop.f32.mrf.mxu0
  %v3950 = vadd.f32 %v420, %v3949
  %v3951 = vpop.f32.mrf.mxu0
  %3952 = vdwg.mxu0
  %v3953 = vsel %vm524, %v3940, -inf
  %3954 = vmax.xlane.f32.xlu0 %v3953
  %v3955 = vpop.xlane.xlu0 %3954
  %v3956 = vsel %vm524, %v3945, -inf
  %3957 = vmax.xlane.f32.xlu0 %v3956
  %v3958 = vpop.xlane.xlu0 %3957
  %v3959 = vsel %vm524, %v3950, -inf
  %3960 = vmax.xlane.f32.xlu0 %v3959
  %v3961 = vpop.xlane.xlu0 %3960
  %v3962 = vsub.f32 %v3940, %v3955
  %v3963 = vsub.f32 %v3945, %v3958
  %v3964 = vsub.f32 %v3950, %v3961
  %v3965 = vmul.f32 %v3962, 1.442695
  %v3966 = vpow.pop %v3965
  %v3967 = vmul.f32 %v3963, 1.442695
  %v3968 = vpow.pop %v3967
  %v3969 = vmul.f32 %v3964, 1.442695
  %v3970 = vpow.pop %v3969
  %v3971 = vsel %vm524, %v3966, 0.0
  %3972 = vadd.xlane.f32.xlu0 %v3971
  %v3973 = vpop.xlane.xlu0 %3972
  %v3974 = vsel %vm524, %v3968, 0.0
  %3975 = vadd.xlane.f32.xlu0 %v3974
  %v3976 = vpop.xlane.xlu0 %3975
  %v3977 = vsel %vm524, %v3970, 0.0
  %3978 = vadd.xlane.f32.xlu0 %v3977
  %v3979 = vpop.xlane.xlu0 %3978
  %v3980 = vrcp.pop %v3973
  %v3981 = vrcp.pop %v3976
  %v3982 = vrcp.pop %v3979
  %v3983 = vmul.f32 %v3966, %v3980
  %v3984 = vmul.f32 %v3968, %v3981
  %v3985 = vmul.f32 %v3970, %v3982
  %3986 = vrot.lane.b32.xlu0 %v3119, 40
  %v3987 = vpop.permute.xlu0 %3986
  %3988 = vrot.lane.b32.xlu0 %v3124, 40
  %v3989 = vpop.permute.xlu0 %3988
  %3990 = vrot.lane.b32.xlu0 %v3129, 40
  %v3991 = vpop.permute.xlu0 %3990
  %v3996 = vsel %vm524, %v3983, 0
  %v3999 = vsel %vm524, %v3984, 0
  %v4002 = vsel %vm524, %v3985, 0
  %4004 = vmatprep.subr.mxu0 0.0
  %4005 = vmatpush1.msra.mxu0 0.0
  %4006 = vmatprep.subr.mxu0 0.0
  %4007 = vmatpush1.msra.mxu0 0.0
  %4008 = vmatprep.subr.mxu0 0.0
  %4009 = vmatpush1.msra.mxu0 0.0
  %4010 = vmatprep.subr.mxu0 0.0
  %4011 = vmatpush1.msra.mxu0 0.0
  %4012 = vmatprep.subr.mxu0 0.0
  %4013 = vmatpush1.msra.mxu0 0.0
  %4014 = vmatprep.subr.mxu0 0.0
  %4015 = vmatpush1.msra.mxu0 0.0
  %4016 = vmatprep.subr.mxu0 0.0
  %4017 = vmatpush1.msra.mxu0 0.0
  %4018 = vmatprep.subr.mxu0 0.0
  %4019 = vmatpush1.msra.mxu0 0.0
  %4020 = vmatprep.subr.mxu0 0.0
  %4021 = vmatpush1.msra.mxu0 0.0
  %4022 = vmatprep.subr.mxu0 0.0
  %4023 = vmatpush1.msra.mxu0 0.0
  %4024 = vmatprep.subr.mxu0 0.0
  %4025 = vmatpush1.msra.mxu0 0.0
  %4026 = vmatprep.subr.mxu0 0.0
  %4027 = vmatpush1.msra.mxu0 0.0
  %4028 = vmatprep.subr.mxu0 0.0
  %4029 = vmatpush1.msra.mxu0 0.0
  %4030 = vmatprep.subr.mxu0 0.0
  %4031 = vmatpush1.msra.mxu0 %v3991
  %4032 = vmatprep.subr.mxu0 0.0
  %4033 = vmatpush1.msra.mxu0 %v3989
  %4034 = vmatprep.subr.mxu0 0.0
  %4035 = vmatpush1.msra.mxu0 %v3987
  %4036 = vmatprep.subr.mxu0 0.0
  %4037 = vmatpush2.msra.mxu0 0.0
  %4038 = vmatprep.subr.mxu0 0.0
  %4039 = vmatpush2.msra.mxu0 0.0
  %4040 = vmatprep.subr.mxu0 0.0
  %4041 = vmatpush2.msra.mxu0 0.0
  %4042 = vmatprep.subr.mxu0 0.0
  %4043 = vmatpush2.msra.mxu0 0.0
  %4044 = vmatprep.subr.mxu0 0.0
  %4045 = vmatpush2.msra.mxu0 0.0
  %4046 = vmatprep.subr.mxu0 0.0
  %4047 = vmatpush2.msra.mxu0 0.0
  %4048 = vmatprep.subr.mxu0 0.0
  %4049 = vmatpush2.msra.mxu0 0.0
  %4050 = vmatprep.subr.mxu0 0.0
  %4051 = vmatpush2.msra.mxu0 0.0
  %4052 = vmatprep.subr.mxu0 0.0
  %4053 = vmatpush2.msra.mxu0 0.0
  %4054 = vmatprep.subr.mxu0 0.0
  %4055 = vmatpush2.msra.mxu0 0.0
  %4056 = vmatprep.subr.mxu0 0.0
  %4057 = vmatpush2.msra.mxu0 0.0
  %4058 = vmatprep.subr.mxu0 0.0
  %4059 = vmatpush2.msra.mxu0 0.0
  %4060 = vmatprep.subr.mxu0 0.0
  %4061 = vmatpush2.msra.mxu0 0.0
  %4062 = vmatprep.subr.mxu0 0.0
  %4063 = vmatpush2.msra.mxu0 0.0
  %4064 = vmatprep.subr.mxu0 0.0
  %4065 = vmatpush2.msra.mxu0 0.0
  %4066 = vmatprep.subr.mxu0 0.0
  %4067 = vmatpush2.msra.mxu0 0.0
  %4068 = vmatprep.mubr.f32.mxu0 0.0
  %4069 = vmatmul.mubr.f32.gmra.mxu0 %v3996
  %v4070 = vpop.f32.mrf.mxu0
  %v4071 = vadd.f32 0.0, %v4070
  %v4072 = vpop.f32.mrf.mxu0
  %4073 = vmatprep.mubr.f32.mxu0 0.0
  %4074 = vmatmul.mubr.f32.gmra.mxu0 %v3999
  %v4075 = vpop.f32.mrf.mxu0
  %v4076 = vadd.f32 0.0, %v4075
  %v4077 = vpop.f32.mrf.mxu0
  %4078 = vmatprep.mubr.f32.mxu0 0.0
  %4079 = vmatmul.mubr.f32.gmra.mxu0 %v4002
  %v4080 = vpop.f32.mrf.mxu0
  %v4081 = vadd.f32 0.0, %v4080
  %v4082 = vpop.f32.mrf.mxu0
  %4083 = vdwg.mxu0
  %4087 = vrot.lane.b32.xlu0 %v3601, 8
  %v4088 = vpop.permute.xlu0 %4087
  %4089 = vrot.lane.b32.xlu0 %v3606, 8
  %v4090 = vpop.permute.xlu0 %4089
  %4091 = vrot.lane.b32.xlu0 %v3611, 8
  %v4092 = vpop.permute.xlu0 %4091
  %4099 = vrot.lane.b32.xlu0 %v3836, 16
  %v4100 = vpop.permute.xlu0 %4099
  %4101 = vrot.lane.b32.xlu0 %v3841, 16
  %v4102 = vpop.permute.xlu0 %4101
  %4103 = vrot.lane.b32.xlu0 %v3846, 16
  %v4104 = vpop.permute.xlu0 %4103
  %4111 = vrot.lane.b32.xlu0 %v4071, 24
  %v4112 = vpop.permute.xlu0 %4111
  %4113 = vrot.lane.b32.xlu0 %v4076, 24
  %v4114 = vpop.permute.xlu0 %4113
  %4115 = vrot.lane.b32.xlu0 %v4081, 24
  %v4116 = vpop.permute.xlu0 %4115
  %v4120 = vsel %vm431, %v3366, %v4088
  %v4121 = vsel %vm431, %v3371, %v4090
  %v4122 = vsel %vm431, %v3376, %v4092
  %v4123 = vsel %vm1400, %v4120, %v4100
  %v4124 = vsel %vm1400, %v4121, %v4102
  %v4125 = vsel %vm1400, %v4122, %v4104
  %v4126 = vsel %vm524, %v4123, %v4112
  %v4127 = vsel %vm524, %v4124, %v4114
  %v4128 = vsel %vm524, %v4125, %v4116
  %4132 = vrot.lane.b32.xlu0 %v3134, 96
  %v4133 = vpop.permute.xlu0 %4132
  %4134 = vrot.lane.b32.xlu0 %v3139, 96
  %v4135 = vpop.permute.xlu0 %4134
  %4136 = vrot.lane.b32.xlu0 %v3144, 96
  %v4137 = vpop.permute.xlu0 %4136
  %v4138 = vsel %vm431, %v3134, 0
  %v4140 = vsel %vm431, %v3139, 0
  %v4142 = vsel %vm431, %v3144, 0
  %v4144 = vsel %vm431, %v4133, 0
  %v4146 = vsel %vm431, %v4135, 0
  %v4148 = vsel %vm431, %v4137, 0
  %4150 = vmatprep.subr.mxu0 0.0
  %4151 = vmatpush1.xpose.msra.mxu0 0.0
  %4152 = vmatprep.subr.mxu0 0.0
  %4153 = vmatpush1.xpose.msra.mxu0 0.0
  %4154 = vmatprep.subr.mxu0 0.0
  %4155 = vmatpush1.xpose.msra.mxu0 0.0
  %4156 = vmatprep.subr.mxu0 0.0
  %4157 = vmatpush1.xpose.msra.mxu0 0.0
  %4158 = vmatprep.subr.mxu0 0.0
  %4159 = vmatpush1.xpose.msra.mxu0 0.0
  %4160 = vmatprep.subr.mxu0 0.0
  %4161 = vmatpush1.xpose.msra.mxu0 0.0
  %4162 = vmatprep.subr.mxu0 0.0
  %4163 = vmatpush1.xpose.msra.mxu0 0.0
  %4164 = vmatprep.subr.mxu0 0.0
  %4165 = vmatpush1.xpose.msra.mxu0 0.0
  %4166 = vmatprep.subr.mxu0 0.0
  %4167 = vmatpush1.xpose.msra.mxu0 0.0
  %4168 = vmatprep.subr.mxu0 0.0
  %4169 = vmatpush1.xpose.msra.mxu0 0.0
  %4170 = vmatprep.subr.mxu0 0.0
  %4171 = vmatpush1.xpose.msra.mxu0 0.0
  %4172 = vmatprep.subr.mxu0 0.0
  %4173 = vmatpush1.xpose.msra.mxu0 0.0
  %4174 = vmatprep.subr.mxu0 0.0
  %4175 = vmatpush1.xpose.msra.mxu0 0.0
  %4176 = vmatprep.subr.mxu0 0.0
  %4177 = vmatpush1.xpose.msra.mxu0 %v4148
  %4178 = vmatprep.subr.mxu0 0.0
  %4179 = vmatpush1.xpose.msra.mxu0 %v4146
  %4180 = vmatprep.subr.mxu0 0.0
  %4181 = vmatpush1.xpose.msra.mxu0 %v4144
  %4182 = vmatprep.subr.mxu0 0.0
  %4183 = vmatpush2.xpose.msra.mxu0 0.0
  %4184 = vmatprep.subr.mxu0 0.0
  %4185 = vmatpush2.xpose.msra.mxu0 0.0
  %4186 = vmatprep.subr.mxu0 0.0
  %4187 = vmatpush2.xpose.msra.mxu0 0.0
  %4188 = vmatprep.subr.mxu0 0.0
  %4189 = vmatpush2.xpose.msra.mxu0 0.0
  %4190 = vmatprep.subr.mxu0 0.0
  %4191 = vmatpush2.xpose.msra.mxu0 0.0
  %4192 = vmatprep.subr.mxu0 0.0
  %4193 = vmatpush2.xpose.msra.mxu0 0.0
  %4194 = vmatprep.subr.mxu0 0.0
  %4195 = vmatpush2.xpose.msra.mxu0 0.0
  %4196 = vmatprep.subr.mxu0 0.0
  %4197 = vmatpush2.xpose.msra.mxu0 0.0
  %4198 = vmatprep.subr.mxu0 0.0
  %4199 = vmatpush2.xpose.msra.mxu0 0.0
  %4200 = vmatprep.subr.mxu0 0.0
  %4201 = vmatpush2.xpose.msra.mxu0 0.0
  %4202 = vmatprep.subr.mxu0 0.0
  %4203 = vmatpush2.xpose.msra.mxu0 0.0
  %4204 = vmatprep.subr.mxu0 0.0
  %4205 = vmatpush2.xpose.msra.mxu0 0.0
  %4206 = vmatprep.subr.mxu0 0.0
  %4207 = vmatpush2.xpose.msra.mxu0 0.0
  %4208 = vmatprep.subr.mxu0 0.0
  %4209 = vmatpush2.xpose.msra.mxu0 0.0
  %4210 = vmatprep.subr.mxu0 0.0
  %4211 = vmatpush2.xpose.msra.mxu0 0.0
  %4212 = vmatprep.subr.mxu0 0.0
  %4213 = vmatpush2.xpose.msra.mxu0 0.0
  %4214 = vmatprep.mubr.f32.mxu0 0.0
  %4215 = vmatmul.mubr.f32.gmra.mxu0 %v4138
  %v4216 = vpop.f32.mrf.mxu0
  %v4217 = vadd.f32 %v420, %v4216
  %v4218 = vpop.f32.mrf.mxu0
  %4219 = vmatprep.mubr.f32.mxu0 0.0
  %4220 = vmatmul.mubr.f32.gmra.mxu0 %v4140
  %v4221 = vpop.f32.mrf.mxu0
  %v4222 = vadd.f32 %v420, %v4221
  %v4223 = vpop.f32.mrf.mxu0
  %4224 = vmatprep.mubr.f32.mxu0 0.0
  %4225 = vmatmul.mubr.f32.gmra.mxu0 %v4142
  %v4226 = vpop.f32.mrf.mxu0
  %v4227 = vadd.f32 %v420, %v4226
  %v4228 = vpop.f32.mrf.mxu0
  %4229 = vdwg.mxu0
  %v4230 = vsel %vm524, %v4217, -inf
  %4231 = vmax.xlane.f32.xlu0 %v4230
  %v4232 = vpop.xlane.xlu0 %4231
  %v4233 = vsel %vm524, %v4222, -inf
  %4234 = vmax.xlane.f32.xlu0 %v4233
  %v4235 = vpop.xlane.xlu0 %4234
  %v4236 = vsel %vm524, %v4227, -inf
  %4237 = vmax.xlane.f32.xlu0 %v4236
  %v4238 = vpop.xlane.xlu0 %4237
  %v4239 = vsub.f32 %v4217, %v4232
  %v4240 = vsub.f32 %v4222, %v4235
  %v4241 = vsub.f32 %v4227, %v4238
  %v4242 = vmul.f32 %v4239, 1.442695
  %v4243 = vpow.pop %v4242
  %v4244 = vmul.f32 %v4240, 1.442695
  %v4245 = vpow.pop %v4244
  %v4246 = vmul.f32 %v4241, 1.442695
  %v4247 = vpow.pop %v4246
  %v4248 = vsel %vm524, %v4243, 0.0
  %4249 = vadd.xlane.f32.xlu0 %v4248
  %v4250 = vpop.xlane.xlu0 %4249
  %v4251 = vsel %vm524, %v4245, 0.0
  %4252 = vadd.xlane.f32.xlu0 %v4251
  %v4253 = vpop.xlane.xlu0 %4252
  %v4254 = vsel %vm524, %v4247, 0.0
  %4255 = vadd.xlane.f32.xlu0 %v4254
  %v4256 = vpop.xlane.xlu0 %4255
  %v4257 = vrcp.pop %v4250
  %v4258 = vrcp.pop %v4253
  %v4259 = vrcp.pop %v4256
  %v4260 = vmul.f32 %v4243, %v4257
  %v4261 = vmul.f32 %v4245, %v4258
  %v4262 = vmul.f32 %v4247, %v4259
  %4263 = vrot.lane.b32.xlu0 %v3134, 64
  %v4264 = vpop.permute.xlu0 %4263
  %4265 = vrot.lane.b32.xlu0 %v3139, 64
  %v4266 = vpop.permute.xlu0 %4265
  %4267 = vrot.lane.b32.xlu0 %v3144, 64
  %v4268 = vpop.permute.xlu0 %4267
  %v4273 = vsel %vm524, %v4260, 0
  %v4276 = vsel %vm524, %v4261, 0
  %v4279 = vsel %vm524, %v4262, 0
  %4281 = vmatprep.subr.mxu0 0.0
  %4282 = vmatpush1.msra.mxu0 0.0
  %4283 = vmatprep.subr.mxu0 0.0
  %4284 = vmatpush1.msra.mxu0 0.0
  %4285 = vmatprep.subr.mxu0 0.0
  %4286 = vmatpush1.msra.mxu0 0.0
  %4287 = vmatprep.subr.mxu0 0.0
  %4288 = vmatpush1.msra.mxu0 0.0
  %4289 = vmatprep.subr.mxu0 0.0
  %4290 = vmatpush1.msra.mxu0 0.0
  %4291 = vmatprep.subr.mxu0 0.0
  %4292 = vmatpush1.msra.mxu0 0.0
  %4293 = vmatprep.subr.mxu0 0.0
  %4294 = vmatpush1.msra.mxu0 0.0
  %4295 = vmatprep.subr.mxu0 0.0
  %4296 = vmatpush1.msra.mxu0 0.0
  %4297 = vmatprep.subr.mxu0 0.0
  %4298 = vmatpush1.msra.mxu0 0.0
  %4299 = vmatprep.subr.mxu0 0.0
  %4300 = vmatpush1.msra.mxu0 0.0
  %4301 = vmatprep.subr.mxu0 0.0
  %4302 = vmatpush1.msra.mxu0 0.0
  %4303 = vmatprep.subr.mxu0 0.0
  %4304 = vmatpush1.msra.mxu0 0.0
  %4305 = vmatprep.subr.mxu0 0.0
  %4306 = vmatpush1.msra.mxu0 0.0
  %4307 = vmatprep.subr.mxu0 0.0
  %4308 = vmatpush1.msra.mxu0 %v4268
  %4309 = vmatprep.subr.mxu0 0.0
  %4310 = vmatpush1.msra.mxu0 %v4266
  %4311 = vmatprep.subr.mxu0 0.0
  %4312 = vmatpush1.msra.mxu0 %v4264
  %4313 = vmatprep.subr.mxu0 0.0
  %4314 = vmatpush2.msra.mxu0 0.0
  %4315 = vmatprep.subr.mxu0 0.0
  %4316 = vmatpush2.msra.mxu0 0.0
  %4317 = vmatprep.subr.mxu0 0.0
  %4318 = vmatpush2.msra.mxu0 0.0
  %4319 = vmatprep.subr.mxu0 0.0
  %4320 = vmatpush2.msra.mxu0 0.0
  %4321 = vmatprep.subr.mxu0 0.0
  %4322 = vmatpush2.msra.mxu0 0.0
  %4323 = vmatprep.subr.mxu0 0.0
  %4324 = vmatpush2.msra.mxu0 0.0
  %4325 = vmatprep.subr.mxu0 0.0
  %4326 = vmatpush2.msra.mxu0 0.0
  %4327 = vmatprep.subr.mxu0 0.0
  %4328 = vmatpush2.msra.mxu0 0.0
  %4329 = vmatprep.subr.mxu0 0.0
  %4330 = vmatpush2.msra.mxu0 0.0
  %4331 = vmatprep.subr.mxu0 0.0
  %4332 = vmatpush2.msra.mxu0 0.0
  %4333 = vmatprep.subr.mxu0 0.0
  %4334 = vmatpush2.msra.mxu0 0.0
  %4335 = vmatprep.subr.mxu0 0.0
  %4336 = vmatpush2.msra.mxu0 0.0
  %4337 = vmatprep.subr.mxu0 0.0
  %4338 = vmatpush2.msra.mxu0 0.0
  %4339 = vmatprep.subr.mxu0 0.0
  %4340 = vmatpush2.msra.mxu0 0.0
  %4341 = vmatprep.subr.mxu0 0.0
  %4342 = vmatpush2.msra.mxu0 0.0
  %4343 = vmatprep.subr.mxu0 0.0
  %4344 = vmatpush2.msra.mxu0 0.0
  %4345 = vmatprep.mubr.f32.mxu0 0.0
  %4346 = vmatmul.mubr.f32.gmra.mxu0 %v4273
  %v4347 = vpop.f32.mrf.mxu0
  %v4348 = vadd.f32 0.0, %v4347
  %v4349 = vpop.f32.mrf.mxu0
  %4350 = vmatprep.mubr.f32.mxu0 0.0
  %4351 = vmatmul.mubr.f32.gmra.mxu0 %v4276
  %v4352 = vpop.f32.mrf.mxu0
  %v4353 = vadd.f32 0.0, %v4352
  %v4354 = vpop.f32.mrf.mxu0
  %4355 = vmatprep.mubr.f32.mxu0 0.0
  %4356 = vmatmul.mubr.f32.gmra.mxu0 %v4279
  %v4357 = vpop.f32.mrf.mxu0
  %v4358 = vadd.f32 0.0, %v4357
  %v4359 = vpop.f32.mrf.mxu0
  %4360 = vdwg.mxu0
  %4361 = vrot.lane.b32.xlu0 %v3134, 120
  %v4362 = vpop.permute.xlu0 %4361
  %4363 = vrot.lane.b32.xlu0 %v3139, 120
  %v4364 = vpop.permute.xlu0 %4363
  %4365 = vrot.lane.b32.xlu0 %v3144, 120
  %v4366 = vpop.permute.xlu0 %4365
  %4367 = vrot.lane.b32.xlu0 %v3134, 88
  %v4368 = vpop.permute.xlu0 %4367
  %4369 = vrot.lane.b32.xlu0 %v3139, 88
  %v4370 = vpop.permute.xlu0 %4369
  %4371 = vrot.lane.b32.xlu0 %v3144, 88
  %v4372 = vpop.permute.xlu0 %4371
  %v4373 = vsel %vm431, %v4362, 0
  %v4375 = vsel %vm431, %v4364, 0
  %v4377 = vsel %vm431, %v4366, 0
  %v4379 = vsel %vm431, %v4368, 0
  %v4381 = vsel %vm431, %v4370, 0
  %v4383 = vsel %vm431, %v4372, 0
  %4385 = vmatprep.subr.mxu0 0.0
  %4386 = vmatpush1.xpose.msra.mxu0 0.0
  %4387 = vmatprep.subr.mxu0 0.0
  %4388 = vmatpush1.xpose.msra.mxu0 0.0
  %4389 = vmatprep.subr.mxu0 0.0
  %4390 = vmatpush1.xpose.msra.mxu0 0.0
  %4391 = vmatprep.subr.mxu0 0.0
  %4392 = vmatpush1.xpose.msra.mxu0 0.0
  %4393 = vmatprep.subr.mxu0 0.0
  %4394 = vmatpush1.xpose.msra.mxu0 0.0
  %4395 = vmatprep.subr.mxu0 0.0
  %4396 = vmatpush1.xpose.msra.mxu0 0.0
  %4397 = vmatprep.subr.mxu0 0.0
  %4398 = vmatpush1.xpose.msra.mxu0 0.0
  %4399 = vmatprep.subr.mxu0 0.0
  %4400 = vmatpush1.xpose.msra.mxu0 0.0
  %4401 = vmatprep.subr.mxu0 0.0
  %4402 = vmatpush1.xpose.msra.mxu0 0.0
  %4403 = vmatprep.subr.mxu0 0.0
  %4404 = vmatpush1.xpose.msra.mxu0 0.0
  %4405 = vmatprep.subr.mxu0 0.0
  %4406 = vmatpush1.xpose.msra.mxu0 0.0
  %4407 = vmatprep.subr.mxu0 0.0
  %4408 = vmatpush1.xpose.msra.mxu0 0.0
  %4409 = vmatprep.subr.mxu0 0.0
  %4410 = vmatpush1.xpose.msra.mxu0 0.0
  %4411 = vmatprep.subr.mxu0 0.0
  %4412 = vmatpush1.xpose.msra.mxu0 %v4383
  %4413 = vmatprep.subr.mxu0 0.0
  %4414 = vmatpush1.xpose.msra.mxu0 %v4381
  %4415 = vmatprep.subr.mxu0 0.0
  %4416 = vmatpush1.xpose.msra.mxu0 %v4379
  %4417 = vmatprep.subr.mxu0 0.0
  %4418 = vmatpush2.xpose.msra.mxu0 0.0
  %4419 = vmatprep.subr.mxu0 0.0
  %4420 = vmatpush2.xpose.msra.mxu0 0.0
  %4421 = vmatprep.subr.mxu0 0.0
  %4422 = vmatpush2.xpose.msra.mxu0 0.0
  %4423 = vmatprep.subr.mxu0 0.0
  %4424 = vmatpush2.xpose.msra.mxu0 0.0
  %4425 = vmatprep.subr.mxu0 0.0
  %4426 = vmatpush2.xpose.msra.mxu0 0.0
  %4427 = vmatprep.subr.mxu0 0.0
  %4428 = vmatpush2.xpose.msra.mxu0 0.0
  %4429 = vmatprep.subr.mxu0 0.0
  %4430 = vmatpush2.xpose.msra.mxu0 0.0
  %4431 = vmatprep.subr.mxu0 0.0
  %4432 = vmatpush2.xpose.msra.mxu0 0.0
  %4433 = vmatprep.subr.mxu0 0.0
  %4434 = vmatpush2.xpose.msra.mxu0 0.0
  %4435 = vmatprep.subr.mxu0 0.0
  %4436 = vmatpush2.xpose.msra.mxu0 0.0
  %4437 = vmatprep.subr.mxu0 0.0
  %4438 = vmatpush2.xpose.msra.mxu0 0.0
  %4439 = vmatprep.subr.mxu0 0.0
  %4440 = vmatpush2.xpose.msra.mxu0 0.0
  %4441 = vmatprep.subr.mxu0 0.0
  %4442 = vmatpush2.xpose.msra.mxu0 0.0
  %4443 = vmatprep.subr.mxu0 0.0
  %4444 = vmatpush2.xpose.msra.mxu0 0.0
  %4445 = vmatprep.subr.mxu0 0.0
  %4446 = vmatpush2.xpose.msra.mxu0 0.0
  %4447 = vmatprep.subr.mxu0 0.0
  %4448 = vmatpush2.xpose.msra.mxu0 0.0
  %4449 = vmatprep.mubr.f32.mxu0 0.0
  %4450 = vmatmul.mubr.f32.gmra.mxu0 %v4373
  %v4451 = vpop.f32.mrf.mxu0
  %v4452 = vadd.f32 %v420, %v4451
  %v4453 = vpop.f32.mrf.mxu0
  %4454 = vmatprep.mubr.f32.mxu0 0.0
  %4455 = vmatmul.mubr.f32.gmra.mxu0 %v4375
  %v4456 = vpop.f32.mrf.mxu0
  %v4457 = vadd.f32 %v420, %v4456
  %v4458 = vpop.f32.mrf.mxu0
  %4459 = vmatprep.mubr.f32.mxu0 0.0
  %4460 = vmatmul.mubr.f32.gmra.mxu0 %v4377
  %v4461 = vpop.f32.mrf.mxu0
  %v4462 = vadd.f32 %v420, %v4461
  %v4463 = vpop.f32.mrf.mxu0
  %4464 = vdwg.mxu0
  %v4465 = vsel %vm524, %v4452, -inf
  %4466 = vmax.xlane.f32.xlu0 %v4465
  %v4467 = vpop.xlane.xlu0 %4466
  %v4468 = vsel %vm524, %v4457, -inf
  %4469 = vmax.xlane.f32.xlu0 %v4468
  %v4470 = vpop.xlane.xlu0 %4469
  %v4471 = vsel %vm524, %v4462, -inf
  %4472 = vmax.xlane.f32.xlu0 %v4471
  %v4473 = vpop.xlane.xlu0 %4472
  %v4474 = vsub.f32 %v4452, %v4467
  %v4475 = vsub.f32 %v4457, %v4470
  %v4476 = vsub.f32 %v4462, %v4473
  %v4477 = vmul.f32 %v4474, 1.442695
  %v4478 = vpow.pop %v4477
  %v4479 = vmul.f32 %v4475, 1.442695
  %v4480 = vpow.pop %v4479
  %v4481 = vmul.f32 %v4476, 1.442695
  %v4482 = vpow.pop %v4481
  %v4483 = vsel %vm524, %v4478, 0.0
  %4484 = vadd.xlane.f32.xlu0 %v4483
  %v4485 = vpop.xlane.xlu0 %4484
  %v4486 = vsel %vm524, %v4480, 0.0
  %4487 = vadd.xlane.f32.xlu0 %v4486
  %v4488 = vpop.xlane.xlu0 %4487
  %v4489 = vsel %vm524, %v4482, 0.0
  %4490 = vadd.xlane.f32.xlu0 %v4489
  %v4491 = vpop.xlane.xlu0 %4490
  %v4492 = vrcp.pop %v4485
  %v4493 = vrcp.pop %v4488
  %v4494 = vrcp.pop %v4491
  %v4495 = vmul.f32 %v4478, %v4492
  %v4496 = vmul.f32 %v4480, %v4493
  %v4497 = vmul.f32 %v4482, %v4494
  %4498 = vrot.lane.b32.xlu0 %v3134, 56
  %v4499 = vpop.permute.xlu0 %4498
  %4500 = vrot.lane.b32.xlu0 %v3139, 56
  %v4501 = vpop.permute.xlu0 %4500
  %4502 = vrot.lane.b32.xlu0 %v3144, 56
  %v4503 = vpop.permute.xlu0 %4502
  %v4508 = vsel %vm524, %v4495, 0
  %v4511 = vsel %vm524, %v4496, 0
  %v4514 = vsel %vm524, %v4497, 0
  %4516 = vmatprep.subr.mxu0 0.0
  %4517 = vmatpush1.msra.mxu0 0.0
  %4518 = vmatprep.subr.mxu0 0.0
  %4519 = vmatpush1.msra.mxu0 0.0
  %4520 = vmatprep.subr.mxu0 0.0
  %4521 = vmatpush1.msra.mxu0 0.0
  %4522 = vmatprep.subr.mxu0 0.0
  %4523 = vmatpush1.msra.mxu0 0.0
  %4524 = vmatprep.subr.mxu0 0.0
  %4525 = vmatpush1.msra.mxu0 0.0
  %4526 = vmatprep.subr.mxu0 0.0
  %4527 = vmatpush1.msra.mxu0 0.0
  %4528 = vmatprep.subr.mxu0 0.0
  %4529 = vmatpush1.msra.mxu0 0.0
  %4530 = vmatprep.subr.mxu0 0.0
  %4531 = vmatpush1.msra.mxu0 0.0
  %4532 = vmatprep.subr.mxu0 0.0
  %4533 = vmatpush1.msra.mxu0 0.0
  %4534 = vmatprep.subr.mxu0 0.0
  %4535 = vmatpush1.msra.mxu0 0.0
  %4536 = vmatprep.subr.mxu0 0.0
  %4537 = vmatpush1.msra.mxu0 0.0
  %4538 = vmatprep.subr.mxu0 0.0
  %4539 = vmatpush1.msra.mxu0 0.0
  %4540 = vmatprep.subr.mxu0 0.0
  %4541 = vmatpush1.msra.mxu0 0.0
  %4542 = vmatprep.subr.mxu0 0.0
  %4543 = vmatpush1.msra.mxu0 %v4503
  %4544 = vmatprep.subr.mxu0 0.0
  %4545 = vmatpush1.msra.mxu0 %v4501
  %4546 = vmatprep.subr.mxu0 0.0
  %4547 = vmatpush1.msra.mxu0 %v4499
  %4548 = vmatprep.subr.mxu0 0.0
  %4549 = vmatpush2.msra.mxu0 0.0
  %4550 = vmatprep.subr.mxu0 0.0
  %4551 = vmatpush2.msra.mxu0 0.0
  %4552 = vmatprep.subr.mxu0 0.0
  %4553 = vmatpush2.msra.mxu0 0.0
  %4554 = vmatprep.subr.mxu0 0.0
  %4555 = vmatpush2.msra.mxu0 0.0
  %4556 = vmatprep.subr.mxu0 0.0
  %4557 = vmatpush2.msra.mxu0 0.0
  %4558 = vmatprep.subr.mxu0 0.0
  %4559 = vmatpush2.msra.mxu0 0.0
  %4560 = vmatprep.subr.mxu0 0.0
  %4561 = vmatpush2.msra.mxu0 0.0
  %4562 = vmatprep.subr.mxu0 0.0
  %4563 = vmatpush2.msra.mxu0 0.0
  %4564 = vmatprep.subr.mxu0 0.0
  %4565 = vmatpush2.msra.mxu0 0.0
  %4566 = vmatprep.subr.mxu0 0.0
  %4567 = vmatpush2.msra.mxu0 0.0
  %4568 = vmatprep.subr.mxu0 0.0
  %4569 = vmatpush2.msra.mxu0 0.0
  %4570 = vmatprep.subr.mxu0 0.0
  %4571 = vmatpush2.msra.mxu0 0.0
  %4572 = vmatprep.subr.mxu0 0.0
  %4573 = vmatpush2.msra.mxu0 0.0
  %4574 = vmatprep.subr.mxu0 0.0
  %4575 = vmatpush2.msra.mxu0 0.0
  %4576 = vmatprep.subr.mxu0 0.0
  %4577 = vmatpush2.msra.mxu0 0.0
  %4578 = vmatprep.subr.mxu0 0.0
  %4579 = vmatpush2.msra.mxu0 0.0
  %4580 = vmatprep.mubr.f32.mxu0 0.0
  %4581 = vmatmul.mubr.f32.gmra.mxu0 %v4508
  %v4582 = vpop.f32.mrf.mxu0
  %v4583 = vadd.f32 0.0, %v4582
  %v4584 = vpop.f32.mrf.mxu0
  %4585 = vmatprep.mubr.f32.mxu0 0.0
  %4586 = vmatmul.mubr.f32.gmra.mxu0 %v4511
  %v4587 = vpop.f32.mrf.mxu0
  %v4588 = vadd.f32 0.0, %v4587
  %v4589 = vpop.f32.mrf.mxu0
  %4590 = vmatprep.mubr.f32.mxu0 0.0
  %4591 = vmatmul.mubr.f32.gmra.mxu0 %v4514
  %v4592 = vpop.f32.mrf.mxu0
  %v4593 = vadd.f32 0.0, %v4592
  %v4594 = vpop.f32.mrf.mxu0
  %4595 = vdwg.mxu0
  %4596 = vrot.lane.b32.xlu0 %v3134, 112
  %v4597 = vpop.permute.xlu0 %4596
  %4598 = vrot.lane.b32.xlu0 %v3139, 112
  %v4599 = vpop.permute.xlu0 %4598
  %4600 = vrot.lane.b32.xlu0 %v3144, 112
  %v4601 = vpop.permute.xlu0 %4600
  %4602 = vrot.lane.b32.xlu0 %v3134, 80
  %v4603 = vpop.permute.xlu0 %4602
  %4604 = vrot.lane.b32.xlu0 %v3139, 80
  %v4605 = vpop.permute.xlu0 %4604
  %4606 = vrot.lane.b32.xlu0 %v3144, 80
  %v4607 = vpop.permute.xlu0 %4606
  %v4608 = vsel %vm431, %v4597, 0
  %v4610 = vsel %vm431, %v4599, 0
  %v4612 = vsel %vm431, %v4601, 0
  %v4614 = vsel %vm431, %v4603, 0
  %v4616 = vsel %vm431, %v4605, 0
  %v4618 = vsel %vm431, %v4607, 0
  %4620 = vmatprep.subr.mxu0 0.0
  %4621 = vmatpush1.xpose.msra.mxu0 0.0
  %4622 = vmatprep.subr.mxu0 0.0
  %4623 = vmatpush1.xpose.msra.mxu0 0.0
  %4624 = vmatprep.subr.mxu0 0.0
  %4625 = vmatpush1.xpose.msra.mxu0 0.0
  %4626 = vmatprep.subr.mxu0 0.0
  %4627 = vmatpush1.xpose.msra.mxu0 0.0
  %4628 = vmatprep.subr.mxu0 0.0
  %4629 = vmatpush1.xpose.msra.mxu0 0.0
  %4630 = vmatprep.subr.mxu0 0.0
  %4631 = vmatpush1.xpose.msra.mxu0 0.0
  %4632 = vmatprep.subr.mxu0 0.0
  %4633 = vmatpush1.xpose.msra.mxu0 0.0
  %4634 = vmatprep.subr.mxu0 0.0
  %4635 = vmatpush1.xpose.msra.mxu0 0.0
  %4636 = vmatprep.subr.mxu0 0.0
  %4637 = vmatpush1.xpose.msra.mxu0 0.0
  %4638 = vmatprep.subr.mxu0 0.0
  %4639 = vmatpush1.xpose.msra.mxu0 0.0
  %4640 = vmatprep.subr.mxu0 0.0
  %4641 = vmatpush1.xpose.msra.mxu0 0.0
  %4642 = vmatprep.subr.mxu0 0.0
  %4643 = vmatpush1.xpose.msra.mxu0 0.0
  %4644 = vmatprep.subr.mxu0 0.0
  %4645 = vmatpush1.xpose.msra.mxu0 0.0
  %4646 = vmatprep.subr.mxu0 0.0
  %4647 = vmatpush1.xpose.msra.mxu0 %v4618
  %4648 = vmatprep.subr.mxu0 0.0
  %4649 = vmatpush1.xpose.msra.mxu0 %v4616
  %4650 = vmatprep.subr.mxu0 0.0
  %4651 = vmatpush1.xpose.msra.mxu0 %v4614
  %4652 = vmatprep.subr.mxu0 0.0
  %4653 = vmatpush2.xpose.msra.mxu0 0.0
  %4654 = vmatprep.subr.mxu0 0.0
  %4655 = vmatpush2.xpose.msra.mxu0 0.0
  %4656 = vmatprep.subr.mxu0 0.0
  %4657 = vmatpush2.xpose.msra.mxu0 0.0
  %4658 = vmatprep.subr.mxu0 0.0
  %4659 = vmatpush2.xpose.msra.mxu0 0.0
  %4660 = vmatprep.subr.mxu0 0.0
  %4661 = vmatpush2.xpose.msra.mxu0 0.0
  %4662 = vmatprep.subr.mxu0 0.0
  %4663 = vmatpush2.xpose.msra.mxu0 0.0
  %4664 = vmatprep.subr.mxu0 0.0
  %4665 = vmatpush2.xpose.msra.mxu0 0.0
  %4666 = vmatprep.subr.mxu0 0.0
  %4667 = vmatpush2.xpose.msra.mxu0 0.0
  %4668 = vmatprep.subr.mxu0 0.0
  %4669 = vmatpush2.xpose.msra.mxu0 0.0
  %4670 = vmatprep.subr.mxu0 0.0
  %4671 = vmatpush2.xpose.msra.mxu0 0.0
  %4672 = vmatprep.subr.mxu0 0.0
  %4673 = vmatpush2.xpose.msra.mxu0 0.0
  %4674 = vmatprep.subr.mxu0 0.0
  %4675 = vmatpush2.xpose.msra.mxu0 0.0
  %4676 = vmatprep.subr.mxu0 0.0
  %4677 = vmatpush2.xpose.msra.mxu0 0.0
  %4678 = vmatprep.subr.mxu0 0.0
  %4679 = vmatpush2.xpose.msra.mxu0 0.0
  %4680 = vmatprep.subr.mxu0 0.0
  %4681 = vmatpush2.xpose.msra.mxu0 0.0
  %4682 = vmatprep.subr.mxu0 0.0
  %4683 = vmatpush2.xpose.msra.mxu0 0.0
  %4684 = vmatprep.mubr.f32.mxu0 0.0
  %4685 = vmatmul.mubr.f32.gmra.mxu0 %v4608
  %v4686 = vpop.f32.mrf.mxu0
  %v4687 = vadd.f32 %v420, %v4686
  %v4688 = vpop.f32.mrf.mxu0
  %4689 = vmatprep.mubr.f32.mxu0 0.0
  %4690 = vmatmul.mubr.f32.gmra.mxu0 %v4610
  %v4691 = vpop.f32.mrf.mxu0
  %v4692 = vadd.f32 %v420, %v4691
  %v4693 = vpop.f32.mrf.mxu0
  %4694 = vmatprep.mubr.f32.mxu0 0.0
  %4695 = vmatmul.mubr.f32.gmra.mxu0 %v4612
  %v4696 = vpop.f32.mrf.mxu0
  %v4697 = vadd.f32 %v420, %v4696
  %v4698 = vpop.f32.mrf.mxu0
  %4699 = vdwg.mxu0
  %v4700 = vsel %vm524, %v4687, -inf
  %4701 = vmax.xlane.f32.xlu0 %v4700
  %v4702 = vpop.xlane.xlu0 %4701
  %v4703 = vsel %vm524, %v4692, -inf
  %4704 = vmax.xlane.f32.xlu0 %v4703
  %v4705 = vpop.xlane.xlu0 %4704
  %v4706 = vsel %vm524, %v4697, -inf
  %4707 = vmax.xlane.f32.xlu0 %v4706
  %v4708 = vpop.xlane.xlu0 %4707
  %v4709 = vsub.f32 %v4687, %v4702
  %v4710 = vsub.f32 %v4692, %v4705
  %v4711 = vsub.f32 %v4697, %v4708
  %v4712 = vmul.f32 %v4709, 1.442695
  %v4713 = vpow.pop %v4712
  %v4714 = vmul.f32 %v4710, 1.442695
  %v4715 = vpow.pop %v4714
  %v4716 = vmul.f32 %v4711, 1.442695
  %v4717 = vpow.pop %v4716
  %v4718 = vsel %vm524, %v4713, 0.0
  %4719 = vadd.xlane.f32.xlu0 %v4718
  %v4720 = vpop.xlane.xlu0 %4719
  %v4721 = vsel %vm524, %v4715, 0.0
  %4722 = vadd.xlane.f32.xlu0 %v4721
  %v4723 = vpop.xlane.xlu0 %4722
  %v4724 = vsel %vm524, %v4717, 0.0
  %4725 = vadd.xlane.f32.xlu0 %v4724
  %v4726 = vpop.xlane.xlu0 %4725
  %v4727 = vrcp.pop %v4720
  %v4728 = vrcp.pop %v4723
  %v4729 = vrcp.pop %v4726
  %v4730 = vmul.f32 %v4713, %v4727
  %v4731 = vmul.f32 %v4715, %v4728
  %v4732 = vmul.f32 %v4717, %v4729
  %4733 = vrot.lane.b32.xlu0 %v3134, 48
  %v4734 = vpop.permute.xlu0 %4733
  %4735 = vrot.lane.b32.xlu0 %v3139, 48
  %v4736 = vpop.permute.xlu0 %4735
  %4737 = vrot.lane.b32.xlu0 %v3144, 48
  %v4738 = vpop.permute.xlu0 %4737
  %v4743 = vsel %vm524, %v4730, 0
  %v4746 = vsel %vm524, %v4731, 0
  %v4749 = vsel %vm524, %v4732, 0
  %4751 = vmatprep.subr.mxu0 0.0
  %4752 = vmatpush1.msra.mxu0 0.0
  %4753 = vmatprep.subr.mxu0 0.0
  %4754 = vmatpush1.msra.mxu0 0.0
  %4755 = vmatprep.subr.mxu0 0.0
  %4756 = vmatpush1.msra.mxu0 0.0
  %4757 = vmatprep.subr.mxu0 0.0
  %4758 = vmatpush1.msra.mxu0 0.0
  %4759 = vmatprep.subr.mxu0 0.0
  %4760 = vmatpush1.msra.mxu0 0.0
  %4761 = vmatprep.subr.mxu0 0.0
  %4762 = vmatpush1.msra.mxu0 0.0
  %4763 = vmatprep.subr.mxu0 0.0
  %4764 = vmatpush1.msra.mxu0 0.0
  %4765 = vmatprep.subr.mxu0 0.0
  %4766 = vmatpush1.msra.mxu0 0.0
  %4767 = vmatprep.subr.mxu0 0.0
  %4768 = vmatpush1.msra.mxu0 0.0
  %4769 = vmatprep.subr.mxu0 0.0
  %4770 = vmatpush1.msra.mxu0 0.0
  %4771 = vmatprep.subr.mxu0 0.0
  %4772 = vmatpush1.msra.mxu0 0.0
  %4773 = vmatprep.subr.mxu0 0.0
  %4774 = vmatpush1.msra.mxu0 0.0
  %4775 = vmatprep.subr.mxu0 0.0
  %4776 = vmatpush1.msra.mxu0 0.0
  %4777 = vmatprep.subr.mxu0 0.0
  %4778 = vmatpush1.msra.mxu0 %v4738
  %4779 = vmatprep.subr.mxu0 0.0
  %4780 = vmatpush1.msra.mxu0 %v4736
  %4781 = vmatprep.subr.mxu0 0.0
  %4782 = vmatpush1.msra.mxu0 %v4734
  %4783 = vmatprep.subr.mxu0 0.0
  %4784 = vmatpush2.msra.mxu0 0.0
  %4785 = vmatprep.subr.mxu0 0.0
  %4786 = vmatpush2.msra.mxu0 0.0
  %4787 = vmatprep.subr.mxu0 0.0
  %4788 = vmatpush2.msra.mxu0 0.0
  %4789 = vmatprep.subr.mxu0 0.0
  %4790 = vmatpush2.msra.mxu0 0.0
  %4791 = vmatprep.subr.mxu0 0.0
  %4792 = vmatpush2.msra.mxu0 0.0
  %4793 = vmatprep.subr.mxu0 0.0
  %4794 = vmatpush2.msra.mxu0 0.0
  %4795 = vmatprep.subr.mxu0 0.0
  %4796 = vmatpush2.msra.mxu0 0.0
  %4797 = vmatprep.subr.mxu0 0.0
  %4798 = vmatpush2.msra.mxu0 0.0
  %4799 = vmatprep.subr.mxu0 0.0
  %4800 = vmatpush2.msra.mxu0 0.0
  %4801 = vmatprep.subr.mxu0 0.0
  %4802 = vmatpush2.msra.mxu0 0.0
  %4803 = vmatprep.subr.mxu0 0.0
  %4804 = vmatpush2.msra.mxu0 0.0
  %4805 = vmatprep.subr.mxu0 0.0
  %4806 = vmatpush2.msra.mxu0 0.0
  %4807 = vmatprep.subr.mxu0 0.0
  %4808 = vmatpush2.msra.mxu0 0.0
  %4809 = vmatprep.subr.mxu0 0.0
  %4810 = vmatpush2.msra.mxu0 0.0
  %4811 = vmatprep.subr.mxu0 0.0
  %4812 = vmatpush2.msra.mxu0 0.0
  %4813 = vmatprep.subr.mxu0 0.0
  %4814 = vmatpush2.msra.mxu0 0.0
  %4815 = vmatprep.mubr.f32.mxu0 0.0
  %4816 = vmatmul.mubr.f32.gmra.mxu0 %v4743
  %v4817 = vpop.f32.mrf.mxu0
  %v4818 = vadd.f32 0.0, %v4817
  %v4819 = vpop.f32.mrf.mxu0
  %4820 = vmatprep.mubr.f32.mxu0 0.0
  %4821 = vmatmul.mubr.f32.gmra.mxu0 %v4746
  %v4822 = vpop.f32.mrf.mxu0
  %v4823 = vadd.f32 0.0, %v4822
  %v4824 = vpop.f32.mrf.mxu0
  %4825 = vmatprep.mubr.f32.mxu0 0.0
  %4826 = vmatmul.mubr.f32.gmra.mxu0 %v4749
  %v4827 = vpop.f32.mrf.mxu0
  %v4828 = vadd.f32 0.0, %v4827
  %v4829 = vpop.f32.mrf.mxu0
  %4830 = vdwg.mxu0
  %4831 = vrot.lane.b32.xlu0 %v3134, 104
  %v4832 = vpop.permute.xlu0 %4831
  %4833 = vrot.lane.b32.xlu0 %v3139, 104
  %v4834 = vpop.permute.xlu0 %4833
  %4835 = vrot.lane.b32.xlu0 %v3144, 104
  %v4836 = vpop.permute.xlu0 %4835
  %4837 = vrot.lane.b32.xlu0 %v3134, 72
  %v4838 = vpop.permute.xlu0 %4837
  %4839 = vrot.lane.b32.xlu0 %v3139, 72
  %v4840 = vpop.permute.xlu0 %4839
  %4841 = vrot.lane.b32.xlu0 %v3144, 72
  %v4842 = vpop.permute.xlu0 %4841
  %v4843 = vsel %vm431, %v4832, 0
  %v4845 = vsel %vm431, %v4834, 0
  %v4847 = vsel %vm431, %v4836, 0
  %v4849 = vsel %vm431, %v4838, 0
  %v4851 = vsel %vm431, %v4840, 0
  %v4853 = vsel %vm431, %v4842, 0
  %4855 = vmatprep.subr.mxu0 0.0
  %4856 = vmatpush1.xpose.msra.mxu0 0.0
  %4857 = vmatprep.subr.mxu0 0.0
  %4858 = vmatpush1.xpose.msra.mxu0 0.0
  %4859 = vmatprep.subr.mxu0 0.0
  %4860 = vmatpush1.xpose.msra.mxu0 0.0
  %4861 = vmatprep.subr.mxu0 0.0
  %4862 = vmatpush1.xpose.msra.mxu0 0.0
  %4863 = vmatprep.subr.mxu0 0.0
  %4864 = vmatpush1.xpose.msra.mxu0 0.0
  %4865 = vmatprep.subr.mxu0 0.0
  %4866 = vmatpush1.xpose.msra.mxu0 0.0
  %4867 = vmatprep.subr.mxu0 0.0
  %4868 = vmatpush1.xpose.msra.mxu0 0.0
  %4869 = vmatprep.subr.mxu0 0.0
  %4870 = vmatpush1.xpose.msra.mxu0 0.0
  %4871 = vmatprep.subr.mxu0 0.0
  %4872 = vmatpush1.xpose.msra.mxu0 0.0
  %4873 = vmatprep.subr.mxu0 0.0
  %4874 = vmatpush1.xpose.msra.mxu0 0.0
  %4875 = vmatprep.subr.mxu0 0.0
  %4876 = vmatpush1.xpose.msra.mxu0 0.0
  %4877 = vmatprep.subr.mxu0 0.0
  %4878 = vmatpush1.xpose.msra.mxu0 0.0
  %4879 = vmatprep.subr.mxu0 0.0
  %4880 = vmatpush1.xpose.msra.mxu0 0.0
  %4881 = vmatprep.subr.mxu0 0.0
  %4882 = vmatpush1.xpose.msra.mxu0 %v4853
  %4883 = vmatprep.subr.mxu0 0.0
  %4884 = vmatpush1.xpose.msra.mxu0 %v4851
  %4885 = vmatprep.subr.mxu0 0.0
  %4886 = vmatpush1.xpose.msra.mxu0 %v4849
  %4887 = vmatprep.subr.mxu0 0.0
  %4888 = vmatpush2.xpose.msra.mxu0 0.0
  %4889 = vmatprep.subr.mxu0 0.0
  %4890 = vmatpush2.xpose.msra.mxu0 0.0
  %4891 = vmatprep.subr.mxu0 0.0
  %4892 = vmatpush2.xpose.msra.mxu0 0.0
  %4893 = vmatprep.subr.mxu0 0.0
  %4894 = vmatpush2.xpose.msra.mxu0 0.0
  %4895 = vmatprep.subr.mxu0 0.0
  %4896 = vmatpush2.xpose.msra.mxu0 0.0
  %4897 = vmatprep.subr.mxu0 0.0
  %4898 = vmatpush2.xpose.msra.mxu0 0.0
  %4899 = vmatprep.subr.mxu0 0.0
  %4900 = vmatpush2.xpose.msra.mxu0 0.0
  %4901 = vmatprep.subr.mxu0 0.0
  %4902 = vmatpush2.xpose.msra.mxu0 0.0
  %4903 = vmatprep.subr.mxu0 0.0
  %4904 = vmatpush2.xpose.msra.mxu0 0.0
  %4905 = vmatprep.subr.mxu0 0.0
  %4906 = vmatpush2.xpose.msra.mxu0 0.0
  %4907 = vmatprep.subr.mxu0 0.0
  %4908 = vmatpush2.xpose.msra.mxu0 0.0
  %4909 = vmatprep.subr.mxu0 0.0
  %4910 = vmatpush2.xpose.msra.mxu0 0.0
  %4911 = vmatprep.subr.mxu0 0.0
  %4912 = vmatpush2.xpose.msra.mxu0 0.0
  %4913 = vmatprep.subr.mxu0 0.0
  %4914 = vmatpush2.xpose.msra.mxu0 0.0
  %4915 = vmatprep.subr.mxu0 0.0
  %4916 = vmatpush2.xpose.msra.mxu0 0.0
  %4917 = vmatprep.subr.mxu0 0.0
  %4918 = vmatpush2.xpose.msra.mxu0 0.0
  %4919 = vmatprep.mubr.f32.mxu0 0.0
  %4920 = vmatmul.mubr.f32.gmra.mxu0 %v4843
  %v4921 = vpop.f32.mrf.mxu0
  %v4922 = vadd.f32 %v420, %v4921
  %v4923 = vpop.f32.mrf.mxu0
  %4924 = vmatprep.mubr.f32.mxu0 0.0
  %4925 = vmatmul.mubr.f32.gmra.mxu0 %v4845
  %v4926 = vpop.f32.mrf.mxu0
  %v4927 = vadd.f32 %v420, %v4926
  %v4928 = vpop.f32.mrf.mxu0
  %4929 = vmatprep.mubr.f32.mxu0 0.0
  %4930 = vmatmul.mubr.f32.gmra.mxu0 %v4847
  %v4931 = vpop.f32.mrf.mxu0
  %v4932 = vadd.f32 %v420, %v4931
  %v4933 = vpop.f32.mrf.mxu0
  %4934 = vdwg.mxu0
  %v4935 = vsel %vm524, %v4922, -inf
  %4936 = vmax.xlane.f32.xlu0 %v4935
  %v4937 = vpop.xlane.xlu0 %4936
  %v4938 = vsel %vm524, %v4927, -inf
  %4939 = vmax.xlane.f32.xlu0 %v4938
  %v4940 = vpop.xlane.xlu0 %4939
  %v4941 = vsel %vm524, %v4932, -inf
  %4942 = vmax.xlane.f32.xlu0 %v4941
  %v4943 = vpop.xlane.xlu0 %4942
  %v4944 = vsub.f32 %v4922, %v4937
  %v4945 = vsub.f32 %v4927, %v4940
  %v4946 = vsub.f32 %v4932, %v4943
  %v4947 = vmul.f32 %v4944, 1.442695
  %v4948 = vpow.pop %v4947
  %v4949 = vmul.f32 %v4945, 1.442695
  %v4950 = vpow.pop %v4949
  %v4951 = vmul.f32 %v4946, 1.442695
  %v4952 = vpow.pop %v4951
  %v4953 = vsel %vm524, %v4948, 0.0
  %4954 = vadd.xlane.f32.xlu0 %v4953
  %v4955 = vpop.xlane.xlu0 %4954
  %v4956 = vsel %vm524, %v4950, 0.0
  %4957 = vadd.xlane.f32.xlu0 %v4956
  %v4958 = vpop.xlane.xlu0 %4957
  %v4959 = vsel %vm524, %v4952, 0.0
  %4960 = vadd.xlane.f32.xlu0 %v4959
  %v4961 = vpop.xlane.xlu0 %4960
  %v4962 = vrcp.pop %v4955
  %v4963 = vrcp.pop %v4958
  %v4964 = vrcp.pop %v4961
  %v4965 = vmul.f32 %v4948, %v4962
  %v4966 = vmul.f32 %v4950, %v4963
  %v4967 = vmul.f32 %v4952, %v4964
  %4968 = vrot.lane.b32.xlu0 %v3134, 40
  %v4969 = vpop.permute.xlu0 %4968
  %4970 = vrot.lane.b32.xlu0 %v3139, 40
  %v4971 = vpop.permute.xlu0 %4970
  %4972 = vrot.lane.b32.xlu0 %v3144, 40
  %v4973 = vpop.permute.xlu0 %4972
  %v4978 = vsel %vm524, %v4965, 0
  %v4981 = vsel %vm524, %v4966, 0
  %v4984 = vsel %vm524, %v4967, 0
  %4986 = vmatprep.subr.mxu0 0.0
  %4987 = vmatpush1.msra.mxu0 0.0
  %4988 = vmatprep.subr.mxu0 0.0
  %4989 = vmatpush1.msra.mxu0 0.0
  %4990 = vmatprep.subr.mxu0 0.0
  %4991 = vmatpush1.msra.mxu0 0.0
  %4992 = vmatprep.subr.mxu0 0.0
  %4993 = vmatpush1.msra.mxu0 0.0
  %4994 = vmatprep.subr.mxu0 0.0
  %4995 = vmatpush1.msra.mxu0 0.0
  %4996 = vmatprep.subr.mxu0 0.0
  %4997 = vmatpush1.msra.mxu0 0.0
  %4998 = vmatprep.subr.mxu0 0.0
  %4999 = vmatpush1.msra.mxu0 0.0
  %5000 = vmatprep.subr.mxu0 0.0
  %5001 = vmatpush1.msra.mxu0 0.0
  %5002 = vmatprep.subr.mxu0 0.0
  %5003 = vmatpush1.msra.mxu0 0.0
  %5004 = vmatprep.subr.mxu0 0.0
  %5005 = vmatpush1.msra.mxu0 0.0
  %5006 = vmatprep.subr.mxu0 0.0
  %5007 = vmatpush1.msra.mxu0 0.0
  %5008 = vmatprep.subr.mxu0 0.0
  %5009 = vmatpush1.msra.mxu0 0.0
  %5010 = vmatprep.subr.mxu0 0.0
  %5011 = vmatpush1.msra.mxu0 0.0
  %5012 = vmatprep.subr.mxu0 0.0
  %5013 = vmatpush1.msra.mxu0 %v4973
  %5014 = vmatprep.subr.mxu0 0.0
  %5015 = vmatpush1.msra.mxu0 %v4971
  %5016 = vmatprep.subr.mxu0 0.0
  %5017 = vmatpush1.msra.mxu0 %v4969
  %5018 = vmatprep.subr.mxu0 0.0
  %5019 = vmatpush2.msra.mxu0 0.0
  %5020 = vmatprep.subr.mxu0 0.0
  %5021 = vmatpush2.msra.mxu0 0.0
  %5022 = vmatprep.subr.mxu0 0.0
  %5023 = vmatpush2.msra.mxu0 0.0
  %5024 = vmatprep.subr.mxu0 0.0
  %5025 = vmatpush2.msra.mxu0 0.0
  %5026 = vmatprep.subr.mxu0 0.0
  %5027 = vmatpush2.msra.mxu0 0.0
  %5028 = vmatprep.subr.mxu0 0.0
  %5029 = vmatpush2.msra.mxu0 0.0
  %5030 = vmatprep.subr.mxu0 0.0
  %5031 = vmatpush2.msra.mxu0 0.0
  %5032 = vmatprep.subr.mxu0 0.0
  %5033 = vmatpush2.msra.mxu0 0.0
  %5034 = vmatprep.subr.mxu0 0.0
  %5035 = vmatpush2.msra.mxu0 0.0
  %5036 = vmatprep.subr.mxu0 0.0
  %5037 = vmatpush2.msra.mxu0 0.0
  %5038 = vmatprep.subr.mxu0 0.0
  %5039 = vmatpush2.msra.mxu0 0.0
  %5040 = vmatprep.subr.mxu0 0.0
  %5041 = vmatpush2.msra.mxu0 0.0
  %5042 = vmatprep.subr.mxu0 0.0
  %5043 = vmatpush2.msra.mxu0 0.0
  %5044 = vmatprep.subr.mxu0 0.0
  %5045 = vmatpush2.msra.mxu0 0.0
  %5046 = vmatprep.subr.mxu0 0.0
  %5047 = vmatpush2.msra.mxu0 0.0
  %5048 = vmatprep.subr.mxu0 0.0
  %5049 = vmatpush2.msra.mxu0 0.0
  %5050 = vmatprep.mubr.f32.mxu0 0.0
  %5051 = vmatmul.mubr.f32.gmra.mxu0 %v4978
  %v5052 = vpop.f32.mrf.mxu0
  %v5053 = vadd.f32 0.0, %v5052
  %v5054 = vpop.f32.mrf.mxu0
  %5055 = vmatprep.mubr.f32.mxu0 0.0
  %5056 = vmatmul.mubr.f32.gmra.mxu0 %v4981
  %v5057 = vpop.f32.mrf.mxu0
  %v5058 = vadd.f32 0.0, %v5057
  %v5059 = vpop.f32.mrf.mxu0
  %5060 = vmatprep.mubr.f32.mxu0 0.0
  %5061 = vmatmul.mubr.f32.gmra.mxu0 %v4984
  %v5062 = vpop.f32.mrf.mxu0
  %v5063 = vadd.f32 0.0, %v5062
  %v5064 = vpop.f32.mrf.mxu0
  %5065 = vdwg.mxu0
  %5069 = vrot.lane.b32.xlu0 %v4583, 8
  %v5070 = vpop.permute.xlu0 %5069
  %5071 = vrot.lane.b32.xlu0 %v4588, 8
  %v5072 = vpop.permute.xlu0 %5071
  %5073 = vrot.lane.b32.xlu0 %v4593, 8
  %v5074 = vpop.permute.xlu0 %5073
  %5081 = vrot.lane.b32.xlu0 %v4818, 16
  %v5082 = vpop.permute.xlu0 %5081
  %5083 = vrot.lane.b32.xlu0 %v4823, 16
  %v5084 = vpop.permute.xlu0 %5083
  %5085 = vrot.lane.b32.xlu0 %v4828, 16
  %v5086 = vpop.permute.xlu0 %5085
  %5093 = vrot.lane.b32.xlu0 %v5053, 24
  %v5094 = vpop.permute.xlu0 %5093
  %5095 = vrot.lane.b32.xlu0 %v5058, 24
  %v5096 = vpop.permute.xlu0 %5095
  %5097 = vrot.lane.b32.xlu0 %v5063, 24
  %v5098 = vpop.permute.xlu0 %5097
  %v5102 = vsel %vm431, %v4348, %v5070
  %v5103 = vsel %vm431, %v4353, %v5072
  %v5104 = vsel %vm431, %v4358, %v5074
  %v5105 = vsel %vm1400, %v5102, %v5082
  %v5106 = vsel %vm1400, %v5103, %v5084
  %v5107 = vsel %vm1400, %v5104, %v5086
  %v5108 = vsel %vm524, %v5105, %v5094
  %v5109 = vsel %vm524, %v5106, %v5096
  %v5110 = vsel %vm524, %v5107, %v5098
  %s5111 = scalar_lea.vmem %s7, 32
  %v5112 = vld [vmem:[%s5111] sm:$0xff]
  %v5113 = vld [vmem:[%s5111 + $0x8] sm:$0xff]
  %v5114 = vld [vmem:[%s5111 + $0x10] sm:$0xff]
  %v5115 = vld [vmem:[%s5111 + $0x18] sm:$0xff]
  %s5116 = scalar_lea.vmem %s8, 1
  %v5117 = vld [vmem:[%s5116] sm:$0x1]
  %v5119 = vlaneseq
  %v5120 = vshrl.u32 %v5119, 7
  %v5121 = vsub.s32 0, %v5120
  %v5122 = vrot.slane %v5117, %v5121
  %v5125 = vsel %vm195, %v4126, 0
  %v5128 = vsel %vm195, %v4127, 0
  %v5131 = vsel %vm195, %v4128, 0
  %v5134 = vsel %vm195, %v5108, 0
  %v5137 = vsel %vm195, %v5109, 0
  %v5140 = vsel %vm195, %v5110, 0
  %5142 = vmatprep.subr.mxu0 0.0
  %5143 = vmatpush1.msra.mxu0 0.0
  %5144 = vmatprep.subr.mxu0 0.0
  %5145 = vmatpush1.msra.mxu0 0.0
  %5146 = vmatprep.subr.mxu0 0.0
  %5147 = vmatpush1.msra.mxu0 0.0
  %5148 = vmatprep.subr.mxu0 0.0
  %5149 = vmatpush1.msra.mxu0 0.0
  %5150 = vmatprep.subr.mxu0 0.0
  %5151 = vmatpush1.msra.mxu0 0.0
  %5152 = vmatprep.subr.mxu0 0.0
  %5153 = vmatpush1.msra.mxu0 0.0
  %5154 = vmatprep.subr.mxu0 0.0
  %5155 = vmatpush1.msra.mxu0 0.0
  %5156 = vmatprep.subr.mxu0 0.0
  %5157 = vmatpush1.msra.mxu0 0.0
  %5158 = vmatprep.subr.mxu0 0.0
  %5159 = vmatpush1.msra.mxu0 0.0
  %5160 = vmatprep.subr.mxu0 0.0
  %5161 = vmatpush1.msra.mxu0 0.0
  %5162 = vmatprep.subr.mxu0 0.0
  %5163 = vmatpush1.msra.mxu0 0.0
  %5164 = vmatprep.subr.mxu0 0.0
  %5165 = vmatpush1.msra.mxu0 0.0
  %5166 = vmatprep.subr.mxu0 0.0
  %5167 = vmatpush1.msra.mxu0 %v5115
  %5168 = vmatprep.subr.mxu0 0.0
  %5169 = vmatpush1.msra.mxu0 %v5114
  %5170 = vmatprep.subr.mxu0 0.0
  %5171 = vmatpush1.msra.mxu0 %v5113
  %5172 = vmatprep.subr.mxu0 0.0
  %5173 = vmatpush1.msra.mxu0 %v5112
  %5174 = vmatprep.subr.mxu0 0.0
  %5175 = vmatpush2.msra.mxu0 0.0
  %5176 = vmatprep.subr.mxu0 0.0
  %5177 = vmatpush2.msra.mxu0 0.0
  %5178 = vmatprep.subr.mxu0 0.0
  %5179 = vmatpush2.msra.mxu0 0.0
  %5180 = vmatprep.subr.mxu0 0.0
  %5181 = vmatpush2.msra.mxu0 0.0
  %5182 = vmatprep.subr.mxu0 0.0
  %5183 = vmatpush2.msra.mxu0 0.0
  %5184 = vmatprep.subr.mxu0 0.0
  %5185 = vmatpush2.msra.mxu0 0.0
  %5186 = vmatprep.subr.mxu0 0.0
  %5187 = vmatpush2.msra.mxu0 0.0
  %5188 = vmatprep.subr.mxu0 0.0
  %5189 = vmatpush2.msra.mxu0 0.0
  %5190 = vmatprep.subr.mxu0 0.0
  %5191 = vmatpush2.msra.mxu0 0.0
  %5192 = vmatprep.subr.mxu0 0.0
  %5193 = vmatpush2.msra.mxu0 0.0
  %5194 = vmatprep.subr.mxu0 0.0
  %5195 = vmatpush2.msra.mxu0 0.0
  %5196 = vmatprep.subr.mxu0 0.0
  %5197 = vmatpush2.msra.mxu0 0.0
  %5198 = vmatprep.subr.mxu0 0.0
  %5199 = vmatpush2.msra.mxu0 0.0
  %5200 = vmatprep.subr.mxu0 0.0
  %5201 = vmatpush2.msra.mxu0 0.0
  %5202 = vmatprep.subr.mxu0 0.0
  %5203 = vmatpush2.msra.mxu0 0.0
  %5204 = vmatprep.subr.mxu0 0.0
  %5205 = vmatpush2.msra.mxu0 0.0
  %5206 = vmatprep.mubr.f32.mxu0 0.0
  %5207 = vmatmul.mubr.f32.gmra.mxu0 %v5125
  %v5208 = vpop.f32.mrf.mxu0
  %v5209 = vadd.f32 %v5122, %v5208
  %v5210 = vpop.f32.mrf.mxu0
  %5211 = vmatprep.mubr.f32.mxu0 0.0
  %5212 = vmatmul.mubr.f32.gmra.mxu0 %v5128
  %v5213 = vpop.f32.mrf.mxu0
  %v5214 = vadd.f32 %v5122, %v5213
  %v5215 = vpop.f32.mrf.mxu0
  %5216 = vmatprep.mubr.f32.mxu0 0.0
  %5217 = vmatmul.mubr.f32.gmra.mxu0 %v5131
  %v5218 = vpop.f32.mrf.mxu0
  %v5219 = vadd.f32 %v5122, %v5218
  %v5220 = vpop.f32.mrf.mxu0
  %5221 = vmatprep.mubr.f32.mxu0 0.0
  %5222 = vmatmul.mubr.f32.gmra.mxu0 %v5134
  %v5223 = vpop.f32.mrf.mxu0
  %v5224 = vadd.f32 %v5122, %v5223
  %v5225 = vpop.f32.mrf.mxu0
  %5226 = vmatprep.mubr.f32.mxu0 0.0
  %5227 = vmatmul.mubr.f32.gmra.mxu0 %v5137
  %v5228 = vpop.f32.mrf.mxu0
  %v5229 = vadd.f32 %v5122, %v5228
  %v5230 = vpop.f32.mrf.mxu0
  %5231 = vmatprep.mubr.f32.mxu0 0.0
  %5232 = vmatmul.mubr.f32.gmra.mxu0 %v5140
  %v5233 = vpop.f32.mrf.mxu0
  %v5234 = vadd.f32 %v5122, %v5233
  %v5235 = vpop.f32.mrf.mxu0
  %5236 = vdwg.mxu0
  %v5237 = vadd.f32 %v2911, %v5209
  %v5238 = vadd.f32 %v2912, %v5214
  %v5239 = vadd.f32 %v2913, %v5219
  %v5240 = vadd.f32 %v2914, %v5224
  %v5241 = vadd.f32 %v2915, %v5229
  %v5242 = vadd.f32 %v2916, %v5234
  %s5243 = scalar_lea.vmem %s9, 1
  %v5244 = vld [vmem:[%s5243] sm:$0x1]
  %s5245 = scalar_lea.vmem %s10, 1
  %v5246 = vld [vmem:[%s5245] sm:$0x1]
  %v5247 = vsel %vm195, %v5237, 0.0
  %5248 = vadd.xlane.f32.xlu0 %v5247
  %v5249 = vpop.xlane.xlu0 %5248
  %v5250 = vsel %vm195, %v5238, 0.0
  %5251 = vadd.xlane.f32.xlu0 %v5250
  %v5252 = vpop.xlane.xlu0 %5251
  %v5253 = vsel %vm195, %v5239, 0.0
  %5254 = vadd.xlane.f32.xlu0 %v5253
  %v5255 = vpop.xlane.xlu0 %5254
  %v5256 = vsel %vm195, %v5240, 0.0
  %5257 = vadd.xlane.f32.xlu0 %v5256
  %v5258 = vpop.xlane.xlu0 %5257
  %v5259 = vsel %vm195, %v5241, 0.0
  %5260 = vadd.xlane.f32.xlu0 %v5259
  %v5261 = vpop.xlane.xlu0 %5260
  %v5262 = vsel %vm195, %v5242, 0.0
  %5263 = vadd.xlane.f32.xlu0 %v5262
  %v5264 = vpop.xlane.xlu0 %5263
  %v5265 = vmul.f32 %v5249, %v214
  %v5266 = vmul.f32 %v5252, %v214
  %v5267 = vmul.f32 %v5255, %v214
  %v5268 = vmul.f32 %v5258, %v214
  %v5269 = vmul.f32 %v5261, %v214
  %v5270 = vmul.f32 %v5264, %v214
  %v5271 = vsub.f32 %v5237, %v5265
  %v5272 = vsub.f32 %v5238, %v5266
  %v5273 = vsub.f32 %v5239, %v5267
  %v5274 = vsub.f32 %v5240, %v5268
  %v5275 = vsub.f32 %v5241, %v5269
  %v5276 = vsub.f32 %v5242, %v5270
  %v5277 = vmul.f32 %v5271, %v5271
  %v5278 = vmul.f32 %v5272, %v5272
  %v5279 = vmul.f32 %v5273, %v5273
  %v5280 = vmul.f32 %v5274, %v5274
  %v5281 = vmul.f32 %v5275, %v5275
  %v5282 = vmul.f32 %v5276, %v5276
  %v5283 = vsel %vm195, %v5277, 0.0
  %5284 = vadd.xlane.f32.xlu0 %v5283
  %v5285 = vpop.xlane.xlu0 %5284
  %v5286 = vsel %vm195, %v5278, 0.0
  %5287 = vadd.xlane.f32.xlu0 %v5286
  %v5288 = vpop.xlane.xlu0 %5287
  %v5289 = vsel %vm195, %v5279, 0.0
  %5290 = vadd.xlane.f32.xlu0 %v5289
  %v5291 = vpop.xlane.xlu0 %5290
  %v5292 = vsel %vm195, %v5280, 0.0
  %5293 = vadd.xlane.f32.xlu0 %v5292
  %v5294 = vpop.xlane.xlu0 %5293
  %v5295 = vsel %vm195, %v5281, 0.0
  %5296 = vadd.xlane.f32.xlu0 %v5295
  %v5297 = vpop.xlane.xlu0 %5296
  %v5298 = vsel %vm195, %v5282, 0.0
  %5299 = vadd.xlane.f32.xlu0 %v5298
  %v5300 = vpop.xlane.xlu0 %5299
  %v5301 = vmul.f32 %v5285, %v214
  %v5302 = vmul.f32 %v5288, %v214
  %v5303 = vmul.f32 %v5291, %v214
  %v5304 = vmul.f32 %v5294, %v214
  %v5305 = vmul.f32 %v5297, %v214
  %v5306 = vmul.f32 %v5300, %v214
  %v5307 = vadd.f32 %v5301, 1e-05
  %v5308 = vadd.f32 %v5302, 1e-05
  %v5309 = vadd.f32 %v5303, 1e-05
  %v5310 = vadd.f32 %v5304, 1e-05
  %v5311 = vadd.f32 %v5305, 1e-05
  %v5312 = vadd.f32 %v5306, 1e-05
  %v5313 = vrsqrt.pop %v5307
  %v5314 = vrsqrt.pop %v5308
  %v5315 = vrsqrt.pop %v5309
  %v5316 = vrsqrt.pop %v5310
  %v5317 = vrsqrt.pop %v5311
  %v5318 = vrsqrt.pop %v5312
  %v5319 = vmul.f32 %v5271, %v5313
  %v5320 = vmul.f32 %v5272, %v5314
  %v5321 = vmul.f32 %v5273, %v5315
  %v5322 = vmul.f32 %v5274, %v5316
  %v5323 = vmul.f32 %v5275, %v5317
  %v5324 = vmul.f32 %v5276, %v5318
  %v5326 = vlaneseq
  %v5327 = vshrl.u32 %v5326, 7
  %v5328 = vsub.s32 0, %v5327
  %v5329 = vrot.slane %v5244, %v5328
  %v5331 = vmul.f32 %v5319, %v5329
  %v5332 = vmul.f32 %v5320, %v5329
  %v5333 = vmul.f32 %v5321, %v5329
  %v5334 = vmul.f32 %v5322, %v5329
  %v5335 = vmul.f32 %v5323, %v5329
  %v5336 = vmul.f32 %v5324, %v5329
  %v5338 = vlaneseq
  %v5339 = vshrl.u32 %v5338, 7
  %v5340 = vsub.s32 0, %v5339
  %v5341 = vrot.slane %v5246, %v5340
  %v5343 = vadd.f32 %v5331, %v5341
  %v5344 = vadd.f32 %v5332, %v5341
  %v5345 = vadd.f32 %v5333, %v5341
  %v5346 = vadd.f32 %v5334, %v5341
  %v5347 = vadd.f32 %v5335, %v5341
  %v5348 = vadd.f32 %v5336, %v5341
  %s5349 = scalar_lea.vmem %s11, 32
  %v5350 = vld [vmem:[%s5349] sm:$0xff]
  %v5351 = vld [vmem:[%s5349 + $0x8] sm:$0xff]
  %v5352 = vld [vmem:[%s5349 + $0x10] sm:$0xff]
  %v5353 = vld [vmem:[%s5349 + $0x18] sm:$0xff]
  %s5354 = scalar_lea.vmem %s12, 1
  %v5355 = vld [vmem:[%s5354] sm:$0x1]
  %v5357 = vlaneseq
  %v5358 = vshrl.u32 %v5357, 7
  %v5359 = vsub.s32 0, %v5358
  %v5360 = vrot.slane %v5355, %v5359
  %v5363 = vsel %vm195, %v5343, 0
  %v5366 = vsel %vm195, %v5344, 0
  %v5369 = vsel %vm195, %v5345, 0
  %v5372 = vsel %vm195, %v5346, 0
  %v5375 = vsel %vm195, %v5347, 0
  %v5378 = vsel %vm195, %v5348, 0
  %5380 = vmatprep.subr.mxu0 0.0
  %5381 = vmatpush1.msra.mxu0 0.0
  %5382 = vmatprep.subr.mxu0 0.0
  %5383 = vmatpush1.msra.mxu0 0.0
  %5384 = vmatprep.subr.mxu0 0.0
  %5385 = vmatpush1.msra.mxu0 0.0
  %5386 = vmatprep.subr.mxu0 0.0
  %5387 = vmatpush1.msra.mxu0 0.0
  %5388 = vmatprep.subr.mxu0 0.0
  %5389 = vmatpush1.msra.mxu0 0.0
  %5390 = vmatprep.subr.mxu0 0.0
  %5391 = vmatpush1.msra.mxu0 0.0
  %5392 = vmatprep.subr.mxu0 0.0
  %5393 = vmatpush1.msra.mxu0 0.0
  %5394 = vmatprep.subr.mxu0 0.0
  %5395 = vmatpush1.msra.mxu0 0.0
  %5396 = vmatprep.subr.mxu0 0.0
  %5397 = vmatpush1.msra.mxu0 0.0
  %5398 = vmatprep.subr.mxu0 0.0
  %5399 = vmatpush1.msra.mxu0 0.0
  %5400 = vmatprep.subr.mxu0 0.0
  %5401 = vmatpush1.msra.mxu0 0.0
  %5402 = vmatprep.subr.mxu0 0.0
  %5403 = vmatpush1.msra.mxu0 0.0
  %5404 = vmatprep.subr.mxu0 0.0
  %5405 = vmatpush1.msra.mxu0 %v5353
  %5406 = vmatprep.subr.mxu0 0.0
  %5407 = vmatpush1.msra.mxu0 %v5352
  %5408 = vmatprep.subr.mxu0 0.0
  %5409 = vmatpush1.msra.mxu0 %v5351
  %5410 = vmatprep.subr.mxu0 0.0
  %5411 = vmatpush1.msra.mxu0 %v5350
  %5412 = vmatprep.subr.mxu0 0.0
  %5413 = vmatpush2.msra.mxu0 0.0
  %5414 = vmatprep.subr.mxu0 0.0
  %5415 = vmatpush2.msra.mxu0 0.0
  %5416 = vmatprep.subr.mxu0 0.0
  %5417 = vmatpush2.msra.mxu0 0.0
  %5418 = vmatprep.subr.mxu0 0.0
  %5419 = vmatpush2.msra.mxu0 0.0
  %5420 = vmatprep.subr.mxu0 0.0
  %5421 = vmatpush2.msra.mxu0 0.0
  %5422 = vmatprep.subr.mxu0 0.0
  %5423 = vmatpush2.msra.mxu0 0.0
  %5424 = vmatprep.subr.mxu0 0.0
  %5425 = vmatpush2.msra.mxu0 0.0
  %5426 = vmatprep.subr.mxu0 0.0
  %5427 = vmatpush2.msra.mxu0 0.0
  %5428 = vmatprep.subr.mxu0 0.0
  %5429 = vmatpush2.msra.mxu0 0.0
  %5430 = vmatprep.subr.mxu0 0.0
  %5431 = vmatpush2.msra.mxu0 0.0
  %5432 = vmatprep.subr.mxu0 0.0
  %5433 = vmatpush2.msra.mxu0 0.0
  %5434 = vmatprep.subr.mxu0 0.0
  %5435 = vmatpush2.msra.mxu0 0.0
  %5436 = vmatprep.subr.mxu0 0.0
  %5437 = vmatpush2.msra.mxu0 0.0
  %5438 = vmatprep.subr.mxu0 0.0
  %5439 = vmatpush2.msra.mxu0 0.0
  %5440 = vmatprep.subr.mxu0 0.0
  %5441 = vmatpush2.msra.mxu0 0.0
  %5442 = vmatprep.subr.mxu0 0.0
  %5443 = vmatpush2.msra.mxu0 0.0
  %5444 = vmatprep.mubr.f32.mxu0 0.0
  %5445 = vmatmul.mubr.f32.gmra.mxu0 %v5363
  %v5446 = vpop.f32.mrf.mxu0
  %v5447 = vadd.f32 %v5360, %v5446
  %v5448 = vpop.f32.mrf.mxu0
  %5449 = vmatprep.mubr.f32.mxu0 0.0
  %5450 = vmatmul.mubr.f32.gmra.mxu0 %v5366
  %v5451 = vpop.f32.mrf.mxu0
  %v5452 = vadd.f32 %v5360, %v5451
  %v5453 = vpop.f32.mrf.mxu0
  %5454 = vmatprep.mubr.f32.mxu0 0.0
  %5455 = vmatmul.mubr.f32.gmra.mxu0 %v5369
  %v5456 = vpop.f32.mrf.mxu0
  %v5457 = vadd.f32 %v5360, %v5456
  %v5458 = vpop.f32.mrf.mxu0
  %5459 = vmatprep.mubr.f32.mxu0 0.0
  %5460 = vmatmul.mubr.f32.gmra.mxu0 %v5372
  %v5461 = vpop.f32.mrf.mxu0
  %v5462 = vadd.f32 %v5360, %v5461
  %v5463 = vpop.f32.mrf.mxu0
  %5464 = vmatprep.mubr.f32.mxu0 0.0
  %5465 = vmatmul.mubr.f32.gmra.mxu0 %v5375
  %v5466 = vpop.f32.mrf.mxu0
  %v5467 = vadd.f32 %v5360, %v5466
  %v5468 = vpop.f32.mrf.mxu0
  %5469 = vmatprep.mubr.f32.mxu0 0.0
  %5470 = vmatmul.mubr.f32.gmra.mxu0 %v5378
  %v5471 = vpop.f32.mrf.mxu0
  %v5472 = vadd.f32 %v5360, %v5471
  %v5473 = vpop.f32.mrf.mxu0
  %5474 = vdwg.mxu0
  %v5475 = vmul.f32 %v5447, 0.5
  %v5476 = vmul.f32 %v5452, 0.5
  %v5477 = vmul.f32 %v5457, 0.5
  %v5478 = vmul.f32 %v5462, 0.5
  %v5479 = vmul.f32 %v5467, 0.5
  %v5480 = vmul.f32 %v5472, 0.5
  %v5481 = vmul.f32 %v5447, 0.70710677
  %v5482 = vmul.f32 %v5452, 0.70710677
  %v5483 = vmul.f32 %v5457, 0.70710677
  %v5484 = vmul.f32 %v5462, 0.70710677
  %v5485 = vmul.f32 %v5467, 0.70710677
  %v5486 = vmul.f32 %v5472, 0.70710677
  %v5487 = verf.f32.pop %v5481
  %v5488 = verf.f32.pop %v5482
  %v5489 = verf.f32.pop %v5483
  %v5490 = verf.f32.pop %v5484
  %v5491 = verf.f32.pop %v5485
  %v5492 = verf.f32.pop %v5486
  %v5493 = vadd.f32 %v5487, 1.0
  %v5494 = vadd.f32 %v5488, 1.0
  %v5495 = vadd.f32 %v5489, 1.0
  %v5496 = vadd.f32 %v5490, 1.0
  %v5497 = vadd.f32 %v5491, 1.0
  %v5498 = vadd.f32 %v5492, 1.0
  %v5499 = vmul.f32 %v5475, %v5493
  %v5500 = vmul.f32 %v5476, %v5494
  %v5501 = vmul.f32 %v5477, %v5495
  %v5502 = vmul.f32 %v5478, %v5496
  %v5503 = vmul.f32 %v5479, %v5497
  %v5504 = vmul.f32 %v5480, %v5498
  %s5505 = scalar_lea.vmem %s13, 64
  %v5506 = vld [vmem:[%s5505] sm:$0xff]
  %v5507 = vld [vmem:[%s5505 + $0x8] sm:$0xff]
  %v5508 = vld [vmem:[%s5505 + $0x10] sm:$0xff]
  %v5509 = vld [vmem:[%s5505 + $0x18] sm:$0xff]
  %v5510 = vld [vmem:[%s5505 + $0x20] sm:$0xff]
  %v5511 = vld [vmem:[%s5505 + $0x28] sm:$0xff]
  %v5512 = vld [vmem:[%s5505 + $0x30] sm:$0xff]
  %v5513 = vld [vmem:[%s5505 + $0x38] sm:$0xff]
  %v5515 = vsel %vm79, %v5499, 0
  %v5518 = vsel %vm79, %v5500, 0
  %v5521 = vsel %vm79, %v5501, 0
  %v5524 = vsel %vm79, %v5502, 0
  %v5527 = vsel %vm79, %v5503, 0
  %v5530 = vsel %vm79, %v5504, 0
  %5532 = vmatprep.subr.mxu0 0.0
  %5533 = vmatpush1.msra.mxu0 0.0
  %5534 = vmatprep.subr.mxu0 0.0
  %5535 = vmatpush1.msra.mxu0 0.0
  %5536 = vmatprep.subr.mxu0 0.0
  %5537 = vmatpush1.msra.mxu0 0.0
  %5538 = vmatprep.subr.mxu0 0.0
  %5539 = vmatpush1.msra.mxu0 0.0
  %5540 = vmatprep.subr.mxu0 0.0
  %5541 = vmatpush1.msra.mxu0 0.0
  %5542 = vmatprep.subr.mxu0 0.0
  %5543 = vmatpush1.msra.mxu0 0.0
  %5544 = vmatprep.subr.mxu0 0.0
  %5545 = vmatpush1.msra.mxu0 0.0
  %5546 = vmatprep.subr.mxu0 0.0
  %5547 = vmatpush1.msra.mxu0 0.0
  %5548 = vmatprep.subr.mxu0 0.0
  %5549 = vmatpush1.msra.mxu0 %v5513
  %5550 = vmatprep.subr.mxu0 0.0
  %5551 = vmatpush1.msra.mxu0 %v5512
  %5552 = vmatprep.subr.mxu0 0.0
  %5553 = vmatpush1.msra.mxu0 %v5511
  %5554 = vmatprep.subr.mxu0 0.0
  %5555 = vmatpush1.msra.mxu0 %v5510
  %5556 = vmatprep.subr.mxu0 0.0
  %5557 = vmatpush1.msra.mxu0 %v5509
  %5558 = vmatprep.subr.mxu0 0.0
  %5559 = vmatpush1.msra.mxu0 %v5508
  %5560 = vmatprep.subr.mxu0 0.0
  %5561 = vmatpush1.msra.mxu0 %v5507
  %5562 = vmatprep.subr.mxu0 0.0
  %5563 = vmatpush1.msra.mxu0 %v5506
  %5564 = vmatprep.subr.mxu0 0.0
  %5565 = vmatpush2.msra.mxu0 0.0
  %5566 = vmatprep.subr.mxu0 0.0
  %5567 = vmatpush2.msra.mxu0 0.0
  %5568 = vmatprep.subr.mxu0 0.0
  %5569 = vmatpush2.msra.mxu0 0.0
  %5570 = vmatprep.subr.mxu0 0.0
  %5571 = vmatpush2.msra.mxu0 0.0
  %5572 = vmatprep.subr.mxu0 0.0
  %5573 = vmatpush2.msra.mxu0 0.0
  %5574 = vmatprep.subr.mxu0 0.0
  %5575 = vmatpush2.msra.mxu0 0.0
  %5576 = vmatprep.subr.mxu0 0.0
  %5577 = vmatpush2.msra.mxu0 0.0
  %5578 = vmatprep.subr.mxu0 0.0
  %5579 = vmatpush2.msra.mxu0 0.0
  %5580 = vmatprep.subr.mxu0 0.0
  %5581 = vmatpush2.msra.mxu0 0.0
  %5582 = vmatprep.subr.mxu0 0.0
  %5583 = vmatpush2.msra.mxu0 0.0
  %5584 = vmatprep.subr.mxu0 0.0
  %5585 = vmatpush2.msra.mxu0 0.0
  %5586 = vmatprep.subr.mxu0 0.0
  %5587 = vmatpush2.msra.mxu0 0.0
  %5588 = vmatprep.subr.mxu0 0.0
  %5589 = vmatpush2.msra.mxu0 0.0
  %5590 = vmatprep.subr.mxu0 0.0
  %5591 = vmatpush2.msra.mxu0 0.0
  %5592 = vmatprep.subr.mxu0 0.0
  %5593 = vmatpush2.msra.mxu0 0.0
  %5594 = vmatprep.subr.mxu0 0.0
  %5595 = vmatpush2.msra.mxu0 0.0
  %5596 = vmatprep.mubr.f32.mxu0 0.0
  %5597 = vmatmul.mubr.f32.gmra.mxu0 %v5515
  %v5598 = vpop.f32.mrf.mxu0
  %v5599 = vadd.f32 0.0, %v5598
  %v5600 = vpop.f32.mrf.mxu0
  %5601 = vmatprep.mubr.f32.mxu0 0.0
  %5602 = vmatmul.mubr.f32.gmra.mxu0 %v5518
  %v5603 = vpop.f32.mrf.mxu0
  %v5604 = vadd.f32 0.0, %v5603
  %v5605 = vpop.f32.mrf.mxu0
  %5606 = vmatprep.mubr.f32.mxu0 0.0
  %5607 = vmatmul.mubr.f32.gmra.mxu0 %v5521
  %v5608 = vpop.f32.mrf.mxu0
  %v5609 = vadd.f32 0.0, %v5608
  %v5610 = vpop.f32.mrf.mxu0
  %5611 = vmatprep.mubr.f32.mxu0 0.0
  %5612 = vmatmul.mubr.f32.gmra.mxu0 %v5524
  %v5613 = vpop.f32.mrf.mxu0
  %v5614 = vadd.f32 0.0, %v5613
  %v5615 = vpop.f32.mrf.mxu0
  %5616 = vmatprep.mubr.f32.mxu0 0.0
  %5617 = vmatmul.mubr.f32.gmra.mxu0 %v5527
  %v5618 = vpop.f32.mrf.mxu0
  %v5619 = vadd.f32 0.0, %v5618
  %v5620 = vpop.f32.mrf.mxu0
  %5621 = vmatprep.mubr.f32.mxu0 0.0
  %5622 = vmatmul.mubr.f32.gmra.mxu0 %v5530
  %v5623 = vpop.f32.mrf.mxu0
  %v5624 = vadd.f32 0.0, %v5623
  %v5625 = vpop.f32.mrf.mxu0
  %5626 = vdwg.mxu0
  %v5627 = vadd.f32 %v5237, %v5599
  %v5628 = vadd.f32 %v5238, %v5604
  %v5629 = vadd.f32 %v5239, %v5609
  %v5630 = vadd.f32 %v5240, %v5614
  %v5631 = vadd.f32 %v5241, %v5619
  %v5632 = vadd.f32 %v5242, %v5624
  %s5633 = scalar_lea.vmem %s14, 1
  %v5634 = vld [vmem:[%s5633] sm:$0x1]
  %v5636 = vlaneseq
  %v5637 = vshrl.u32 %v5636, 7
  %v5638 = vsub.s32 0, %v5637
  %v5639 = vrot.slane %v5634, %v5638
  %v5641 = vadd.f32 %v5627, %v5639
  %v5642 = vadd.f32 %v5628, %v5639
  %v5643 = vadd.f32 %v5629, %v5639
  %v5644 = vadd.f32 %v5630, %v5639
  %v5645 = vadd.f32 %v5631, %v5639
  %v5646 = vadd.f32 %v5632, %v5639
  %s5647 = scalar_lea.vmem %s17, 48
  %5648 = vst.msk [vmem:[%s5647] sm:$0xff] %vm195, %v5641
  %5649 = vst.msk [vmem:[%s5647 + $0x8] sm:$0xff] %vm195, %v5642
  %5650 = vst.msk [vmem:[%s5647 + $0x10] sm:$0xff] %vm195, %v5643
  %5651 = vst.msk [vmem:[%s5647 + $0x18] sm:$0xff] %vm195, %v5644
  %5652 = vst.msk [vmem:[%s5647 + $0x20] sm:$0xff] %vm195, %v5645
  %5653 = vst.msk [vmem:[%s5647 + $0x28] sm:$0xff] %vm195, %v5646
  %v5654 = vld [vmem:[%s15] sm:$0x1]
  %v5655 = vld [vmem:[%s16] sm:$0x1]
  %v5656 = vsel %vm195, %v5641, 0.0
  %5657 = vadd.xlane.f32.xlu0 %v5656
  %v5658 = vpop.xlane.xlu0 %5657
  %v5659 = vsel %vm195, %v5642, 0.0
  %5660 = vadd.xlane.f32.xlu0 %v5659
  %v5661 = vpop.xlane.xlu0 %5660
  %v5662 = vsel %vm195, %v5643, 0.0
  %5663 = vadd.xlane.f32.xlu0 %v5662
  %v5664 = vpop.xlane.xlu0 %5663
  %v5665 = vsel %vm195, %v5644, 0.0
  %5666 = vadd.xlane.f32.xlu0 %v5665
  %v5667 = vpop.xlane.xlu0 %5666
  %v5668 = vsel %vm195, %v5645, 0.0
  %5669 = vadd.xlane.f32.xlu0 %v5668
  %v5670 = vpop.xlane.xlu0 %5669
  %v5671 = vsel %vm195, %v5646, 0.0
  %5672 = vadd.xlane.f32.xlu0 %v5671
  %v5673 = vpop.xlane.xlu0 %5672
  %v5674 = vmul.f32 %v5658, %v214
  %v5675 = vmul.f32 %v5661, %v214
  %v5676 = vmul.f32 %v5664, %v214
  %v5677 = vmul.f32 %v5667, %v214
  %v5678 = vmul.f32 %v5670, %v214
  %v5679 = vmul.f32 %v5673, %v214
  %v5680 = vsub.f32 %v5641, %v5674
  %v5681 = vsub.f32 %v5642, %v5675
  %v5682 = vsub.f32 %v5643, %v5676
  %v5683 = vsub.f32 %v5644, %v5677
  %v5684 = vsub.f32 %v5645, %v5678
  %v5685 = vsub.f32 %v5646, %v5679
  %v5686 = vmul.f32 %v5680, %v5680
  %v5687 = vmul.f32 %v5681, %v5681
  %v5688 = vmul.f32 %v5682, %v5682
  %v5689 = vmul.f32 %v5683, %v5683
  %v5690 = vmul.f32 %v5684, %v5684
  %v5691 = vmul.f32 %v5685, %v5685
  %v5692 = vsel %vm195, %v5686, 0.0
  %5693 = vadd.xlane.f32.xlu0 %v5692
  %v5694 = vpop.xlane.xlu0 %5693
  %v5695 = vsel %vm195, %v5687, 0.0
  %5696 = vadd.xlane.f32.xlu0 %v5695
  %v5697 = vpop.xlane.xlu0 %5696
  %v5698 = vsel %vm195, %v5688, 0.0
  %5699 = vadd.xlane.f32.xlu0 %v5698
  %v5700 = vpop.xlane.xlu0 %5699
  %v5701 = vsel %vm195, %v5689, 0.0
  %5702 = vadd.xlane.f32.xlu0 %v5701
  %v5703 = vpop.xlane.xlu0 %5702
  %v5704 = vsel %vm195, %v5690, 0.0
  %5705 = vadd.xlane.f32.xlu0 %v5704
  %v5706 = vpop.xlane.xlu0 %5705
  %v5707 = vsel %vm195, %v5691, 0.0
  %5708 = vadd.xlane.f32.xlu0 %v5707
  %v5709 = vpop.xlane.xlu0 %5708
  %v5710 = vmul.f32 %v5694, %v214
  %v5711 = vmul.f32 %v5697, %v214
  %v5712 = vmul.f32 %v5700, %v214
  %v5713 = vmul.f32 %v5703, %v214
  %v5714 = vmul.f32 %v5706, %v214
  %v5715 = vmul.f32 %v5709, %v214
  %v5716 = vadd.f32 %v5710, 1e-05
  %v5717 = vadd.f32 %v5711, 1e-05
  %v5718 = vadd.f32 %v5712, 1e-05
  %v5719 = vadd.f32 %v5713, 1e-05
  %v5720 = vadd.f32 %v5714, 1e-05
  %v5721 = vadd.f32 %v5715, 1e-05
  %v5722 = vrsqrt.pop %v5716
  %v5723 = vrsqrt.pop %v5717
  %v5724 = vrsqrt.pop %v5718
  %v5725 = vrsqrt.pop %v5719
  %v5726 = vrsqrt.pop %v5720
  %v5727 = vrsqrt.pop %v5721
  %v5728 = vmul.f32 %v5680, %v5722
  %v5729 = vmul.f32 %v5681, %v5723
  %v5730 = vmul.f32 %v5682, %v5724
  %v5731 = vmul.f32 %v5683, %v5725
  %v5732 = vmul.f32 %v5684, %v5726
  %v5733 = vmul.f32 %v5685, %v5727
  %v5735 = vlaneseq
  %v5736 = vshrl.u32 %v5735, 7
  %v5737 = vsub.s32 0, %v5736
  %v5738 = vrot.slane %v5654, %v5737
  %v5740 = vmul.f32 %v5728, %v5738
  %v5741 = vmul.f32 %v5729, %v5738
  %v5742 = vmul.f32 %v5730, %v5738
  %v5743 = vmul.f32 %v5731, %v5738
  %v5744 = vmul.f32 %v5732, %v5738
  %v5745 = vmul.f32 %v5733, %v5738
  %v5747 = vlaneseq
  %v5748 = vshrl.u32 %v5747, 7
  %v5749 = vsub.s32 0, %v5748
  %v5750 = vrot.slane %v5655, %v5749
  %v5752 = vadd.f32 %v5740, %v5750
  %v5753 = vadd.f32 %v5741, %v5750
  %v5754 = vadd.f32 %v5742, %v5750
  %v5755 = vadd.f32 %v5743, %v5750
  %v5756 = vadd.f32 %v5744, %v5750
  %v5757 = vadd.f32 %v5745, %v5750
  %5758 = vst.msk [vmem:[%s18] sm:$0xff] %vm195, %v5752
  %5759 = vst.msk [vmem:[%s18 + $0x8] sm:$0xff] %vm195, %v5753
  %5760 = vst.msk [vmem:[%s18 + $0x10] sm:$0xff] %vm195, %v5754
  %5761 = vst.msk [vmem:[%s18 + $0x18] sm:$0xff] %vm195, %v5755
  %5762 = vst.msk [vmem:[%s18 + $0x20] sm:$0xff] %vm195, %v5756
  %5763 = vst.msk [vmem:[%s18 + $0x28] sm:$0xff] %vm195, %v5757
  // Predicated region
  $region70: #{vit_modality_forward.1} parent=0 // pred_check
    _
  $region71: #{vit_modality_forward.1} parent=0 // pred_check_branch
    %5765 = sbr.rel (0) target = $region73
  $region72: #{vit_modality_forward.1} parent=0 // pred_region
    _
  $region73: #{vit_modality_forward.1} parent=0 // pred_fallthru
    _
  // Predicated region
  $region74: #{vit_modality_forward.1} parent=0 // pred_check
    _
  $region75: #{vit_modality_forward.1} parent=0 // pred_check_branch
    %5767 = sbr.rel (0) target = $region77
  $region76: #{vit_modality_forward.1} parent=0 // pred_region
    _
  $region77: #{vit_modality_forward.1} parent=0 // pred_fallthru
    _
  // Predicated region
  $region78: #{vit_modality_forward.1} parent=0 // pred_check
    _
  $region79: #{vit_modality_forward.1} parent=0 // pred_check_branch
    %5769 = sbr.rel (0) target = $region81
  $region80: #{vit_modality_forward.1} parent=0 // pred_region
    _
  $region81: #{vit_modality_forward.1} parent=0 // pred_fallthru
    _
  // Predicated region
  $region82: #{vit_modality_forward.1} parent=0 // pred_check
    _
  $region83: #{vit_modality_forward.1} parent=0 // pred_check_branch
    %5771 = sbr.rel (0) target = $region85
  $region84: #{vit_modality_forward.1} parent=0 // pred_region
    _
  $region85: #{vit_modality_forward.1} parent=0 // pred_fallthru
    _

</llo_original>
